<compile_context>
chip_gen: v5e
topology: v5e:2x2
jax: 0.10.0
libtpu: 0.0.40
codegen_flags: <defaults>
</compile_context>

<pallas_src>
import functools
import math

import jax
import jax.numpy as jnp
from jax.experimental import pallas as pl
from jax.experimental.pallas import tpu as pltpu

_LANE = 128


def _round_up(n, m):
    return ((n + m - 1) // m) * m


def _pad2(a, rows, cols):
    return jnp.pad(a, ((0, rows - a.shape[0]), (0, cols - a.shape[1])))


def _layer_norm(x, gamma, beta, eps=1e-5):
    mu = jnp.mean(x, axis=-1, keepdims=True)
    xc = x - mu
    var = jnp.mean(xc * xc, axis=-1, keepdims=True)
    return xc * jax.lax.rsqrt(var + eps) * gamma + beta


def _layer_norm_padded(x, gamma, beta, true_dim, eps=1e-5):
    # x / gamma / beta are lane-padded with zeros beyond `true_dim`; statistics
    # use the true feature count, padded output lanes stay zero (gamma=beta=0 there).
    inv_n = 1.0 / true_dim
    mu = jnp.sum(x, axis=-1, keepdims=True) * inv_n
    var = jnp.sum(x * x, axis=-1, keepdims=True) * inv_n - mu * mu
    return (x - mu) * jax.lax.rsqrt(var + eps) * gamma + beta


def _encoder_kernel(x_ref,
                    w_in_ref, b_in_ref,
                    w_qkv_ref, b_qkv_ref,
                    w_o_ref, b_o_ref,
                    g1_ref, be1_ref,
                    w1_ref, b1_ref,
                    w2_ref, b2_ref,
                    g2_ref, be2_ref,
                    w_out_ref, b_out_ref,
                    o_ref, *, n_heads, bn_tile, seq_len, true_hid, approx_recip):
    mm_dt = w_in_ref.dtype                    # matmul operand dtype (bf16 or f32)
    m_rows = bn_tile * seq_len
    hpad = w_in_ref.shape[1]
    hd = true_hid // n_heads
    scale = 1.0 / math.sqrt(hd)

    # in_fc : (M, Fpad) @ (Fpad, Hpad) with f32 accumulation.
    h = jnp.dot(x_ref[...], w_in_ref[...],
                preferred_element_type=jnp.float32) + b_in_ref[...]

    # Fused QKV projection; q/k/v each occupy a lane-aligned 128-wide slab.
    qkv = jnp.dot(h.astype(mm_dt), w_qkv_ref[...],
                  preferred_element_type=jnp.float32) + b_qkv_ref[...]
    q = (qkv[:, 0 * hpad:1 * hpad] * scale).reshape(bn_tile, seq_len, hpad)
    k = qkv[:, 1 * hpad:2 * hpad].reshape(bn_tile, seq_len, hpad)
    v = qkv[:, 2 * hpad:3 * hpad].reshape(bn_tile, seq_len, hpad)

    # Multi-head attention; concat-over-heads folded into per-head W_o row blocks:
    # attn = b_o + sum_h head_h @ W_o[h*hd:(h+1)*hd, :].
    attn = jnp.zeros((m_rows, hpad), jnp.float32) + b_o_ref[...]
    for hi in range(n_heads):
        lo = hi * hd
        qh = q[:, :, lo:lo + hd].astype(mm_dt)
        kh = k[:, :, lo:lo + hd].astype(mm_dt)
        vh = v[:, :, lo:lo + hd].astype(mm_dt)
        s = jnp.einsum('btd,bsd->bts', qh, kh,
                       preferred_element_type=jnp.float32)
        s = s - jnp.max(s, axis=-1, keepdims=True)
        p = jnp.exp(s)
        denom = jnp.sum(p, axis=-1, keepdims=True)
        if approx_recip:
            p = p * pl.reciprocal(denom, approx=True)   # EUP slot; VALU stays free
        else:
            p = p / denom                               # exact divide for f32 check
        oh = jnp.einsum('bts,bsd->btd', p.astype(mm_dt), vh,
                        preferred_element_type=jnp.float32)
        attn = attn + jnp.dot(oh.reshape(m_rows, hd).astype(mm_dt),
                              w_o_ref[pl.ds(lo, hd), :].astype(mm_dt),
                              preferred_element_type=jnp.float32)

    h1 = _layer_norm_padded(h + attn, g1_ref[...], be1_ref[...], true_hid)

    # Feed-forward: linear2(relu(linear1(h1)))
    ff = jnp.dot(h1.astype(mm_dt), w1_ref[...],
                 preferred_element_type=jnp.float32) + b1_ref[...]
    ff = jnp.maximum(ff, 0.0)
    ff = jnp.dot(ff.astype(mm_dt), w2_ref[...],
                 preferred_element_type=jnp.float32) + b2_ref[...]
    h2 = _layer_norm_padded(h1 + ff, g2_ref[...], be2_ref[...], true_hid)

    # out_fc (lane-dense padded output; sliced to out_feat in the wrapper)
    out = jnp.dot(h2.astype(mm_dt), w_out_ref[...],
                  preferred_element_type=jnp.float32) + b_out_ref[...]
    o_ref[...] = out.astype(o_ref.dtype)


def _pick_bn_tile(bn, seq_len, target_rows=512):
    divisors = [d for d in range(1, bn + 1) if bn % d == 0]
    # prefer grid >= 2 so v7x can shard the 'parallel' axis over both TensorCores
    cands = [d for d in divisors if bn // d >= 2 and d * seq_len <= target_rows]
    if cands:
        return max(cands)
    cands = [d for d in divisors if d * seq_len <= target_rows]
    return max(cands) if cands else 1


def traffic_transformer_encoder(x, params, *, n_heads, bn_tile=None,
                                mm_dtype=jnp.bfloat16):
    B, T, N, f_in = x.shape
    hid = params['w_in'].shape[1]
    dff = params['w1'].shape[1]
    out_feat = params['w_out'].shape[1]
    assert hid % n_heads == 0
    BN = B * N

    if bn_tile is None:
        bn_tile = _pick_bn_tile(BN, T)
    assert BN % bn_tile == 0, (BN, bn_tile)
    m_tile = bn_tile * T
    grid = (BN // bn_tile,)

    # Lane-dense zero padding (numerics unchanged).
    FP = _round_up(f_in, _LANE)
    HP = _round_up(hid, _LANE)
    DP = _round_up(dff, _LANE)
    OP = _round_up(out_feat, _LANE)

    f32 = jnp.float32
    wq, wk, wv = (params['w_qkv'][:, i * hid:(i + 1) * hid] for i in range(3))
    bq, bk, bv = (params['b_qkv'][:, i * hid:(i + 1) * hid] for i in range(3))

    weights = [
        _pad2(params['w_in'], FP, HP).astype(mm_dtype),
        _pad2(params['b_in'], 1, HP).astype(f32),
        jnp.concatenate([_pad2(wq, HP, HP), _pad2(wk, HP, HP),
                         _pad2(wv, HP, HP)], axis=1).astype(mm_dtype),
        jnp.concatenate([_pad2(bq, 1, HP), _pad2(bk, 1, HP),
                         _pad2(bv, 1, HP)], axis=1).astype(f32),
        _pad2(params['w_o'], HP, HP).astype(f32),   # sublane-sliced per head in-kernel
        _pad2(params['b_o'], 1, HP).astype(f32),
        _pad2(params['g1'], 1, HP).astype(f32),
        _pad2(params['be1'], 1, HP).astype(f32),
        _pad2(params['w1'], HP, DP).astype(mm_dtype),
        _pad2(params['b1'], 1, DP).astype(f32),
        _pad2(params['w2'], DP, HP).astype(mm_dtype),
        _pad2(params['b2'], 1, HP).astype(f32),
        _pad2(params['g2'], 1, HP).astype(f32),
        _pad2(params['be2'], 1, HP).astype(f32),
        _pad2(params['w_out'], HP, OP).astype(mm_dtype),
        _pad2(params['b_out'], 1, OP).astype(f32),
    ]

    # Glue: (B,T,N,F) -> (B*N*T, F_pad), matching .permute(1,0,2,3).view(T,B*N,-1);
    # row block i holds bn_tile complete sequences of length T.
    xs = jnp.transpose(x, (0, 2, 1, 3)).reshape(BN * T, f_in)
    xs = jnp.pad(xs, ((0, 0), (0, FP - f_in))).astype(mm_dtype)

    in_specs = [pl.BlockSpec((m_tile, FP), lambda i: (i, 0))]
    in_specs += [pl.BlockSpec(w.shape, lambda i: (0, 0)) for w in weights]
    out_spec = pl.BlockSpec((m_tile, OP), lambda i: (i, 0))

    # Advisory cost estimate for the XLA scheduler.
    m_total = BN * T
    hd = hid // n_heads
    flops = 2 * m_total * (FP * HP + HP * 3 * HP + HP * HP + HP * DP + DP * HP + HP * OP)
    flops += 4 * BN * n_heads * T * T * hd
    transcendentals = BN * n_heads * T * T + 2 * m_total
    bytes_accessed = int(xs.size * xs.dtype.itemsize) + int(m_total * OP * 4)
    bytes_accessed += sum(int(w.size) * int(w.dtype.itemsize) for w in weights)
    cost = pl.CostEstimate(flops=int(flops), transcendentals=int(transcendentals),
                           bytes_accessed=int(bytes_accessed))

    # VMEM budget: double-buffered x/out blocks + (double-buffered) weights + live
    # f32 activations; clamped to 64 MiB so v7x (64 MiB physical) stays safe.
    blk_bytes = m_tile * FP * xs.dtype.itemsize + m_tile * OP * 4
    w_bytes = sum(int(w.size) * int(w.dtype.itemsize) for w in weights)
    act_bytes = m_tile * (3 * HP + DP + 6 * HP) * 4
    vmem_limit = int(min(max(2 * (blk_bytes + w_bytes) + 2 * act_bytes, 32 << 20),
                         64 << 20))

    kernel = functools.partial(
        _encoder_kernel, n_heads=n_heads, bn_tile=bn_tile, seq_len=T,
        true_hid=hid, approx_recip=(mm_dtype == jnp.bfloat16))

    out = pl.pallas_call(
        kernel,
        out_shape=jax.ShapeDtypeStruct((BN * T, OP), x.dtype),
        grid_spec=pltpu.PrefetchScalarGridSpec(
            num_scalar_prefetch=0,
            grid=grid,
            in_specs=in_specs,
            out_specs=out_spec),
        compiler_params=pltpu.CompilerParams(
            dimension_semantics=("parallel",),
            vmem_limit_bytes=vmem_limit),
        cost_estimate=cost,
    )(xs, *weights)

    out = out[:, :out_feat].reshape(B, N, T, out_feat)
    return jnp.transpose(out, (0, 2, 1, 3))


def init_params(key, in_feat, out_feat, hid_feat):
    ks = jax.random.split(key, 12)
    s = 0.1

    def rn(k, shape):
        return (s * jax.random.normal(k, shape)).astype(jnp.float32)

    return dict(
        w_in=rn(ks[0], (in_feat, hid_feat)),
        b_in=rn(ks[1], (1, hid_feat)),
        w_qkv=rn(ks[2], (hid_feat, 3 * hid_feat)),
        b_qkv=rn(ks[3], (1, 3 * hid_feat)),
        w_o=rn(ks[4], (hid_feat, hid_feat)),
        b_o=rn(ks[5], (1, hid_feat)),
        g1=jnp.ones((1, hid_feat), jnp.float32),
        be1=jnp.zeros((1, hid_feat), jnp.float32),
        w1=rn(ks[6], (hid_feat, 4 * hid_feat)),
        b1=rn(ks[7], (1, 4 * hid_feat)),
        w2=rn(ks[8], (4 * hid_feat, hid_feat)),
        b2=rn(ks[9], (1, hid_feat)),
        g2=jnp.ones((1, hid_feat), jnp.float32),
        be2=jnp.zeros((1, hid_feat), jnp.float32),
        w_out=rn(ks[10], (hid_feat, out_feat)),
        b_out=rn(ks[11], (1, out_feat)),
    )


def reference(x, params, *, n_heads):
    # pure-JAX f32 mirror of the PyTorch forward, for validation
    B, T, N, f_in = x.shape
    hid = params['w_in'].shape[1]
    hd = hid // n_heads
    h = x @ params['w_in'] + params['b_in']                          # (B,T,N,hid)
    h = jnp.transpose(h, (1, 0, 2, 3)).reshape(T, B * N, hid)        # (T, BN, hid)

    qkv = h @ params['w_qkv'] + params['b_qkv']
    q, k, v = jnp.split(qkv, 3, axis=-1)

    def split_heads(a):                                              # -> (BN,H,T,hd)
        return a.reshape(T, B * N, n_heads, hd).transpose(1, 2, 0, 3)

    qh, kh, vh = map(split_heads, (q, k, v))
    s = jnp.einsum('bhtd,bhsd->bhts', qh, kh) / math.sqrt(hd)
    p = jax.nn.softmax(s, axis=-1)
    o = jnp.einsum('bhts,bhsd->bhtd', p, vh)
    o = o.transpose(2, 0, 1, 3).reshape(T, B * N, hid)
    o = o @ params['w_o'] + params['b_o']

    h1 = _layer_norm(h + o, params['g1'], params['be1'])
    ff = jax.nn.relu(h1 @ params['w1'] + params['b1']) @ params['w2'] + params['b2']
    h2 = _layer_norm(h1 + ff, params['g2'], params['be2'])

    h2 = h2.reshape(T, B, N, hid).transpose(1, 0, 2, 3)
    return h2 @ params['w_out'] + params['b_out']


if __name__ == "__main__":
    B, T, N, F_IN = 2, 8, 16, 4
    HID, N_HEADS, OUT_FEAT = 32, 4, 8

    key = jax.random.PRNGKey(0)
    kx, kp = jax.random.split(key)
    x = jax.random.normal(kx, (B, T, N, F_IN), dtype=jnp.float32)
    params = init_params(kp, F_IN, OUT_FEAT, HID)

    y_ref = reference(x, params, n_heads=N_HEADS)

    # Strict-precision path (f32 matmuls): validates padding / layernorm / attention.
    y_f32 = traffic_transformer_encoder(x, params, n_heads=N_HEADS,
                                        mm_dtype=jnp.float32)
    y_f32 = jax.block_until_ready(y_f32)
    assert y_f32.shape == (B, T, N, OUT_FEAT), y_f32.shape
    err32 = float(jnp.max(jnp.abs(y_f32 - y_ref)))
    assert err32 < 1e-4, f"f32 path max abs error {err32}"

    # Performance path (default): bf16 MXU operands, f32 accumulation.
    y = traffic_transformer_encoder(x, params, n_heads=N_HEADS)
    y = jax.block_until_ready(y)
    assert y.shape == (B, T, N, OUT_FEAT), y.shape
    err_bf16 = float(jnp.max(jnp.abs(y - y_ref)))
    tol = 5e-2 * (1.0 + float(jnp.max(jnp.abs(y_ref))))
    assert err_bf16 < tol, f"bf16 path max abs error {err_bf16} (tol {tol})"

    print("KERNEL_OK")
</pallas_src>

<mosaic_0001>
module attributes {stable_mosaic.version = 11 : i64} {
  func.func @_encoder_kernel(%arg0: i32, %arg1: memref<128x128xf32, #tpu.memory_space<vmem>>, %arg2: memref<128x128xf32, #tpu.memory_space<vmem>>, %arg3: memref<1x128xf32, #tpu.memory_space<vmem>>, %arg4: memref<128x384xf32, #tpu.memory_space<vmem>>, %arg5: memref<1x384xf32, #tpu.memory_space<vmem>>, %arg6: memref<128x128xf32, #tpu.memory_space<vmem>>, %arg7: memref<1x128xf32, #tpu.memory_space<vmem>>, %arg8: memref<1x128xf32, #tpu.memory_space<vmem>>, %arg9: memref<1x128xf32, #tpu.memory_space<vmem>>, %arg10: memref<128x128xf32, #tpu.memory_space<vmem>>, %arg11: memref<1x128xf32, #tpu.memory_space<vmem>>, %arg12: memref<128x128xf32, #tpu.memory_space<vmem>>, %arg13: memref<1x128xf32, #tpu.memory_space<vmem>>, %arg14: memref<1x128xf32, #tpu.memory_space<vmem>>, %arg15: memref<1x128xf32, #tpu.memory_space<vmem>>, %arg16: memref<128x128xf32, #tpu.memory_space<vmem>>, %arg17: memref<1x128xf32, #tpu.memory_space<vmem>>, %arg18: memref<128x128xf32, #tpu.memory_space<vmem>>) attributes {dimension_semantics = [#tpu.dimension_semantics<parallel>], iteration_bounds = array<i64: 2>, scalar_prefetch = 0 : i64, scratch_operands = 0 : i64, tpu.core_type = #tpu.core_type<tc>, window_params = [{transform_indices = @transform_0, window_bounds = array<i64: 128, 128>}, {pipeline_mode = #tpu.pipeline_mode<synchronous>, transform_indices = @transform_1, window_bounds = array<i64: 128, 128>}, {pipeline_mode = #tpu.pipeline_mode<synchronous>, transform_indices = @transform_2, window_bounds = array<i64: 1, 128>}, {pipeline_mode = #tpu.pipeline_mode<synchronous>, transform_indices = @transform_3, window_bounds = array<i64: 128, 384>}, {pipeline_mode = #tpu.pipeline_mode<synchronous>, transform_indices = @transform_4, window_bounds = array<i64: 1, 384>}, {pipeline_mode = #tpu.pipeline_mode<synchronous>, transform_indices = @transform_5, window_bounds = array<i64: 128, 128>}, {pipeline_mode = #tpu.pipeline_mode<synchronous>, transform_indices = @transform_6, window_bounds = array<i64: 1, 128>}, {pipeline_mode = #tpu.pipeline_mode<synchronous>, transform_indices = @transform_7, window_bounds = array<i64: 1, 128>}, {pipeline_mode = #tpu.pipeline_mode<synchronous>, transform_indices = @transform_8, window_bounds = array<i64: 1, 128>}, {pipeline_mode = #tpu.pipeline_mode<synchronous>, transform_indices = @transform_9, window_bounds = array<i64: 128, 128>}, {pipeline_mode = #tpu.pipeline_mode<synchronous>, transform_indices = @transform_10, window_bounds = array<i64: 1, 128>}, {pipeline_mode = #tpu.pipeline_mode<synchronous>, transform_indices = @transform_11, window_bounds = array<i64: 128, 128>}, {pipeline_mode = #tpu.pipeline_mode<synchronous>, transform_indices = @transform_12, window_bounds = array<i64: 1, 128>}, {pipeline_mode = #tpu.pipeline_mode<synchronous>, transform_indices = @transform_13, window_bounds = array<i64: 1, 128>}, {pipeline_mode = #tpu.pipeline_mode<synchronous>, transform_indices = @transform_14, window_bounds = array<i64: 1, 128>}, {pipeline_mode = #tpu.pipeline_mode<synchronous>, transform_indices = @transform_15, window_bounds = array<i64: 128, 128>}, {pipeline_mode = #tpu.pipeline_mode<synchronous>, transform_indices = @transform_16, window_bounds = array<i64: 1, 128>}, {transform_indices = @transform_17, window_bounds = array<i64: 128, 128>}]} {
    %c0 = arith.constant 0 : index
    %c0_0 = arith.constant 0 : index
    %0 = vector.load %arg1[%c0, %c0_0] : memref<128x128xf32, #tpu.memory_space<vmem>>, vector<128x128xf32>
    %c0_1 = arith.constant 0 : index
    %c0_2 = arith.constant 0 : index
    %1 = vector.load %arg2[%c0_1, %c0_2] : memref<128x128xf32, #tpu.memory_space<vmem>>, vector<128x128xf32>
    %cst = arith.constant dense<0.000000e+00> : vector<128x128xf32>
    %2 = tpu.matmul %0, %1, %cst {dimension_numbers = #tpu.dot_dimension_numbers<[1], [0], [0], [1], [0, 0, 1, 1], [], []>} : vector<128x128xf32>, vector<128x128xf32>, vector<128x128xf32> -> vector<128x128xf32>
    %c0_3 = arith.constant 0 : index
    %c0_4 = arith.constant 0 : index
    %3 = vector.load %arg3[%c0_3, %c0_4] : memref<1x128xf32, #tpu.memory_space<vmem>>, vector<1x128xf32>
    %4 = vector.broadcast %3 : vector<1x128xf32> to vector<128x128xf32>
    %5 = arith.addf %2, %4 : vector<128x128xf32>
    %c0_5 = arith.constant 0 : index
    %c0_6 = arith.constant 0 : index
    %6 = vector.load %arg4[%c0_5, %c0_6] : memref<128x384xf32, #tpu.memory_space<vmem>>, vector<128x384xf32>
    %cst_7 = arith.constant dense<0.000000e+00> : vector<128x384xf32>
    %7 = tpu.matmul %5, %6, %cst_7 {dimension_numbers = #tpu.dot_dimension_numbers<[1], [0], [0], [1], [0, 0, 1, 1], [], []>} : vector<128x128xf32>, vector<128x384xf32>, vector<128x384xf32> -> vector<128x384xf32>
    %c0_8 = arith.constant 0 : index
    %c0_9 = arith.constant 0 : index
    %8 = vector.load %arg5[%c0_8, %c0_9] : memref<1x384xf32, #tpu.memory_space<vmem>>, vector<1x384xf32>
    %9 = vector.broadcast %8 : vector<1x384xf32> to vector<128x384xf32>
    %10 = arith.addf %7, %9 : vector<128x384xf32>
    %11 = vector.extract_strided_slice %10 {offsets = [0, 0], sizes = [128, 128], strides = [1, 1]} : vector<128x384xf32> to vector<128x128xf32>
    %cst_10 = arith.constant 0.353553385 : f32
    %12 = vector.broadcast %cst_10 : f32 to vector<128x128xf32>
    %13 = arith.mulf %11, %12 : vector<128x128xf32>
    %14 = vector.shape_cast %13 : vector<128x128xf32> to vector<16x8x128xf32>
    %15 = vector.extract_strided_slice %10 {offsets = [0, 128], sizes = [128, 128], strides = [1, 1]} : vector<128x384xf32> to vector<128x128xf32>
    %16 = vector.shape_cast %15 : vector<128x128xf32> to vector<16x8x128xf32>
    %17 = vector.extract_strided_slice %10 {offsets = [0, 256], sizes = [128, 128], strides = [1, 1]} : vector<128x384xf32> to vector<128x128xf32>
    %18 = vector.shape_cast %17 : vector<128x128xf32> to vector<16x8x128xf32>
    %cst_11 = arith.constant 0.000000e+00 : f32
    %19 = vector.broadcast %cst_11 : f32 to vector<128x128xf32>
    %c0_12 = arith.constant 0 : index
    %c0_13 = arith.constant 0 : index
    %20 = vector.load %arg7[%c0_12, %c0_13] : memref<1x128xf32, #tpu.memory_space<vmem>>, vector<1x128xf32>
    %21 = vector.broadcast %20 : vector<1x128xf32> to vector<128x128xf32>
    %22 = arith.addf %19, %21 : vector<128x128xf32>
    %23 = vector.extract_strided_slice %14 {offsets = [0, 0, 0], sizes = [16, 8, 8], strides = [1, 1, 1]} : vector<16x8x128xf32> to vector<16x8x8xf32>
    %24 = vector.extract_strided_slice %16 {offsets = [0, 0, 0], sizes = [16, 8, 8], strides = [1, 1, 1]} : vector<16x8x128xf32> to vector<16x8x8xf32>
    %25 = vector.extract_strided_slice %18 {offsets = [0, 0, 0], sizes = [16, 8, 8], strides = [1, 1, 1]} : vector<16x8x128xf32> to vector<16x8x8xf32>
    "tpu.trace_start"() <{level = 10 : i32, message = "btd,bsd->bts"}> : () -> ()
    %cst_14 = arith.constant dense<0.000000e+00> : vector<16x8x8xf32>
    %26 = tpu.matmul %23, %24, %cst_14 {dimension_numbers = #tpu.dot_dimension_numbers<[2], [2], [1], [1], [0, 0, 0, 1, 1, 1], [0], [0]>} : vector<16x8x8xf32>, vector<16x8x8xf32>, vector<16x8x8xf32> -> vector<16x8x8xf32>
    "tpu.trace_stop"() : () -> ()
    %cst_15 = arith.constant dense<0xFF800000> : vector<16x8xf32>
    %27 = vector.multi_reduction <maximumf>, %26, %cst_15 [2] : vector<16x8x8xf32> to vector<16x8xf32>
    %28 = vector.shape_cast %27 : vector<16x8xf32> to vector<16x8x1xf32>
    %29 = vector.broadcast %28 : vector<16x8x1xf32> to vector<16x8x8xf32>
    %30 = arith.subf %26, %29 : vector<16x8x8xf32>
    %31 = math.exp %30 : vector<16x8x8xf32>
    %cst_16 = arith.constant dense<0.000000e+00> : vector<16x8xf32>
    %32 = vector.multi_reduction <add>, %31, %cst_16 [2] : vector<16x8x8xf32> to vector<16x8xf32>
    %33 = vector.shape_cast %32 : vector<16x8xf32> to vector<16x8x1xf32>
    %34 = vector.broadcast %33 : vector<16x8x1xf32> to vector<16x8x8xf32>
    %35 = arith.divf %31, %34 : vector<16x8x8xf32>
    "tpu.trace_start"() <{level = 10 : i32, message = "bts,bsd->btd"}> : () -> ()
    %cst_17 = arith.constant dense<0.000000e+00> : vector<16x8x8xf32>
    %36 = tpu.matmul %35, %25, %cst_17 {dimension_numbers = #tpu.dot_dimension_numbers<[2], [1], [1], [2], [0, 0, 0, 1, 1, 2], [0], [0]>} : vector<16x8x8xf32>, vector<16x8x8xf32>, vector<16x8x8xf32> -> vector<16x8x8xf32>
    "tpu.trace_stop"() : () -> ()
    %37 = vector.shape_cast %36 : vector<16x8x8xf32> to vector<128x8xf32>
    %c0_18 = arith.constant 0 : index
    %c0_19 = arith.constant 0 : index
    %38 = vector.load %arg6[%c0_18, %c0_19] : memref<128x128xf32, #tpu.memory_space<vmem>>, vector<8x128xf32>
    %cst_20 = arith.constant dense<0.000000e+00> : vector<128x128xf32>
    %39 = tpu.matmul %37, %38, %cst_20 {dimension_numbers = #tpu.dot_dimension_numbers<[1], [0], [0], [1], [0, 0, 1, 1], [], []>} : vector<128x8xf32>, vector<8x128xf32>, vector<128x128xf32> -> vector<128x128xf32>
    %40 = arith.addf %22, %39 : vector<128x128xf32>
    %41 = vector.extract_strided_slice %14 {offsets = [0, 0, 8], sizes = [16, 8, 8], strides = [1, 1, 1]} : vector<16x8x128xf32> to vector<16x8x8xf32>
    %42 = vector.extract_strided_slice %16 {offsets = [0, 0, 8], sizes = [16, 8, 8], strides = [1, 1, 1]} : vector<16x8x128xf32> to vector<16x8x8xf32>
    %43 = vector.extract_strided_slice %18 {offsets = [0, 0, 8], sizes = [16, 8, 8], strides = [1, 1, 1]} : vector<16x8x128xf32> to vector<16x8x8xf32>
    "tpu.trace_start"() <{level = 10 : i32, message = "btd,bsd->bts"}> : () -> ()
    %cst_21 = arith.constant dense<0.000000e+00> : vector<16x8x8xf32>
    %44 = tpu.matmul %41, %42, %cst_21 {dimension_numbers = #tpu.dot_dimension_numbers<[2], [2], [1], [1], [0, 0, 0, 1, 1, 1], [0], [0]>} : vector<16x8x8xf32>, vector<16x8x8xf32>, vector<16x8x8xf32> -> vector<16x8x8xf32>
    "tpu.trace_stop"() : () -> ()
    %cst_22 = arith.constant dense<0xFF800000> : vector<16x8xf32>
    %45 = vector.multi_reduction <maximumf>, %44, %cst_22 [2] : vector<16x8x8xf32> to vector<16x8xf32>
    %46 = vector.shape_cast %45 : vector<16x8xf32> to vector<16x8x1xf32>
    %47 = vector.broadcast %46 : vector<16x8x1xf32> to vector<16x8x8xf32>
    %48 = arith.subf %44, %47 : vector<16x8x8xf32>
    %49 = math.exp %48 : vector<16x8x8xf32>
    %cst_23 = arith.constant dense<0.000000e+00> : vector<16x8xf32>
    %50 = vector.multi_reduction <add>, %49, %cst_23 [2] : vector<16x8x8xf32> to vector<16x8xf32>
    %51 = vector.shape_cast %50 : vector<16x8xf32> to vector<16x8x1xf32>
    %52 = vector.broadcast %51 : vector<16x8x1xf32> to vector<16x8x8xf32>
    %53 = arith.divf %49, %52 : vector<16x8x8xf32>
    "tpu.trace_start"() <{level = 10 : i32, message = "bts,bsd->btd"}> : () -> ()
    %cst_24 = arith.constant dense<0.000000e+00> : vector<16x8x8xf32>
    %54 = tpu.matmul %53, %43, %cst_24 {dimension_numbers = #tpu.dot_dimension_numbers<[2], [1], [1], [2], [0, 0, 0, 1, 1, 2], [0], [0]>} : vector<16x8x8xf32>, vector<16x8x8xf32>, vector<16x8x8xf32> -> vector<16x8x8xf32>
    "tpu.trace_stop"() : () -> ()
    %55 = vector.shape_cast %54 : vector<16x8x8xf32> to vector<128x8xf32>
    %c8 = arith.constant 8 : index
    %c0_25 = arith.constant 0 : index
    %56 = vector.load %arg6[%c8, %c0_25] : memref<128x128xf32, #tpu.memory_space<vmem>>, vector<8x128xf32>
    %cst_26 = arith.constant dense<0.000000e+00> : vector<128x128xf32>
    %57 = tpu.matmul %55, %56, %cst_26 {dimension_numbers = #tpu.dot_dimension_numbers<[1], [0], [0], [1], [0, 0, 1, 1], [], []>} : vector<128x8xf32>, vector<8x128xf32>, vector<128x128xf32> -> vector<128x128xf32>
    %58 = arith.addf %40, %57 : vector<128x128xf32>
    %59 = vector.extract_strided_slice %14 {offsets = [0, 0, 16], sizes = [16, 8, 8], strides = [1, 1, 1]} : vector<16x8x128xf32> to vector<16x8x8xf32>
    %60 = vector.extract_strided_slice %16 {offsets = [0, 0, 16], sizes = [16, 8, 8], strides = [1, 1, 1]} : vector<16x8x128xf32> to vector<16x8x8xf32>
    %61 = vector.extract_strided_slice %18 {offsets = [0, 0, 16], sizes = [16, 8, 8], strides = [1, 1, 1]} : vector<16x8x128xf32> to vector<16x8x8xf32>
    "tpu.trace_start"() <{level = 10 : i32, message = "btd,bsd->bts"}> : () -> ()
    %cst_27 = arith.constant dense<0.000000e+00> : vector<16x8x8xf32>
    %62 = tpu.matmul %59, %60, %cst_27 {dimension_numbers = #tpu.dot_dimension_numbers<[2], [2], [1], [1], [0, 0, 0, 1, 1, 1], [0], [0]>} : vector<16x8x8xf32>, vector<16x8x8xf32>, vector<16x8x8xf32> -> vector<16x8x8xf32>
    "tpu.trace_stop"() : () -> ()
    %cst_28 = arith.constant dense<0xFF800000> : vector<16x8xf32>
    %63 = vector.multi_reduction <maximumf>, %62, %cst_28 [2] : vector<16x8x8xf32> to vector<16x8xf32>
    %64 = vector.shape_cast %63 : vector<16x8xf32> to vector<16x8x1xf32>
    %65 = vector.broadcast %64 : vector<16x8x1xf32> to vector<16x8x8xf32>
    %66 = arith.subf %62, %65 : vector<16x8x8xf32>
    %67 = math.exp %66 : vector<16x8x8xf32>
    %cst_29 = arith.constant dense<0.000000e+00> : vector<16x8xf32>
    %68 = vector.multi_reduction <add>, %67, %cst_29 [2] : vector<16x8x8xf32> to vector<16x8xf32>
    %69 = vector.shape_cast %68 : vector<16x8xf32> to vector<16x8x1xf32>
    %70 = vector.broadcast %69 : vector<16x8x1xf32> to vector<16x8x8xf32>
    %71 = arith.divf %67, %70 : vector<16x8x8xf32>
    "tpu.trace_start"() <{level = 10 : i32, message = "bts,bsd->btd"}> : () -> ()
    %cst_30 = arith.constant dense<0.000000e+00> : vector<16x8x8xf32>
    %72 = tpu.matmul %71, %61, %cst_30 {dimension_numbers = #tpu.dot_dimension_numbers<[2], [1], [1], [2], [0, 0, 0, 1, 1, 2], [0], [0]>} : vector<16x8x8xf32>, vector<16x8x8xf32>, vector<16x8x8xf32> -> vector<16x8x8xf32>
    "tpu.trace_stop"() : () -> ()
    %73 = vector.shape_cast %72 : vector<16x8x8xf32> to vector<128x8xf32>
    %c16 = arith.constant 16 : index
    %c0_31 = arith.constant 0 : index
    %74 = vector.load %arg6[%c16, %c0_31] : memref<128x128xf32, #tpu.memory_space<vmem>>, vector<8x128xf32>
    %cst_32 = arith.constant dense<0.000000e+00> : vector<128x128xf32>
    %75 = tpu.matmul %73, %74, %cst_32 {dimension_numbers = #tpu.dot_dimension_numbers<[1], [0], [0], [1], [0, 0, 1, 1], [], []>} : vector<128x8xf32>, vector<8x128xf32>, vector<128x128xf32> -> vector<128x128xf32>
    %76 = arith.addf %58, %75 : vector<128x128xf32>
    %77 = vector.extract_strided_slice %14 {offsets = [0, 0, 24], sizes = [16, 8, 8], strides = [1, 1, 1]} : vector<16x8x128xf32> to vector<16x8x8xf32>
    %78 = vector.extract_strided_slice %16 {offsets = [0, 0, 24], sizes = [16, 8, 8], strides = [1, 1, 1]} : vector<16x8x128xf32> to vector<16x8x8xf32>
    %79 = vector.extract_strided_slice %18 {offsets = [0, 0, 24], sizes = [16, 8, 8], strides = [1, 1, 1]} : vector<16x8x128xf32> to vector<16x8x8xf32>
    "tpu.trace_start"() <{level = 10 : i32, message = "btd,bsd->bts"}> : () -> ()
    %cst_33 = arith.constant dense<0.000000e+00> : vector<16x8x8xf32>
    %80 = tpu.matmul %77, %78, %cst_33 {dimension_numbers = #tpu.dot_dimension_numbers<[2], [2], [1], [1], [0, 0, 0, 1, 1, 1], [0], [0]>} : vector<16x8x8xf32>, vector<16x8x8xf32>, vector<16x8x8xf32> -> vector<16x8x8xf32>
    "tpu.trace_stop"() : () -> ()
    %cst_34 = arith.constant dense<0xFF800000> : vector<16x8xf32>
    %81 = vector.multi_reduction <maximumf>, %80, %cst_34 [2] : vector<16x8x8xf32> to vector<16x8xf32>
    %82 = vector.shape_cast %81 : vector<16x8xf32> to vector<16x8x1xf32>
    %83 = vector.broadcast %82 : vector<16x8x1xf32> to vector<16x8x8xf32>
    %84 = arith.subf %80, %83 : vector<16x8x8xf32>
    %85 = math.exp %84 : vector<16x8x8xf32>
    %cst_35 = arith.constant dense<0.000000e+00> : vector<16x8xf32>
    %86 = vector.multi_reduction <add>, %85, %cst_35 [2] : vector<16x8x8xf32> to vector<16x8xf32>
    %87 = vector.shape_cast %86 : vector<16x8xf32> to vector<16x8x1xf32>
    %88 = vector.broadcast %87 : vector<16x8x1xf32> to vector<16x8x8xf32>
    %89 = arith.divf %85, %88 : vector<16x8x8xf32>
    "tpu.trace_start"() <{level = 10 : i32, message = "bts,bsd->btd"}> : () -> ()
    %cst_36 = arith.constant dense<0.000000e+00> : vector<16x8x8xf32>
    %90 = tpu.matmul %89, %79, %cst_36 {dimension_numbers = #tpu.dot_dimension_numbers<[2], [1], [1], [2], [0, 0, 0, 1, 1, 2], [0], [0]>} : vector<16x8x8xf32>, vector<16x8x8xf32>, vector<16x8x8xf32> -> vector<16x8x8xf32>
    "tpu.trace_stop"() : () -> ()
    %91 = vector.shape_cast %90 : vector<16x8x8xf32> to vector<128x8xf32>
    %c24 = arith.constant 24 : index
    %c0_37 = arith.constant 0 : index
    %92 = vector.load %arg6[%c24, %c0_37] : memref<128x128xf32, #tpu.memory_space<vmem>>, vector<8x128xf32>
    %cst_38 = arith.constant dense<0.000000e+00> : vector<128x128xf32>
    %93 = tpu.matmul %91, %92, %cst_38 {dimension_numbers = #tpu.dot_dimension_numbers<[1], [0], [0], [1], [0, 0, 1, 1], [], []>} : vector<128x8xf32>, vector<8x128xf32>, vector<128x128xf32> -> vector<128x128xf32>
    %94 = arith.addf %76, %93 : vector<128x128xf32>
    %95 = arith.addf %5, %94 : vector<128x128xf32>
    %c0_39 = arith.constant 0 : index
    %c0_40 = arith.constant 0 : index
    %96 = vector.load %arg8[%c0_39, %c0_40] : memref<1x128xf32, #tpu.memory_space<vmem>>, vector<1x128xf32>
    %c0_41 = arith.constant 0 : index
    %c0_42 = arith.constant 0 : index
    %97 = vector.load %arg9[%c0_41, %c0_42] : memref<1x128xf32, #tpu.memory_space<vmem>>, vector<1x128xf32>
    %cst_43 = arith.constant dense<0.000000e+00> : vector<128xf32>
    %98 = vector.multi_reduction <add>, %95, %cst_43 [1] : vector<128x128xf32> to vector<128xf32>
    %99 = vector.shape_cast %98 : vector<128xf32> to vector<128x1xf32>
    %cst_44 = arith.constant 3.125000e-02 : f32
    %100 = vector.broadcast %cst_44 : f32 to vector<128x1xf32>
    %101 = arith.mulf %99, %100 : vector<128x1xf32>
    %102 = arith.mulf %95, %95 : vector<128x128xf32>
    %cst_45 = arith.constant dense<0.000000e+00> : vector<128xf32>
    %103 = vector.multi_reduction <add>, %102, %cst_45 [1] : vector<128x128xf32> to vector<128xf32>
    %104 = vector.shape_cast %103 : vector<128xf32> to vector<128x1xf32>
    %cst_46 = arith.constant 3.125000e-02 : f32
    %105 = vector.broadcast %cst_46 : f32 to vector<128x1xf32>
    %106 = arith.mulf %104, %105 : vector<128x1xf32>
    %107 = arith.mulf %101, %101 : vector<128x1xf32>
    %108 = arith.subf %106, %107 : vector<128x1xf32>
    %109 = vector.broadcast %101 : vector<128x1xf32> to vector<128x128xf32>
    %110 = arith.subf %95, %109 : vector<128x128xf32>
    %cst_47 = arith.constant 9.99999974E-6 : f32
    %111 = vector.broadcast %cst_47 : f32 to vector<128x1xf32>
    %112 = arith.addf %108, %111 : vector<128x1xf32>
    %113 = math.rsqrt %112 : vector<128x1xf32>
    %114 = vector.broadcast %113 : vector<128x1xf32> to vector<128x128xf32>
    %115 = arith.mulf %110, %114 : vector<128x128xf32>
    %116 = vector.broadcast %96 : vector<1x128xf32> to vector<128x128xf32>
    %117 = arith.mulf %115, %116 : vector<128x128xf32>
    %118 = vector.broadcast %97 : vector<1x128xf32> to vector<128x128xf32>
    %119 = arith.addf %117, %118 : vector<128x128xf32>
    %c0_48 = arith.constant 0 : index
    %c0_49 = arith.constant 0 : index
    %120 = vector.load %arg10[%c0_48, %c0_49] : memref<128x128xf32, #tpu.memory_space<vmem>>, vector<128x128xf32>
    %cst_50 = arith.constant dense<0.000000e+00> : vector<128x128xf32>
    %121 = tpu.matmul %119, %120, %cst_50 {dimension_numbers = #tpu.dot_dimension_numbers<[1], [0], [0], [1], [0, 0, 1, 1], [], []>} : vector<128x128xf32>, vector<128x128xf32>, vector<128x128xf32> -> vector<128x128xf32>
    %c0_51 = arith.constant 0 : index
    %c0_52 = arith.constant 0 : index
    %122 = vector.load %arg11[%c0_51, %c0_52] : memref<1x128xf32, #tpu.memory_space<vmem>>, vector<1x128xf32>
    %123 = vector.broadcast %122 : vector<1x128xf32> to vector<128x128xf32>
    %124 = arith.addf %121, %123 : vector<128x128xf32>
    %cst_53 = arith.constant 0.000000e+00 : f32
    %125 = vector.broadcast %cst_53 : f32 to vector<128x128xf32>
    %126 = arith.maximumf %124, %125 : vector<128x128xf32>
    %c0_54 = arith.constant 0 : index
    %c0_55 = arith.constant 0 : index
    %127 = vector.load %arg12[%c0_54, %c0_55] : memref<128x128xf32, #tpu.memory_space<vmem>>, vector<128x128xf32>
    %cst_56 = arith.constant dense<0.000000e+00> : vector<128x128xf32>
    %128 = tpu.matmul %126, %127, %cst_56 {dimension_numbers = #tpu.dot_dimension_numbers<[1], [0], [0], [1], [0, 0, 1, 1], [], []>} : vector<128x128xf32>, vector<128x128xf32>, vector<128x128xf32> -> vector<128x128xf32>
    %c0_57 = arith.constant 0 : index
    %c0_58 = arith.constant 0 : index
    %129 = vector.load %arg13[%c0_57, %c0_58] : memref<1x128xf32, #tpu.memory_space<vmem>>, vector<1x128xf32>
    %130 = vector.broadcast %129 : vector<1x128xf32> to vector<128x128xf32>
    %131 = arith.addf %128, %130 : vector<128x128xf32>
    %132 = arith.addf %119, %131 : vector<128x128xf32>
    %c0_59 = arith.constant 0 : index
    %c0_60 = arith.constant 0 : index
    %133 = vector.load %arg14[%c0_59, %c0_60] : memref<1x128xf32, #tpu.memory_space<vmem>>, vector<1x128xf32>
    %c0_61 = arith.constant 0 : index
    %c0_62 = arith.constant 0 : index
    %134 = vector.load %arg15[%c0_61, %c0_62] : memref<1x128xf32, #tpu.memory_space<vmem>>, vector<1x128xf32>
    %cst_63 = arith.constant dense<0.000000e+00> : vector<128xf32>
    %135 = vector.multi_reduction <add>, %132, %cst_63 [1] : vector<128x128xf32> to vector<128xf32>
    %136 = vector.shape_cast %135 : vector<128xf32> to vector<128x1xf32>
    %cst_64 = arith.constant 3.125000e-02 : f32
    %137 = vector.broadcast %cst_64 : f32 to vector<128x1xf32>
    %138 = arith.mulf %136, %137 : vector<128x1xf32>
    %139 = arith.mulf %132, %132 : vector<128x128xf32>
    %cst_65 = arith.constant dense<0.000000e+00> : vector<128xf32>
    %140 = vector.multi_reduction <add>, %139, %cst_65 [1] : vector<128x128xf32> to vector<128xf32>
    %141 = vector.shape_cast %140 : vector<128xf32> to vector<128x1xf32>
    %cst_66 = arith.constant 3.125000e-02 : f32
    %142 = vector.broadcast %cst_66 : f32 to vector<128x1xf32>
    %143 = arith.mulf %141, %142 : vector<128x1xf32>
    %144 = arith.mulf %138, %138 : vector<128x1xf32>
    %145 = arith.subf %143, %144 : vector<128x1xf32>
    %146 = vector.broadcast %138 : vector<128x1xf32> to vector<128x128xf32>
    %147 = arith.subf %132, %146 : vector<128x128xf32>
    %cst_67 = arith.constant 9.99999974E-6 : f32
    %148 = vector.broadcast %cst_67 : f32 to vector<128x1xf32>
    %149 = arith.addf %145, %148 : vector<128x1xf32>
    %150 = math.rsqrt %149 : vector<128x1xf32>
    %151 = vector.broadcast %150 : vector<128x1xf32> to vector<128x128xf32>
    %152 = arith.mulf %147, %151 : vector<128x128xf32>
    %153 = vector.broadcast %133 : vector<1x128xf32> to vector<128x128xf32>
    %154 = arith.mulf %152, %153 : vector<128x128xf32>
    %155 = vector.broadcast %134 : vector<1x128xf32> to vector<128x128xf32>
    %156 = arith.addf %154, %155 : vector<128x128xf32>
    %c0_68 = arith.constant 0 : index
    %c0_69 = arith.constant 0 : index
    %157 = vector.load %arg16[%c0_68, %c0_69] : memref<128x128xf32, #tpu.memory_space<vmem>>, vector<128x128xf32>
    %cst_70 = arith.constant dense<0.000000e+00> : vector<128x128xf32>
    %158 = tpu.matmul %156, %157, %cst_70 {dimension_numbers = #tpu.dot_dimension_numbers<[1], [0], [0], [1], [0, 0, 1, 1], [], []>} : vector<128x128xf32>, vector<128x128xf32>, vector<128x128xf32> -> vector<128x128xf32>
    %c0_71 = arith.constant 0 : index
    %c0_72 = arith.constant 0 : index
    %159 = vector.load %arg17[%c0_71, %c0_72] : memref<1x128xf32, #tpu.memory_space<vmem>>, vector<1x128xf32>
    %160 = vector.broadcast %159 : vector<1x128xf32> to vector<128x128xf32>
    %161 = arith.addf %158, %160 : vector<128x128xf32>
    %c0_73 = arith.constant 0 : index
    %c0_74 = arith.constant 0 : index
    %162 = vector.load %arg18[%c0_73, %c0_74] : memref<128x128xf32, #tpu.memory_space<vmem>>, vector<128x128xf32>
    tpu.vector_store %arg18[%c0_73, %c0_74], %161 {strides = array<i32>} : memref<128x128xf32, #tpu.memory_space<vmem>>, vector<128x128xf32>,
    return
  }
  func.func @transform_0(%arg0: i32) -> (i32, i32) {
    %c0_i32 = arith.constant 0 : i32
    %c0_i32_0 = arith.constant 0 : i32
    return %arg0, %c0_i32 : i32, i32
  }
  func.func @transform_1(%arg0: i32) -> (i32, i32) {
    %c0_i32 = arith.constant 0 : i32
    %c0_i32_0 = arith.constant 0 : i32
    %c0_i32_1 = arith.constant 0 : i32
    return %c0_i32, %c0_i32_0 : i32, i32
  }
  func.func @transform_2(%arg0: i32) -> (i32, i32) {
    %c0_i32 = arith.constant 0 : i32
    %c0_i32_0 = arith.constant 0 : i32
    %c0_i32_1 = arith.constant 0 : i32
    return %c0_i32, %c0_i32_0 : i32, i32
  }
  func.func @transform_3(%arg0: i32) -> (i32, i32) {
    %c0_i32 = arith.constant 0 : i32
    %c0_i32_0 = arith.constant 0 : i32
    %c0_i32_1 = arith.constant 0 : i32
    return %c0_i32, %c0_i32_0 : i32, i32
  }
  func.func @transform_4(%arg0: i32) -> (i32, i32) {
    %c0_i32 = arith.constant 0 : i32
    %c0_i32_0 = arith.constant 0 : i32
    %c0_i32_1 = arith.constant 0 : i32
    return %c0_i32, %c0_i32_0 : i32, i32
  }
  func.func @transform_5(%arg0: i32) -> (i32, i32) {
    %c0_i32 = arith.constant 0 : i32
    %c0_i32_0 = arith.constant 0 : i32
    %c0_i32_1 = arith.constant 0 : i32
    return %c0_i32, %c0_i32_0 : i32, i32
  }
  func.func @transform_6(%arg0: i32) -> (i32, i32) {
    %c0_i32 = arith.constant 0 : i32
    %c0_i32_0 = arith.constant 0 : i32
    %c0_i32_1 = arith.constant 0 : i32
    return %c0_i32, %c0_i32_0 : i32, i32
  }
  func.func @transform_7(%arg0: i32) -> (i32, i32) {
    %c0_i32 = arith.constant 0 : i32
    %c0_i32_0 = arith.constant 0 : i32
    %c0_i32_1 = arith.constant 0 : i32
    return %c0_i32, %c0_i32_0 : i32, i32
  }
  func.func @transform_8(%arg0: i32) -> (i32, i32) {
    %c0_i32 = arith.constant 0 : i32
    %c0_i32_0 = arith.constant 0 : i32
    %c0_i32_1 = arith.constant 0 : i32
    return %c0_i32, %c0_i32_0 : i32, i32
  }
  func.func @transform_9(%arg0: i32) -> (i32, i32) {
    %c0_i32 = arith.constant 0 : i32
    %c0_i32_0 = arith.constant 0 : i32
    %c0_i32_1 = arith.constant 0 : i32
    return %c0_i32, %c0_i32_0 : i32, i32
  }
  func.func @transform_10(%arg0: i32) -> (i32, i32) {
    %c0_i32 = arith.constant 0 : i32
    %c0_i32_0 = arith.constant 0 : i32
    %c0_i32_1 = arith.constant 0 : i32
    return %c0_i32, %c0_i32_0 : i32, i32
  }
  func.func @transform_11(%arg0: i32) -> (i32, i32) {
    %c0_i32 = arith.constant 0 : i32
    %c0_i32_0 = arith.constant 0 : i32
    %c0_i32_1 = arith.constant 0 : i32
    return %c0_i32, %c0_i32_0 : i32, i32
  }
  func.func @transform_12(%arg0: i32) -> (i32, i32) {
    %c0_i32 = arith.constant 0 : i32
    %c0_i32_0 = arith.constant 0 : i32
    %c0_i32_1 = arith.constant 0 : i32
    return %c0_i32, %c0_i32_0 : i32, i32
  }
  func.func @transform_13(%arg0: i32) -> (i32, i32) {
    %c0_i32 = arith.constant 0 : i32
    %c0_i32_0 = arith.constant 0 : i32
    %c0_i32_1 = arith.constant 0 : i32
    return %c0_i32, %c0_i32_0 : i32, i32
  }
  func.func @transform_14(%arg0: i32) -> (i32, i32) {
    %c0_i32 = arith.constant 0 : i32
    %c0_i32_0 = arith.constant 0 : i32
    %c0_i32_1 = arith.constant 0 : i32
    return %c0_i32, %c0_i32_0 : i32, i32
  }
  func.func @transform_15(%arg0: i32) -> (i32, i32) {
    %c0_i32 = arith.constant 0 : i32
    %c0_i32_0 = arith.constant 0 : i32
    %c0_i32_1 = arith.constant 0 : i32
    return %c0_i32, %c0_i32_0 : i32, i32
  }
  func.func @transform_16(%arg0: i32) -> (i32, i32) {
    %c0_i32 = arith.constant 0 : i32
    %c0_i32_0 = arith.constant 0 : i32
    %c0_i32_1 = arith.constant 0 : i32
    return %c0_i32, %c0_i32_0 : i32, i32
  }
  func.func @transform_17(%arg0: i32) -> (i32, i32) {
    %c0_i32 = arith.constant 0 : i32
    %c0_i32_0 = arith.constant 0 : i32
    return %arg0, %c0_i32 : i32, i32
  }
}

</mosaic_0001>

<llo_original>
// kernel: tpu_custom_call.1
$region0: #{tpu_custom_call.1}
  #allocation0 [shape = 'u32[]', space=smem, size = 0x4, offset = 0x4, fixed_abs, tag = 'smem constant byte address 0x4 - core index']
  #allocation1 [shape = 'u32[72,128]{1,0:T(1,128)}', space=vmem, size = 0x9000, scoped, tag = 'internal scratch']
  %s0 = inlined_call_operand.hbm [shape: f32[256,128], index: 0, kind: input, shape index: {}]
  %s1 = inlined_call_operand.hbm [shape: f32[128,128], index: 1, kind: input, shape index: {}]
  %s2 = inlined_call_operand.hbm [shape: f32[1,128], index: 2, kind: input, shape index: {}]
  %s3 = inlined_call_operand.hbm [shape: f32[128,384], index: 3, kind: input, shape index: {}]
  %s4 = inlined_call_operand.vmem [shape: f32[1,384], index: 4, kind: input, shape index: {}]
  %s5 = inlined_call_operand.hbm [shape: f32[128,128], index: 5, kind: input, shape index: {}]
  %s6 = inlined_call_operand.vmem [shape: f32[1,128], index: 6, kind: input, shape index: {}]
  %s7 = inlined_call_operand.vmem [shape: f32[1,128], index: 7, kind: input, shape index: {}]
  %s8 = inlined_call_operand.vmem [shape: f32[1,128], index: 8, kind: input, shape index: {}]
  %s9 = inlined_call_operand.hbm [shape: f32[128,128], index: 9, kind: input, shape index: {}]
  %s10 = inlined_call_operand.vmem [shape: f32[1,128], index: 10, kind: input, shape index: {}]
  %s11 = inlined_call_operand.hbm [shape: f32[128,128], index: 11, kind: input, shape index: {}]
  %s12 = inlined_call_operand.vmem [shape: f32[1,128], index: 12, kind: input, shape index: {}]
  %s13 = inlined_call_operand.vmem [shape: f32[1,128], index: 13, kind: input, shape index: {}]
  %s14 = inlined_call_operand.vmem [shape: f32[1,128], index: 14, kind: input, shape index: {}]
  %s15 = inlined_call_operand.hbm [shape: f32[128,128], index: 15, kind: input, shape index: {}]
  %s16 = inlined_call_operand.vmem [shape: f32[1,128], index: 16, kind: input, shape index: {}]
  %s17 = inlined_call_operand.hbm [shape: f32[256,128], index: 17, kind: output, shape index: {}]
  %s18 = sld [smem:[#allocation0]]
  $region133: #{tpu_custom_call.1} parent=0
    _
  %s20 = ssub.s32 1, %s18
  %s21 = scalar_select 0, %s20, %s18
  $region1: #{tpu_custom_call.1} parent=0
    #allocation2 [shape = 'u8[131072]{0}', space=vmem, size = 0x20000, scoped, tag = 'input window, operand 0']
    #allocation3 [shape = 's32[2]{0}', space=sflag, size = 0x8, scoped, tag = 'scoped memory for tpu_custom_call.1']
    #allocation4 [shape = 's32[2]{0}', space=sflag, size = 0x8, scoped, tag = 'scoped memory for tpu_custom_call.1']
    #allocation5 [shape = 'u8[65536]{0}', space=vmem, size = 0x10000, scoped, tag = 'input window, operand 1, single buffered']
    #allocation6 [shape = 's32[1]{0}', space=sflag, size = 0x4, scoped, tag = 'scoped memory for tpu_custom_call.1']
    #allocation7 [shape = 'u8[512]{0}', space=vmem, size = 0x400, scoped, tag = 'input window, operand 2, single buffered']
    #allocation8 [shape = 'u8[196608]{0}', space=vmem, size = 0x30000, scoped, tag = 'input window, operand 3, single buffered']
    #allocation9 [shape = 's32[1]{0}', space=sflag, size = 0x4, scoped, tag = 'scoped memory for tpu_custom_call.1']
    #allocation10 [shape = 'u8[65536]{0}', space=vmem, size = 0x10000, scoped, tag = 'input window, operand 5, single buffered']
    #allocation11 [shape = 'u8[65536]{0}', space=vmem, size = 0x10000, scoped, tag = 'input window, operand 9, single buffered']
    #allocation12 [shape = 's32[1]{0}', space=sflag, size = 0x4, scoped, tag = 'scoped memory for tpu_custom_call.1']
    #allocation13 [shape = 'u8[65536]{0}', space=vmem, size = 0x10000, scoped, tag = 'input window, operand 11, single buffered']
    #allocation14 [shape = 'u8[65536]{0}', space=vmem, size = 0x10000, scoped, tag = 'input window, operand 15, single buffered']
    #allocation15 [shape = 's32[1]{0}', space=sflag, size = 0x4, scoped, tag = 'scoped memory for tpu_custom_call.1']
    #allocation16 [shape = 'u8[131072]{0}', space=vmem, size = 0x20000, scoped, tag = 'output window, operand 0']
    %22 = vsyncpa [#allocation3], 0
    %s23 = scalar_lea.sflag [#allocation3], 1
    %24 = vsyncpa %s23, 0
    %25 = vsyncpa [#allocation6], 0
    %26 = vsyncpa [#allocation9], 0
    %27 = vsyncpa [#allocation12], 0
    %28 = vsyncpa [#allocation15], 0
    %29 = vsyncpa [#allocation4], 0
    %s30 = scalar_lea.sflag [#allocation4], 1
    %31 = vsyncpa %s30, 0
    loop: start=0, step=1, limit=4
    $region2: #{tpu_custom_call.1} parent=1 // loop_pre_header
      _
    $region3: #{tpu_custom_call.1} parent=1 // loop_header
      %s33 = sphi 0, %s37
      %p34 = scmp.ge.s32.totalorder %s33, 4
      %s43 = sphi 0, %s45
      %s46 = sphi 0, %s43
      %s47 = sphi 0, %s46
      %s63 = sphi 0, %s47
      %s67 = sphi 0, %s67
      %s69 = sphi 0, %s67
      %s70 = sphi 0, %s69
      %s84 = sphi 0, %s70
      %s88 = sphi 0, %s88
      %s90 = sphi 0, %s88
      %s91 = sphi 0, %s90
      %s105 = sphi 0, %s91
      %s109 = sphi 0, %s109
      %s111 = sphi 0, %s109
      %s112 = sphi 0, %s111
      %s126 = sphi 0, %s112
      %s130 = sphi 0, %s130
      %s132 = sphi 0, %s130
      %s133 = sphi 0, %s132
      %s147 = sphi 0, %s133
      %s151 = sphi 0, %s151
      %s153 = sphi 0, %s151
      %s154 = sphi 0, %s153
      %s168 = sphi 0, %s154
      %s172 = sphi 0, %s172
      %s174 = sphi 0, %s172
      %s175 = sphi 0, %s174
      %s189 = sphi 0, %s175
      %s193 = sphi 0, %s193
      %s195 = sphi 0, %s193
      %s196 = sphi 0, %s195
      %s210 = sphi 0, %s196
      %s214 = sphi 0, %s214
      %s216 = sphi 0, %s214
      %s217 = sphi 0, %s216
      %s231 = sphi 0, %s217
      %s235 = sphi 0, %s235
      %s237 = sphi 0, %s235
      %s238 = sphi 0, %s237
      %s252 = sphi 0, %s238
      %s256 = sphi 0, %s256
      %s258 = sphi 0, %s256
      %s259 = sphi 0, %s258
      %s273 = sphi 0, %s259
      %s277 = sphi 0, %s277
      %s279 = sphi 0, %s277
      %s280 = sphi 0, %s279
      %s294 = sphi 0, %s280
      %s298 = sphi 0, %s298
      %s300 = sphi 0, %s298
      %s301 = sphi 0, %s300
      %s315 = sphi 0, %s301
      %s319 = sphi 0, %s319
      %s321 = sphi 0, %s319
      %s322 = sphi 0, %s321
      %s336 = sphi 0, %s322
      %s340 = sphi 0, %s340
      %s342 = sphi 0, %s340
      %s343 = sphi 0, %s342
      %s357 = sphi 0, %s343
      %s361 = sphi 0, %s361
      %s363 = sphi 0, %s361
      %s364 = sphi 0, %s363
      %s378 = sphi 0, %s364
      %s382 = sphi 0, %s382
      %s384 = sphi 0, %s382
      %s385 = sphi 0, %s384
      %s399 = sphi 0, %s385
      %s405 = sphi 0, %s407
      %s408 = sphi 0, %s405
      %s409 = sphi 0, %s408
      %s425 = sphi 0, %s409
    $region4: #{tpu_custom_call.1} parent=1 // loop_header_branch
      %36 = sbr.rel (%p34) target = $region8
    $region5: #{tpu_custom_call.1} parent=1 // loop_body
      %s38 = ssub.s32 %s33, 1
      %s39 = ssub.s32 %s33, 2
      %s40 = sadd.s32 %s33, 1
      %s41 = ssub.s32 %s33, %s40
      %p42 = scmp.eq.s32.totalorder %s41, 0
      %s44 = sadd.s32 %s43, 1
      %s45 = scalar_select %p42, %s43, %s44
      %p48 = pneg %p42
      %p49 = scmp.eq.s32.totalorder %s33, 1
      %p50 = por %p48, %p49
      %p51 = scmp.ne.s32.totalorder %s43, %s46
      %p52 = scmp.eq.s32.totalorder %s33, 0
      %p53 = por %p51, %p52
      %p54 = scmp.ne.s32.totalorder %s43, %s46
      %p55 = scmp.eq.s32.totalorder %s38, 1
      %p56 = por %p54, %p55
      %p57 = scmp.ne.s32.totalorder %s46, %s47
      %p58 = scmp.eq.s32.totalorder %s38, 0
      %p59 = por %p57, %p58
      %p60 = scmp.ne.s32.totalorder %s46, %s47
      %p61 = scmp.eq.s32.totalorder %s39, 1
      %p62 = por %p60, %p61
      %p64 = scmp.ne.s32.totalorder %s47, %s63
      %p65 = scmp.eq.s32.totalorder %s39, 0
      %p66 = por %p64, %p65
      %s68 = sadd.s32 %s67, 1
      %p71 = scmp.eq.s32.totalorder %s33, 1
      %p72 = scmp.ne.s32.totalorder %s67, %s69
      %p73 = scmp.eq.s32.totalorder %s33, 0
      %p74 = por %p72, %p73
      %p75 = scmp.ne.s32.totalorder %s67, %s69
      %p76 = scmp.eq.s32.totalorder %s38, 1
      %p77 = por %p75, %p76
      %p78 = scmp.ne.s32.totalorder %s69, %s70
      %p79 = scmp.eq.s32.totalorder %s38, 0
      %p80 = por %p78, %p79
      %p81 = scmp.ne.s32.totalorder %s69, %s70
      %p82 = scmp.eq.s32.totalorder %s39, 1
      %p83 = por %p81, %p82
      %p85 = scmp.ne.s32.totalorder %s70, %s84
      %p86 = scmp.eq.s32.totalorder %s39, 0
      %p87 = por %p85, %p86
      %s89 = sadd.s32 %s88, 1
      %p92 = scmp.eq.s32.totalorder %s33, 1
      %p93 = scmp.ne.s32.totalorder %s88, %s90
      %p94 = scmp.eq.s32.totalorder %s33, 0
      %p95 = por %p93, %p94
      %p96 = scmp.ne.s32.totalorder %s88, %s90
      %p97 = scmp.eq.s32.totalorder %s38, 1
      %p98 = por %p96, %p97
      %p99 = scmp.ne.s32.totalorder %s90, %s91
      %p100 = scmp.eq.s32.totalorder %s38, 0
      %p101 = por %p99, %p100
      %p102 = scmp.ne.s32.totalorder %s90, %s91
      %p103 = scmp.eq.s32.totalorder %s39, 1
      %p104 = por %p102, %p103
      %p106 = scmp.ne.s32.totalorder %s91, %s105
      %p107 = scmp.eq.s32.totalorder %s39, 0
      %p108 = por %p106, %p107
      %s110 = sadd.s32 %s109, 1
      %p113 = scmp.eq.s32.totalorder %s33, 1
      %p114 = scmp.ne.s32.totalorder %s109, %s111
      %p115 = scmp.eq.s32.totalorder %s33, 0
      %p116 = por %p114, %p115
      %p117 = scmp.ne.s32.totalorder %s109, %s111
      %p118 = scmp.eq.s32.totalorder %s38, 1
      %p119 = por %p117, %p118
      %p120 = scmp.ne.s32.totalorder %s111, %s112
      %p121 = scmp.eq.s32.totalorder %s38, 0
      %p122 = por %p120, %p121
      %p123 = scmp.ne.s32.totalorder %s111, %s112
      %p124 = scmp.eq.s32.totalorder %s39, 1
      %p125 = por %p123, %p124
      %p127 = scmp.ne.s32.totalorder %s112, %s126
      %p128 = scmp.eq.s32.totalorder %s39, 0
      %p129 = por %p127, %p128
      %s131 = sadd.s32 %s130, 1
      %p134 = scmp.eq.s32.totalorder %s33, 1
      %p135 = scmp.ne.s32.totalorder %s130, %s132
      %p136 = scmp.eq.s32.totalorder %s33, 0
      %p137 = por %p135, %p136
      %p138 = scmp.ne.s32.totalorder %s130, %s132
      %p139 = scmp.eq.s32.totalorder %s38, 1
      %p140 = por %p138, %p139
      %p141 = scmp.ne.s32.totalorder %s132, %s133
      %p142 = scmp.eq.s32.totalorder %s38, 0
      %p143 = por %p141, %p142
      %p144 = scmp.ne.s32.totalorder %s132, %s133
      %p145 = scmp.eq.s32.totalorder %s39, 1
      %p146 = por %p144, %p145
      %p148 = scmp.ne.s32.totalorder %s133, %s147
      %p149 = scmp.eq.s32.totalorder %s39, 0
      %p150 = por %p148, %p149
      %s152 = sadd.s32 %s151, 1
      %p155 = scmp.eq.s32.totalorder %s33, 1
      %p156 = scmp.ne.s32.totalorder %s151, %s153
      %p157 = scmp.eq.s32.totalorder %s33, 0
      %p158 = por %p156, %p157
      %p159 = scmp.ne.s32.totalorder %s151, %s153
      %p160 = scmp.eq.s32.totalorder %s38, 1
      %p161 = por %p159, %p160
      %p162 = scmp.ne.s32.totalorder %s153, %s154
      %p163 = scmp.eq.s32.totalorder %s38, 0
      %p164 = por %p162, %p163
      %p165 = scmp.ne.s32.totalorder %s153, %s154
      %p166 = scmp.eq.s32.totalorder %s39, 1
      %p167 = por %p165, %p166
      %p169 = scmp.ne.s32.totalorder %s154, %s168
      %p170 = scmp.eq.s32.totalorder %s39, 0
      %p171 = por %p169, %p170
      %s173 = sadd.s32 %s172, 1
      %p176 = scmp.eq.s32.totalorder %s33, 1
      %p177 = scmp.ne.s32.totalorder %s172, %s174
      %p178 = scmp.eq.s32.totalorder %s33, 0
      %p179 = por %p177, %p178
      %p180 = scmp.ne.s32.totalorder %s172, %s174
      %p181 = scmp.eq.s32.totalorder %s38, 1
      %p182 = por %p180, %p181
      %p183 = scmp.ne.s32.totalorder %s174, %s175
      %p184 = scmp.eq.s32.totalorder %s38, 0
      %p185 = por %p183, %p184
      %p186 = scmp.ne.s32.totalorder %s174, %s175
      %p187 = scmp.eq.s32.totalorder %s39, 1
      %p188 = por %p186, %p187
      %p190 = scmp.ne.s32.totalorder %s175, %s189
      %p191 = scmp.eq.s32.totalorder %s39, 0
      %p192 = por %p190, %p191
      %s194 = sadd.s32 %s193, 1
      %p197 = scmp.eq.s32.totalorder %s33, 1
      %p198 = scmp.ne.s32.totalorder %s193, %s195
      %p199 = scmp.eq.s32.totalorder %s33, 0
      %p200 = por %p198, %p199
      %p201 = scmp.ne.s32.totalorder %s193, %s195
      %p202 = scmp.eq.s32.totalorder %s38, 1
      %p203 = por %p201, %p202
      %p204 = scmp.ne.s32.totalorder %s195, %s196
      %p205 = scmp.eq.s32.totalorder %s38, 0
      %p206 = por %p204, %p205
      %p207 = scmp.ne.s32.totalorder %s195, %s196
      %p208 = scmp.eq.s32.totalorder %s39, 1
      %p209 = por %p207, %p208
      %p211 = scmp.ne.s32.totalorder %s196, %s210
      %p212 = scmp.eq.s32.totalorder %s39, 0
      %p213 = por %p211, %p212
      %s215 = sadd.s32 %s214, 1
      %p218 = scmp.eq.s32.totalorder %s33, 1
      %p219 = scmp.ne.s32.totalorder %s214, %s216
      %p220 = scmp.eq.s32.totalorder %s33, 0
      %p221 = por %p219, %p220
      %p222 = scmp.ne.s32.totalorder %s214, %s216
      %p223 = scmp.eq.s32.totalorder %s38, 1
      %p224 = por %p222, %p223
      %p225 = scmp.ne.s32.totalorder %s216, %s217
      %p226 = scmp.eq.s32.totalorder %s38, 0
      %p227 = por %p225, %p226
      %p228 = scmp.ne.s32.totalorder %s216, %s217
      %p229 = scmp.eq.s32.totalorder %s39, 1
      %p230 = por %p228, %p229
      %p232 = scmp.ne.s32.totalorder %s217, %s231
      %p233 = scmp.eq.s32.totalorder %s39, 0
      %p234 = por %p232, %p233
      %s236 = sadd.s32 %s235, 1
      %p239 = scmp.eq.s32.totalorder %s33, 1
      %p240 = scmp.ne.s32.totalorder %s235, %s237
      %p241 = scmp.eq.s32.totalorder %s33, 0
      %p242 = por %p240, %p241
      %p243 = scmp.ne.s32.totalorder %s235, %s237
      %p244 = scmp.eq.s32.totalorder %s38, 1
      %p245 = por %p243, %p244
      %p246 = scmp.ne.s32.totalorder %s237, %s238
      %p247 = scmp.eq.s32.totalorder %s38, 0
      %p248 = por %p246, %p247
      %p249 = scmp.ne.s32.totalorder %s237, %s238
      %p250 = scmp.eq.s32.totalorder %s39, 1
      %p251 = por %p249, %p250
      %p253 = scmp.ne.s32.totalorder %s238, %s252
      %p254 = scmp.eq.s32.totalorder %s39, 0
      %p255 = por %p253, %p254
      %s257 = sadd.s32 %s256, 1
      %p260 = scmp.eq.s32.totalorder %s33, 1
      %p261 = scmp.ne.s32.totalorder %s256, %s258
      %p262 = scmp.eq.s32.totalorder %s33, 0
      %p263 = por %p261, %p262
      %p264 = scmp.ne.s32.totalorder %s256, %s258
      %p265 = scmp.eq.s32.totalorder %s38, 1
      %p266 = por %p264, %p265
      %p267 = scmp.ne.s32.totalorder %s258, %s259
      %p268 = scmp.eq.s32.totalorder %s38, 0
      %p269 = por %p267, %p268
      %p270 = scmp.ne.s32.totalorder %s258, %s259
      %p271 = scmp.eq.s32.totalorder %s39, 1
      %p272 = por %p270, %p271
      %p274 = scmp.ne.s32.totalorder %s259, %s273
      %p275 = scmp.eq.s32.totalorder %s39, 0
      %p276 = por %p274, %p275
      %s278 = sadd.s32 %s277, 1
      %p281 = scmp.eq.s32.totalorder %s33, 1
      %p282 = scmp.ne.s32.totalorder %s277, %s279
      %p283 = scmp.eq.s32.totalorder %s33, 0
      %p284 = por %p282, %p283
      %p285 = scmp.ne.s32.totalorder %s277, %s279
      %p286 = scmp.eq.s32.totalorder %s38, 1
      %p287 = por %p285, %p286
      %p288 = scmp.ne.s32.totalorder %s279, %s280
      %p289 = scmp.eq.s32.totalorder %s38, 0
      %p290 = por %p288, %p289
      %p291 = scmp.ne.s32.totalorder %s279, %s280
      %p292 = scmp.eq.s32.totalorder %s39, 1
      %p293 = por %p291, %p292
      %p295 = scmp.ne.s32.totalorder %s280, %s294
      %p296 = scmp.eq.s32.totalorder %s39, 0
      %p297 = por %p295, %p296
      %s299 = sadd.s32 %s298, 1
      %p302 = scmp.eq.s32.totalorder %s33, 1
      %p303 = scmp.ne.s32.totalorder %s298, %s300
      %p304 = scmp.eq.s32.totalorder %s33, 0
      %p305 = por %p303, %p304
      %p306 = scmp.ne.s32.totalorder %s298, %s300
      %p307 = scmp.eq.s32.totalorder %s38, 1
      %p308 = por %p306, %p307
      %p309 = scmp.ne.s32.totalorder %s300, %s301
      %p310 = scmp.eq.s32.totalorder %s38, 0
      %p311 = por %p309, %p310
      %p312 = scmp.ne.s32.totalorder %s300, %s301
      %p313 = scmp.eq.s32.totalorder %s39, 1
      %p314 = por %p312, %p313
      %p316 = scmp.ne.s32.totalorder %s301, %s315
      %p317 = scmp.eq.s32.totalorder %s39, 0
      %p318 = por %p316, %p317
      %s320 = sadd.s32 %s319, 1
      %p323 = scmp.eq.s32.totalorder %s33, 1
      %p324 = scmp.ne.s32.totalorder %s319, %s321
      %p325 = scmp.eq.s32.totalorder %s33, 0
      %p326 = por %p324, %p325
      %p327 = scmp.ne.s32.totalorder %s319, %s321
      %p328 = scmp.eq.s32.totalorder %s38, 1
      %p329 = por %p327, %p328
      %p330 = scmp.ne.s32.totalorder %s321, %s322
      %p331 = scmp.eq.s32.totalorder %s38, 0
      %p332 = por %p330, %p331
      %p333 = scmp.ne.s32.totalorder %s321, %s322
      %p334 = scmp.eq.s32.totalorder %s39, 1
      %p335 = por %p333, %p334
      %p337 = scmp.ne.s32.totalorder %s322, %s336
      %p338 = scmp.eq.s32.totalorder %s39, 0
      %p339 = por %p337, %p338
      %s341 = sadd.s32 %s340, 1
      %p344 = scmp.eq.s32.totalorder %s33, 1
      %p345 = scmp.ne.s32.totalorder %s340, %s342
      %p346 = scmp.eq.s32.totalorder %s33, 0
      %p347 = por %p345, %p346
      %p348 = scmp.ne.s32.totalorder %s340, %s342
      %p349 = scmp.eq.s32.totalorder %s38, 1
      %p350 = por %p348, %p349
      %p351 = scmp.ne.s32.totalorder %s342, %s343
      %p352 = scmp.eq.s32.totalorder %s38, 0
      %p353 = por %p351, %p352
      %p354 = scmp.ne.s32.totalorder %s342, %s343
      %p355 = scmp.eq.s32.totalorder %s39, 1
      %p356 = por %p354, %p355
      %p358 = scmp.ne.s32.totalorder %s343, %s357
      %p359 = scmp.eq.s32.totalorder %s39, 0
      %p360 = por %p358, %p359
      %s362 = sadd.s32 %s361, 1
      %p365 = scmp.eq.s32.totalorder %s33, 1
      %p366 = scmp.ne.s32.totalorder %s361, %s363
      %p367 = scmp.eq.s32.totalorder %s33, 0
      %p368 = por %p366, %p367
      %p369 = scmp.ne.s32.totalorder %s361, %s363
      %p370 = scmp.eq.s32.totalorder %s38, 1
      %p371 = por %p369, %p370
      %p372 = scmp.ne.s32.totalorder %s363, %s364
      %p373 = scmp.eq.s32.totalorder %s38, 0
      %p374 = por %p372, %p373
      %p375 = scmp.ne.s32.totalorder %s363, %s364
      %p376 = scmp.eq.s32.totalorder %s39, 1
      %p377 = por %p375, %p376
      %p379 = scmp.ne.s32.totalorder %s364, %s378
      %p380 = scmp.eq.s32.totalorder %s39, 0
      %p381 = por %p379, %p380
      %s383 = sadd.s32 %s382, 1
      %p386 = scmp.eq.s32.totalorder %s33, 1
      %p387 = scmp.ne.s32.totalorder %s382, %s384
      %p388 = scmp.eq.s32.totalorder %s33, 0
      %p389 = por %p387, %p388
      %p390 = scmp.ne.s32.totalorder %s382, %s384
      %p391 = scmp.eq.s32.totalorder %s38, 1
      %p392 = por %p390, %p391
      %p393 = scmp.ne.s32.totalorder %s384, %s385
      %p394 = scmp.eq.s32.totalorder %s38, 0
      %p395 = por %p393, %p394
      %p396 = scmp.ne.s32.totalorder %s384, %s385
      %p397 = scmp.eq.s32.totalorder %s39, 1
      %p398 = por %p396, %p397
      %p400 = scmp.ne.s32.totalorder %s385, %s399
      %p401 = scmp.eq.s32.totalorder %s39, 0
      %p402 = por %p400, %p401
      %s403 = ssub.s32 %s33, %s40
      %p404 = scmp.eq.s32.totalorder %s403, 0
      %s406 = sadd.s32 %s405, 1
      %s407 = scalar_select %p404, %s405, %s406
      %p410 = pneg %p404
      %p411 = scmp.eq.s32.totalorder %s33, 1
      %p412 = por %p410, %p411
      %p413 = scmp.ne.s32.totalorder %s405, %s408
      %p414 = scmp.eq.s32.totalorder %s33, 0
      %p415 = por %p413, %p414
      %p416 = scmp.ne.s32.totalorder %s405, %s408
      %p417 = scmp.eq.s32.totalorder %s38, 1
      %p418 = por %p416, %p417
      %p419 = scmp.ne.s32.totalorder %s408, %s409
      %p420 = scmp.eq.s32.totalorder %s38, 0
      %p421 = por %p419, %p420
      %p422 = scmp.ne.s32.totalorder %s408, %s409
      %p423 = scmp.eq.s32.totalorder %s39, 1
      %p424 = por %p422, %p423
      %p426 = scmp.ne.s32.totalorder %s409, %s425
      %p427 = scmp.eq.s32.totalorder %s39, 0
      %p428 = por %p426, %p427
      %p429 = scmp.le.s32.totalorder 1, %s33
      %p430 = scmp.lt.s32.totalorder %s33, 3
      %p431 = pnand %p429, %p430
      %p432 = pneg %p431
      // Predicated region
      $region9: #{tpu_custom_call.1} parent=5 // pred_check
        _
      $region10: #{tpu_custom_call.1} parent=5 // pred_check_branch
        %434 = sbr.rel (%p431) target = $region12
      $region11: #{tpu_custom_call.1} parent=5 // pred_region
        %s435 = ssub.s32 %s33, 1
        // Predicated region
        $region13: #{tpu_custom_call.1} parent=11 // pred_check
          %p436 = pneg %p80
        $region14: #{tpu_custom_call.1} parent=11 // pred_check_branch
          %438 = sbr.rel (%p436) target = $region16
        $region15: #{tpu_custom_call.1} parent=11 // pred_region
          %440 = vsyncadd [#allocation6], 0
          %s441 = sshll.u32 %s1, 4
          %s442 = int_to_ptr.hbm [resolvable:$true] %s441
          %s443 = sshll.u32 [#allocation5], 4
          %s444 = int_to_ptr.vmem [resolvable:$true] %s443
          %449 = dma.hbm_to_vmem [thread:$0]  %s442, 2048, %s444, [#allocation6], 128, 128, 8
        $region16: #{tpu_custom_call.1} parent=11 // pred_fallthru
          _
        // Predicated region
        $region17: #{tpu_custom_call.1} parent=11 // pred_check
          %p450 = pneg %p101
        $region18: #{tpu_custom_call.1} parent=11 // pred_check_branch
          %452 = sbr.rel (%p450) target = $region20
        $region19: #{tpu_custom_call.1} parent=11 // pred_region
          %454 = vsyncadd [#allocation6], 0
          %s456 = sshll.u32 %s2, 4
          %s457 = int_to_ptr.hbm [resolvable:$true] %s456
          %s458 = sshll.u32 [#allocation7], 4
          %s459 = int_to_ptr.vmem [resolvable:$true] %s458
          %461 = dma.hbm_to_vmem [thread:$0]  %s457, 16, %s459, [#allocation6]
        $region20: #{tpu_custom_call.1} parent=11 // pred_fallthru
          _
        // Predicated region
        $region21: #{tpu_custom_call.1} parent=11 // pred_check
          %p462 = pneg %p122
        $region22: #{tpu_custom_call.1} parent=11 // pred_check_branch
          %464 = sbr.rel (%p462) target = $region24
        $region23: #{tpu_custom_call.1} parent=11 // pred_region
          %466 = vsyncadd [#allocation9], 0
          %s467 = sshll.u32 %s3, 4
          %s468 = int_to_ptr.hbm [resolvable:$true] %s467
          %s469 = sshll.u32 [#allocation8], 4
          %s470 = int_to_ptr.vmem [resolvable:$true] %s469
          %475 = dma.hbm_to_vmem [thread:$0]  %s468, 6144, %s470, [#allocation9], 384, 384, 24
        $region24: #{tpu_custom_call.1} parent=11 // pred_fallthru
          _
        // Predicated region
        $region25: #{tpu_custom_call.1} parent=11 // pred_check
          %p476 = pneg %p143
        $region26: #{tpu_custom_call.1} parent=11 // pred_check_branch
          %478 = sbr.rel (%p476) target = $region28
        $region27: #{tpu_custom_call.1} parent=11 // pred_region
          _
        $region28: #{tpu_custom_call.1} parent=11 // pred_fallthru
          _
        // Predicated region
        $region29: #{tpu_custom_call.1} parent=11 // pred_check
          %p479 = pneg %p164
        $region30: #{tpu_custom_call.1} parent=11 // pred_check_branch
          %481 = sbr.rel (%p479) target = $region32
        $region31: #{tpu_custom_call.1} parent=11 // pred_region
          %483 = vsyncadd [#allocation9], 0
          %s484 = sshll.u32 %s5, 4
          %s485 = int_to_ptr.hbm [resolvable:$true] %s484
          %s486 = sshll.u32 [#allocation10], 4
          %s487 = int_to_ptr.vmem [resolvable:$true] %s486
          %492 = dma.hbm_to_vmem [thread:$0]  %s485, 2048, %s487, [#allocation9], 128, 128, 8
        $region32: #{tpu_custom_call.1} parent=11 // pred_fallthru
          _
        // Predicated region
        $region33: #{tpu_custom_call.1} parent=11 // pred_check
          %p493 = pneg %p185
        $region34: #{tpu_custom_call.1} parent=11 // pred_check_branch
          %495 = sbr.rel (%p493) target = $region36
        $region35: #{tpu_custom_call.1} parent=11 // pred_region
          _
        $region36: #{tpu_custom_call.1} parent=11 // pred_fallthru
          _
        // Predicated region
        $region37: #{tpu_custom_call.1} parent=11 // pred_check
          %p496 = pneg %p206
        $region38: #{tpu_custom_call.1} parent=11 // pred_check_branch
          %498 = sbr.rel (%p496) target = $region40
        $region39: #{tpu_custom_call.1} parent=11 // pred_region
          _
        $region40: #{tpu_custom_call.1} parent=11 // pred_fallthru
          _
        // Predicated region
        $region41: #{tpu_custom_call.1} parent=11 // pred_check
          %p499 = pneg %p227
        $region42: #{tpu_custom_call.1} parent=11 // pred_check_branch
          %501 = sbr.rel (%p499) target = $region44
        $region43: #{tpu_custom_call.1} parent=11 // pred_region
          _
        $region44: #{tpu_custom_call.1} parent=11 // pred_fallthru
          _
        // Predicated region
        $region45: #{tpu_custom_call.1} parent=11 // pred_check
          %p502 = pneg %p248
        $region46: #{tpu_custom_call.1} parent=11 // pred_check_branch
          %504 = sbr.rel (%p502) target = $region48
        $region47: #{tpu_custom_call.1} parent=11 // pred_region
          %506 = vsyncadd [#allocation12], 0
          %s507 = sshll.u32 %s9, 4
          %s508 = int_to_ptr.hbm [resolvable:$true] %s507
          %s509 = sshll.u32 [#allocation11], 4
          %s510 = int_to_ptr.vmem [resolvable:$true] %s509
          %515 = dma.hbm_to_vmem [thread:$0]  %s508, 2048, %s510, [#allocation12], 128, 128, 8
        $region48: #{tpu_custom_call.1} parent=11 // pred_fallthru
          _
        // Predicated region
        $region49: #{tpu_custom_call.1} parent=11 // pred_check
          %p516 = pneg %p269
        $region50: #{tpu_custom_call.1} parent=11 // pred_check_branch
          %518 = sbr.rel (%p516) target = $region52
        $region51: #{tpu_custom_call.1} parent=11 // pred_region
          _
        $region52: #{tpu_custom_call.1} parent=11 // pred_fallthru
          _
        // Predicated region
        $region53: #{tpu_custom_call.1} parent=11 // pred_check
          %p519 = pneg %p290
        $region54: #{tpu_custom_call.1} parent=11 // pred_check_branch
          %521 = sbr.rel (%p519) target = $region56
        $region55: #{tpu_custom_call.1} parent=11 // pred_region
          %523 = vsyncadd [#allocation12], 0
          %s524 = sshll.u32 %s11, 4
          %s525 = int_to_ptr.hbm [resolvable:$true] %s524
          %s526 = sshll.u32 [#allocation13], 4
          %s527 = int_to_ptr.vmem [resolvable:$true] %s526
          %532 = dma.hbm_to_vmem [thread:$0]  %s525, 2048, %s527, [#allocation12], 128, 128, 8
        $region56: #{tpu_custom_call.1} parent=11 // pred_fallthru
          _
        // Predicated region
        $region57: #{tpu_custom_call.1} parent=11 // pred_check
          %p533 = pneg %p311
        $region58: #{tpu_custom_call.1} parent=11 // pred_check_branch
          %535 = sbr.rel (%p533) target = $region60
        $region59: #{tpu_custom_call.1} parent=11 // pred_region
          _
        $region60: #{tpu_custom_call.1} parent=11 // pred_fallthru
          _
        // Predicated region
        $region61: #{tpu_custom_call.1} parent=11 // pred_check
          %p536 = pneg %p332
        $region62: #{tpu_custom_call.1} parent=11 // pred_check_branch
          %538 = sbr.rel (%p536) target = $region64
        $region63: #{tpu_custom_call.1} parent=11 // pred_region
          _
        $region64: #{tpu_custom_call.1} parent=11 // pred_fallthru
          _
        // Predicated region
        $region65: #{tpu_custom_call.1} parent=11 // pred_check
          %p539 = pneg %p353
        $region66: #{tpu_custom_call.1} parent=11 // pred_check_branch
          %541 = sbr.rel (%p539) target = $region68
        $region67: #{tpu_custom_call.1} parent=11 // pred_region
          _
        $region68: #{tpu_custom_call.1} parent=11 // pred_fallthru
          _
        // Predicated region
        $region69: #{tpu_custom_call.1} parent=11 // pred_check
          %p542 = pneg %p374
        $region70: #{tpu_custom_call.1} parent=11 // pred_check_branch
          %544 = sbr.rel (%p542) target = $region72
        $region71: #{tpu_custom_call.1} parent=11 // pred_region
          %546 = vsyncadd [#allocation15], 0
          %s547 = sshll.u32 %s15, 4
          %s548 = int_to_ptr.hbm [resolvable:$true] %s547
          %s549 = sshll.u32 [#allocation14], 4
          %s550 = int_to_ptr.vmem [resolvable:$true] %s549
          %555 = dma.hbm_to_vmem [thread:$0]  %s548, 2048, %s550, [#allocation15], 128, 128, 8
        $region72: #{tpu_custom_call.1} parent=11 // pred_fallthru
          _
        // Predicated region
        $region73: #{tpu_custom_call.1} parent=11 // pred_check
          %p556 = pneg %p395
        $region74: #{tpu_custom_call.1} parent=11 // pred_check_branch
          %558 = sbr.rel (%p556) target = $region76
        $region75: #{tpu_custom_call.1} parent=11 // pred_region
          _
        $region76: #{tpu_custom_call.1} parent=11 // pred_fallthru
          _
      $region12: #{tpu_custom_call.1} parent=5 // pred_fallthru
        _
      %p559 = scmp.lt.s32.totalorder %s33, 2
      // Predicated region
      $region77: #{tpu_custom_call.1} parent=5 // pred_check
        %p560 = pneg %p559
      $region78: #{tpu_custom_call.1} parent=5 // pred_check_branch
        %562 = sbr.rel (%p560) target = $region80
      $region79: #{tpu_custom_call.1} parent=5 // pred_region
        // Predicated region
        $region81: #{tpu_custom_call.1} parent=79 // pred_check
          %p563 = pneg %p53
        $region82: #{tpu_custom_call.1} parent=79 // pred_check_branch
          %565 = sbr.rel (%p563) target = $region84
        $region83: #{tpu_custom_call.1} parent=79 // pred_region
          %s566 = sand.u32 %s43, 1
          %s567 = scalar_lea.sflag [#allocation3], %s566
          %s568 = sand.u32 %s43, 1
          %s569 = smul.addr %s568, 128
          %s570 = scalar_lea.vmem [#allocation2], %s569
          %s571 = smul.u32 16, %s33
          %573 = vsyncadd %s567, 0
          %s574 = smul.addr %s571, 8
          %s575 = scalar_lea.hbm %s0, %s574
          %s576 = sshll.u32 %s575, 4
          %s577 = int_to_ptr.hbm [resolvable:$true] %s576
          %s578 = sshll.u32 %s570, 4
          %s579 = int_to_ptr.vmem [resolvable:$true] %s578
          %584 = dma.hbm_to_vmem [thread:$0]  %s577, 2048, %s579, %s567, 128, 128, 8
        $region84: #{tpu_custom_call.1} parent=79 // pred_fallthru
          _
      $region80: #{tpu_custom_call.1} parent=5 // pred_fallthru
        _
      %p585 = scmp.le.s32.totalorder 1, %s33
      %p586 = scmp.lt.s32.totalorder %s33, 3
      %p587 = pnand %p585, %p586
      %p588 = pneg %p587
      // Predicated region
      $region85: #{tpu_custom_call.1} parent=5 // pred_check
        _
      $region86: #{tpu_custom_call.1} parent=5 // pred_check_branch
        %590 = sbr.rel (%p587) target = $region88
      $region87: #{tpu_custom_call.1} parent=5 // pred_region
        %s591 = ssub.s32 %s33, 1
        %s592 = sand.u32 %s46, 1
        %s593 = scalar_lea.sflag [#allocation3], %s592
        %s594 = sand.u32 %s46, 1
        %s595 = smul.addr %s594, 128
        %s596 = scalar_lea.vmem [#allocation2], %s595
        // Predicated region
        $region89: #{tpu_custom_call.1} parent=87 // pred_check
          %p597 = pneg %p59
        $region90: #{tpu_custom_call.1} parent=87 // pred_check_branch
          %599 = sbr.rel (%p597) target = $region92
        $region91: #{tpu_custom_call.1} parent=87 // pred_region
          %601 = dma.done %s593, 2048
        $region92: #{tpu_custom_call.1} parent=87 // pred_fallthru
          _
        // Predicated region
        $region93: #{tpu_custom_call.1} parent=87 // pred_check
          %p602 = pneg %p80
        $region94: #{tpu_custom_call.1} parent=87 // pred_check_branch
          %604 = sbr.rel (%p602) target = $region96
        $region95: #{tpu_custom_call.1} parent=87 // pred_region
          %606 = dma.done [#allocation6], 2048
        $region96: #{tpu_custom_call.1} parent=87 // pred_fallthru
          _
        // Predicated region
        $region97: #{tpu_custom_call.1} parent=87 // pred_check
          %p607 = pneg %p101
        $region98: #{tpu_custom_call.1} parent=87 // pred_check_branch
          %609 = sbr.rel (%p607) target = $region100
        $region99: #{tpu_custom_call.1} parent=87 // pred_region
          %611 = dma.done [#allocation6], 16
        $region100: #{tpu_custom_call.1} parent=87 // pred_fallthru
          _
        // Predicated region
        $region101: #{tpu_custom_call.1} parent=87 // pred_check
          %p612 = pneg %p122
        $region102: #{tpu_custom_call.1} parent=87 // pred_check_branch
          %614 = sbr.rel (%p612) target = $region104
        $region103: #{tpu_custom_call.1} parent=87 // pred_region
          %616 = dma.done [#allocation9], 6144
        $region104: #{tpu_custom_call.1} parent=87 // pred_fallthru
          _
        // Predicated region
        $region105: #{tpu_custom_call.1} parent=87 // pred_check
          %p617 = pneg %p164
        $region106: #{tpu_custom_call.1} parent=87 // pred_check_branch
          %619 = sbr.rel (%p617) target = $region108
        $region107: #{tpu_custom_call.1} parent=87 // pred_region
          %621 = dma.done [#allocation9], 2048
        $region108: #{tpu_custom_call.1} parent=87 // pred_fallthru
          _
        // Predicated region
        $region109: #{tpu_custom_call.1} parent=87 // pred_check
          %p622 = pneg %p248
        $region110: #{tpu_custom_call.1} parent=87 // pred_check_branch
          %624 = sbr.rel (%p622) target = $region112
        $region111: #{tpu_custom_call.1} parent=87 // pred_region
          %626 = dma.done [#allocation12], 2048
        $region112: #{tpu_custom_call.1} parent=87 // pred_fallthru
          _
        // Predicated region
        $region113: #{tpu_custom_call.1} parent=87 // pred_check
          %p627 = pneg %p290
        $region114: #{tpu_custom_call.1} parent=87 // pred_check_branch
          %629 = sbr.rel (%p627) target = $region116
        $region115: #{tpu_custom_call.1} parent=87 // pred_region
          %631 = dma.done [#allocation12], 2048
        $region116: #{tpu_custom_call.1} parent=87 // pred_fallthru
          _
        // Predicated region
        $region117: #{tpu_custom_call.1} parent=87 // pred_check
          %p632 = pneg %p374
        $region118: #{tpu_custom_call.1} parent=87 // pred_check_branch
          %634 = sbr.rel (%p632) target = $region120
        $region119: #{tpu_custom_call.1} parent=87 // pred_region
          %636 = dma.done [#allocation15], 2048
        $region120: #{tpu_custom_call.1} parent=87 // pred_fallthru
          _
        %s637 = sand.u32 %s46, 1
        %s638 = scalar_lea.sflag [#allocation3], %s637
        %s639 = sand.u32 %s46, 1
        %s640 = smul.addr %s639, 128
        %s641 = scalar_lea.vmem [#allocation2], %s640
        %p642 = pneg %p59
        %p643 = pneg %p56
        %p644 = pneg %p80
        %p645 = pneg %p77
        %p646 = pneg %p101
        %p647 = pneg %p98
        %p648 = pneg %p122
        %p649 = pneg %p119
        %p650 = pneg %p143
        %p651 = pneg %p140
        %p652 = pneg %p164
        %p653 = pneg %p161
        %p654 = pneg %p185
        %p655 = pneg %p182
        %p656 = pneg %p206
        %p657 = pneg %p203
        %p658 = pneg %p227
        %p659 = pneg %p224
        %p660 = pneg %p248
        %p661 = pneg %p245
        %p662 = pneg %p269
        %p663 = pneg %p266
        %p664 = pneg %p290
        %p665 = pneg %p287
        %p666 = pneg %p311
        %p667 = pneg %p308
        %p668 = pneg %p332
        %p669 = pneg %p329
        %p670 = pneg %p353
        %p671 = pneg %p350
        %p672 = pneg %p374
        %p673 = pneg %p371
        %p674 = pneg %p395
        %p675 = pneg %p392
        %p676 = pneg %p421
        %p677 = pneg %p418
        %s678 = sand.u32 %s408, 1
        %s679 = scalar_lea.sflag [#allocation4], %s678
        %s680 = sand.u32 %s408, 1
        %s681 = smul.addr %s680, 128
        %s682 = scalar_lea.vmem [#allocation16], %s681
        %s683 = smul.u32 16, %s38
        %s684 = smul.u32 16, %s38
        %v685 = vld [vmem:[%s596] sm:$0xff]
        %v686 = vld [vmem:[%s596 + $0x8] sm:$0xff]
        %v687 = vld [vmem:[%s596 + $0x10] sm:$0xff]
        %v688 = vld [vmem:[%s596 + $0x18] sm:$0xff]
        %v689 = vld [vmem:[%s596 + $0x20] sm:$0xff]
        %v690 = vld [vmem:[%s596 + $0x28] sm:$0xff]
        %v691 = vld [vmem:[%s596 + $0x30] sm:$0xff]
        %v692 = vld [vmem:[%s596 + $0x38] sm:$0xff]
        %v693 = vld [vmem:[%s596 + $0x40] sm:$0xff]
        %v694 = vld [vmem:[%s596 + $0x48] sm:$0xff]
        %v695 = vld [vmem:[%s596 + $0x50] sm:$0xff]
        %v696 = vld [vmem:[%s596 + $0x58] sm:$0xff]
        %v697 = vld [vmem:[%s596 + $0x60] sm:$0xff]
        %v698 = vld [vmem:[%s596 + $0x68] sm:$0xff]
        %v699 = vld [vmem:[%s596 + $0x70] sm:$0xff]
        %v700 = vld [vmem:[%s596 + $0x78] sm:$0xff]
        %v701 = vld [vmem:[#allocation5] sm:$0xff]
        %v702 = vld [vmem:[#allocation5 + $0x8] sm:$0xff]
        %v703 = vld [vmem:[#allocation5 + $0x10] sm:$0xff]
        %v704 = vld [vmem:[#allocation5 + $0x18] sm:$0xff]
        %v705 = vld [vmem:[#allocation5 + $0x20] sm:$0xff]
        %v706 = vld [vmem:[#allocation5 + $0x28] sm:$0xff]
        %v707 = vld [vmem:[#allocation5 + $0x30] sm:$0xff]
        %v708 = vld [vmem:[#allocation5 + $0x38] sm:$0xff]
        %v709 = vld [vmem:[#allocation5 + $0x40] sm:$0xff]
        %v710 = vld [vmem:[#allocation5 + $0x48] sm:$0xff]
        %v711 = vld [vmem:[#allocation5 + $0x50] sm:$0xff]
        %v712 = vld [vmem:[#allocation5 + $0x58] sm:$0xff]
        %v713 = vld [vmem:[#allocation5 + $0x60] sm:$0xff]
        %v714 = vld [vmem:[#allocation5 + $0x68] sm:$0xff]
        %v715 = vld [vmem:[#allocation5 + $0x70] sm:$0xff]
        %v716 = vld [vmem:[#allocation5 + $0x78] sm:$0xff]
        %v717 = vld [vmem:[#allocation7] sm:$0x1]
        %v719 = vperm.slane %v717, 0
        %721 = vmatpush.msra.mxu0 %v716
        %722 = vmatpush.msra.mxu0 %v715
        %723 = vmatpush.msra.mxu0 %v714
        %724 = vmatpush.msra.mxu0 %v713
        %725 = vmatpush.msra.mxu0 %v712
        %726 = vmatpush.msra.mxu0 %v711
        %727 = vmatpush.msra.mxu0 %v710
        %728 = vmatpush.msra.mxu0 %v709
        %729 = vmatpush.msra.mxu0 %v708
        %730 = vmatpush.msra.mxu0 %v707
        %731 = vmatpush.msra.mxu0 %v706
        %732 = vmatpush.msra.mxu0 %v705
        %733 = vmatpush.msra.mxu0 %v704
        %734 = vmatpush.msra.mxu0 %v703
        %735 = vmatpush.msra.mxu0 %v702
        %736 = vmatpush.msra.mxu0 %v701
        %737 = vmatmul.f32.gmra.mxu0 %v685
        %v738 = vpop.f32.mrf.mxu0
        %v739 = vadd.f32 %v719, %v738
        %740 = vmatmul.f32.gmra.mxu0 %v686
        %v741 = vpop.f32.mrf.mxu0
        %v742 = vadd.f32 %v719, %v741
        %743 = vmatmul.f32.gmra.mxu0 %v687
        %v744 = vpop.f32.mrf.mxu0
        %v745 = vadd.f32 %v719, %v744
        %746 = vmatmul.f32.gmra.mxu0 %v688
        %v747 = vpop.f32.mrf.mxu0
        %v748 = vadd.f32 %v719, %v747
        %749 = vmatmul.f32.gmra.mxu0 %v689
        %v750 = vpop.f32.mrf.mxu0
        %v751 = vadd.f32 %v719, %v750
        %752 = vmatmul.f32.gmra.mxu0 %v690
        %v753 = vpop.f32.mrf.mxu0
        %v754 = vadd.f32 %v719, %v753
        %755 = vmatmul.f32.gmra.mxu0 %v691
        %v756 = vpop.f32.mrf.mxu0
        %v757 = vadd.f32 %v719, %v756
        %758 = vmatmul.f32.gmra.mxu0 %v692
        %v759 = vpop.f32.mrf.mxu0
        %v760 = vadd.f32 %v719, %v759
        %761 = vmatmul.f32.gmra.mxu0 %v693
        %v762 = vpop.f32.mrf.mxu0
        %v763 = vadd.f32 %v719, %v762
        %764 = vmatmul.f32.gmra.mxu0 %v694
        %v765 = vpop.f32.mrf.mxu0
        %v766 = vadd.f32 %v719, %v765
        %767 = vmatmul.f32.gmra.mxu0 %v695
        %v768 = vpop.f32.mrf.mxu0
        %v769 = vadd.f32 %v719, %v768
        %770 = vmatmul.f32.gmra.mxu0 %v696
        %v771 = vpop.f32.mrf.mxu0
        %v772 = vadd.f32 %v719, %v771
        %773 = vmatmul.f32.gmra.mxu0 %v697
        %v774 = vpop.f32.mrf.mxu0
        %v775 = vadd.f32 %v719, %v774
        %776 = vmatmul.f32.gmra.mxu0 %v698
        %v777 = vpop.f32.mrf.mxu0
        %v778 = vadd.f32 %v719, %v777
        %779 = vmatmul.f32.gmra.mxu0 %v699
        %v780 = vpop.f32.mrf.mxu0
        %v781 = vadd.f32 %v719, %v780
        %782 = vmatmul.f32.gmra.mxu0 %v700
        %v783 = vpop.f32.mrf.mxu0
        %v784 = vadd.f32 %v719, %v783
        %785 = vdwg.mxu0
        %v786 = vld [vmem:[#allocation8] sm:$0xff]
        %v787 = vld [vmem:[#allocation8 + $0x8] sm:$0xff]
        %v788 = vld [vmem:[#allocation8 + $0x10] sm:$0xff]
        %v789 = vld [vmem:[#allocation8 + $0x18] sm:$0xff]
        %v790 = vld [vmem:[#allocation8 + $0x20] sm:$0xff]
        %v791 = vld [vmem:[#allocation8 + $0x28] sm:$0xff]
        %v792 = vld [vmem:[#allocation8 + $0x30] sm:$0xff]
        %v793 = vld [vmem:[#allocation8 + $0x38] sm:$0xff]
        %v794 = vld [vmem:[#allocation8 + $0x40] sm:$0xff]
        %v795 = vld [vmem:[#allocation8 + $0x48] sm:$0xff]
        %v796 = vld [vmem:[#allocation8 + $0x50] sm:$0xff]
        %v797 = vld [vmem:[#allocation8 + $0x58] sm:$0xff]
        %v798 = vld [vmem:[#allocation8 + $0x60] sm:$0xff]
        %v799 = vld [vmem:[#allocation8 + $0x68] sm:$0xff]
        %v800 = vld [vmem:[#allocation8 + $0x70] sm:$0xff]
        %v801 = vld [vmem:[#allocation8 + $0x78] sm:$0xff]
        %v802 = vld [vmem:[#allocation8 + $0x80] sm:$0xff]
        %v803 = vld [vmem:[#allocation8 + $0x88] sm:$0xff]
        %v804 = vld [vmem:[#allocation8 + $0x90] sm:$0xff]
        %v805 = vld [vmem:[#allocation8 + $0x98] sm:$0xff]
        %v806 = vld [vmem:[#allocation8 + $0xa0] sm:$0xff]
        %v807 = vld [vmem:[#allocation8 + $0xa8] sm:$0xff]
        %v808 = vld [vmem:[#allocation8 + $0xb0] sm:$0xff]
        %v809 = vld [vmem:[#allocation8 + $0xb8] sm:$0xff]
        %v810 = vld [vmem:[#allocation8 + $0xc0] sm:$0xff]
        %v811 = vld [vmem:[#allocation8 + $0xc8] sm:$0xff]
        %v812 = vld [vmem:[#allocation8 + $0xd0] sm:$0xff]
        %v813 = vld [vmem:[#allocation8 + $0xd8] sm:$0xff]
        %v814 = vld [vmem:[#allocation8 + $0xe0] sm:$0xff]
        %v815 = vld [vmem:[#allocation8 + $0xe8] sm:$0xff]
        %v816 = vld [vmem:[#allocation8 + $0xf0] sm:$0xff]
        %v817 = vld [vmem:[#allocation8 + $0xf8] sm:$0xff]
        %v818 = vld [vmem:[#allocation8 + $0x100] sm:$0xff]
        %v819 = vld [vmem:[#allocation8 + $0x108] sm:$0xff]
        %v820 = vld [vmem:[#allocation8 + $0x110] sm:$0xff]
        %v821 = vld [vmem:[#allocation8 + $0x118] sm:$0xff]
        %v822 = vld [vmem:[#allocation8 + $0x120] sm:$0xff]
        %v823 = vld [vmem:[#allocation8 + $0x128] sm:$0xff]
        %v824 = vld [vmem:[#allocation8 + $0x130] sm:$0xff]
        %v825 = vld [vmem:[#allocation8 + $0x138] sm:$0xff]
        %v826 = vld [vmem:[#allocation8 + $0x140] sm:$0xff]
        %v827 = vld [vmem:[#allocation8 + $0x148] sm:$0xff]
        %v828 = vld [vmem:[#allocation8 + $0x150] sm:$0xff]
        %v829 = vld [vmem:[#allocation8 + $0x158] sm:$0xff]
        %v830 = vld [vmem:[#allocation8 + $0x160] sm:$0xff]
        %v831 = vld [vmem:[#allocation8 + $0x168] sm:$0xff]
        %v832 = vld [vmem:[#allocation8 + $0x170] sm:$0xff]
        %v833 = vld [vmem:[#allocation8 + $0x178] sm:$0xff]
        %v834 = vld [vmem:[%s4] sm:$0x7]
        %v836 = vperm.slane %v834, 0
        %v837 = vperm.slane %v834, 1
        %v838 = vperm.slane %v834, 2
        %842 = vmatpush.msra.mxu0 %v831
        %843 = vmatpush.msra.mxu0 %v828
        %844 = vmatpush.msra.mxu0 %v825
        %845 = vmatpush.msra.mxu0 %v822
        %846 = vmatpush.msra.mxu0 %v819
        %847 = vmatpush.msra.mxu0 %v816
        %848 = vmatpush.msra.mxu0 %v813
        %849 = vmatpush.msra.mxu0 %v810
        %850 = vmatpush.msra.mxu0 %v807
        %851 = vmatpush.msra.mxu0 %v804
        %852 = vmatpush.msra.mxu0 %v801
        %853 = vmatpush.msra.mxu0 %v798
        %854 = vmatpush.msra.mxu0 %v795
        %855 = vmatpush.msra.mxu0 %v792
        %856 = vmatpush.msra.mxu0 %v789
        %857 = vmatpush.msra.mxu0 %v786
        %858 = vmatmul.f32.gmra.mxu0 %v739
        %v859 = vpop.f32.mrf.mxu0
        %v860 = vadd.f32 %v836, %v859
        %861 = vmatmul.f32.gmra.mxu0 %v742
        %v862 = vpop.f32.mrf.mxu0
        %v863 = vadd.f32 %v836, %v862
        %864 = vmatmul.f32.gmra.mxu0 %v745
        %v865 = vpop.f32.mrf.mxu0
        %v866 = vadd.f32 %v836, %v865
        %867 = vmatmul.f32.gmra.mxu0 %v748
        %v868 = vpop.f32.mrf.mxu0
        %v869 = vadd.f32 %v836, %v868
        %870 = vmatmul.f32.gmra.mxu0 %v751
        %v871 = vpop.f32.mrf.mxu0
        %v872 = vadd.f32 %v836, %v871
        %873 = vmatmul.f32.gmra.mxu0 %v754
        %v874 = vpop.f32.mrf.mxu0
        %v875 = vadd.f32 %v836, %v874
        %876 = vmatmul.f32.gmra.mxu0 %v757
        %v877 = vpop.f32.mrf.mxu0
        %v878 = vadd.f32 %v836, %v877
        %879 = vmatmul.f32.gmra.mxu0 %v760
        %v880 = vpop.f32.mrf.mxu0
        %v881 = vadd.f32 %v836, %v880
        %882 = vmatmul.f32.gmra.mxu0 %v763
        %v883 = vpop.f32.mrf.mxu0
        %v884 = vadd.f32 %v836, %v883
        %885 = vmatmul.f32.gmra.mxu0 %v766
        %v886 = vpop.f32.mrf.mxu0
        %v887 = vadd.f32 %v836, %v886
        %888 = vmatmul.f32.gmra.mxu0 %v769
        %v889 = vpop.f32.mrf.mxu0
        %v890 = vadd.f32 %v836, %v889
        %891 = vmatmul.f32.gmra.mxu0 %v772
        %v892 = vpop.f32.mrf.mxu0
        %v893 = vadd.f32 %v836, %v892
        %894 = vmatmul.f32.gmra.mxu0 %v775
        %v895 = vpop.f32.mrf.mxu0
        %v896 = vadd.f32 %v836, %v895
        %897 = vmatmul.f32.gmra.mxu0 %v778
        %v898 = vpop.f32.mrf.mxu0
        %v899 = vadd.f32 %v836, %v898
        %900 = vmatmul.f32.gmra.mxu0 %v781
        %v901 = vpop.f32.mrf.mxu0
        %v902 = vadd.f32 %v836, %v901
        %903 = vmatmul.f32.gmra.mxu0 %v784
        %v904 = vpop.f32.mrf.mxu0
        %v905 = vadd.f32 %v836, %v904
        %906 = vdwg.mxu0
        %907 = vmatpush.msra.mxu0 %v832
        %908 = vmatpush.msra.mxu0 %v829
        %909 = vmatpush.msra.mxu0 %v826
        %910 = vmatpush.msra.mxu0 %v823
        %911 = vmatpush.msra.mxu0 %v820
        %912 = vmatpush.msra.mxu0 %v817
        %913 = vmatpush.msra.mxu0 %v814
        %914 = vmatpush.msra.mxu0 %v811
        %915 = vmatpush.msra.mxu0 %v808
        %916 = vmatpush.msra.mxu0 %v805
        %917 = vmatpush.msra.mxu0 %v802
        %918 = vmatpush.msra.mxu0 %v799
        %919 = vmatpush.msra.mxu0 %v796
        %920 = vmatpush.msra.mxu0 %v793
        %921 = vmatpush.msra.mxu0 %v790
        %922 = vmatpush.msra.mxu0 %v787
        %923 = vmatmul.f32.gmra.mxu0 %v739
        %v924 = vpop.f32.mrf.mxu0
        %v925 = vadd.f32 %v837, %v924
        %926 = vmatmul.f32.gmra.mxu0 %v742
        %v927 = vpop.f32.mrf.mxu0
        %v928 = vadd.f32 %v837, %v927
        %929 = vmatmul.f32.gmra.mxu0 %v745
        %v930 = vpop.f32.mrf.mxu0
        %v931 = vadd.f32 %v837, %v930
        %932 = vmatmul.f32.gmra.mxu0 %v748
        %v933 = vpop.f32.mrf.mxu0
        %v934 = vadd.f32 %v837, %v933
        %935 = vmatmul.f32.gmra.mxu0 %v751
        %v936 = vpop.f32.mrf.mxu0
        %v937 = vadd.f32 %v837, %v936
        %938 = vmatmul.f32.gmra.mxu0 %v754
        %v939 = vpop.f32.mrf.mxu0
        %v940 = vadd.f32 %v837, %v939
        %941 = vmatmul.f32.gmra.mxu0 %v757
        %v942 = vpop.f32.mrf.mxu0
        %v943 = vadd.f32 %v837, %v942
        %944 = vmatmul.f32.gmra.mxu0 %v760
        %v945 = vpop.f32.mrf.mxu0
        %v946 = vadd.f32 %v837, %v945
        %947 = vmatmul.f32.gmra.mxu0 %v763
        %v948 = vpop.f32.mrf.mxu0
        %v949 = vadd.f32 %v837, %v948
        %950 = vmatmul.f32.gmra.mxu0 %v766
        %v951 = vpop.f32.mrf.mxu0
        %v952 = vadd.f32 %v837, %v951
        %953 = vmatmul.f32.gmra.mxu0 %v769
        %v954 = vpop.f32.mrf.mxu0
        %v955 = vadd.f32 %v837, %v954
        %956 = vmatmul.f32.gmra.mxu0 %v772
        %v957 = vpop.f32.mrf.mxu0
        %v958 = vadd.f32 %v837, %v957
        %959 = vmatmul.f32.gmra.mxu0 %v775
        %v960 = vpop.f32.mrf.mxu0
        %v961 = vadd.f32 %v837, %v960
        %962 = vmatmul.f32.gmra.mxu0 %v778
        %v963 = vpop.f32.mrf.mxu0
        %v964 = vadd.f32 %v837, %v963
        %965 = vmatmul.f32.gmra.mxu0 %v781
        %v966 = vpop.f32.mrf.mxu0
        %v967 = vadd.f32 %v837, %v966
        %968 = vmatmul.f32.gmra.mxu0 %v784
        %v969 = vpop.f32.mrf.mxu0
        %v970 = vadd.f32 %v837, %v969
        %971 = vdwg.mxu0
        %972 = vmatpush.msra.mxu0 %v833
        %973 = vmatpush.msra.mxu0 %v830
        %974 = vmatpush.msra.mxu0 %v827
        %975 = vmatpush.msra.mxu0 %v824
        %976 = vmatpush.msra.mxu0 %v821
        %977 = vmatpush.msra.mxu0 %v818
        %978 = vmatpush.msra.mxu0 %v815
        %979 = vmatpush.msra.mxu0 %v812
        %980 = vmatpush.msra.mxu0 %v809
        %981 = vmatpush.msra.mxu0 %v806
        %982 = vmatpush.msra.mxu0 %v803
        %983 = vmatpush.msra.mxu0 %v800
        %984 = vmatpush.msra.mxu0 %v797
        %985 = vmatpush.msra.mxu0 %v794
        %986 = vmatpush.msra.mxu0 %v791
        %987 = vmatpush.msra.mxu0 %v788
        %988 = vmatmul.f32.gmra.mxu0 %v739
        %v989 = vpop.f32.mrf.mxu0
        %v990 = vadd.f32 %v838, %v989
        %991 = vmatmul.f32.gmra.mxu0 %v742
        %v992 = vpop.f32.mrf.mxu0
        %v993 = vadd.f32 %v838, %v992
        %994 = vmatmul.f32.gmra.mxu0 %v745
        %v995 = vpop.f32.mrf.mxu0
        %v996 = vadd.f32 %v838, %v995
        %997 = vmatmul.f32.gmra.mxu0 %v748
        %v998 = vpop.f32.mrf.mxu0
        %v999 = vadd.f32 %v838, %v998
        %1000 = vmatmul.f32.gmra.mxu0 %v751
        %v1001 = vpop.f32.mrf.mxu0
        %v1002 = vadd.f32 %v838, %v1001
        %1003 = vmatmul.f32.gmra.mxu0 %v754
        %v1004 = vpop.f32.mrf.mxu0
        %v1005 = vadd.f32 %v838, %v1004
        %1006 = vmatmul.f32.gmra.mxu0 %v757
        %v1007 = vpop.f32.mrf.mxu0
        %v1008 = vadd.f32 %v838, %v1007
        %1009 = vmatmul.f32.gmra.mxu0 %v760
        %v1010 = vpop.f32.mrf.mxu0
        %v1011 = vadd.f32 %v838, %v1010
        %1012 = vmatmul.f32.gmra.mxu0 %v763
        %v1013 = vpop.f32.mrf.mxu0
        %v1014 = vadd.f32 %v838, %v1013
        %1015 = vmatmul.f32.gmra.mxu0 %v766
        %v1016 = vpop.f32.mrf.mxu0
        %v1017 = vadd.f32 %v838, %v1016
        %1018 = vmatmul.f32.gmra.mxu0 %v769
        %v1019 = vpop.f32.mrf.mxu0
        %v1020 = vadd.f32 %v838, %v1019
        %1021 = vmatmul.f32.gmra.mxu0 %v772
        %v1022 = vpop.f32.mrf.mxu0
        %v1023 = vadd.f32 %v838, %v1022
        %1024 = vmatmul.f32.gmra.mxu0 %v775
        %v1025 = vpop.f32.mrf.mxu0
        %v1026 = vadd.f32 %v838, %v1025
        %1027 = vmatmul.f32.gmra.mxu0 %v778
        %v1028 = vpop.f32.mrf.mxu0
        %v1029 = vadd.f32 %v838, %v1028
        %1030 = vmatmul.f32.gmra.mxu0 %v781
        %v1031 = vpop.f32.mrf.mxu0
        %v1032 = vadd.f32 %v838, %v1031
        %1033 = vmatmul.f32.gmra.mxu0 %v784
        %v1034 = vpop.f32.mrf.mxu0
        %v1035 = vadd.f32 %v838, %v1034
        %1036 = vdwg.mxu0
        %v1037 = vmul.f32 %v860, 0.35355338
        %v1038 = vmul.f32 %v863, 0.35355338
        %v1039 = vmul.f32 %v866, 0.35355338
        %v1040 = vmul.f32 %v869, 0.35355338
        %v1041 = vmul.f32 %v872, 0.35355338
        %v1042 = vmul.f32 %v875, 0.35355338
        %v1043 = vmul.f32 %v878, 0.35355338
        %v1044 = vmul.f32 %v881, 0.35355338
        %v1045 = vmul.f32 %v884, 0.35355338
        %v1046 = vmul.f32 %v887, 0.35355338
        %v1047 = vmul.f32 %v890, 0.35355338
        %v1048 = vmul.f32 %v893, 0.35355338
        %v1049 = vmul.f32 %v896, 0.35355338
        %v1050 = vmul.f32 %v899, 0.35355338
        %v1051 = vmul.f32 %v902, 0.35355338
        %v1052 = vmul.f32 %v905, 0.35355338
        %v1053 = vld [vmem:[%s6] sm:$0x1]
        %v1055 = vperm.slane %v1053, 0
        %v1057 = vadd.f32 %v1055, 0.0
        %vm1058 = vcmask 64512
        %v1060 = vsel %vm1058, %v1037, 0
        %v1063 = vsel %vm1058, %v925, 0
        %1065 = vmatpush.xpose.msra.mxu0 0.0
        %1066 = vmatpush.xpose.msra.mxu0 0.0
        %1067 = vmatpush.xpose.msra.mxu0 0.0
        %1068 = vmatpush.xpose.msra.mxu0 0.0
        %1069 = vmatpush.xpose.msra.mxu0 0.0
        %1070 = vmatpush.xpose.msra.mxu0 0.0
        %1071 = vmatpush.xpose.msra.mxu0 0.0
        %1072 = vmatpush.xpose.msra.mxu0 0.0
        %1073 = vmatpush.xpose.msra.mxu0 0.0
        %1074 = vmatpush.xpose.msra.mxu0 0.0
        %1075 = vmatpush.xpose.msra.mxu0 0.0
        %1076 = vmatpush.xpose.msra.mxu0 0.0
        %1077 = vmatpush.xpose.msra.mxu0 0.0
        %1078 = vmatpush.xpose.msra.mxu0 0.0
        %1079 = vmatpush.xpose.msra.mxu0 0.0
        %1080 = vmatpush.xpose.msra.mxu0 %v1063
        %1081 = vmatmul.f32.gmra.mxu0 %v1060
        %v1082 = vpop.f32.mrf.mxu0
        %v1083 = vadd.f32 0.0, %v1082
        %1084 = vdwg.mxu0
        %v1086 = vsel %vm1058, %v1038, 0
        %v1089 = vsel %vm1058, %v928, 0
        %1091 = vmatpush.xpose.msra.mxu0 0.0
        %1092 = vmatpush.xpose.msra.mxu0 0.0
        %1093 = vmatpush.xpose.msra.mxu0 0.0
        %1094 = vmatpush.xpose.msra.mxu0 0.0
        %1095 = vmatpush.xpose.msra.mxu0 0.0
        %1096 = vmatpush.xpose.msra.mxu0 0.0
        %1097 = vmatpush.xpose.msra.mxu0 0.0
        %1098 = vmatpush.xpose.msra.mxu0 0.0
        %1099 = vmatpush.xpose.msra.mxu0 0.0
        %1100 = vmatpush.xpose.msra.mxu0 0.0
        %1101 = vmatpush.xpose.msra.mxu0 0.0
        %1102 = vmatpush.xpose.msra.mxu0 0.0
        %1103 = vmatpush.xpose.msra.mxu0 0.0
        %1104 = vmatpush.xpose.msra.mxu0 0.0
        %1105 = vmatpush.xpose.msra.mxu0 0.0
        %1106 = vmatpush.xpose.msra.mxu0 %v1089
        %1107 = vmatmul.f32.gmra.mxu0 %v1086
        %v1108 = vpop.f32.mrf.mxu0
        %v1109 = vadd.f32 0.0, %v1108
        %1110 = vdwg.mxu0
        %v1112 = vsel %vm1058, %v1039, 0
        %v1115 = vsel %vm1058, %v931, 0
        %1117 = vmatpush.xpose.msra.mxu0 0.0
        %1118 = vmatpush.xpose.msra.mxu0 0.0
        %1119 = vmatpush.xpose.msra.mxu0 0.0
        %1120 = vmatpush.xpose.msra.mxu0 0.0
        %1121 = vmatpush.xpose.msra.mxu0 0.0
        %1122 = vmatpush.xpose.msra.mxu0 0.0
        %1123 = vmatpush.xpose.msra.mxu0 0.0
        %1124 = vmatpush.xpose.msra.mxu0 0.0
        %1125 = vmatpush.xpose.msra.mxu0 0.0
        %1126 = vmatpush.xpose.msra.mxu0 0.0
        %1127 = vmatpush.xpose.msra.mxu0 0.0
        %1128 = vmatpush.xpose.msra.mxu0 0.0
        %1129 = vmatpush.xpose.msra.mxu0 0.0
        %1130 = vmatpush.xpose.msra.mxu0 0.0
        %1131 = vmatpush.xpose.msra.mxu0 0.0
        %1132 = vmatpush.xpose.msra.mxu0 %v1115
        %1133 = vmatmul.f32.gmra.mxu0 %v1112
        %v1134 = vpop.f32.mrf.mxu0
        %v1135 = vadd.f32 0.0, %v1134
        %1136 = vdwg.mxu0
        %v1138 = vsel %vm1058, %v1040, 0
        %v1141 = vsel %vm1058, %v934, 0
        %1143 = vmatpush.xpose.msra.mxu0 0.0
        %1144 = vmatpush.xpose.msra.mxu0 0.0
        %1145 = vmatpush.xpose.msra.mxu0 0.0
        %1146 = vmatpush.xpose.msra.mxu0 0.0
        %1147 = vmatpush.xpose.msra.mxu0 0.0
        %1148 = vmatpush.xpose.msra.mxu0 0.0
        %1149 = vmatpush.xpose.msra.mxu0 0.0
        %1150 = vmatpush.xpose.msra.mxu0 0.0
        %1151 = vmatpush.xpose.msra.mxu0 0.0
        %1152 = vmatpush.xpose.msra.mxu0 0.0
        %1153 = vmatpush.xpose.msra.mxu0 0.0
        %1154 = vmatpush.xpose.msra.mxu0 0.0
        %1155 = vmatpush.xpose.msra.mxu0 0.0
        %1156 = vmatpush.xpose.msra.mxu0 0.0
        %1157 = vmatpush.xpose.msra.mxu0 0.0
        %1158 = vmatpush.xpose.msra.mxu0 %v1141
        %1159 = vmatmul.f32.gmra.mxu0 %v1138
        %v1160 = vpop.f32.mrf.mxu0
        %v1161 = vadd.f32 0.0, %v1160
        %1162 = vdwg.mxu0
        %v1164 = vsel %vm1058, %v1041, 0
        %v1167 = vsel %vm1058, %v937, 0
        %1169 = vmatpush.xpose.msra.mxu0 0.0
        %1170 = vmatpush.xpose.msra.mxu0 0.0
        %1171 = vmatpush.xpose.msra.mxu0 0.0
        %1172 = vmatpush.xpose.msra.mxu0 0.0
        %1173 = vmatpush.xpose.msra.mxu0 0.0
        %1174 = vmatpush.xpose.msra.mxu0 0.0
        %1175 = vmatpush.xpose.msra.mxu0 0.0
        %1176 = vmatpush.xpose.msra.mxu0 0.0
        %1177 = vmatpush.xpose.msra.mxu0 0.0
        %1178 = vmatpush.xpose.msra.mxu0 0.0
        %1179 = vmatpush.xpose.msra.mxu0 0.0
        %1180 = vmatpush.xpose.msra.mxu0 0.0
        %1181 = vmatpush.xpose.msra.mxu0 0.0
        %1182 = vmatpush.xpose.msra.mxu0 0.0
        %1183 = vmatpush.xpose.msra.mxu0 0.0
        %1184 = vmatpush.xpose.msra.mxu0 %v1167
        %1185 = vmatmul.f32.gmra.mxu0 %v1164
        %v1186 = vpop.f32.mrf.mxu0
        %v1187 = vadd.f32 0.0, %v1186
        %1188 = vdwg.mxu0
        %v1190 = vsel %vm1058, %v1042, 0
        %v1193 = vsel %vm1058, %v940, 0
        %1195 = vmatpush.xpose.msra.mxu0 0.0
        %1196 = vmatpush.xpose.msra.mxu0 0.0
        %1197 = vmatpush.xpose.msra.mxu0 0.0
        %1198 = vmatpush.xpose.msra.mxu0 0.0
        %1199 = vmatpush.xpose.msra.mxu0 0.0
        %1200 = vmatpush.xpose.msra.mxu0 0.0
        %1201 = vmatpush.xpose.msra.mxu0 0.0
        %1202 = vmatpush.xpose.msra.mxu0 0.0
        %1203 = vmatpush.xpose.msra.mxu0 0.0
        %1204 = vmatpush.xpose.msra.mxu0 0.0
        %1205 = vmatpush.xpose.msra.mxu0 0.0
        %1206 = vmatpush.xpose.msra.mxu0 0.0
        %1207 = vmatpush.xpose.msra.mxu0 0.0
        %1208 = vmatpush.xpose.msra.mxu0 0.0
        %1209 = vmatpush.xpose.msra.mxu0 0.0
        %1210 = vmatpush.xpose.msra.mxu0 %v1193
        %1211 = vmatmul.f32.gmra.mxu0 %v1190
        %v1212 = vpop.f32.mrf.mxu0
        %v1213 = vadd.f32 0.0, %v1212
        %1214 = vdwg.mxu0
        %v1216 = vsel %vm1058, %v1043, 0
        %v1219 = vsel %vm1058, %v943, 0
        %1221 = vmatpush.xpose.msra.mxu0 0.0
        %1222 = vmatpush.xpose.msra.mxu0 0.0
        %1223 = vmatpush.xpose.msra.mxu0 0.0
        %1224 = vmatpush.xpose.msra.mxu0 0.0
        %1225 = vmatpush.xpose.msra.mxu0 0.0
        %1226 = vmatpush.xpose.msra.mxu0 0.0
        %1227 = vmatpush.xpose.msra.mxu0 0.0
        %1228 = vmatpush.xpose.msra.mxu0 0.0
        %1229 = vmatpush.xpose.msra.mxu0 0.0
        %1230 = vmatpush.xpose.msra.mxu0 0.0
        %1231 = vmatpush.xpose.msra.mxu0 0.0
        %1232 = vmatpush.xpose.msra.mxu0 0.0
        %1233 = vmatpush.xpose.msra.mxu0 0.0
        %1234 = vmatpush.xpose.msra.mxu0 0.0
        %1235 = vmatpush.xpose.msra.mxu0 0.0
        %1236 = vmatpush.xpose.msra.mxu0 %v1219
        %1237 = vmatmul.f32.gmra.mxu0 %v1216
        %v1238 = vpop.f32.mrf.mxu0
        %v1239 = vadd.f32 0.0, %v1238
        %1240 = vdwg.mxu0
        %v1242 = vsel %vm1058, %v1044, 0
        %v1245 = vsel %vm1058, %v946, 0
        %1247 = vmatpush.xpose.msra.mxu0 0.0
        %1248 = vmatpush.xpose.msra.mxu0 0.0
        %1249 = vmatpush.xpose.msra.mxu0 0.0
        %1250 = vmatpush.xpose.msra.mxu0 0.0
        %1251 = vmatpush.xpose.msra.mxu0 0.0
        %1252 = vmatpush.xpose.msra.mxu0 0.0
        %1253 = vmatpush.xpose.msra.mxu0 0.0
        %1254 = vmatpush.xpose.msra.mxu0 0.0
        %1255 = vmatpush.xpose.msra.mxu0 0.0
        %1256 = vmatpush.xpose.msra.mxu0 0.0
        %1257 = vmatpush.xpose.msra.mxu0 0.0
        %1258 = vmatpush.xpose.msra.mxu0 0.0
        %1259 = vmatpush.xpose.msra.mxu0 0.0
        %1260 = vmatpush.xpose.msra.mxu0 0.0
        %1261 = vmatpush.xpose.msra.mxu0 0.0
        %1262 = vmatpush.xpose.msra.mxu0 %v1245
        %1263 = vmatmul.f32.gmra.mxu0 %v1242
        %v1264 = vpop.f32.mrf.mxu0
        %v1265 = vadd.f32 0.0, %v1264
        %1266 = vdwg.mxu0
        %v1268 = vsel %vm1058, %v1045, 0
        %v1271 = vsel %vm1058, %v949, 0
        %1273 = vmatpush.xpose.msra.mxu0 0.0
        %1274 = vmatpush.xpose.msra.mxu0 0.0
        %1275 = vmatpush.xpose.msra.mxu0 0.0
        %1276 = vmatpush.xpose.msra.mxu0 0.0
        %1277 = vmatpush.xpose.msra.mxu0 0.0
        %1278 = vmatpush.xpose.msra.mxu0 0.0
        %1279 = vmatpush.xpose.msra.mxu0 0.0
        %1280 = vmatpush.xpose.msra.mxu0 0.0
        %1281 = vmatpush.xpose.msra.mxu0 0.0
        %1282 = vmatpush.xpose.msra.mxu0 0.0
        %1283 = vmatpush.xpose.msra.mxu0 0.0
        %1284 = vmatpush.xpose.msra.mxu0 0.0
        %1285 = vmatpush.xpose.msra.mxu0 0.0
        %1286 = vmatpush.xpose.msra.mxu0 0.0
        %1287 = vmatpush.xpose.msra.mxu0 0.0
        %1288 = vmatpush.xpose.msra.mxu0 %v1271
        %1289 = vmatmul.f32.gmra.mxu0 %v1268
        %v1290 = vpop.f32.mrf.mxu0
        %v1291 = vadd.f32 0.0, %v1290
        %1292 = vdwg.mxu0
        %v1294 = vsel %vm1058, %v1046, 0
        %v1297 = vsel %vm1058, %v952, 0
        %1299 = vmatpush.xpose.msra.mxu0 0.0
        %1300 = vmatpush.xpose.msra.mxu0 0.0
        %1301 = vmatpush.xpose.msra.mxu0 0.0
        %1302 = vmatpush.xpose.msra.mxu0 0.0
        %1303 = vmatpush.xpose.msra.mxu0 0.0
        %1304 = vmatpush.xpose.msra.mxu0 0.0
        %1305 = vmatpush.xpose.msra.mxu0 0.0
        %1306 = vmatpush.xpose.msra.mxu0 0.0
        %1307 = vmatpush.xpose.msra.mxu0 0.0
        %1308 = vmatpush.xpose.msra.mxu0 0.0
        %1309 = vmatpush.xpose.msra.mxu0 0.0
        %1310 = vmatpush.xpose.msra.mxu0 0.0
        %1311 = vmatpush.xpose.msra.mxu0 0.0
        %1312 = vmatpush.xpose.msra.mxu0 0.0
        %1313 = vmatpush.xpose.msra.mxu0 0.0
        %1314 = vmatpush.xpose.msra.mxu0 %v1297
        %1315 = vmatmul.f32.gmra.mxu0 %v1294
        %v1316 = vpop.f32.mrf.mxu0
        %v1317 = vadd.f32 0.0, %v1316
        %1318 = vdwg.mxu0
        %v1320 = vsel %vm1058, %v1047, 0
        %v1323 = vsel %vm1058, %v955, 0
        %1325 = vmatpush.xpose.msra.mxu0 0.0
        %1326 = vmatpush.xpose.msra.mxu0 0.0
        %1327 = vmatpush.xpose.msra.mxu0 0.0
        %1328 = vmatpush.xpose.msra.mxu0 0.0
        %1329 = vmatpush.xpose.msra.mxu0 0.0
        %1330 = vmatpush.xpose.msra.mxu0 0.0
        %1331 = vmatpush.xpose.msra.mxu0 0.0
        %1332 = vmatpush.xpose.msra.mxu0 0.0
        %1333 = vmatpush.xpose.msra.mxu0 0.0
        %1334 = vmatpush.xpose.msra.mxu0 0.0
        %1335 = vmatpush.xpose.msra.mxu0 0.0
        %1336 = vmatpush.xpose.msra.mxu0 0.0
        %1337 = vmatpush.xpose.msra.mxu0 0.0
        %1338 = vmatpush.xpose.msra.mxu0 0.0
        %1339 = vmatpush.xpose.msra.mxu0 0.0
        %1340 = vmatpush.xpose.msra.mxu0 %v1323
        %1341 = vmatmul.f32.gmra.mxu0 %v1320
        %v1342 = vpop.f32.mrf.mxu0
        %v1343 = vadd.f32 0.0, %v1342
        %1344 = vdwg.mxu0
        %v1346 = vsel %vm1058, %v1048, 0
        %v1349 = vsel %vm1058, %v958, 0
        %1351 = vmatpush.xpose.msra.mxu0 0.0
        %1352 = vmatpush.xpose.msra.mxu0 0.0
        %1353 = vmatpush.xpose.msra.mxu0 0.0
        %1354 = vmatpush.xpose.msra.mxu0 0.0
        %1355 = vmatpush.xpose.msra.mxu0 0.0
        %1356 = vmatpush.xpose.msra.mxu0 0.0
        %1357 = vmatpush.xpose.msra.mxu0 0.0
        %1358 = vmatpush.xpose.msra.mxu0 0.0
        %1359 = vmatpush.xpose.msra.mxu0 0.0
        %1360 = vmatpush.xpose.msra.mxu0 0.0
        %1361 = vmatpush.xpose.msra.mxu0 0.0
        %1362 = vmatpush.xpose.msra.mxu0 0.0
        %1363 = vmatpush.xpose.msra.mxu0 0.0
        %1364 = vmatpush.xpose.msra.mxu0 0.0
        %1365 = vmatpush.xpose.msra.mxu0 0.0
        %1366 = vmatpush.xpose.msra.mxu0 %v1349
        %1367 = vmatmul.f32.gmra.mxu0 %v1346
        %v1368 = vpop.f32.mrf.mxu0
        %v1369 = vadd.f32 0.0, %v1368
        %1370 = vdwg.mxu0
        %v1372 = vsel %vm1058, %v1049, 0
        %v1375 = vsel %vm1058, %v961, 0
        %1377 = vmatpush.xpose.msra.mxu0 0.0
        %1378 = vmatpush.xpose.msra.mxu0 0.0
        %1379 = vmatpush.xpose.msra.mxu0 0.0
        %1380 = vmatpush.xpose.msra.mxu0 0.0
        %1381 = vmatpush.xpose.msra.mxu0 0.0
        %1382 = vmatpush.xpose.msra.mxu0 0.0
        %1383 = vmatpush.xpose.msra.mxu0 0.0
        %1384 = vmatpush.xpose.msra.mxu0 0.0
        %1385 = vmatpush.xpose.msra.mxu0 0.0
        %1386 = vmatpush.xpose.msra.mxu0 0.0
        %1387 = vmatpush.xpose.msra.mxu0 0.0
        %1388 = vmatpush.xpose.msra.mxu0 0.0
        %1389 = vmatpush.xpose.msra.mxu0 0.0
        %1390 = vmatpush.xpose.msra.mxu0 0.0
        %1391 = vmatpush.xpose.msra.mxu0 0.0
        %1392 = vmatpush.xpose.msra.mxu0 %v1375
        %1393 = vmatmul.f32.gmra.mxu0 %v1372
        %v1394 = vpop.f32.mrf.mxu0
        %v1395 = vadd.f32 0.0, %v1394
        %1396 = vdwg.mxu0
        %v1398 = vsel %vm1058, %v1050, 0
        %v1401 = vsel %vm1058, %v964, 0
        %1403 = vmatpush.xpose.msra.mxu0 0.0
        %1404 = vmatpush.xpose.msra.mxu0 0.0
        %1405 = vmatpush.xpose.msra.mxu0 0.0
        %1406 = vmatpush.xpose.msra.mxu0 0.0
        %1407 = vmatpush.xpose.msra.mxu0 0.0
        %1408 = vmatpush.xpose.msra.mxu0 0.0
        %1409 = vmatpush.xpose.msra.mxu0 0.0
        %1410 = vmatpush.xpose.msra.mxu0 0.0
        %1411 = vmatpush.xpose.msra.mxu0 0.0
        %1412 = vmatpush.xpose.msra.mxu0 0.0
        %1413 = vmatpush.xpose.msra.mxu0 0.0
        %1414 = vmatpush.xpose.msra.mxu0 0.0
        %1415 = vmatpush.xpose.msra.mxu0 0.0
        %1416 = vmatpush.xpose.msra.mxu0 0.0
        %1417 = vmatpush.xpose.msra.mxu0 0.0
        %1418 = vmatpush.xpose.msra.mxu0 %v1401
        %1419 = vmatmul.f32.gmra.mxu0 %v1398
        %v1420 = vpop.f32.mrf.mxu0
        %v1421 = vadd.f32 0.0, %v1420
        %1422 = vdwg.mxu0
        %v1424 = vsel %vm1058, %v1051, 0
        %v1427 = vsel %vm1058, %v967, 0
        %1429 = vmatpush.xpose.msra.mxu0 0.0
        %1430 = vmatpush.xpose.msra.mxu0 0.0
        %1431 = vmatpush.xpose.msra.mxu0 0.0
        %1432 = vmatpush.xpose.msra.mxu0 0.0
        %1433 = vmatpush.xpose.msra.mxu0 0.0
        %1434 = vmatpush.xpose.msra.mxu0 0.0
        %1435 = vmatpush.xpose.msra.mxu0 0.0
        %1436 = vmatpush.xpose.msra.mxu0 0.0
        %1437 = vmatpush.xpose.msra.mxu0 0.0
        %1438 = vmatpush.xpose.msra.mxu0 0.0
        %1439 = vmatpush.xpose.msra.mxu0 0.0
        %1440 = vmatpush.xpose.msra.mxu0 0.0
        %1441 = vmatpush.xpose.msra.mxu0 0.0
        %1442 = vmatpush.xpose.msra.mxu0 0.0
        %1443 = vmatpush.xpose.msra.mxu0 0.0
        %1444 = vmatpush.xpose.msra.mxu0 %v1427
        %1445 = vmatmul.f32.gmra.mxu0 %v1424
        %v1446 = vpop.f32.mrf.mxu0
        %v1447 = vadd.f32 0.0, %v1446
        %1448 = vdwg.mxu0
        %v1450 = vsel %vm1058, %v1052, 0
        %v1453 = vsel %vm1058, %v970, 0
        %1455 = vmatpush.xpose.msra.mxu0 0.0
        %1456 = vmatpush.xpose.msra.mxu0 0.0
        %1457 = vmatpush.xpose.msra.mxu0 0.0
        %1458 = vmatpush.xpose.msra.mxu0 0.0
        %1459 = vmatpush.xpose.msra.mxu0 0.0
        %1460 = vmatpush.xpose.msra.mxu0 0.0
        %1461 = vmatpush.xpose.msra.mxu0 0.0
        %1462 = vmatpush.xpose.msra.mxu0 0.0
        %1463 = vmatpush.xpose.msra.mxu0 0.0
        %1464 = vmatpush.xpose.msra.mxu0 0.0
        %1465 = vmatpush.xpose.msra.mxu0 0.0
        %1466 = vmatpush.xpose.msra.mxu0 0.0
        %1467 = vmatpush.xpose.msra.mxu0 0.0
        %1468 = vmatpush.xpose.msra.mxu0 0.0
        %1469 = vmatpush.xpose.msra.mxu0 0.0
        %1470 = vmatpush.xpose.msra.mxu0 %v1453
        %1471 = vmatmul.f32.gmra.mxu0 %v1450
        %v1472 = vpop.f32.mrf.mxu0
        %v1473 = vadd.f32 0.0, %v1472
        %1474 = vdwg.mxu0
        %v1475 = vsel %vm1058, %v1083, -inf
        %1476 = vmax.xlane.f32.xlu0 %v1475
        %v1477 = vpop.xlane.xlu0 %1476
        %v1478 = vsel %vm1058, %v1109, -inf
        %1479 = vmax.xlane.f32.xlu0 %v1478
        %v1480 = vpop.xlane.xlu0 %1479
        %v1481 = vsel %vm1058, %v1135, -inf
        %1482 = vmax.xlane.f32.xlu0 %v1481
        %v1483 = vpop.xlane.xlu0 %1482
        %v1484 = vsel %vm1058, %v1161, -inf
        %1485 = vmax.xlane.f32.xlu0 %v1484
        %v1486 = vpop.xlane.xlu0 %1485
        %v1487 = vsel %vm1058, %v1187, -inf
        %1488 = vmax.xlane.f32.xlu0 %v1487
        %v1489 = vpop.xlane.xlu0 %1488
        %v1490 = vsel %vm1058, %v1213, -inf
        %1491 = vmax.xlane.f32.xlu0 %v1490
        %v1492 = vpop.xlane.xlu0 %1491
        %v1493 = vsel %vm1058, %v1239, -inf
        %1494 = vmax.xlane.f32.xlu0 %v1493
        %v1495 = vpop.xlane.xlu0 %1494
        %v1496 = vsel %vm1058, %v1265, -inf
        %1497 = vmax.xlane.f32.xlu0 %v1496
        %v1498 = vpop.xlane.xlu0 %1497
        %v1499 = vsel %vm1058, %v1291, -inf
        %1500 = vmax.xlane.f32.xlu0 %v1499
        %v1501 = vpop.xlane.xlu0 %1500
        %v1502 = vsel %vm1058, %v1317, -inf
        %1503 = vmax.xlane.f32.xlu0 %v1502
        %v1504 = vpop.xlane.xlu0 %1503
        %v1505 = vsel %vm1058, %v1343, -inf
        %1506 = vmax.xlane.f32.xlu0 %v1505
        %v1507 = vpop.xlane.xlu0 %1506
        %v1508 = vsel %vm1058, %v1369, -inf
        %1509 = vmax.xlane.f32.xlu0 %v1508
        %v1510 = vpop.xlane.xlu0 %1509
        %v1511 = vsel %vm1058, %v1395, -inf
        %1512 = vmax.xlane.f32.xlu0 %v1511
        %v1513 = vpop.xlane.xlu0 %1512
        %v1514 = vsel %vm1058, %v1421, -inf
        %1515 = vmax.xlane.f32.xlu0 %v1514
        %v1516 = vpop.xlane.xlu0 %1515
        %v1517 = vsel %vm1058, %v1447, -inf
        %1518 = vmax.xlane.f32.xlu0 %v1517
        %v1519 = vpop.xlane.xlu0 %1518
        %v1520 = vsel %vm1058, %v1473, -inf
        %1521 = vmax.xlane.f32.xlu0 %v1520
        %v1522 = vpop.xlane.xlu0 %1521
        %v1523 = vsub.f32 %v1083, %v1477
        %v1524 = vsub.f32 %v1109, %v1480
        %v1525 = vsub.f32 %v1135, %v1483
        %v1526 = vsub.f32 %v1161, %v1486
        %v1527 = vsub.f32 %v1187, %v1489
        %v1528 = vsub.f32 %v1213, %v1492
        %v1529 = vsub.f32 %v1239, %v1495
        %v1530 = vsub.f32 %v1265, %v1498
        %v1531 = vsub.f32 %v1291, %v1501
        %v1532 = vsub.f32 %v1317, %v1504
        %v1533 = vsub.f32 %v1343, %v1507
        %v1534 = vsub.f32 %v1369, %v1510
        %v1535 = vsub.f32 %v1395, %v1513
        %v1536 = vsub.f32 %v1421, %v1516
        %v1537 = vsub.f32 %v1447, %v1519
        %v1538 = vsub.f32 %v1473, %v1522
        %v1539 = vmul.f32 %v1523, 1.442695
        %v1540 = vpow.pop %v1539
        %v1541 = vmul.f32 %v1524, 1.442695
        %v1542 = vpow.pop %v1541
        %v1543 = vmul.f32 %v1525, 1.442695
        %v1544 = vpow.pop %v1543
        %v1545 = vmul.f32 %v1526, 1.442695
        %v1546 = vpow.pop %v1545
        %v1547 = vmul.f32 %v1527, 1.442695
        %v1548 = vpow.pop %v1547
        %v1549 = vmul.f32 %v1528, 1.442695
        %v1550 = vpow.pop %v1549
        %v1551 = vmul.f32 %v1529, 1.442695
        %v1552 = vpow.pop %v1551
        %v1553 = vmul.f32 %v1530, 1.442695
        %v1554 = vpow.pop %v1553
        %v1555 = vmul.f32 %v1531, 1.442695
        %v1556 = vpow.pop %v1555
        %v1557 = vmul.f32 %v1532, 1.442695
        %v1558 = vpow.pop %v1557
        %v1559 = vmul.f32 %v1533, 1.442695
        %v1560 = vpow.pop %v1559
        %v1561 = vmul.f32 %v1534, 1.442695
        %v1562 = vpow.pop %v1561
        %v1563 = vmul.f32 %v1535, 1.442695
        %v1564 = vpow.pop %v1563
        %v1565 = vmul.f32 %v1536, 1.442695
        %v1566 = vpow.pop %v1565
        %v1567 = vmul.f32 %v1537, 1.442695
        %v1568 = vpow.pop %v1567
        %v1569 = vmul.f32 %v1538, 1.442695
        %v1570 = vpow.pop %v1569
        %v1571 = vsel %vm1058, %v1540, 0.0
        %1572 = vadd.xlane.f32.xlu0 %v1571
        %v1573 = vpop.xlane.xlu0 %1572
        %v1574 = vsel %vm1058, %v1542, 0.0
        %1575 = vadd.xlane.f32.xlu0 %v1574
        %v1576 = vpop.xlane.xlu0 %1575
        %v1577 = vsel %vm1058, %v1544, 0.0
        %1578 = vadd.xlane.f32.xlu0 %v1577
        %v1579 = vpop.xlane.xlu0 %1578
        %v1580 = vsel %vm1058, %v1546, 0.0
        %1581 = vadd.xlane.f32.xlu0 %v1580
        %v1582 = vpop.xlane.xlu0 %1581
        %v1583 = vsel %vm1058, %v1548, 0.0
        %1584 = vadd.xlane.f32.xlu0 %v1583
        %v1585 = vpop.xlane.xlu0 %1584
        %v1586 = vsel %vm1058, %v1550, 0.0
        %1587 = vadd.xlane.f32.xlu0 %v1586
        %v1588 = vpop.xlane.xlu0 %1587
        %v1589 = vsel %vm1058, %v1552, 0.0
        %1590 = vadd.xlane.f32.xlu0 %v1589
        %v1591 = vpop.xlane.xlu0 %1590
        %v1592 = vsel %vm1058, %v1554, 0.0
        %1593 = vadd.xlane.f32.xlu0 %v1592
        %v1594 = vpop.xlane.xlu0 %1593
        %v1595 = vsel %vm1058, %v1556, 0.0
        %1596 = vadd.xlane.f32.xlu0 %v1595
        %v1597 = vpop.xlane.xlu0 %1596
        %v1598 = vsel %vm1058, %v1558, 0.0
        %1599 = vadd.xlane.f32.xlu0 %v1598
        %v1600 = vpop.xlane.xlu0 %1599
        %v1601 = vsel %vm1058, %v1560, 0.0
        %1602 = vadd.xlane.f32.xlu0 %v1601
        %v1603 = vpop.xlane.xlu0 %1602
        %v1604 = vsel %vm1058, %v1562, 0.0
        %1605 = vadd.xlane.f32.xlu0 %v1604
        %v1606 = vpop.xlane.xlu0 %1605
        %v1607 = vsel %vm1058, %v1564, 0.0
        %1608 = vadd.xlane.f32.xlu0 %v1607
        %v1609 = vpop.xlane.xlu0 %1608
        %v1610 = vsel %vm1058, %v1566, 0.0
        %1611 = vadd.xlane.f32.xlu0 %v1610
        %v1612 = vpop.xlane.xlu0 %1611
        %v1613 = vsel %vm1058, %v1568, 0.0
        %1614 = vadd.xlane.f32.xlu0 %v1613
        %v1615 = vpop.xlane.xlu0 %1614
        %v1616 = vsel %vm1058, %v1570, 0.0
        %1617 = vadd.xlane.f32.xlu0 %v1616
        %v1618 = vpop.xlane.xlu0 %1617
        %v1619 = vrcp.pop %v1573
        %v1620 = vmul.f32 %v1573, %v1619
        %v1621 = vsub.f32 1.0, %v1620
        %v1622 = vmul.f32 %v1619, %v1621
        %v1623 = vadd.f32 %v1619, %v1622
        %vm1624 = vweird.f32 %v1573
        %vm1625 = vweird.f32 %v1619
        %vm1626 = vmor %vm1624, %vm1625
        %v1627 = vsel %vm1626, %v1619, %v1623
        %v1628 = vand.u32 2147483647, %v1573
        %vm1629 = vcmp.eq.f32.partialorder %v1628, 8.507059e+37
        %v1630 = vand.u32 %v1573, 2147483648
        %v1631 = vor.u32 1.1754944e-38, %v1630
        %v1632 = vsel %vm1629, %v1631, %v1627
        %v1633 = vmul.f32 %v1540, %v1632
        %v1634 = vrcp.pop %v1576
        %v1635 = vmul.f32 %v1576, %v1634
        %v1636 = vsub.f32 1.0, %v1635
        %v1637 = vmul.f32 %v1634, %v1636
        %v1638 = vadd.f32 %v1634, %v1637
        %vm1639 = vweird.f32 %v1576
        %vm1640 = vweird.f32 %v1634
        %vm1641 = vmor %vm1639, %vm1640
        %v1642 = vsel %vm1641, %v1634, %v1638
        %v1643 = vand.u32 2147483647, %v1576
        %vm1644 = vcmp.eq.f32.partialorder %v1643, 8.507059e+37
        %v1645 = vand.u32 %v1576, 2147483648
        %v1646 = vor.u32 1.1754944e-38, %v1645
        %v1647 = vsel %vm1644, %v1646, %v1642
        %v1648 = vmul.f32 %v1542, %v1647
        %v1649 = vrcp.pop %v1579
        %v1650 = vmul.f32 %v1579, %v1649
        %v1651 = vsub.f32 1.0, %v1650
        %v1652 = vmul.f32 %v1649, %v1651
        %v1653 = vadd.f32 %v1649, %v1652
        %vm1654 = vweird.f32 %v1579
        %vm1655 = vweird.f32 %v1649
        %vm1656 = vmor %vm1654, %vm1655
        %v1657 = vsel %vm1656, %v1649, %v1653
        %v1658 = vand.u32 2147483647, %v1579
        %vm1659 = vcmp.eq.f32.partialorder %v1658, 8.507059e+37
        %v1660 = vand.u32 %v1579, 2147483648
        %v1661 = vor.u32 1.1754944e-38, %v1660
        %v1662 = vsel %vm1659, %v1661, %v1657
        %v1663 = vmul.f32 %v1544, %v1662
        %v1664 = vrcp.pop %v1582
        %v1665 = vmul.f32 %v1582, %v1664
        %v1666 = vsub.f32 1.0, %v1665
        %v1667 = vmul.f32 %v1664, %v1666
        %v1668 = vadd.f32 %v1664, %v1667
        %vm1669 = vweird.f32 %v1582
        %vm1670 = vweird.f32 %v1664
        %vm1671 = vmor %vm1669, %vm1670
        %v1672 = vsel %vm1671, %v1664, %v1668
        %v1673 = vand.u32 2147483647, %v1582
        %vm1674 = vcmp.eq.f32.partialorder %v1673, 8.507059e+37
        %v1675 = vand.u32 %v1582, 2147483648
        %v1676 = vor.u32 1.1754944e-38, %v1675
        %v1677 = vsel %vm1674, %v1676, %v1672
        %v1678 = vmul.f32 %v1546, %v1677
        %v1679 = vrcp.pop %v1585
        %v1680 = vmul.f32 %v1585, %v1679
        %v1681 = vsub.f32 1.0, %v1680
        %v1682 = vmul.f32 %v1679, %v1681
        %v1683 = vadd.f32 %v1679, %v1682
        %vm1684 = vweird.f32 %v1585
        %vm1685 = vweird.f32 %v1679
        %vm1686 = vmor %vm1684, %vm1685
        %v1687 = vsel %vm1686, %v1679, %v1683
        %v1688 = vand.u32 2147483647, %v1585
        %vm1689 = vcmp.eq.f32.partialorder %v1688, 8.507059e+37
        %v1690 = vand.u32 %v1585, 2147483648
        %v1691 = vor.u32 1.1754944e-38, %v1690
        %v1692 = vsel %vm1689, %v1691, %v1687
        %v1693 = vmul.f32 %v1548, %v1692
        %v1694 = vrcp.pop %v1588
        %v1695 = vmul.f32 %v1588, %v1694
        %v1696 = vsub.f32 1.0, %v1695
        %v1697 = vmul.f32 %v1694, %v1696
        %v1698 = vadd.f32 %v1694, %v1697
        %vm1699 = vweird.f32 %v1588
        %vm1700 = vweird.f32 %v1694
        %vm1701 = vmor %vm1699, %vm1700
        %v1702 = vsel %vm1701, %v1694, %v1698
        %v1703 = vand.u32 2147483647, %v1588
        %vm1704 = vcmp.eq.f32.partialorder %v1703, 8.507059e+37
        %v1705 = vand.u32 %v1588, 2147483648
        %v1706 = vor.u32 1.1754944e-38, %v1705
        %v1707 = vsel %vm1704, %v1706, %v1702
        %v1708 = vmul.f32 %v1550, %v1707
        %v1709 = vrcp.pop %v1591
        %v1710 = vmul.f32 %v1591, %v1709
        %v1711 = vsub.f32 1.0, %v1710
        %v1712 = vmul.f32 %v1709, %v1711
        %v1713 = vadd.f32 %v1709, %v1712
        %vm1714 = vweird.f32 %v1591
        %vm1715 = vweird.f32 %v1709
        %vm1716 = vmor %vm1714, %vm1715
        %v1717 = vsel %vm1716, %v1709, %v1713
        %v1718 = vand.u32 2147483647, %v1591
        %vm1719 = vcmp.eq.f32.partialorder %v1718, 8.507059e+37
        %v1720 = vand.u32 %v1591, 2147483648
        %v1721 = vor.u32 1.1754944e-38, %v1720
        %v1722 = vsel %vm1719, %v1721, %v1717
        %v1723 = vmul.f32 %v1552, %v1722
        %v1724 = vrcp.pop %v1594
        %v1725 = vmul.f32 %v1594, %v1724
        %v1726 = vsub.f32 1.0, %v1725
        %v1727 = vmul.f32 %v1724, %v1726
        %v1728 = vadd.f32 %v1724, %v1727
        %vm1729 = vweird.f32 %v1594
        %vm1730 = vweird.f32 %v1724
        %vm1731 = vmor %vm1729, %vm1730
        %v1732 = vsel %vm1731, %v1724, %v1728
        %v1733 = vand.u32 2147483647, %v1594
        %vm1734 = vcmp.eq.f32.partialorder %v1733, 8.507059e+37
        %v1735 = vand.u32 %v1594, 2147483648
        %v1736 = vor.u32 1.1754944e-38, %v1735
        %v1737 = vsel %vm1734, %v1736, %v1732
        %v1738 = vmul.f32 %v1554, %v1737
        %v1739 = vrcp.pop %v1597
        %v1740 = vmul.f32 %v1597, %v1739
        %v1741 = vsub.f32 1.0, %v1740
        %v1742 = vmul.f32 %v1739, %v1741
        %v1743 = vadd.f32 %v1739, %v1742
        %vm1744 = vweird.f32 %v1597
        %vm1745 = vweird.f32 %v1739
        %vm1746 = vmor %vm1744, %vm1745
        %v1747 = vsel %vm1746, %v1739, %v1743
        %v1748 = vand.u32 2147483647, %v1597
        %vm1749 = vcmp.eq.f32.partialorder %v1748, 8.507059e+37
        %v1750 = vand.u32 %v1597, 2147483648
        %v1751 = vor.u32 1.1754944e-38, %v1750
        %v1752 = vsel %vm1749, %v1751, %v1747
        %v1753 = vmul.f32 %v1556, %v1752
        %v1754 = vrcp.pop %v1600
        %v1755 = vmul.f32 %v1600, %v1754
        %v1756 = vsub.f32 1.0, %v1755
        %v1757 = vmul.f32 %v1754, %v1756
        %v1758 = vadd.f32 %v1754, %v1757
        %vm1759 = vweird.f32 %v1600
        %vm1760 = vweird.f32 %v1754
        %vm1761 = vmor %vm1759, %vm1760
        %v1762 = vsel %vm1761, %v1754, %v1758
        %v1763 = vand.u32 2147483647, %v1600
        %vm1764 = vcmp.eq.f32.partialorder %v1763, 8.507059e+37
        %v1765 = vand.u32 %v1600, 2147483648
        %v1766 = vor.u32 1.1754944e-38, %v1765
        %v1767 = vsel %vm1764, %v1766, %v1762
        %v1768 = vmul.f32 %v1558, %v1767
        %v1769 = vrcp.pop %v1603
        %v1770 = vmul.f32 %v1603, %v1769
        %v1771 = vsub.f32 1.0, %v1770
        %v1772 = vmul.f32 %v1769, %v1771
        %v1773 = vadd.f32 %v1769, %v1772
        %vm1774 = vweird.f32 %v1603
        %vm1775 = vweird.f32 %v1769
        %vm1776 = vmor %vm1774, %vm1775
        %v1777 = vsel %vm1776, %v1769, %v1773
        %v1778 = vand.u32 2147483647, %v1603
        %vm1779 = vcmp.eq.f32.partialorder %v1778, 8.507059e+37
        %v1780 = vand.u32 %v1603, 2147483648
        %v1781 = vor.u32 1.1754944e-38, %v1780
        %v1782 = vsel %vm1779, %v1781, %v1777
        %v1783 = vmul.f32 %v1560, %v1782
        %v1784 = vrcp.pop %v1606
        %v1785 = vmul.f32 %v1606, %v1784
        %v1786 = vsub.f32 1.0, %v1785
        %v1787 = vmul.f32 %v1784, %v1786
        %v1788 = vadd.f32 %v1784, %v1787
        %vm1789 = vweird.f32 %v1606
        %vm1790 = vweird.f32 %v1784
        %vm1791 = vmor %vm1789, %vm1790
        %v1792 = vsel %vm1791, %v1784, %v1788
        %v1793 = vand.u32 2147483647, %v1606
        %vm1794 = vcmp.eq.f32.partialorder %v1793, 8.507059e+37
        %v1795 = vand.u32 %v1606, 2147483648
        %v1796 = vor.u32 1.1754944e-38, %v1795
        %v1797 = vsel %vm1794, %v1796, %v1792
        %v1798 = vmul.f32 %v1562, %v1797
        %v1799 = vrcp.pop %v1609
        %v1800 = vmul.f32 %v1609, %v1799
        %v1801 = vsub.f32 1.0, %v1800
        %v1802 = vmul.f32 %v1799, %v1801
        %v1803 = vadd.f32 %v1799, %v1802
        %vm1804 = vweird.f32 %v1609
        %vm1805 = vweird.f32 %v1799
        %vm1806 = vmor %vm1804, %vm1805
        %v1807 = vsel %vm1806, %v1799, %v1803
        %v1808 = vand.u32 2147483647, %v1609
        %vm1809 = vcmp.eq.f32.partialorder %v1808, 8.507059e+37
        %v1810 = vand.u32 %v1609, 2147483648
        %v1811 = vor.u32 1.1754944e-38, %v1810
        %v1812 = vsel %vm1809, %v1811, %v1807
        %v1813 = vmul.f32 %v1564, %v1812
        %v1814 = vrcp.pop %v1612
        %v1815 = vmul.f32 %v1612, %v1814
        %v1816 = vsub.f32 1.0, %v1815
        %v1817 = vmul.f32 %v1814, %v1816
        %v1818 = vadd.f32 %v1814, %v1817
        %vm1819 = vweird.f32 %v1612
        %vm1820 = vweird.f32 %v1814
        %vm1821 = vmor %vm1819, %vm1820
        %v1822 = vsel %vm1821, %v1814, %v1818
        %v1823 = vand.u32 2147483647, %v1612
        %vm1824 = vcmp.eq.f32.partialorder %v1823, 8.507059e+37
        %v1825 = vand.u32 %v1612, 2147483648
        %v1826 = vor.u32 1.1754944e-38, %v1825
        %v1827 = vsel %vm1824, %v1826, %v1822
        %v1828 = vmul.f32 %v1566, %v1827
        %v1829 = vrcp.pop %v1615
        %v1830 = vmul.f32 %v1615, %v1829
        %v1831 = vsub.f32 1.0, %v1830
        %v1832 = vmul.f32 %v1829, %v1831
        %v1833 = vadd.f32 %v1829, %v1832
        %vm1834 = vweird.f32 %v1615
        %vm1835 = vweird.f32 %v1829
        %vm1836 = vmor %vm1834, %vm1835
        %v1837 = vsel %vm1836, %v1829, %v1833
        %v1838 = vand.u32 2147483647, %v1615
        %vm1839 = vcmp.eq.f32.partialorder %v1838, 8.507059e+37
        %v1840 = vand.u32 %v1615, 2147483648
        %v1841 = vor.u32 1.1754944e-38, %v1840
        %v1842 = vsel %vm1839, %v1841, %v1837
        %v1843 = vmul.f32 %v1568, %v1842
        %v1844 = vrcp.pop %v1618
        %v1845 = vmul.f32 %v1618, %v1844
        %v1846 = vsub.f32 1.0, %v1845
        %v1847 = vmul.f32 %v1844, %v1846
        %v1848 = vadd.f32 %v1844, %v1847
        %vm1849 = vweird.f32 %v1618
        %vm1850 = vweird.f32 %v1844
        %vm1851 = vmor %vm1849, %vm1850
        %v1852 = vsel %vm1851, %v1844, %v1848
        %v1853 = vand.u32 2147483647, %v1618
        %vm1854 = vcmp.eq.f32.partialorder %v1853, 8.507059e+37
        %v1855 = vand.u32 %v1618, 2147483648
        %v1856 = vor.u32 1.1754944e-38, %v1855
        %v1857 = vsel %vm1854, %v1856, %v1852
        %v1858 = vmul.f32 %v1570, %v1857
        %v1860 = vsel %vm1058, %v1633, 0
        %1862 = vmatpush.msra.mxu0 0.0
        %1863 = vmatpush.msra.mxu0 0.0
        %1864 = vmatpush.msra.mxu0 0.0
        %1865 = vmatpush.msra.mxu0 0.0
        %1866 = vmatpush.msra.mxu0 0.0
        %1867 = vmatpush.msra.mxu0 0.0
        %1868 = vmatpush.msra.mxu0 0.0
        %1869 = vmatpush.msra.mxu0 0.0
        %1870 = vmatpush.msra.mxu0 0.0
        %1871 = vmatpush.msra.mxu0 0.0
        %1872 = vmatpush.msra.mxu0 0.0
        %1873 = vmatpush.msra.mxu0 0.0
        %1874 = vmatpush.msra.mxu0 0.0
        %1875 = vmatpush.msra.mxu0 0.0
        %1876 = vmatpush.msra.mxu0 0.0
        %1877 = vmatpush.msra.mxu0 %v990
        %1878 = vmatmul.f32.gmra.mxu0 %v1860
        %v1879 = vpop.f32.mrf.mxu0
        %v1880 = vadd.f32 0.0, %v1879
        %1881 = vdwg.mxu0
        %v1883 = vsel %vm1058, %v1648, 0
        %1885 = vmatpush.msra.mxu0 0.0
        %1886 = vmatpush.msra.mxu0 0.0
        %1887 = vmatpush.msra.mxu0 0.0
        %1888 = vmatpush.msra.mxu0 0.0
        %1889 = vmatpush.msra.mxu0 0.0
        %1890 = vmatpush.msra.mxu0 0.0
        %1891 = vmatpush.msra.mxu0 0.0
        %1892 = vmatpush.msra.mxu0 0.0
        %1893 = vmatpush.msra.mxu0 0.0
        %1894 = vmatpush.msra.mxu0 0.0
        %1895 = vmatpush.msra.mxu0 0.0
        %1896 = vmatpush.msra.mxu0 0.0
        %1897 = vmatpush.msra.mxu0 0.0
        %1898 = vmatpush.msra.mxu0 0.0
        %1899 = vmatpush.msra.mxu0 0.0
        %1900 = vmatpush.msra.mxu0 %v993
        %1901 = vmatmul.f32.gmra.mxu0 %v1883
        %v1902 = vpop.f32.mrf.mxu0
        %v1903 = vadd.f32 0.0, %v1902
        %1904 = vdwg.mxu0
        %v1906 = vsel %vm1058, %v1663, 0
        %1908 = vmatpush.msra.mxu0 0.0
        %1909 = vmatpush.msra.mxu0 0.0
        %1910 = vmatpush.msra.mxu0 0.0
        %1911 = vmatpush.msra.mxu0 0.0
        %1912 = vmatpush.msra.mxu0 0.0
        %1913 = vmatpush.msra.mxu0 0.0
        %1914 = vmatpush.msra.mxu0 0.0
        %1915 = vmatpush.msra.mxu0 0.0
        %1916 = vmatpush.msra.mxu0 0.0
        %1917 = vmatpush.msra.mxu0 0.0
        %1918 = vmatpush.msra.mxu0 0.0
        %1919 = vmatpush.msra.mxu0 0.0
        %1920 = vmatpush.msra.mxu0 0.0
        %1921 = vmatpush.msra.mxu0 0.0
        %1922 = vmatpush.msra.mxu0 0.0
        %1923 = vmatpush.msra.mxu0 %v996
        %1924 = vmatmul.f32.gmra.mxu0 %v1906
        %v1925 = vpop.f32.mrf.mxu0
        %v1926 = vadd.f32 0.0, %v1925
        %1927 = vdwg.mxu0
        %v1929 = vsel %vm1058, %v1678, 0
        %1931 = vmatpush.msra.mxu0 0.0
        %1932 = vmatpush.msra.mxu0 0.0
        %1933 = vmatpush.msra.mxu0 0.0
        %1934 = vmatpush.msra.mxu0 0.0
        %1935 = vmatpush.msra.mxu0 0.0
        %1936 = vmatpush.msra.mxu0 0.0
        %1937 = vmatpush.msra.mxu0 0.0
        %1938 = vmatpush.msra.mxu0 0.0
        %1939 = vmatpush.msra.mxu0 0.0
        %1940 = vmatpush.msra.mxu0 0.0
        %1941 = vmatpush.msra.mxu0 0.0
        %1942 = vmatpush.msra.mxu0 0.0
        %1943 = vmatpush.msra.mxu0 0.0
        %1944 = vmatpush.msra.mxu0 0.0
        %1945 = vmatpush.msra.mxu0 0.0
        %1946 = vmatpush.msra.mxu0 %v999
        %1947 = vmatmul.f32.gmra.mxu0 %v1929
        %v1948 = vpop.f32.mrf.mxu0
        %v1949 = vadd.f32 0.0, %v1948
        %1950 = vdwg.mxu0
        %v1952 = vsel %vm1058, %v1693, 0
        %1954 = vmatpush.msra.mxu0 0.0
        %1955 = vmatpush.msra.mxu0 0.0
        %1956 = vmatpush.msra.mxu0 0.0
        %1957 = vmatpush.msra.mxu0 0.0
        %1958 = vmatpush.msra.mxu0 0.0
        %1959 = vmatpush.msra.mxu0 0.0
        %1960 = vmatpush.msra.mxu0 0.0
        %1961 = vmatpush.msra.mxu0 0.0
        %1962 = vmatpush.msra.mxu0 0.0
        %1963 = vmatpush.msra.mxu0 0.0
        %1964 = vmatpush.msra.mxu0 0.0
        %1965 = vmatpush.msra.mxu0 0.0
        %1966 = vmatpush.msra.mxu0 0.0
        %1967 = vmatpush.msra.mxu0 0.0
        %1968 = vmatpush.msra.mxu0 0.0
        %1969 = vmatpush.msra.mxu0 %v1002
        %1970 = vmatmul.f32.gmra.mxu0 %v1952
        %v1971 = vpop.f32.mrf.mxu0
        %v1972 = vadd.f32 0.0, %v1971
        %1973 = vdwg.mxu0
        %v1975 = vsel %vm1058, %v1708, 0
        %1977 = vmatpush.msra.mxu0 0.0
        %1978 = vmatpush.msra.mxu0 0.0
        %1979 = vmatpush.msra.mxu0 0.0
        %1980 = vmatpush.msra.mxu0 0.0
        %1981 = vmatpush.msra.mxu0 0.0
        %1982 = vmatpush.msra.mxu0 0.0
        %1983 = vmatpush.msra.mxu0 0.0
        %1984 = vmatpush.msra.mxu0 0.0
        %1985 = vmatpush.msra.mxu0 0.0
        %1986 = vmatpush.msra.mxu0 0.0
        %1987 = vmatpush.msra.mxu0 0.0
        %1988 = vmatpush.msra.mxu0 0.0
        %1989 = vmatpush.msra.mxu0 0.0
        %1990 = vmatpush.msra.mxu0 0.0
        %1991 = vmatpush.msra.mxu0 0.0
        %1992 = vmatpush.msra.mxu0 %v1005
        %1993 = vmatmul.f32.gmra.mxu0 %v1975
        %v1994 = vpop.f32.mrf.mxu0
        %v1995 = vadd.f32 0.0, %v1994
        %1996 = vdwg.mxu0
        %v1998 = vsel %vm1058, %v1723, 0
        %2000 = vmatpush.msra.mxu0 0.0
        %2001 = vmatpush.msra.mxu0 0.0
        %2002 = vmatpush.msra.mxu0 0.0
        %2003 = vmatpush.msra.mxu0 0.0
        %2004 = vmatpush.msra.mxu0 0.0
        %2005 = vmatpush.msra.mxu0 0.0
        %2006 = vmatpush.msra.mxu0 0.0
        %2007 = vmatpush.msra.mxu0 0.0
        %2008 = vmatpush.msra.mxu0 0.0
        %2009 = vmatpush.msra.mxu0 0.0
        %2010 = vmatpush.msra.mxu0 0.0
        %2011 = vmatpush.msra.mxu0 0.0
        %2012 = vmatpush.msra.mxu0 0.0
        %2013 = vmatpush.msra.mxu0 0.0
        %2014 = vmatpush.msra.mxu0 0.0
        %2015 = vmatpush.msra.mxu0 %v1008
        %2016 = vmatmul.f32.gmra.mxu0 %v1998
        %v2017 = vpop.f32.mrf.mxu0
        %v2018 = vadd.f32 0.0, %v2017
        %2019 = vdwg.mxu0
        %v2021 = vsel %vm1058, %v1738, 0
        %2023 = vmatpush.msra.mxu0 0.0
        %2024 = vmatpush.msra.mxu0 0.0
        %2025 = vmatpush.msra.mxu0 0.0
        %2026 = vmatpush.msra.mxu0 0.0
        %2027 = vmatpush.msra.mxu0 0.0
        %2028 = vmatpush.msra.mxu0 0.0
        %2029 = vmatpush.msra.mxu0 0.0
        %2030 = vmatpush.msra.mxu0 0.0
        %2031 = vmatpush.msra.mxu0 0.0
        %2032 = vmatpush.msra.mxu0 0.0
        %2033 = vmatpush.msra.mxu0 0.0
        %2034 = vmatpush.msra.mxu0 0.0
        %2035 = vmatpush.msra.mxu0 0.0
        %2036 = vmatpush.msra.mxu0 0.0
        %2037 = vmatpush.msra.mxu0 0.0
        %2038 = vmatpush.msra.mxu0 %v1011
        %2039 = vmatmul.f32.gmra.mxu0 %v2021
        %v2040 = vpop.f32.mrf.mxu0
        %v2041 = vadd.f32 0.0, %v2040
        %2042 = vdwg.mxu0
        %v2044 = vsel %vm1058, %v1753, 0
        %2046 = vmatpush.msra.mxu0 0.0
        %2047 = vmatpush.msra.mxu0 0.0
        %2048 = vmatpush.msra.mxu0 0.0
        %2049 = vmatpush.msra.mxu0 0.0
        %2050 = vmatpush.msra.mxu0 0.0
        %2051 = vmatpush.msra.mxu0 0.0
        %2052 = vmatpush.msra.mxu0 0.0
        %2053 = vmatpush.msra.mxu0 0.0
        %2054 = vmatpush.msra.mxu0 0.0
        %2055 = vmatpush.msra.mxu0 0.0
        %2056 = vmatpush.msra.mxu0 0.0
        %2057 = vmatpush.msra.mxu0 0.0
        %2058 = vmatpush.msra.mxu0 0.0
        %2059 = vmatpush.msra.mxu0 0.0
        %2060 = vmatpush.msra.mxu0 0.0
        %2061 = vmatpush.msra.mxu0 %v1014
        %2062 = vmatmul.f32.gmra.mxu0 %v2044
        %v2063 = vpop.f32.mrf.mxu0
        %v2064 = vadd.f32 0.0, %v2063
        %2065 = vdwg.mxu0
        %v2067 = vsel %vm1058, %v1768, 0
        %2069 = vmatpush.msra.mxu0 0.0
        %2070 = vmatpush.msra.mxu0 0.0
        %2071 = vmatpush.msra.mxu0 0.0
        %2072 = vmatpush.msra.mxu0 0.0
        %2073 = vmatpush.msra.mxu0 0.0
        %2074 = vmatpush.msra.mxu0 0.0
        %2075 = vmatpush.msra.mxu0 0.0
        %2076 = vmatpush.msra.mxu0 0.0
        %2077 = vmatpush.msra.mxu0 0.0
        %2078 = vmatpush.msra.mxu0 0.0
        %2079 = vmatpush.msra.mxu0 0.0
        %2080 = vmatpush.msra.mxu0 0.0
        %2081 = vmatpush.msra.mxu0 0.0
        %2082 = vmatpush.msra.mxu0 0.0
        %2083 = vmatpush.msra.mxu0 0.0
        %2084 = vmatpush.msra.mxu0 %v1017
        %2085 = vmatmul.f32.gmra.mxu0 %v2067
        %v2086 = vpop.f32.mrf.mxu0
        %v2087 = vadd.f32 0.0, %v2086
        %2088 = vdwg.mxu0
        %v2090 = vsel %vm1058, %v1783, 0
        %2092 = vmatpush.msra.mxu0 0.0
        %2093 = vmatpush.msra.mxu0 0.0
        %2094 = vmatpush.msra.mxu0 0.0
        %2095 = vmatpush.msra.mxu0 0.0
        %2096 = vmatpush.msra.mxu0 0.0
        %2097 = vmatpush.msra.mxu0 0.0
        %2098 = vmatpush.msra.mxu0 0.0
        %2099 = vmatpush.msra.mxu0 0.0
        %2100 = vmatpush.msra.mxu0 0.0
        %2101 = vmatpush.msra.mxu0 0.0
        %2102 = vmatpush.msra.mxu0 0.0
        %2103 = vmatpush.msra.mxu0 0.0
        %2104 = vmatpush.msra.mxu0 0.0
        %2105 = vmatpush.msra.mxu0 0.0
        %2106 = vmatpush.msra.mxu0 0.0
        %2107 = vmatpush.msra.mxu0 %v1020
        %2108 = vmatmul.f32.gmra.mxu0 %v2090
        %v2109 = vpop.f32.mrf.mxu0
        %v2110 = vadd.f32 0.0, %v2109
        %2111 = vdwg.mxu0
        %v2113 = vsel %vm1058, %v1798, 0
        %2115 = vmatpush.msra.mxu0 0.0
        %2116 = vmatpush.msra.mxu0 0.0
        %2117 = vmatpush.msra.mxu0 0.0
        %2118 = vmatpush.msra.mxu0 0.0
        %2119 = vmatpush.msra.mxu0 0.0
        %2120 = vmatpush.msra.mxu0 0.0
        %2121 = vmatpush.msra.mxu0 0.0
        %2122 = vmatpush.msra.mxu0 0.0
        %2123 = vmatpush.msra.mxu0 0.0
        %2124 = vmatpush.msra.mxu0 0.0
        %2125 = vmatpush.msra.mxu0 0.0
        %2126 = vmatpush.msra.mxu0 0.0
        %2127 = vmatpush.msra.mxu0 0.0
        %2128 = vmatpush.msra.mxu0 0.0
        %2129 = vmatpush.msra.mxu0 0.0
        %2130 = vmatpush.msra.mxu0 %v1023
        %2131 = vmatmul.f32.gmra.mxu0 %v2113
        %v2132 = vpop.f32.mrf.mxu0
        %v2133 = vadd.f32 0.0, %v2132
        %2134 = vdwg.mxu0
        %v2136 = vsel %vm1058, %v1813, 0
        %2138 = vmatpush.msra.mxu0 0.0
        %2139 = vmatpush.msra.mxu0 0.0
        %2140 = vmatpush.msra.mxu0 0.0
        %2141 = vmatpush.msra.mxu0 0.0
        %2142 = vmatpush.msra.mxu0 0.0
        %2143 = vmatpush.msra.mxu0 0.0
        %2144 = vmatpush.msra.mxu0 0.0
        %2145 = vmatpush.msra.mxu0 0.0
        %2146 = vmatpush.msra.mxu0 0.0
        %2147 = vmatpush.msra.mxu0 0.0
        %2148 = vmatpush.msra.mxu0 0.0
        %2149 = vmatpush.msra.mxu0 0.0
        %2150 = vmatpush.msra.mxu0 0.0
        %2151 = vmatpush.msra.mxu0 0.0
        %2152 = vmatpush.msra.mxu0 0.0
        %2153 = vmatpush.msra.mxu0 %v1026
        %2154 = vmatmul.f32.gmra.mxu0 %v2136
        %v2155 = vpop.f32.mrf.mxu0
        %v2156 = vadd.f32 0.0, %v2155
        %2157 = vdwg.mxu0
        %v2159 = vsel %vm1058, %v1828, 0
        %2161 = vmatpush.msra.mxu0 0.0
        %2162 = vmatpush.msra.mxu0 0.0
        %2163 = vmatpush.msra.mxu0 0.0
        %2164 = vmatpush.msra.mxu0 0.0
        %2165 = vmatpush.msra.mxu0 0.0
        %2166 = vmatpush.msra.mxu0 0.0
        %2167 = vmatpush.msra.mxu0 0.0
        %2168 = vmatpush.msra.mxu0 0.0
        %2169 = vmatpush.msra.mxu0 0.0
        %2170 = vmatpush.msra.mxu0 0.0
        %2171 = vmatpush.msra.mxu0 0.0
        %2172 = vmatpush.msra.mxu0 0.0
        %2173 = vmatpush.msra.mxu0 0.0
        %2174 = vmatpush.msra.mxu0 0.0
        %2175 = vmatpush.msra.mxu0 0.0
        %2176 = vmatpush.msra.mxu0 %v1029
        %2177 = vmatmul.f32.gmra.mxu0 %v2159
        %v2178 = vpop.f32.mrf.mxu0
        %v2179 = vadd.f32 0.0, %v2178
        %2180 = vdwg.mxu0
        %v2182 = vsel %vm1058, %v1843, 0
        %2184 = vmatpush.msra.mxu0 0.0
        %2185 = vmatpush.msra.mxu0 0.0
        %2186 = vmatpush.msra.mxu0 0.0
        %2187 = vmatpush.msra.mxu0 0.0
        %2188 = vmatpush.msra.mxu0 0.0
        %2189 = vmatpush.msra.mxu0 0.0
        %2190 = vmatpush.msra.mxu0 0.0
        %2191 = vmatpush.msra.mxu0 0.0
        %2192 = vmatpush.msra.mxu0 0.0
        %2193 = vmatpush.msra.mxu0 0.0
        %2194 = vmatpush.msra.mxu0 0.0
        %2195 = vmatpush.msra.mxu0 0.0
        %2196 = vmatpush.msra.mxu0 0.0
        %2197 = vmatpush.msra.mxu0 0.0
        %2198 = vmatpush.msra.mxu0 0.0
        %2199 = vmatpush.msra.mxu0 %v1032
        %2200 = vmatmul.f32.gmra.mxu0 %v2182
        %v2201 = vpop.f32.mrf.mxu0
        %v2202 = vadd.f32 0.0, %v2201
        %2203 = vdwg.mxu0
        %v2205 = vsel %vm1058, %v1858, 0
        %2207 = vmatpush.msra.mxu0 0.0
        %2208 = vmatpush.msra.mxu0 0.0
        %2209 = vmatpush.msra.mxu0 0.0
        %2210 = vmatpush.msra.mxu0 0.0
        %2211 = vmatpush.msra.mxu0 0.0
        %2212 = vmatpush.msra.mxu0 0.0
        %2213 = vmatpush.msra.mxu0 0.0
        %2214 = vmatpush.msra.mxu0 0.0
        %2215 = vmatpush.msra.mxu0 0.0
        %2216 = vmatpush.msra.mxu0 0.0
        %2217 = vmatpush.msra.mxu0 0.0
        %2218 = vmatpush.msra.mxu0 0.0
        %2219 = vmatpush.msra.mxu0 0.0
        %2220 = vmatpush.msra.mxu0 0.0
        %2221 = vmatpush.msra.mxu0 0.0
        %2222 = vmatpush.msra.mxu0 %v1035
        %2223 = vmatmul.f32.gmra.mxu0 %v2205
        %v2224 = vpop.f32.mrf.mxu0
        %v2225 = vadd.f32 0.0, %v2224
        %2226 = vdwg.mxu0
        %v2227 = vld [vmem:[#allocation10] sm:$0xff]
        %v2229 = vsel %vm1058, %v1880, 0
        %v2232 = vsel %vm1058, %v1903, 0
        %v2235 = vsel %vm1058, %v1926, 0
        %v2238 = vsel %vm1058, %v1949, 0
        %v2241 = vsel %vm1058, %v1972, 0
        %v2244 = vsel %vm1058, %v1995, 0
        %v2247 = vsel %vm1058, %v2018, 0
        %v2250 = vsel %vm1058, %v2041, 0
        %v2253 = vsel %vm1058, %v2064, 0
        %v2256 = vsel %vm1058, %v2087, 0
        %v2259 = vsel %vm1058, %v2110, 0
        %v2262 = vsel %vm1058, %v2133, 0
        %v2265 = vsel %vm1058, %v2156, 0
        %v2268 = vsel %vm1058, %v2179, 0
        %v2271 = vsel %vm1058, %v2202, 0
        %v2274 = vsel %vm1058, %v2225, 0
        %2276 = vmatpush.msra.mxu0 0.0
        %2277 = vmatpush.msra.mxu0 0.0
        %2278 = vmatpush.msra.mxu0 0.0
        %2279 = vmatpush.msra.mxu0 0.0
        %2280 = vmatpush.msra.mxu0 0.0
        %2281 = vmatpush.msra.mxu0 0.0
        %2282 = vmatpush.msra.mxu0 0.0
        %2283 = vmatpush.msra.mxu0 0.0
        %2284 = vmatpush.msra.mxu0 0.0
        %2285 = vmatpush.msra.mxu0 0.0
        %2286 = vmatpush.msra.mxu0 0.0
        %2287 = vmatpush.msra.mxu0 0.0
        %2288 = vmatpush.msra.mxu0 0.0
        %2289 = vmatpush.msra.mxu0 0.0
        %2290 = vmatpush.msra.mxu0 0.0
        %2291 = vmatpush.msra.mxu0 %v2227
        %2292 = vmatmul.f32.gmra.mxu0 %v2229
        %v2293 = vpop.f32.mrf.mxu0
        %v2294 = vadd.f32 0.0, %v2293
        %2295 = vmatmul.f32.gmra.mxu0 %v2232
        %v2296 = vpop.f32.mrf.mxu0
        %v2297 = vadd.f32 0.0, %v2296
        %2298 = vmatmul.f32.gmra.mxu0 %v2235
        %v2299 = vpop.f32.mrf.mxu0
        %v2300 = vadd.f32 0.0, %v2299
        %2301 = vmatmul.f32.gmra.mxu0 %v2238
        %v2302 = vpop.f32.mrf.mxu0
        %v2303 = vadd.f32 0.0, %v2302
        %2304 = vmatmul.f32.gmra.mxu0 %v2241
        %v2305 = vpop.f32.mrf.mxu0
        %v2306 = vadd.f32 0.0, %v2305
        %2307 = vmatmul.f32.gmra.mxu0 %v2244
        %v2308 = vpop.f32.mrf.mxu0
        %v2309 = vadd.f32 0.0, %v2308
        %2310 = vmatmul.f32.gmra.mxu0 %v2247
        %v2311 = vpop.f32.mrf.mxu0
        %v2312 = vadd.f32 0.0, %v2311
        %2313 = vmatmul.f32.gmra.mxu0 %v2250
        %v2314 = vpop.f32.mrf.mxu0
        %v2315 = vadd.f32 0.0, %v2314
        %2316 = vmatmul.f32.gmra.mxu0 %v2253
        %v2317 = vpop.f32.mrf.mxu0
        %v2318 = vadd.f32 0.0, %v2317
        %2319 = vmatmul.f32.gmra.mxu0 %v2256
        %v2320 = vpop.f32.mrf.mxu0
        %v2321 = vadd.f32 0.0, %v2320
        %2322 = vmatmul.f32.gmra.mxu0 %v2259
        %v2323 = vpop.f32.mrf.mxu0
        %v2324 = vadd.f32 0.0, %v2323
        %2325 = vmatmul.f32.gmra.mxu0 %v2262
        %v2326 = vpop.f32.mrf.mxu0
        %v2327 = vadd.f32 0.0, %v2326
        %2328 = vmatmul.f32.gmra.mxu0 %v2265
        %v2329 = vpop.f32.mrf.mxu0
        %v2330 = vadd.f32 0.0, %v2329
        %2331 = vmatmul.f32.gmra.mxu0 %v2268
        %v2332 = vpop.f32.mrf.mxu0
        %v2333 = vadd.f32 0.0, %v2332
        %2334 = vmatmul.f32.gmra.mxu0 %v2271
        %v2335 = vpop.f32.mrf.mxu0
        %v2336 = vadd.f32 0.0, %v2335
        %2337 = vmatmul.f32.gmra.mxu0 %v2274
        %v2338 = vpop.f32.mrf.mxu0
        %v2339 = vadd.f32 0.0, %v2338
        %2340 = vdwg.mxu0
        %v2341 = vadd.f32 %v1057, %v2294
        %v2342 = vadd.f32 %v1057, %v2297
        %v2343 = vadd.f32 %v1057, %v2300
        %v2344 = vadd.f32 %v1057, %v2303
        %v2345 = vadd.f32 %v1057, %v2306
        %v2346 = vadd.f32 %v1057, %v2309
        %v2347 = vadd.f32 %v1057, %v2312
        %v2348 = vadd.f32 %v1057, %v2315
        %v2349 = vadd.f32 %v1057, %v2318
        %v2350 = vadd.f32 %v1057, %v2321
        %v2351 = vadd.f32 %v1057, %v2324
        %v2352 = vadd.f32 %v1057, %v2327
        %v2353 = vadd.f32 %v1057, %v2330
        %v2354 = vadd.f32 %v1057, %v2333
        %v2355 = vadd.f32 %v1057, %v2336
        %v2356 = vadd.f32 %v1057, %v2339
        %2357 = vrot.lane.b32.xlu0 %v1037, 120
        %v2358 = vpop.permute.xlu0 %2357
        %2359 = vrot.lane.b32.xlu0 %v925, 120
        %v2360 = vpop.permute.xlu0 %2359
        %v2361 = vsel %vm1058, %v2358, 0
        %v2363 = vsel %vm1058, %v2360, 0
        %2365 = vmatpush.xpose.msra.mxu0 0.0
        %2366 = vmatpush.xpose.msra.mxu0 0.0
        %2367 = vmatpush.xpose.msra.mxu0 0.0
        %2368 = vmatpush.xpose.msra.mxu0 0.0
        %2369 = vmatpush.xpose.msra.mxu0 0.0
        %2370 = vmatpush.xpose.msra.mxu0 0.0
        %2371 = vmatpush.xpose.msra.mxu0 0.0
        %2372 = vmatpush.xpose.msra.mxu0 0.0
        %2373 = vmatpush.xpose.msra.mxu0 0.0
        %2374 = vmatpush.xpose.msra.mxu0 0.0
        %2375 = vmatpush.xpose.msra.mxu0 0.0
        %2376 = vmatpush.xpose.msra.mxu0 0.0
        %2377 = vmatpush.xpose.msra.mxu0 0.0
        %2378 = vmatpush.xpose.msra.mxu0 0.0
        %2379 = vmatpush.xpose.msra.mxu0 0.0
        %2380 = vmatpush.xpose.msra.mxu0 %v2363
        %2381 = vmatmul.f32.gmra.mxu0 %v2361
        %v2382 = vpop.f32.mrf.mxu0
        %v2383 = vadd.f32 0.0, %v2382
        %2384 = vdwg.mxu0
        %2385 = vrot.lane.b32.xlu0 %v1038, 120
        %v2386 = vpop.permute.xlu0 %2385
        %2387 = vrot.lane.b32.xlu0 %v928, 120
        %v2388 = vpop.permute.xlu0 %2387
        %v2389 = vsel %vm1058, %v2386, 0
        %v2391 = vsel %vm1058, %v2388, 0
        %2393 = vmatpush.xpose.msra.mxu0 0.0
        %2394 = vmatpush.xpose.msra.mxu0 0.0
        %2395 = vmatpush.xpose.msra.mxu0 0.0
        %2396 = vmatpush.xpose.msra.mxu0 0.0
        %2397 = vmatpush.xpose.msra.mxu0 0.0
        %2398 = vmatpush.xpose.msra.mxu0 0.0
        %2399 = vmatpush.xpose.msra.mxu0 0.0
        %2400 = vmatpush.xpose.msra.mxu0 0.0
        %2401 = vmatpush.xpose.msra.mxu0 0.0
        %2402 = vmatpush.xpose.msra.mxu0 0.0
        %2403 = vmatpush.xpose.msra.mxu0 0.0
        %2404 = vmatpush.xpose.msra.mxu0 0.0
        %2405 = vmatpush.xpose.msra.mxu0 0.0
        %2406 = vmatpush.xpose.msra.mxu0 0.0
        %2407 = vmatpush.xpose.msra.mxu0 0.0
        %2408 = vmatpush.xpose.msra.mxu0 %v2391
        %2409 = vmatmul.f32.gmra.mxu0 %v2389
        %v2410 = vpop.f32.mrf.mxu0
        %v2411 = vadd.f32 0.0, %v2410
        %2412 = vdwg.mxu0
        %2413 = vrot.lane.b32.xlu0 %v1039, 120
        %v2414 = vpop.permute.xlu0 %2413
        %2415 = vrot.lane.b32.xlu0 %v931, 120
        %v2416 = vpop.permute.xlu0 %2415
        %v2417 = vsel %vm1058, %v2414, 0
        %v2419 = vsel %vm1058, %v2416, 0
        %2421 = vmatpush.xpose.msra.mxu0 0.0
        %2422 = vmatpush.xpose.msra.mxu0 0.0
        %2423 = vmatpush.xpose.msra.mxu0 0.0
        %2424 = vmatpush.xpose.msra.mxu0 0.0
        %2425 = vmatpush.xpose.msra.mxu0 0.0
        %2426 = vmatpush.xpose.msra.mxu0 0.0
        %2427 = vmatpush.xpose.msra.mxu0 0.0
        %2428 = vmatpush.xpose.msra.mxu0 0.0
        %2429 = vmatpush.xpose.msra.mxu0 0.0
        %2430 = vmatpush.xpose.msra.mxu0 0.0
        %2431 = vmatpush.xpose.msra.mxu0 0.0
        %2432 = vmatpush.xpose.msra.mxu0 0.0
        %2433 = vmatpush.xpose.msra.mxu0 0.0
        %2434 = vmatpush.xpose.msra.mxu0 0.0
        %2435 = vmatpush.xpose.msra.mxu0 0.0
        %2436 = vmatpush.xpose.msra.mxu0 %v2419
        %2437 = vmatmul.f32.gmra.mxu0 %v2417
        %v2438 = vpop.f32.mrf.mxu0
        %v2439 = vadd.f32 0.0, %v2438
        %2440 = vdwg.mxu0
        %2441 = vrot.lane.b32.xlu0 %v1040, 120
        %v2442 = vpop.permute.xlu0 %2441
        %2443 = vrot.lane.b32.xlu0 %v934, 120
        %v2444 = vpop.permute.xlu0 %2443
        %v2445 = vsel %vm1058, %v2442, 0
        %v2447 = vsel %vm1058, %v2444, 0
        %2449 = vmatpush.xpose.msra.mxu0 0.0
        %2450 = vmatpush.xpose.msra.mxu0 0.0
        %2451 = vmatpush.xpose.msra.mxu0 0.0
        %2452 = vmatpush.xpose.msra.mxu0 0.0
        %2453 = vmatpush.xpose.msra.mxu0 0.0
        %2454 = vmatpush.xpose.msra.mxu0 0.0
        %2455 = vmatpush.xpose.msra.mxu0 0.0
        %2456 = vmatpush.xpose.msra.mxu0 0.0
        %2457 = vmatpush.xpose.msra.mxu0 0.0
        %2458 = vmatpush.xpose.msra.mxu0 0.0
        %2459 = vmatpush.xpose.msra.mxu0 0.0
        %2460 = vmatpush.xpose.msra.mxu0 0.0
        %2461 = vmatpush.xpose.msra.mxu0 0.0
        %2462 = vmatpush.xpose.msra.mxu0 0.0
        %2463 = vmatpush.xpose.msra.mxu0 0.0
        %2464 = vmatpush.xpose.msra.mxu0 %v2447
        %2465 = vmatmul.f32.gmra.mxu0 %v2445
        %v2466 = vpop.f32.mrf.mxu0
        %v2467 = vadd.f32 0.0, %v2466
        %2468 = vdwg.mxu0
        %2469 = vrot.lane.b32.xlu0 %v1041, 120
        %v2470 = vpop.permute.xlu0 %2469
        %2471 = vrot.lane.b32.xlu0 %v937, 120
        %v2472 = vpop.permute.xlu0 %2471
        %v2473 = vsel %vm1058, %v2470, 0
        %v2475 = vsel %vm1058, %v2472, 0
        %2477 = vmatpush.xpose.msra.mxu0 0.0
        %2478 = vmatpush.xpose.msra.mxu0 0.0
        %2479 = vmatpush.xpose.msra.mxu0 0.0
        %2480 = vmatpush.xpose.msra.mxu0 0.0
        %2481 = vmatpush.xpose.msra.mxu0 0.0
        %2482 = vmatpush.xpose.msra.mxu0 0.0
        %2483 = vmatpush.xpose.msra.mxu0 0.0
        %2484 = vmatpush.xpose.msra.mxu0 0.0
        %2485 = vmatpush.xpose.msra.mxu0 0.0
        %2486 = vmatpush.xpose.msra.mxu0 0.0
        %2487 = vmatpush.xpose.msra.mxu0 0.0
        %2488 = vmatpush.xpose.msra.mxu0 0.0
        %2489 = vmatpush.xpose.msra.mxu0 0.0
        %2490 = vmatpush.xpose.msra.mxu0 0.0
        %2491 = vmatpush.xpose.msra.mxu0 0.0
        %2492 = vmatpush.xpose.msra.mxu0 %v2475
        %2493 = vmatmul.f32.gmra.mxu0 %v2473
        %v2494 = vpop.f32.mrf.mxu0
        %v2495 = vadd.f32 0.0, %v2494
        %2496 = vdwg.mxu0
        %2497 = vrot.lane.b32.xlu0 %v1042, 120
        %v2498 = vpop.permute.xlu0 %2497
        %2499 = vrot.lane.b32.xlu0 %v940, 120
        %v2500 = vpop.permute.xlu0 %2499
        %v2501 = vsel %vm1058, %v2498, 0
        %v2503 = vsel %vm1058, %v2500, 0
        %2505 = vmatpush.xpose.msra.mxu0 0.0
        %2506 = vmatpush.xpose.msra.mxu0 0.0
        %2507 = vmatpush.xpose.msra.mxu0 0.0
        %2508 = vmatpush.xpose.msra.mxu0 0.0
        %2509 = vmatpush.xpose.msra.mxu0 0.0
        %2510 = vmatpush.xpose.msra.mxu0 0.0
        %2511 = vmatpush.xpose.msra.mxu0 0.0
        %2512 = vmatpush.xpose.msra.mxu0 0.0
        %2513 = vmatpush.xpose.msra.mxu0 0.0
        %2514 = vmatpush.xpose.msra.mxu0 0.0
        %2515 = vmatpush.xpose.msra.mxu0 0.0
        %2516 = vmatpush.xpose.msra.mxu0 0.0
        %2517 = vmatpush.xpose.msra.mxu0 0.0
        %2518 = vmatpush.xpose.msra.mxu0 0.0
        %2519 = vmatpush.xpose.msra.mxu0 0.0
        %2520 = vmatpush.xpose.msra.mxu0 %v2503
        %2521 = vmatmul.f32.gmra.mxu0 %v2501
        %v2522 = vpop.f32.mrf.mxu0
        %v2523 = vadd.f32 0.0, %v2522
        %2524 = vdwg.mxu0
        %2525 = vrot.lane.b32.xlu0 %v1043, 120
        %v2526 = vpop.permute.xlu0 %2525
        %2527 = vrot.lane.b32.xlu0 %v943, 120
        %v2528 = vpop.permute.xlu0 %2527
        %v2529 = vsel %vm1058, %v2526, 0
        %v2531 = vsel %vm1058, %v2528, 0
        %2533 = vmatpush.xpose.msra.mxu0 0.0
        %2534 = vmatpush.xpose.msra.mxu0 0.0
        %2535 = vmatpush.xpose.msra.mxu0 0.0
        %2536 = vmatpush.xpose.msra.mxu0 0.0
        %2537 = vmatpush.xpose.msra.mxu0 0.0
        %2538 = vmatpush.xpose.msra.mxu0 0.0
        %2539 = vmatpush.xpose.msra.mxu0 0.0
        %2540 = vmatpush.xpose.msra.mxu0 0.0
        %2541 = vmatpush.xpose.msra.mxu0 0.0
        %2542 = vmatpush.xpose.msra.mxu0 0.0
        %2543 = vmatpush.xpose.msra.mxu0 0.0
        %2544 = vmatpush.xpose.msra.mxu0 0.0
        %2545 = vmatpush.xpose.msra.mxu0 0.0
        %2546 = vmatpush.xpose.msra.mxu0 0.0
        %2547 = vmatpush.xpose.msra.mxu0 0.0
        %2548 = vmatpush.xpose.msra.mxu0 %v2531
        %2549 = vmatmul.f32.gmra.mxu0 %v2529
        %v2550 = vpop.f32.mrf.mxu0
        %v2551 = vadd.f32 0.0, %v2550
        %2552 = vdwg.mxu0
        %2553 = vrot.lane.b32.xlu0 %v1044, 120
        %v2554 = vpop.permute.xlu0 %2553
        %2555 = vrot.lane.b32.xlu0 %v946, 120
        %v2556 = vpop.permute.xlu0 %2555
        %v2557 = vsel %vm1058, %v2554, 0
        %v2559 = vsel %vm1058, %v2556, 0
        %2561 = vmatpush.xpose.msra.mxu0 0.0
        %2562 = vmatpush.xpose.msra.mxu0 0.0
        %2563 = vmatpush.xpose.msra.mxu0 0.0
        %2564 = vmatpush.xpose.msra.mxu0 0.0
        %2565 = vmatpush.xpose.msra.mxu0 0.0
        %2566 = vmatpush.xpose.msra.mxu0 0.0
        %2567 = vmatpush.xpose.msra.mxu0 0.0
        %2568 = vmatpush.xpose.msra.mxu0 0.0
        %2569 = vmatpush.xpose.msra.mxu0 0.0
        %2570 = vmatpush.xpose.msra.mxu0 0.0
        %2571 = vmatpush.xpose.msra.mxu0 0.0
        %2572 = vmatpush.xpose.msra.mxu0 0.0
        %2573 = vmatpush.xpose.msra.mxu0 0.0
        %2574 = vmatpush.xpose.msra.mxu0 0.0
        %2575 = vmatpush.xpose.msra.mxu0 0.0
        %2576 = vmatpush.xpose.msra.mxu0 %v2559
        %2577 = vmatmul.f32.gmra.mxu0 %v2557
        %v2578 = vpop.f32.mrf.mxu0
        %v2579 = vadd.f32 0.0, %v2578
        %2580 = vdwg.mxu0
        %2581 = vrot.lane.b32.xlu0 %v1045, 120
        %v2582 = vpop.permute.xlu0 %2581
        %2583 = vrot.lane.b32.xlu0 %v949, 120
        %v2584 = vpop.permute.xlu0 %2583
        %v2585 = vsel %vm1058, %v2582, 0
        %v2587 = vsel %vm1058, %v2584, 0
        %2589 = vmatpush.xpose.msra.mxu0 0.0
        %2590 = vmatpush.xpose.msra.mxu0 0.0
        %2591 = vmatpush.xpose.msra.mxu0 0.0
        %2592 = vmatpush.xpose.msra.mxu0 0.0
        %2593 = vmatpush.xpose.msra.mxu0 0.0
        %2594 = vmatpush.xpose.msra.mxu0 0.0
        %2595 = vmatpush.xpose.msra.mxu0 0.0
        %2596 = vmatpush.xpose.msra.mxu0 0.0
        %2597 = vmatpush.xpose.msra.mxu0 0.0
        %2598 = vmatpush.xpose.msra.mxu0 0.0
        %2599 = vmatpush.xpose.msra.mxu0 0.0
        %2600 = vmatpush.xpose.msra.mxu0 0.0
        %2601 = vmatpush.xpose.msra.mxu0 0.0
        %2602 = vmatpush.xpose.msra.mxu0 0.0
        %2603 = vmatpush.xpose.msra.mxu0 0.0
        %2604 = vmatpush.xpose.msra.mxu0 %v2587
        %2605 = vmatmul.f32.gmra.mxu0 %v2585
        %v2606 = vpop.f32.mrf.mxu0
        %v2607 = vadd.f32 0.0, %v2606
        %2608 = vdwg.mxu0
        %2609 = vrot.lane.b32.xlu0 %v1046, 120
        %v2610 = vpop.permute.xlu0 %2609
        %2611 = vrot.lane.b32.xlu0 %v952, 120
        %v2612 = vpop.permute.xlu0 %2611
        %v2613 = vsel %vm1058, %v2610, 0
        %v2615 = vsel %vm1058, %v2612, 0
        %2617 = vmatpush.xpose.msra.mxu0 0.0
        %2618 = vmatpush.xpose.msra.mxu0 0.0
        %2619 = vmatpush.xpose.msra.mxu0 0.0
        %2620 = vmatpush.xpose.msra.mxu0 0.0
        %2621 = vmatpush.xpose.msra.mxu0 0.0
        %2622 = vmatpush.xpose.msra.mxu0 0.0
        %2623 = vmatpush.xpose.msra.mxu0 0.0
        %2624 = vmatpush.xpose.msra.mxu0 0.0
        %2625 = vmatpush.xpose.msra.mxu0 0.0
        %2626 = vmatpush.xpose.msra.mxu0 0.0
        %2627 = vmatpush.xpose.msra.mxu0 0.0
        %2628 = vmatpush.xpose.msra.mxu0 0.0
        %2629 = vmatpush.xpose.msra.mxu0 0.0
        %2630 = vmatpush.xpose.msra.mxu0 0.0
        %2631 = vmatpush.xpose.msra.mxu0 0.0
        %2632 = vmatpush.xpose.msra.mxu0 %v2615
        %2633 = vmatmul.f32.gmra.mxu0 %v2613
        %v2634 = vpop.f32.mrf.mxu0
        %v2635 = vadd.f32 0.0, %v2634
        %2636 = vdwg.mxu0
        %2637 = vrot.lane.b32.xlu0 %v1047, 120
        %v2638 = vpop.permute.xlu0 %2637
        %2639 = vrot.lane.b32.xlu0 %v955, 120
        %v2640 = vpop.permute.xlu0 %2639
        %v2641 = vsel %vm1058, %v2638, 0
        %v2643 = vsel %vm1058, %v2640, 0
        %2645 = vmatpush.xpose.msra.mxu0 0.0
        %2646 = vmatpush.xpose.msra.mxu0 0.0
        %2647 = vmatpush.xpose.msra.mxu0 0.0
        %2648 = vmatpush.xpose.msra.mxu0 0.0
        %2649 = vmatpush.xpose.msra.mxu0 0.0
        %2650 = vmatpush.xpose.msra.mxu0 0.0
        %2651 = vmatpush.xpose.msra.mxu0 0.0
        %2652 = vmatpush.xpose.msra.mxu0 0.0
        %2653 = vmatpush.xpose.msra.mxu0 0.0
        %2654 = vmatpush.xpose.msra.mxu0 0.0
        %2655 = vmatpush.xpose.msra.mxu0 0.0
        %2656 = vmatpush.xpose.msra.mxu0 0.0
        %2657 = vmatpush.xpose.msra.mxu0 0.0
        %2658 = vmatpush.xpose.msra.mxu0 0.0
        %2659 = vmatpush.xpose.msra.mxu0 0.0
        %2660 = vmatpush.xpose.msra.mxu0 %v2643
        %2661 = vmatmul.f32.gmra.mxu0 %v2641
        %v2662 = vpop.f32.mrf.mxu0
        %v2663 = vadd.f32 0.0, %v2662
        %2664 = vdwg.mxu0
        %2665 = vrot.lane.b32.xlu0 %v1048, 120
        %v2666 = vpop.permute.xlu0 %2665
        %2667 = vrot.lane.b32.xlu0 %v958, 120
        %v2668 = vpop.permute.xlu0 %2667
        %v2669 = vsel %vm1058, %v2666, 0
        %v2671 = vsel %vm1058, %v2668, 0
        %2673 = vmatpush.xpose.msra.mxu0 0.0
        %2674 = vmatpush.xpose.msra.mxu0 0.0
        %2675 = vmatpush.xpose.msra.mxu0 0.0
        %2676 = vmatpush.xpose.msra.mxu0 0.0
        %2677 = vmatpush.xpose.msra.mxu0 0.0
        %2678 = vmatpush.xpose.msra.mxu0 0.0
        %2679 = vmatpush.xpose.msra.mxu0 0.0
        %2680 = vmatpush.xpose.msra.mxu0 0.0
        %2681 = vmatpush.xpose.msra.mxu0 0.0
        %2682 = vmatpush.xpose.msra.mxu0 0.0
        %2683 = vmatpush.xpose.msra.mxu0 0.0
        %2684 = vmatpush.xpose.msra.mxu0 0.0
        %2685 = vmatpush.xpose.msra.mxu0 0.0
        %2686 = vmatpush.xpose.msra.mxu0 0.0
        %2687 = vmatpush.xpose.msra.mxu0 0.0
        %2688 = vmatpush.xpose.msra.mxu0 %v2671
        %2689 = vmatmul.f32.gmra.mxu0 %v2669
        %v2690 = vpop.f32.mrf.mxu0
        %v2691 = vadd.f32 0.0, %v2690
        %2692 = vdwg.mxu0
        %2693 = vrot.lane.b32.xlu0 %v1049, 120
        %v2694 = vpop.permute.xlu0 %2693
        %2695 = vrot.lane.b32.xlu0 %v961, 120
        %v2696 = vpop.permute.xlu0 %2695
        %v2697 = vsel %vm1058, %v2694, 0
        %v2699 = vsel %vm1058, %v2696, 0
        %2701 = vmatpush.xpose.msra.mxu0 0.0
        %2702 = vmatpush.xpose.msra.mxu0 0.0
        %2703 = vmatpush.xpose.msra.mxu0 0.0
        %2704 = vmatpush.xpose.msra.mxu0 0.0
        %2705 = vmatpush.xpose.msra.mxu0 0.0
        %2706 = vmatpush.xpose.msra.mxu0 0.0
        %2707 = vmatpush.xpose.msra.mxu0 0.0
        %2708 = vmatpush.xpose.msra.mxu0 0.0
        %2709 = vmatpush.xpose.msra.mxu0 0.0
        %2710 = vmatpush.xpose.msra.mxu0 0.0
        %2711 = vmatpush.xpose.msra.mxu0 0.0
        %2712 = vmatpush.xpose.msra.mxu0 0.0
        %2713 = vmatpush.xpose.msra.mxu0 0.0
        %2714 = vmatpush.xpose.msra.mxu0 0.0
        %2715 = vmatpush.xpose.msra.mxu0 0.0
        %2716 = vmatpush.xpose.msra.mxu0 %v2699
        %2717 = vmatmul.f32.gmra.mxu0 %v2697
        %v2718 = vpop.f32.mrf.mxu0
        %v2719 = vadd.f32 0.0, %v2718
        %2720 = vdwg.mxu0
        %2721 = vrot.lane.b32.xlu0 %v1050, 120
        %v2722 = vpop.permute.xlu0 %2721
        %2723 = vrot.lane.b32.xlu0 %v964, 120
        %v2724 = vpop.permute.xlu0 %2723
        %v2725 = vsel %vm1058, %v2722, 0
        %v2727 = vsel %vm1058, %v2724, 0
        %2729 = vmatpush.xpose.msra.mxu0 0.0
        %2730 = vmatpush.xpose.msra.mxu0 0.0
        %2731 = vmatpush.xpose.msra.mxu0 0.0
        %2732 = vmatpush.xpose.msra.mxu0 0.0
        %2733 = vmatpush.xpose.msra.mxu0 0.0
        %2734 = vmatpush.xpose.msra.mxu0 0.0
        %2735 = vmatpush.xpose.msra.mxu0 0.0
        %2736 = vmatpush.xpose.msra.mxu0 0.0
        %2737 = vmatpush.xpose.msra.mxu0 0.0
        %2738 = vmatpush.xpose.msra.mxu0 0.0
        %2739 = vmatpush.xpose.msra.mxu0 0.0
        %2740 = vmatpush.xpose.msra.mxu0 0.0
        %2741 = vmatpush.xpose.msra.mxu0 0.0
        %2742 = vmatpush.xpose.msra.mxu0 0.0
        %2743 = vmatpush.xpose.msra.mxu0 0.0
        %2744 = vmatpush.xpose.msra.mxu0 %v2727
        %2745 = vmatmul.f32.gmra.mxu0 %v2725
        %v2746 = vpop.f32.mrf.mxu0
        %v2747 = vadd.f32 0.0, %v2746
        %2748 = vdwg.mxu0
        %2749 = vrot.lane.b32.xlu0 %v1051, 120
        %v2750 = vpop.permute.xlu0 %2749
        %2751 = vrot.lane.b32.xlu0 %v967, 120
        %v2752 = vpop.permute.xlu0 %2751
        %v2753 = vsel %vm1058, %v2750, 0
        %v2755 = vsel %vm1058, %v2752, 0
        %2757 = vmatpush.xpose.msra.mxu0 0.0
        %2758 = vmatpush.xpose.msra.mxu0 0.0
        %2759 = vmatpush.xpose.msra.mxu0 0.0
        %2760 = vmatpush.xpose.msra.mxu0 0.0
        %2761 = vmatpush.xpose.msra.mxu0 0.0
        %2762 = vmatpush.xpose.msra.mxu0 0.0
        %2763 = vmatpush.xpose.msra.mxu0 0.0
        %2764 = vmatpush.xpose.msra.mxu0 0.0
        %2765 = vmatpush.xpose.msra.mxu0 0.0
        %2766 = vmatpush.xpose.msra.mxu0 0.0
        %2767 = vmatpush.xpose.msra.mxu0 0.0
        %2768 = vmatpush.xpose.msra.mxu0 0.0
        %2769 = vmatpush.xpose.msra.mxu0 0.0
        %2770 = vmatpush.xpose.msra.mxu0 0.0
        %2771 = vmatpush.xpose.msra.mxu0 0.0
        %2772 = vmatpush.xpose.msra.mxu0 %v2755
        %2773 = vmatmul.f32.gmra.mxu0 %v2753
        %v2774 = vpop.f32.mrf.mxu0
        %v2775 = vadd.f32 0.0, %v2774
        %2776 = vdwg.mxu0
        %2777 = vrot.lane.b32.xlu0 %v1052, 120
        %v2778 = vpop.permute.xlu0 %2777
        %2779 = vrot.lane.b32.xlu0 %v970, 120
        %v2780 = vpop.permute.xlu0 %2779
        %v2781 = vsel %vm1058, %v2778, 0
        %v2783 = vsel %vm1058, %v2780, 0
        %2785 = vmatpush.xpose.msra.mxu0 0.0
        %2786 = vmatpush.xpose.msra.mxu0 0.0
        %2787 = vmatpush.xpose.msra.mxu0 0.0
        %2788 = vmatpush.xpose.msra.mxu0 0.0
        %2789 = vmatpush.xpose.msra.mxu0 0.0
        %2790 = vmatpush.xpose.msra.mxu0 0.0
        %2791 = vmatpush.xpose.msra.mxu0 0.0
        %2792 = vmatpush.xpose.msra.mxu0 0.0
        %2793 = vmatpush.xpose.msra.mxu0 0.0
        %2794 = vmatpush.xpose.msra.mxu0 0.0
        %2795 = vmatpush.xpose.msra.mxu0 0.0
        %2796 = vmatpush.xpose.msra.mxu0 0.0
        %2797 = vmatpush.xpose.msra.mxu0 0.0
        %2798 = vmatpush.xpose.msra.mxu0 0.0
        %2799 = vmatpush.xpose.msra.mxu0 0.0
        %2800 = vmatpush.xpose.msra.mxu0 %v2783
        %2801 = vmatmul.f32.gmra.mxu0 %v2781
        %v2802 = vpop.f32.mrf.mxu0
        %v2803 = vadd.f32 0.0, %v2802
        %2804 = vdwg.mxu0
        %v2805 = vsel %vm1058, %v2383, -inf
        %2806 = vmax.xlane.f32.xlu0 %v2805
        %v2807 = vpop.xlane.xlu0 %2806
        %v2808 = vsel %vm1058, %v2411, -inf
        %2809 = vmax.xlane.f32.xlu0 %v2808
        %v2810 = vpop.xlane.xlu0 %2809
        %v2811 = vsel %vm1058, %v2439, -inf
        %2812 = vmax.xlane.f32.xlu0 %v2811
        %v2813 = vpop.xlane.xlu0 %2812
        %v2814 = vsel %vm1058, %v2467, -inf
        %2815 = vmax.xlane.f32.xlu0 %v2814
        %v2816 = vpop.xlane.xlu0 %2815
        %v2817 = vsel %vm1058, %v2495, -inf
        %2818 = vmax.xlane.f32.xlu0 %v2817
        %v2819 = vpop.xlane.xlu0 %2818
        %v2820 = vsel %vm1058, %v2523, -inf
        %2821 = vmax.xlane.f32.xlu0 %v2820
        %v2822 = vpop.xlane.xlu0 %2821
        %v2823 = vsel %vm1058, %v2551, -inf
        %2824 = vmax.xlane.f32.xlu0 %v2823
        %v2825 = vpop.xlane.xlu0 %2824
        %v2826 = vsel %vm1058, %v2579, -inf
        %2827 = vmax.xlane.f32.xlu0 %v2826
        %v2828 = vpop.xlane.xlu0 %2827
        %v2829 = vsel %vm1058, %v2607, -inf
        %2830 = vmax.xlane.f32.xlu0 %v2829
        %v2831 = vpop.xlane.xlu0 %2830
        %v2832 = vsel %vm1058, %v2635, -inf
        %2833 = vmax.xlane.f32.xlu0 %v2832
        %v2834 = vpop.xlane.xlu0 %2833
        %v2835 = vsel %vm1058, %v2663, -inf
        %2836 = vmax.xlane.f32.xlu0 %v2835
        %v2837 = vpop.xlane.xlu0 %2836
        %v2838 = vsel %vm1058, %v2691, -inf
        %2839 = vmax.xlane.f32.xlu0 %v2838
        %v2840 = vpop.xlane.xlu0 %2839
        %v2841 = vsel %vm1058, %v2719, -inf
        %2842 = vmax.xlane.f32.xlu0 %v2841
        %v2843 = vpop.xlane.xlu0 %2842
        %v2844 = vsel %vm1058, %v2747, -inf
        %2845 = vmax.xlane.f32.xlu0 %v2844
        %v2846 = vpop.xlane.xlu0 %2845
        %v2847 = vsel %vm1058, %v2775, -inf
        %2848 = vmax.xlane.f32.xlu0 %v2847
        %v2849 = vpop.xlane.xlu0 %2848
        %v2850 = vsel %vm1058, %v2803, -inf
        %2851 = vmax.xlane.f32.xlu0 %v2850
        %v2852 = vpop.xlane.xlu0 %2851
        %v2853 = vsub.f32 %v2383, %v2807
        %v2854 = vsub.f32 %v2411, %v2810
        %v2855 = vsub.f32 %v2439, %v2813
        %v2856 = vsub.f32 %v2467, %v2816
        %v2857 = vsub.f32 %v2495, %v2819
        %v2858 = vsub.f32 %v2523, %v2822
        %v2859 = vsub.f32 %v2551, %v2825
        %v2860 = vsub.f32 %v2579, %v2828
        %v2861 = vsub.f32 %v2607, %v2831
        %v2862 = vsub.f32 %v2635, %v2834
        %v2863 = vsub.f32 %v2663, %v2837
        %v2864 = vsub.f32 %v2691, %v2840
        %v2865 = vsub.f32 %v2719, %v2843
        %v2866 = vsub.f32 %v2747, %v2846
        %v2867 = vsub.f32 %v2775, %v2849
        %v2868 = vsub.f32 %v2803, %v2852
        %v2869 = vmul.f32 %v2853, 1.442695
        %v2870 = vpow.pop %v2869
        %v2871 = vmul.f32 %v2854, 1.442695
        %v2872 = vpow.pop %v2871
        %v2873 = vmul.f32 %v2855, 1.442695
        %v2874 = vpow.pop %v2873
        %v2875 = vmul.f32 %v2856, 1.442695
        %v2876 = vpow.pop %v2875
        %v2877 = vmul.f32 %v2857, 1.442695
        %v2878 = vpow.pop %v2877
        %v2879 = vmul.f32 %v2858, 1.442695
        %v2880 = vpow.pop %v2879
        %v2881 = vmul.f32 %v2859, 1.442695
        %v2882 = vpow.pop %v2881
        %v2883 = vmul.f32 %v2860, 1.442695
        %v2884 = vpow.pop %v2883
        %v2885 = vmul.f32 %v2861, 1.442695
        %v2886 = vpow.pop %v2885
        %v2887 = vmul.f32 %v2862, 1.442695
        %v2888 = vpow.pop %v2887
        %v2889 = vmul.f32 %v2863, 1.442695
        %v2890 = vpow.pop %v2889
        %v2891 = vmul.f32 %v2864, 1.442695
        %v2892 = vpow.pop %v2891
        %v2893 = vmul.f32 %v2865, 1.442695
        %v2894 = vpow.pop %v2893
        %v2895 = vmul.f32 %v2866, 1.442695
        %v2896 = vpow.pop %v2895
        %v2897 = vmul.f32 %v2867, 1.442695
        %v2898 = vpow.pop %v2897
        %v2899 = vmul.f32 %v2868, 1.442695
        %v2900 = vpow.pop %v2899
        %v2901 = vsel %vm1058, %v2870, 0.0
        %2902 = vadd.xlane.f32.xlu0 %v2901
        %v2903 = vpop.xlane.xlu0 %2902
        %v2904 = vsel %vm1058, %v2872, 0.0
        %2905 = vadd.xlane.f32.xlu0 %v2904
        %v2906 = vpop.xlane.xlu0 %2905
        %v2907 = vsel %vm1058, %v2874, 0.0
        %2908 = vadd.xlane.f32.xlu0 %v2907
        %v2909 = vpop.xlane.xlu0 %2908
        %v2910 = vsel %vm1058, %v2876, 0.0
        %2911 = vadd.xlane.f32.xlu0 %v2910
        %v2912 = vpop.xlane.xlu0 %2911
        %v2913 = vsel %vm1058, %v2878, 0.0
        %2914 = vadd.xlane.f32.xlu0 %v2913
        %v2915 = vpop.xlane.xlu0 %2914
        %v2916 = vsel %vm1058, %v2880, 0.0
        %2917 = vadd.xlane.f32.xlu0 %v2916
        %v2918 = vpop.xlane.xlu0 %2917
        %v2919 = vsel %vm1058, %v2882, 0.0
        %2920 = vadd.xlane.f32.xlu0 %v2919
        %v2921 = vpop.xlane.xlu0 %2920
        %v2922 = vsel %vm1058, %v2884, 0.0
        %2923 = vadd.xlane.f32.xlu0 %v2922
        %v2924 = vpop.xlane.xlu0 %2923
        %v2925 = vsel %vm1058, %v2886, 0.0
        %2926 = vadd.xlane.f32.xlu0 %v2925
        %v2927 = vpop.xlane.xlu0 %2926
        %v2928 = vsel %vm1058, %v2888, 0.0
        %2929 = vadd.xlane.f32.xlu0 %v2928
        %v2930 = vpop.xlane.xlu0 %2929
        %v2931 = vsel %vm1058, %v2890, 0.0
        %2932 = vadd.xlane.f32.xlu0 %v2931
        %v2933 = vpop.xlane.xlu0 %2932
        %v2934 = vsel %vm1058, %v2892, 0.0
        %2935 = vadd.xlane.f32.xlu0 %v2934
        %v2936 = vpop.xlane.xlu0 %2935
        %v2937 = vsel %vm1058, %v2894, 0.0
        %2938 = vadd.xlane.f32.xlu0 %v2937
        %v2939 = vpop.xlane.xlu0 %2938
        %v2940 = vsel %vm1058, %v2896, 0.0
        %2941 = vadd.xlane.f32.xlu0 %v2940
        %v2942 = vpop.xlane.xlu0 %2941
        %v2943 = vsel %vm1058, %v2898, 0.0
        %2944 = vadd.xlane.f32.xlu0 %v2943
        %v2945 = vpop.xlane.xlu0 %2944
        %v2946 = vsel %vm1058, %v2900, 0.0
        %2947 = vadd.xlane.f32.xlu0 %v2946
        %v2948 = vpop.xlane.xlu0 %2947
        %v2949 = vrcp.pop %v2903
        %v2950 = vmul.f32 %v2903, %v2949
        %v2951 = vsub.f32 1.0, %v2950
        %v2952 = vmul.f32 %v2949, %v2951
        %v2953 = vadd.f32 %v2949, %v2952
        %vm2954 = vweird.f32 %v2903
        %vm2955 = vweird.f32 %v2949
        %vm2956 = vmor %vm2954, %vm2955
        %v2957 = vsel %vm2956, %v2949, %v2953
        %v2958 = vand.u32 2147483647, %v2903
        %vm2959 = vcmp.eq.f32.partialorder %v2958, 8.507059e+37
        %v2960 = vand.u32 %v2903, 2147483648
        %v2961 = vor.u32 1.1754944e-38, %v2960
        %v2962 = vsel %vm2959, %v2961, %v2957
        %v2963 = vmul.f32 %v2870, %v2962
        %v2964 = vrcp.pop %v2906
        %v2965 = vmul.f32 %v2906, %v2964
        %v2966 = vsub.f32 1.0, %v2965
        %v2967 = vmul.f32 %v2964, %v2966
        %v2968 = vadd.f32 %v2964, %v2967
        %vm2969 = vweird.f32 %v2906
        %vm2970 = vweird.f32 %v2964
        %vm2971 = vmor %vm2969, %vm2970
        %v2972 = vsel %vm2971, %v2964, %v2968
        %v2973 = vand.u32 2147483647, %v2906
        %vm2974 = vcmp.eq.f32.partialorder %v2973, 8.507059e+37
        %v2975 = vand.u32 %v2906, 2147483648
        %v2976 = vor.u32 1.1754944e-38, %v2975
        %v2977 = vsel %vm2974, %v2976, %v2972
        %v2978 = vmul.f32 %v2872, %v2977
        %v2979 = vrcp.pop %v2909
        %v2980 = vmul.f32 %v2909, %v2979
        %v2981 = vsub.f32 1.0, %v2980
        %v2982 = vmul.f32 %v2979, %v2981
        %v2983 = vadd.f32 %v2979, %v2982
        %vm2984 = vweird.f32 %v2909
        %vm2985 = vweird.f32 %v2979
        %vm2986 = vmor %vm2984, %vm2985
        %v2987 = vsel %vm2986, %v2979, %v2983
        %v2988 = vand.u32 2147483647, %v2909
        %vm2989 = vcmp.eq.f32.partialorder %v2988, 8.507059e+37
        %v2990 = vand.u32 %v2909, 2147483648
        %v2991 = vor.u32 1.1754944e-38, %v2990
        %v2992 = vsel %vm2989, %v2991, %v2987
        %v2993 = vmul.f32 %v2874, %v2992
        %v2994 = vrcp.pop %v2912
        %v2995 = vmul.f32 %v2912, %v2994
        %v2996 = vsub.f32 1.0, %v2995
        %v2997 = vmul.f32 %v2994, %v2996
        %v2998 = vadd.f32 %v2994, %v2997
        %vm2999 = vweird.f32 %v2912
        %vm3000 = vweird.f32 %v2994
        %vm3001 = vmor %vm2999, %vm3000
        %v3002 = vsel %vm3001, %v2994, %v2998
        %v3003 = vand.u32 2147483647, %v2912
        %vm3004 = vcmp.eq.f32.partialorder %v3003, 8.507059e+37
        %v3005 = vand.u32 %v2912, 2147483648
        %v3006 = vor.u32 1.1754944e-38, %v3005
        %v3007 = vsel %vm3004, %v3006, %v3002
        %v3008 = vmul.f32 %v2876, %v3007
        %v3009 = vrcp.pop %v2915
        %v3010 = vmul.f32 %v2915, %v3009
        %v3011 = vsub.f32 1.0, %v3010
        %v3012 = vmul.f32 %v3009, %v3011
        %v3013 = vadd.f32 %v3009, %v3012
        %vm3014 = vweird.f32 %v2915
        %vm3015 = vweird.f32 %v3009
        %vm3016 = vmor %vm3014, %vm3015
        %v3017 = vsel %vm3016, %v3009, %v3013
        %v3018 = vand.u32 2147483647, %v2915
        %vm3019 = vcmp.eq.f32.partialorder %v3018, 8.507059e+37
        %v3020 = vand.u32 %v2915, 2147483648
        %v3021 = vor.u32 1.1754944e-38, %v3020
        %v3022 = vsel %vm3019, %v3021, %v3017
        %v3023 = vmul.f32 %v2878, %v3022
        %v3024 = vrcp.pop %v2918
        %v3025 = vmul.f32 %v2918, %v3024
        %v3026 = vsub.f32 1.0, %v3025
        %v3027 = vmul.f32 %v3024, %v3026
        %v3028 = vadd.f32 %v3024, %v3027
        %vm3029 = vweird.f32 %v2918
        %vm3030 = vweird.f32 %v3024
        %vm3031 = vmor %vm3029, %vm3030
        %v3032 = vsel %vm3031, %v3024, %v3028
        %v3033 = vand.u32 2147483647, %v2918
        %vm3034 = vcmp.eq.f32.partialorder %v3033, 8.507059e+37
        %v3035 = vand.u32 %v2918, 2147483648
        %v3036 = vor.u32 1.1754944e-38, %v3035
        %v3037 = vsel %vm3034, %v3036, %v3032
        %v3038 = vmul.f32 %v2880, %v3037
        %v3039 = vrcp.pop %v2921
        %v3040 = vmul.f32 %v2921, %v3039
        %v3041 = vsub.f32 1.0, %v3040
        %v3042 = vmul.f32 %v3039, %v3041
        %v3043 = vadd.f32 %v3039, %v3042
        %vm3044 = vweird.f32 %v2921
        %vm3045 = vweird.f32 %v3039
        %vm3046 = vmor %vm3044, %vm3045
        %v3047 = vsel %vm3046, %v3039, %v3043
        %v3048 = vand.u32 2147483647, %v2921
        %vm3049 = vcmp.eq.f32.partialorder %v3048, 8.507059e+37
        %v3050 = vand.u32 %v2921, 2147483648
        %v3051 = vor.u32 1.1754944e-38, %v3050
        %v3052 = vsel %vm3049, %v3051, %v3047
        %v3053 = vmul.f32 %v2882, %v3052
        %v3054 = vrcp.pop %v2924
        %v3055 = vmul.f32 %v2924, %v3054
        %v3056 = vsub.f32 1.0, %v3055
        %v3057 = vmul.f32 %v3054, %v3056
        %v3058 = vadd.f32 %v3054, %v3057
        %vm3059 = vweird.f32 %v2924
        %vm3060 = vweird.f32 %v3054
        %vm3061 = vmor %vm3059, %vm3060
        %v3062 = vsel %vm3061, %v3054, %v3058
        %v3063 = vand.u32 2147483647, %v2924
        %vm3064 = vcmp.eq.f32.partialorder %v3063, 8.507059e+37
        %v3065 = vand.u32 %v2924, 2147483648
        %v3066 = vor.u32 1.1754944e-38, %v3065
        %v3067 = vsel %vm3064, %v3066, %v3062
        %v3068 = vmul.f32 %v2884, %v3067
        %v3069 = vrcp.pop %v2927
        %v3070 = vmul.f32 %v2927, %v3069
        %v3071 = vsub.f32 1.0, %v3070
        %v3072 = vmul.f32 %v3069, %v3071
        %v3073 = vadd.f32 %v3069, %v3072
        %vm3074 = vweird.f32 %v2927
        %vm3075 = vweird.f32 %v3069
        %vm3076 = vmor %vm3074, %vm3075
        %v3077 = vsel %vm3076, %v3069, %v3073
        %v3078 = vand.u32 2147483647, %v2927
        %vm3079 = vcmp.eq.f32.partialorder %v3078, 8.507059e+37
        %v3080 = vand.u32 %v2927, 2147483648
        %v3081 = vor.u32 1.1754944e-38, %v3080
        %v3082 = vsel %vm3079, %v3081, %v3077
        %v3083 = vmul.f32 %v2886, %v3082
        %v3084 = vrcp.pop %v2930
        %v3085 = vmul.f32 %v2930, %v3084
        %v3086 = vsub.f32 1.0, %v3085
        %v3087 = vmul.f32 %v3084, %v3086
        %v3088 = vadd.f32 %v3084, %v3087
        %vm3089 = vweird.f32 %v2930
        %vm3090 = vweird.f32 %v3084
        %vm3091 = vmor %vm3089, %vm3090
        %v3092 = vsel %vm3091, %v3084, %v3088
        %v3093 = vand.u32 2147483647, %v2930
        %vm3094 = vcmp.eq.f32.partialorder %v3093, 8.507059e+37
        %v3095 = vand.u32 %v2930, 2147483648
        %v3096 = vor.u32 1.1754944e-38, %v3095
        %v3097 = vsel %vm3094, %v3096, %v3092
        %v3098 = vmul.f32 %v2888, %v3097
        %v3099 = vrcp.pop %v2933
        %v3100 = vmul.f32 %v2933, %v3099
        %v3101 = vsub.f32 1.0, %v3100
        %v3102 = vmul.f32 %v3099, %v3101
        %v3103 = vadd.f32 %v3099, %v3102
        %vm3104 = vweird.f32 %v2933
        %vm3105 = vweird.f32 %v3099
        %vm3106 = vmor %vm3104, %vm3105
        %v3107 = vsel %vm3106, %v3099, %v3103
        %v3108 = vand.u32 2147483647, %v2933
        %vm3109 = vcmp.eq.f32.partialorder %v3108, 8.507059e+37
        %v3110 = vand.u32 %v2933, 2147483648
        %v3111 = vor.u32 1.1754944e-38, %v3110
        %v3112 = vsel %vm3109, %v3111, %v3107
        %v3113 = vmul.f32 %v2890, %v3112
        %v3114 = vrcp.pop %v2936
        %v3115 = vmul.f32 %v2936, %v3114
        %v3116 = vsub.f32 1.0, %v3115
        %v3117 = vmul.f32 %v3114, %v3116
        %v3118 = vadd.f32 %v3114, %v3117
        %vm3119 = vweird.f32 %v2936
        %vm3120 = vweird.f32 %v3114
        %vm3121 = vmor %vm3119, %vm3120
        %v3122 = vsel %vm3121, %v3114, %v3118
        %v3123 = vand.u32 2147483647, %v2936
        %vm3124 = vcmp.eq.f32.partialorder %v3123, 8.507059e+37
        %v3125 = vand.u32 %v2936, 2147483648
        %v3126 = vor.u32 1.1754944e-38, %v3125
        %v3127 = vsel %vm3124, %v3126, %v3122
        %v3128 = vmul.f32 %v2892, %v3127
        %v3129 = vrcp.pop %v2939
        %v3130 = vmul.f32 %v2939, %v3129
        %v3131 = vsub.f32 1.0, %v3130
        %v3132 = vmul.f32 %v3129, %v3131
        %v3133 = vadd.f32 %v3129, %v3132
        %vm3134 = vweird.f32 %v2939
        %vm3135 = vweird.f32 %v3129
        %vm3136 = vmor %vm3134, %vm3135
        %v3137 = vsel %vm3136, %v3129, %v3133
        %v3138 = vand.u32 2147483647, %v2939
        %vm3139 = vcmp.eq.f32.partialorder %v3138, 8.507059e+37
        %v3140 = vand.u32 %v2939, 2147483648
        %v3141 = vor.u32 1.1754944e-38, %v3140
        %v3142 = vsel %vm3139, %v3141, %v3137
        %v3143 = vmul.f32 %v2894, %v3142
        %v3144 = vrcp.pop %v2942
        %v3145 = vmul.f32 %v2942, %v3144
        %v3146 = vsub.f32 1.0, %v3145
        %v3147 = vmul.f32 %v3144, %v3146
        %v3148 = vadd.f32 %v3144, %v3147
        %vm3149 = vweird.f32 %v2942
        %vm3150 = vweird.f32 %v3144
        %vm3151 = vmor %vm3149, %vm3150
        %v3152 = vsel %vm3151, %v3144, %v3148
        %v3153 = vand.u32 2147483647, %v2942
        %vm3154 = vcmp.eq.f32.partialorder %v3153, 8.507059e+37
        %v3155 = vand.u32 %v2942, 2147483648
        %v3156 = vor.u32 1.1754944e-38, %v3155
        %v3157 = vsel %vm3154, %v3156, %v3152
        %v3158 = vmul.f32 %v2896, %v3157
        %v3159 = vrcp.pop %v2945
        %v3160 = vmul.f32 %v2945, %v3159
        %v3161 = vsub.f32 1.0, %v3160
        %v3162 = vmul.f32 %v3159, %v3161
        %v3163 = vadd.f32 %v3159, %v3162
        %vm3164 = vweird.f32 %v2945
        %vm3165 = vweird.f32 %v3159
        %vm3166 = vmor %vm3164, %vm3165
        %v3167 = vsel %vm3166, %v3159, %v3163
        %v3168 = vand.u32 2147483647, %v2945
        %vm3169 = vcmp.eq.f32.partialorder %v3168, 8.507059e+37
        %v3170 = vand.u32 %v2945, 2147483648
        %v3171 = vor.u32 1.1754944e-38, %v3170
        %v3172 = vsel %vm3169, %v3171, %v3167
        %v3173 = vmul.f32 %v2898, %v3172
        %v3174 = vrcp.pop %v2948
        %v3175 = vmul.f32 %v2948, %v3174
        %v3176 = vsub.f32 1.0, %v3175
        %v3177 = vmul.f32 %v3174, %v3176
        %v3178 = vadd.f32 %v3174, %v3177
        %vm3179 = vweird.f32 %v2948
        %vm3180 = vweird.f32 %v3174
        %vm3181 = vmor %vm3179, %vm3180
        %v3182 = vsel %vm3181, %v3174, %v3178
        %v3183 = vand.u32 2147483647, %v2948
        %vm3184 = vcmp.eq.f32.partialorder %v3183, 8.507059e+37
        %v3185 = vand.u32 %v2948, 2147483648
        %v3186 = vor.u32 1.1754944e-38, %v3185
        %v3187 = vsel %vm3184, %v3186, %v3182
        %v3188 = vmul.f32 %v2900, %v3187
        %3190 = vrot.lane.b32.xlu0 %v990, 120
        %v3191 = vpop.permute.xlu0 %3190
        %v3194 = vsel %vm1058, %v2963, 0
        %3196 = vmatpush.msra.mxu0 0.0
        %3197 = vmatpush.msra.mxu0 0.0
        %3198 = vmatpush.msra.mxu0 0.0
        %3199 = vmatpush.msra.mxu0 0.0
        %3200 = vmatpush.msra.mxu0 0.0
        %3201 = vmatpush.msra.mxu0 0.0
        %3202 = vmatpush.msra.mxu0 0.0
        %3203 = vmatpush.msra.mxu0 0.0
        %3204 = vmatpush.msra.mxu0 0.0
        %3205 = vmatpush.msra.mxu0 0.0
        %3206 = vmatpush.msra.mxu0 0.0
        %3207 = vmatpush.msra.mxu0 0.0
        %3208 = vmatpush.msra.mxu0 0.0
        %3209 = vmatpush.msra.mxu0 0.0
        %3210 = vmatpush.msra.mxu0 0.0
        %3211 = vmatpush.msra.mxu0 %v3191
        %3212 = vmatmul.f32.gmra.mxu0 %v3194
        %v3213 = vpop.f32.mrf.mxu0
        %v3214 = vadd.f32 0.0, %v3213
        %3215 = vdwg.mxu0
        %3217 = vrot.lane.b32.xlu0 %v993, 120
        %v3218 = vpop.permute.xlu0 %3217
        %v3221 = vsel %vm1058, %v2978, 0
        %3223 = vmatpush.msra.mxu0 0.0
        %3224 = vmatpush.msra.mxu0 0.0
        %3225 = vmatpush.msra.mxu0 0.0
        %3226 = vmatpush.msra.mxu0 0.0
        %3227 = vmatpush.msra.mxu0 0.0
        %3228 = vmatpush.msra.mxu0 0.0
        %3229 = vmatpush.msra.mxu0 0.0
        %3230 = vmatpush.msra.mxu0 0.0
        %3231 = vmatpush.msra.mxu0 0.0
        %3232 = vmatpush.msra.mxu0 0.0
        %3233 = vmatpush.msra.mxu0 0.0
        %3234 = vmatpush.msra.mxu0 0.0
        %3235 = vmatpush.msra.mxu0 0.0
        %3236 = vmatpush.msra.mxu0 0.0
        %3237 = vmatpush.msra.mxu0 0.0
        %3238 = vmatpush.msra.mxu0 %v3218
        %3239 = vmatmul.f32.gmra.mxu0 %v3221
        %v3240 = vpop.f32.mrf.mxu0
        %v3241 = vadd.f32 0.0, %v3240
        %3242 = vdwg.mxu0
        %3244 = vrot.lane.b32.xlu0 %v996, 120
        %v3245 = vpop.permute.xlu0 %3244
        %v3248 = vsel %vm1058, %v2993, 0
        %3250 = vmatpush.msra.mxu0 0.0
        %3251 = vmatpush.msra.mxu0 0.0
        %3252 = vmatpush.msra.mxu0 0.0
        %3253 = vmatpush.msra.mxu0 0.0
        %3254 = vmatpush.msra.mxu0 0.0
        %3255 = vmatpush.msra.mxu0 0.0
        %3256 = vmatpush.msra.mxu0 0.0
        %3257 = vmatpush.msra.mxu0 0.0
        %3258 = vmatpush.msra.mxu0 0.0
        %3259 = vmatpush.msra.mxu0 0.0
        %3260 = vmatpush.msra.mxu0 0.0
        %3261 = vmatpush.msra.mxu0 0.0
        %3262 = vmatpush.msra.mxu0 0.0
        %3263 = vmatpush.msra.mxu0 0.0
        %3264 = vmatpush.msra.mxu0 0.0
        %3265 = vmatpush.msra.mxu0 %v3245
        %3266 = vmatmul.f32.gmra.mxu0 %v3248
        %v3267 = vpop.f32.mrf.mxu0
        %v3268 = vadd.f32 0.0, %v3267
        %3269 = vdwg.mxu0
        %3271 = vrot.lane.b32.xlu0 %v999, 120
        %v3272 = vpop.permute.xlu0 %3271
        %v3275 = vsel %vm1058, %v3008, 0
        %3277 = vmatpush.msra.mxu0 0.0
        %3278 = vmatpush.msra.mxu0 0.0
        %3279 = vmatpush.msra.mxu0 0.0
        %3280 = vmatpush.msra.mxu0 0.0
        %3281 = vmatpush.msra.mxu0 0.0
        %3282 = vmatpush.msra.mxu0 0.0
        %3283 = vmatpush.msra.mxu0 0.0
        %3284 = vmatpush.msra.mxu0 0.0
        %3285 = vmatpush.msra.mxu0 0.0
        %3286 = vmatpush.msra.mxu0 0.0
        %3287 = vmatpush.msra.mxu0 0.0
        %3288 = vmatpush.msra.mxu0 0.0
        %3289 = vmatpush.msra.mxu0 0.0
        %3290 = vmatpush.msra.mxu0 0.0
        %3291 = vmatpush.msra.mxu0 0.0
        %3292 = vmatpush.msra.mxu0 %v3272
        %3293 = vmatmul.f32.gmra.mxu0 %v3275
        %v3294 = vpop.f32.mrf.mxu0
        %v3295 = vadd.f32 0.0, %v3294
        %3296 = vdwg.mxu0
        %3298 = vrot.lane.b32.xlu0 %v1002, 120
        %v3299 = vpop.permute.xlu0 %3298
        %v3302 = vsel %vm1058, %v3023, 0
        %3304 = vmatpush.msra.mxu0 0.0
        %3305 = vmatpush.msra.mxu0 0.0
        %3306 = vmatpush.msra.mxu0 0.0
        %3307 = vmatpush.msra.mxu0 0.0
        %3308 = vmatpush.msra.mxu0 0.0
        %3309 = vmatpush.msra.mxu0 0.0
        %3310 = vmatpush.msra.mxu0 0.0
        %3311 = vmatpush.msra.mxu0 0.0
        %3312 = vmatpush.msra.mxu0 0.0
        %3313 = vmatpush.msra.mxu0 0.0
        %3314 = vmatpush.msra.mxu0 0.0
        %3315 = vmatpush.msra.mxu0 0.0
        %3316 = vmatpush.msra.mxu0 0.0
        %3317 = vmatpush.msra.mxu0 0.0
        %3318 = vmatpush.msra.mxu0 0.0
        %3319 = vmatpush.msra.mxu0 %v3299
        %3320 = vmatmul.f32.gmra.mxu0 %v3302
        %v3321 = vpop.f32.mrf.mxu0
        %v3322 = vadd.f32 0.0, %v3321
        %3323 = vdwg.mxu0
        %3325 = vrot.lane.b32.xlu0 %v1005, 120
        %v3326 = vpop.permute.xlu0 %3325
        %v3329 = vsel %vm1058, %v3038, 0
        %3331 = vmatpush.msra.mxu0 0.0
        %3332 = vmatpush.msra.mxu0 0.0
        %3333 = vmatpush.msra.mxu0 0.0
        %3334 = vmatpush.msra.mxu0 0.0
        %3335 = vmatpush.msra.mxu0 0.0
        %3336 = vmatpush.msra.mxu0 0.0
        %3337 = vmatpush.msra.mxu0 0.0
        %3338 = vmatpush.msra.mxu0 0.0
        %3339 = vmatpush.msra.mxu0 0.0
        %3340 = vmatpush.msra.mxu0 0.0
        %3341 = vmatpush.msra.mxu0 0.0
        %3342 = vmatpush.msra.mxu0 0.0
        %3343 = vmatpush.msra.mxu0 0.0
        %3344 = vmatpush.msra.mxu0 0.0
        %3345 = vmatpush.msra.mxu0 0.0
        %3346 = vmatpush.msra.mxu0 %v3326
        %3347 = vmatmul.f32.gmra.mxu0 %v3329
        %v3348 = vpop.f32.mrf.mxu0
        %v3349 = vadd.f32 0.0, %v3348
        %3350 = vdwg.mxu0
        %3352 = vrot.lane.b32.xlu0 %v1008, 120
        %v3353 = vpop.permute.xlu0 %3352
        %v3356 = vsel %vm1058, %v3053, 0
        %3358 = vmatpush.msra.mxu0 0.0
        %3359 = vmatpush.msra.mxu0 0.0
        %3360 = vmatpush.msra.mxu0 0.0
        %3361 = vmatpush.msra.mxu0 0.0
        %3362 = vmatpush.msra.mxu0 0.0
        %3363 = vmatpush.msra.mxu0 0.0
        %3364 = vmatpush.msra.mxu0 0.0
        %3365 = vmatpush.msra.mxu0 0.0
        %3366 = vmatpush.msra.mxu0 0.0
        %3367 = vmatpush.msra.mxu0 0.0
        %3368 = vmatpush.msra.mxu0 0.0
        %3369 = vmatpush.msra.mxu0 0.0
        %3370 = vmatpush.msra.mxu0 0.0
        %3371 = vmatpush.msra.mxu0 0.0
        %3372 = vmatpush.msra.mxu0 0.0
        %3373 = vmatpush.msra.mxu0 %v3353
        %3374 = vmatmul.f32.gmra.mxu0 %v3356
        %v3375 = vpop.f32.mrf.mxu0
        %v3376 = vadd.f32 0.0, %v3375
        %3377 = vdwg.mxu0
        %3379 = vrot.lane.b32.xlu0 %v1011, 120
        %v3380 = vpop.permute.xlu0 %3379
        %v3383 = vsel %vm1058, %v3068, 0
        %3385 = vmatpush.msra.mxu0 0.0
        %3386 = vmatpush.msra.mxu0 0.0
        %3387 = vmatpush.msra.mxu0 0.0
        %3388 = vmatpush.msra.mxu0 0.0
        %3389 = vmatpush.msra.mxu0 0.0
        %3390 = vmatpush.msra.mxu0 0.0
        %3391 = vmatpush.msra.mxu0 0.0
        %3392 = vmatpush.msra.mxu0 0.0
        %3393 = vmatpush.msra.mxu0 0.0
        %3394 = vmatpush.msra.mxu0 0.0
        %3395 = vmatpush.msra.mxu0 0.0
        %3396 = vmatpush.msra.mxu0 0.0
        %3397 = vmatpush.msra.mxu0 0.0
        %3398 = vmatpush.msra.mxu0 0.0
        %3399 = vmatpush.msra.mxu0 0.0
        %3400 = vmatpush.msra.mxu0 %v3380
        %3401 = vmatmul.f32.gmra.mxu0 %v3383
        %v3402 = vpop.f32.mrf.mxu0
        %v3403 = vadd.f32 0.0, %v3402
        %3404 = vdwg.mxu0
        %3406 = vrot.lane.b32.xlu0 %v1014, 120
        %v3407 = vpop.permute.xlu0 %3406
        %v3410 = vsel %vm1058, %v3083, 0
        %3412 = vmatpush.msra.mxu0 0.0
        %3413 = vmatpush.msra.mxu0 0.0
        %3414 = vmatpush.msra.mxu0 0.0
        %3415 = vmatpush.msra.mxu0 0.0
        %3416 = vmatpush.msra.mxu0 0.0
        %3417 = vmatpush.msra.mxu0 0.0
        %3418 = vmatpush.msra.mxu0 0.0
        %3419 = vmatpush.msra.mxu0 0.0
        %3420 = vmatpush.msra.mxu0 0.0
        %3421 = vmatpush.msra.mxu0 0.0
        %3422 = vmatpush.msra.mxu0 0.0
        %3423 = vmatpush.msra.mxu0 0.0
        %3424 = vmatpush.msra.mxu0 0.0
        %3425 = vmatpush.msra.mxu0 0.0
        %3426 = vmatpush.msra.mxu0 0.0
        %3427 = vmatpush.msra.mxu0 %v3407
        %3428 = vmatmul.f32.gmra.mxu0 %v3410
        %v3429 = vpop.f32.mrf.mxu0
        %v3430 = vadd.f32 0.0, %v3429
        %3431 = vdwg.mxu0
        %3433 = vrot.lane.b32.xlu0 %v1017, 120
        %v3434 = vpop.permute.xlu0 %3433
        %v3437 = vsel %vm1058, %v3098, 0
        %3439 = vmatpush.msra.mxu0 0.0
        %3440 = vmatpush.msra.mxu0 0.0
        %3441 = vmatpush.msra.mxu0 0.0
        %3442 = vmatpush.msra.mxu0 0.0
        %3443 = vmatpush.msra.mxu0 0.0
        %3444 = vmatpush.msra.mxu0 0.0
        %3445 = vmatpush.msra.mxu0 0.0
        %3446 = vmatpush.msra.mxu0 0.0
        %3447 = vmatpush.msra.mxu0 0.0
        %3448 = vmatpush.msra.mxu0 0.0
        %3449 = vmatpush.msra.mxu0 0.0
        %3450 = vmatpush.msra.mxu0 0.0
        %3451 = vmatpush.msra.mxu0 0.0
        %3452 = vmatpush.msra.mxu0 0.0
        %3453 = vmatpush.msra.mxu0 0.0
        %3454 = vmatpush.msra.mxu0 %v3434
        %3455 = vmatmul.f32.gmra.mxu0 %v3437
        %v3456 = vpop.f32.mrf.mxu0
        %v3457 = vadd.f32 0.0, %v3456
        %3458 = vdwg.mxu0
        %3460 = vrot.lane.b32.xlu0 %v1020, 120
        %v3461 = vpop.permute.xlu0 %3460
        %v3464 = vsel %vm1058, %v3113, 0
        %3466 = vmatpush.msra.mxu0 0.0
        %3467 = vmatpush.msra.mxu0 0.0
        %3468 = vmatpush.msra.mxu0 0.0
        %3469 = vmatpush.msra.mxu0 0.0
        %3470 = vmatpush.msra.mxu0 0.0
        %3471 = vmatpush.msra.mxu0 0.0
        %3472 = vmatpush.msra.mxu0 0.0
        %3473 = vmatpush.msra.mxu0 0.0
        %3474 = vmatpush.msra.mxu0 0.0
        %3475 = vmatpush.msra.mxu0 0.0
        %3476 = vmatpush.msra.mxu0 0.0
        %3477 = vmatpush.msra.mxu0 0.0
        %3478 = vmatpush.msra.mxu0 0.0
        %3479 = vmatpush.msra.mxu0 0.0
        %3480 = vmatpush.msra.mxu0 0.0
        %3481 = vmatpush.msra.mxu0 %v3461
        %3482 = vmatmul.f32.gmra.mxu0 %v3464
        %v3483 = vpop.f32.mrf.mxu0
        %v3484 = vadd.f32 0.0, %v3483
        %3485 = vdwg.mxu0
        %3487 = vrot.lane.b32.xlu0 %v1023, 120
        %v3488 = vpop.permute.xlu0 %3487
        %v3491 = vsel %vm1058, %v3128, 0
        %3493 = vmatpush.msra.mxu0 0.0
        %3494 = vmatpush.msra.mxu0 0.0
        %3495 = vmatpush.msra.mxu0 0.0
        %3496 = vmatpush.msra.mxu0 0.0
        %3497 = vmatpush.msra.mxu0 0.0
        %3498 = vmatpush.msra.mxu0 0.0
        %3499 = vmatpush.msra.mxu0 0.0
        %3500 = vmatpush.msra.mxu0 0.0
        %3501 = vmatpush.msra.mxu0 0.0
        %3502 = vmatpush.msra.mxu0 0.0
        %3503 = vmatpush.msra.mxu0 0.0
        %3504 = vmatpush.msra.mxu0 0.0
        %3505 = vmatpush.msra.mxu0 0.0
        %3506 = vmatpush.msra.mxu0 0.0
        %3507 = vmatpush.msra.mxu0 0.0
        %3508 = vmatpush.msra.mxu0 %v3488
        %3509 = vmatmul.f32.gmra.mxu0 %v3491
        %v3510 = vpop.f32.mrf.mxu0
        %v3511 = vadd.f32 0.0, %v3510
        %3512 = vdwg.mxu0
        %3514 = vrot.lane.b32.xlu0 %v1026, 120
        %v3515 = vpop.permute.xlu0 %3514
        %v3518 = vsel %vm1058, %v3143, 0
        %3520 = vmatpush.msra.mxu0 0.0
        %3521 = vmatpush.msra.mxu0 0.0
        %3522 = vmatpush.msra.mxu0 0.0
        %3523 = vmatpush.msra.mxu0 0.0
        %3524 = vmatpush.msra.mxu0 0.0
        %3525 = vmatpush.msra.mxu0 0.0
        %3526 = vmatpush.msra.mxu0 0.0
        %3527 = vmatpush.msra.mxu0 0.0
        %3528 = vmatpush.msra.mxu0 0.0
        %3529 = vmatpush.msra.mxu0 0.0
        %3530 = vmatpush.msra.mxu0 0.0
        %3531 = vmatpush.msra.mxu0 0.0
        %3532 = vmatpush.msra.mxu0 0.0
        %3533 = vmatpush.msra.mxu0 0.0
        %3534 = vmatpush.msra.mxu0 0.0
        %3535 = vmatpush.msra.mxu0 %v3515
        %3536 = vmatmul.f32.gmra.mxu0 %v3518
        %v3537 = vpop.f32.mrf.mxu0
        %v3538 = vadd.f32 0.0, %v3537
        %3539 = vdwg.mxu0
        %3541 = vrot.lane.b32.xlu0 %v1029, 120
        %v3542 = vpop.permute.xlu0 %3541
        %v3545 = vsel %vm1058, %v3158, 0
        %3547 = vmatpush.msra.mxu0 0.0
        %3548 = vmatpush.msra.mxu0 0.0
        %3549 = vmatpush.msra.mxu0 0.0
        %3550 = vmatpush.msra.mxu0 0.0
        %3551 = vmatpush.msra.mxu0 0.0
        %3552 = vmatpush.msra.mxu0 0.0
        %3553 = vmatpush.msra.mxu0 0.0
        %3554 = vmatpush.msra.mxu0 0.0
        %3555 = vmatpush.msra.mxu0 0.0
        %3556 = vmatpush.msra.mxu0 0.0
        %3557 = vmatpush.msra.mxu0 0.0
        %3558 = vmatpush.msra.mxu0 0.0
        %3559 = vmatpush.msra.mxu0 0.0
        %3560 = vmatpush.msra.mxu0 0.0
        %3561 = vmatpush.msra.mxu0 0.0
        %3562 = vmatpush.msra.mxu0 %v3542
        %3563 = vmatmul.f32.gmra.mxu0 %v3545
        %v3564 = vpop.f32.mrf.mxu0
        %v3565 = vadd.f32 0.0, %v3564
        %3566 = vdwg.mxu0
        %3568 = vrot.lane.b32.xlu0 %v1032, 120
        %v3569 = vpop.permute.xlu0 %3568
        %v3572 = vsel %vm1058, %v3173, 0
        %3574 = vmatpush.msra.mxu0 0.0
        %3575 = vmatpush.msra.mxu0 0.0
        %3576 = vmatpush.msra.mxu0 0.0
        %3577 = vmatpush.msra.mxu0 0.0
        %3578 = vmatpush.msra.mxu0 0.0
        %3579 = vmatpush.msra.mxu0 0.0
        %3580 = vmatpush.msra.mxu0 0.0
        %3581 = vmatpush.msra.mxu0 0.0
        %3582 = vmatpush.msra.mxu0 0.0
        %3583 = vmatpush.msra.mxu0 0.0
        %3584 = vmatpush.msra.mxu0 0.0
        %3585 = vmatpush.msra.mxu0 0.0
        %3586 = vmatpush.msra.mxu0 0.0
        %3587 = vmatpush.msra.mxu0 0.0
        %3588 = vmatpush.msra.mxu0 0.0
        %3589 = vmatpush.msra.mxu0 %v3569
        %3590 = vmatmul.f32.gmra.mxu0 %v3572
        %v3591 = vpop.f32.mrf.mxu0
        %v3592 = vadd.f32 0.0, %v3591
        %3593 = vdwg.mxu0
        %3595 = vrot.lane.b32.xlu0 %v1035, 120
        %v3596 = vpop.permute.xlu0 %3595
        %v3599 = vsel %vm1058, %v3188, 0
        %3601 = vmatpush.msra.mxu0 0.0
        %3602 = vmatpush.msra.mxu0 0.0
        %3603 = vmatpush.msra.mxu0 0.0
        %3604 = vmatpush.msra.mxu0 0.0
        %3605 = vmatpush.msra.mxu0 0.0
        %3606 = vmatpush.msra.mxu0 0.0
        %3607 = vmatpush.msra.mxu0 0.0
        %3608 = vmatpush.msra.mxu0 0.0
        %3609 = vmatpush.msra.mxu0 0.0
        %3610 = vmatpush.msra.mxu0 0.0
        %3611 = vmatpush.msra.mxu0 0.0
        %3612 = vmatpush.msra.mxu0 0.0
        %3613 = vmatpush.msra.mxu0 0.0
        %3614 = vmatpush.msra.mxu0 0.0
        %3615 = vmatpush.msra.mxu0 0.0
        %3616 = vmatpush.msra.mxu0 %v3596
        %3617 = vmatmul.f32.gmra.mxu0 %v3599
        %v3618 = vpop.f32.mrf.mxu0
        %v3619 = vadd.f32 0.0, %v3618
        %3620 = vdwg.mxu0
        %v3621 = vld [vmem:[#allocation10 + $0x8] sm:$0xff]
        %v3623 = vsel %vm1058, %v3214, 0
        %v3626 = vsel %vm1058, %v3241, 0
        %v3629 = vsel %vm1058, %v3268, 0
        %v3632 = vsel %vm1058, %v3295, 0
        %v3635 = vsel %vm1058, %v3322, 0
        %v3638 = vsel %vm1058, %v3349, 0
        %v3641 = vsel %vm1058, %v3376, 0
        %v3644 = vsel %vm1058, %v3403, 0
        %v3647 = vsel %vm1058, %v3430, 0
        %v3650 = vsel %vm1058, %v3457, 0
        %v3653 = vsel %vm1058, %v3484, 0
        %v3656 = vsel %vm1058, %v3511, 0
        %v3659 = vsel %vm1058, %v3538, 0
        %v3662 = vsel %vm1058, %v3565, 0
        %v3665 = vsel %vm1058, %v3592, 0
        %v3668 = vsel %vm1058, %v3619, 0
        %3670 = vmatpush.msra.mxu0 0.0
        %3671 = vmatpush.msra.mxu0 0.0
        %3672 = vmatpush.msra.mxu0 0.0
        %3673 = vmatpush.msra.mxu0 0.0
        %3674 = vmatpush.msra.mxu0 0.0
        %3675 = vmatpush.msra.mxu0 0.0
        %3676 = vmatpush.msra.mxu0 0.0
        %3677 = vmatpush.msra.mxu0 0.0
        %3678 = vmatpush.msra.mxu0 0.0
        %3679 = vmatpush.msra.mxu0 0.0
        %3680 = vmatpush.msra.mxu0 0.0
        %3681 = vmatpush.msra.mxu0 0.0
        %3682 = vmatpush.msra.mxu0 0.0
        %3683 = vmatpush.msra.mxu0 0.0
        %3684 = vmatpush.msra.mxu0 0.0
        %3685 = vmatpush.msra.mxu0 %v3621
        %3686 = vmatmul.f32.gmra.mxu0 %v3623
        %v3687 = vpop.f32.mrf.mxu0
        %v3688 = vadd.f32 0.0, %v3687
        %3689 = vmatmul.f32.gmra.mxu0 %v3626
        %v3690 = vpop.f32.mrf.mxu0
        %v3691 = vadd.f32 0.0, %v3690
        %3692 = vmatmul.f32.gmra.mxu0 %v3629
        %v3693 = vpop.f32.mrf.mxu0
        %v3694 = vadd.f32 0.0, %v3693
        %3695 = vmatmul.f32.gmra.mxu0 %v3632
        %v3696 = vpop.f32.mrf.mxu0
        %v3697 = vadd.f32 0.0, %v3696
        %3698 = vmatmul.f32.gmra.mxu0 %v3635
        %v3699 = vpop.f32.mrf.mxu0
        %v3700 = vadd.f32 0.0, %v3699
        %3701 = vmatmul.f32.gmra.mxu0 %v3638
        %v3702 = vpop.f32.mrf.mxu0
        %v3703 = vadd.f32 0.0, %v3702
        %3704 = vmatmul.f32.gmra.mxu0 %v3641
        %v3705 = vpop.f32.mrf.mxu0
        %v3706 = vadd.f32 0.0, %v3705
        %3707 = vmatmul.f32.gmra.mxu0 %v3644
        %v3708 = vpop.f32.mrf.mxu0
        %v3709 = vadd.f32 0.0, %v3708
        %3710 = vmatmul.f32.gmra.mxu0 %v3647
        %v3711 = vpop.f32.mrf.mxu0
        %v3712 = vadd.f32 0.0, %v3711
        %3713 = vmatmul.f32.gmra.mxu0 %v3650
        %v3714 = vpop.f32.mrf.mxu0
        %v3715 = vadd.f32 0.0, %v3714
        %3716 = vmatmul.f32.gmra.mxu0 %v3653
        %v3717 = vpop.f32.mrf.mxu0
        %v3718 = vadd.f32 0.0, %v3717
        %3719 = vmatmul.f32.gmra.mxu0 %v3656
        %v3720 = vpop.f32.mrf.mxu0
        %v3721 = vadd.f32 0.0, %v3720
        %3722 = vmatmul.f32.gmra.mxu0 %v3659
        %v3723 = vpop.f32.mrf.mxu0
        %v3724 = vadd.f32 0.0, %v3723
        %3725 = vmatmul.f32.gmra.mxu0 %v3662
        %v3726 = vpop.f32.mrf.mxu0
        %v3727 = vadd.f32 0.0, %v3726
        %3728 = vmatmul.f32.gmra.mxu0 %v3665
        %v3729 = vpop.f32.mrf.mxu0
        %v3730 = vadd.f32 0.0, %v3729
        %3731 = vmatmul.f32.gmra.mxu0 %v3668
        %v3732 = vpop.f32.mrf.mxu0
        %v3733 = vadd.f32 0.0, %v3732
        %3734 = vdwg.mxu0
        %v3735 = vadd.f32 %v2341, %v3688
        %v3736 = vadd.f32 %v2342, %v3691
        %v3737 = vadd.f32 %v2343, %v3694
        %v3738 = vadd.f32 %v2344, %v3697
        %v3739 = vadd.f32 %v2345, %v3700
        %v3740 = vadd.f32 %v2346, %v3703
        %v3741 = vadd.f32 %v2347, %v3706
        %v3742 = vadd.f32 %v2348, %v3709
        %v3743 = vadd.f32 %v2349, %v3712
        %v3744 = vadd.f32 %v2350, %v3715
        %v3745 = vadd.f32 %v2351, %v3718
        %v3746 = vadd.f32 %v2352, %v3721
        %v3747 = vadd.f32 %v2353, %v3724
        %v3748 = vadd.f32 %v2354, %v3727
        %v3749 = vadd.f32 %v2355, %v3730
        %v3750 = vadd.f32 %v2356, %v3733
        %3751 = vrot.lane.b32.xlu0 %v1037, 112
        %v3752 = vpop.permute.xlu0 %3751
        %3753 = vrot.lane.b32.xlu0 %v925, 112
        %v3754 = vpop.permute.xlu0 %3753
        %v3755 = vsel %vm1058, %v3752, 0
        %v3757 = vsel %vm1058, %v3754, 0
        %3759 = vmatpush.xpose.msra.mxu0 0.0
        %3760 = vmatpush.xpose.msra.mxu0 0.0
        %3761 = vmatpush.xpose.msra.mxu0 0.0
        %3762 = vmatpush.xpose.msra.mxu0 0.0
        %3763 = vmatpush.xpose.msra.mxu0 0.0
        %3764 = vmatpush.xpose.msra.mxu0 0.0
        %3765 = vmatpush.xpose.msra.mxu0 0.0
        %3766 = vmatpush.xpose.msra.mxu0 0.0
        %3767 = vmatpush.xpose.msra.mxu0 0.0
        %3768 = vmatpush.xpose.msra.mxu0 0.0
        %3769 = vmatpush.xpose.msra.mxu0 0.0
        %3770 = vmatpush.xpose.msra.mxu0 0.0
        %3771 = vmatpush.xpose.msra.mxu0 0.0
        %3772 = vmatpush.xpose.msra.mxu0 0.0
        %3773 = vmatpush.xpose.msra.mxu0 0.0
        %3774 = vmatpush.xpose.msra.mxu0 %v3757
        %3775 = vmatmul.f32.gmra.mxu0 %v3755
        %v3776 = vpop.f32.mrf.mxu0
        %v3777 = vadd.f32 0.0, %v3776
        %3778 = vdwg.mxu0
        %3779 = vrot.lane.b32.xlu0 %v1038, 112
        %v3780 = vpop.permute.xlu0 %3779
        %3781 = vrot.lane.b32.xlu0 %v928, 112
        %v3782 = vpop.permute.xlu0 %3781
        %v3783 = vsel %vm1058, %v3780, 0
        %v3785 = vsel %vm1058, %v3782, 0
        %3787 = vmatpush.xpose.msra.mxu0 0.0
        %3788 = vmatpush.xpose.msra.mxu0 0.0
        %3789 = vmatpush.xpose.msra.mxu0 0.0
        %3790 = vmatpush.xpose.msra.mxu0 0.0
        %3791 = vmatpush.xpose.msra.mxu0 0.0
        %3792 = vmatpush.xpose.msra.mxu0 0.0
        %3793 = vmatpush.xpose.msra.mxu0 0.0
        %3794 = vmatpush.xpose.msra.mxu0 0.0
        %3795 = vmatpush.xpose.msra.mxu0 0.0
        %3796 = vmatpush.xpose.msra.mxu0 0.0
        %3797 = vmatpush.xpose.msra.mxu0 0.0
        %3798 = vmatpush.xpose.msra.mxu0 0.0
        %3799 = vmatpush.xpose.msra.mxu0 0.0
        %3800 = vmatpush.xpose.msra.mxu0 0.0
        %3801 = vmatpush.xpose.msra.mxu0 0.0
        %3802 = vmatpush.xpose.msra.mxu0 %v3785
        %3803 = vmatmul.f32.gmra.mxu0 %v3783
        %v3804 = vpop.f32.mrf.mxu0
        %v3805 = vadd.f32 0.0, %v3804
        %3806 = vdwg.mxu0
        %3807 = vrot.lane.b32.xlu0 %v1039, 112
        %v3808 = vpop.permute.xlu0 %3807
        %3809 = vrot.lane.b32.xlu0 %v931, 112
        %v3810 = vpop.permute.xlu0 %3809
        %v3811 = vsel %vm1058, %v3808, 0
        %v3813 = vsel %vm1058, %v3810, 0
        %3815 = vmatpush.xpose.msra.mxu0 0.0
        %3816 = vmatpush.xpose.msra.mxu0 0.0
        %3817 = vmatpush.xpose.msra.mxu0 0.0
        %3818 = vmatpush.xpose.msra.mxu0 0.0
        %3819 = vmatpush.xpose.msra.mxu0 0.0
        %3820 = vmatpush.xpose.msra.mxu0 0.0
        %3821 = vmatpush.xpose.msra.mxu0 0.0
        %3822 = vmatpush.xpose.msra.mxu0 0.0
        %3823 = vmatpush.xpose.msra.mxu0 0.0
        %3824 = vmatpush.xpose.msra.mxu0 0.0
        %3825 = vmatpush.xpose.msra.mxu0 0.0
        %3826 = vmatpush.xpose.msra.mxu0 0.0
        %3827 = vmatpush.xpose.msra.mxu0 0.0
        %3828 = vmatpush.xpose.msra.mxu0 0.0
        %3829 = vmatpush.xpose.msra.mxu0 0.0
        %3830 = vmatpush.xpose.msra.mxu0 %v3813
        %3831 = vmatmul.f32.gmra.mxu0 %v3811
        %v3832 = vpop.f32.mrf.mxu0
        %v3833 = vadd.f32 0.0, %v3832
        %3834 = vdwg.mxu0
        %3835 = vrot.lane.b32.xlu0 %v1040, 112
        %v3836 = vpop.permute.xlu0 %3835
        %3837 = vrot.lane.b32.xlu0 %v934, 112
        %v3838 = vpop.permute.xlu0 %3837
        %v3839 = vsel %vm1058, %v3836, 0
        %v3841 = vsel %vm1058, %v3838, 0
        %3843 = vmatpush.xpose.msra.mxu0 0.0
        %3844 = vmatpush.xpose.msra.mxu0 0.0
        %3845 = vmatpush.xpose.msra.mxu0 0.0
        %3846 = vmatpush.xpose.msra.mxu0 0.0
        %3847 = vmatpush.xpose.msra.mxu0 0.0
        %3848 = vmatpush.xpose.msra.mxu0 0.0
        %3849 = vmatpush.xpose.msra.mxu0 0.0
        %3850 = vmatpush.xpose.msra.mxu0 0.0
        %3851 = vmatpush.xpose.msra.mxu0 0.0
        %3852 = vmatpush.xpose.msra.mxu0 0.0
        %3853 = vmatpush.xpose.msra.mxu0 0.0
        %3854 = vmatpush.xpose.msra.mxu0 0.0
        %3855 = vmatpush.xpose.msra.mxu0 0.0
        %3856 = vmatpush.xpose.msra.mxu0 0.0
        %3857 = vmatpush.xpose.msra.mxu0 0.0
        %3858 = vmatpush.xpose.msra.mxu0 %v3841
        %3859 = vmatmul.f32.gmra.mxu0 %v3839
        %v3860 = vpop.f32.mrf.mxu0
        %v3861 = vadd.f32 0.0, %v3860
        %3862 = vdwg.mxu0
        %3863 = vrot.lane.b32.xlu0 %v1041, 112
        %v3864 = vpop.permute.xlu0 %3863
        %3865 = vrot.lane.b32.xlu0 %v937, 112
        %v3866 = vpop.permute.xlu0 %3865
        %v3867 = vsel %vm1058, %v3864, 0
        %v3869 = vsel %vm1058, %v3866, 0
        %3871 = vmatpush.xpose.msra.mxu0 0.0
        %3872 = vmatpush.xpose.msra.mxu0 0.0
        %3873 = vmatpush.xpose.msra.mxu0 0.0
        %3874 = vmatpush.xpose.msra.mxu0 0.0
        %3875 = vmatpush.xpose.msra.mxu0 0.0
        %3876 = vmatpush.xpose.msra.mxu0 0.0
        %3877 = vmatpush.xpose.msra.mxu0 0.0
        %3878 = vmatpush.xpose.msra.mxu0 0.0
        %3879 = vmatpush.xpose.msra.mxu0 0.0
        %3880 = vmatpush.xpose.msra.mxu0 0.0
        %3881 = vmatpush.xpose.msra.mxu0 0.0
        %3882 = vmatpush.xpose.msra.mxu0 0.0
        %3883 = vmatpush.xpose.msra.mxu0 0.0
        %3884 = vmatpush.xpose.msra.mxu0 0.0
        %3885 = vmatpush.xpose.msra.mxu0 0.0
        %3886 = vmatpush.xpose.msra.mxu0 %v3869
        %3887 = vmatmul.f32.gmra.mxu0 %v3867
        %v3888 = vpop.f32.mrf.mxu0
        %v3889 = vadd.f32 0.0, %v3888
        %3890 = vdwg.mxu0
        %3891 = vrot.lane.b32.xlu0 %v1042, 112
        %v3892 = vpop.permute.xlu0 %3891
        %3893 = vrot.lane.b32.xlu0 %v940, 112
        %v3894 = vpop.permute.xlu0 %3893
        %v3895 = vsel %vm1058, %v3892, 0
        %v3897 = vsel %vm1058, %v3894, 0
        %3899 = vmatpush.xpose.msra.mxu0 0.0
        %3900 = vmatpush.xpose.msra.mxu0 0.0
        %3901 = vmatpush.xpose.msra.mxu0 0.0
        %3902 = vmatpush.xpose.msra.mxu0 0.0
        %3903 = vmatpush.xpose.msra.mxu0 0.0
        %3904 = vmatpush.xpose.msra.mxu0 0.0
        %3905 = vmatpush.xpose.msra.mxu0 0.0
        %3906 = vmatpush.xpose.msra.mxu0 0.0
        %3907 = vmatpush.xpose.msra.mxu0 0.0
        %3908 = vmatpush.xpose.msra.mxu0 0.0
        %3909 = vmatpush.xpose.msra.mxu0 0.0
        %3910 = vmatpush.xpose.msra.mxu0 0.0
        %3911 = vmatpush.xpose.msra.mxu0 0.0
        %3912 = vmatpush.xpose.msra.mxu0 0.0
        %3913 = vmatpush.xpose.msra.mxu0 0.0
        %3914 = vmatpush.xpose.msra.mxu0 %v3897
        %3915 = vmatmul.f32.gmra.mxu0 %v3895
        %v3916 = vpop.f32.mrf.mxu0
        %v3917 = vadd.f32 0.0, %v3916
        %3918 = vdwg.mxu0
        %3919 = vrot.lane.b32.xlu0 %v1043, 112
        %v3920 = vpop.permute.xlu0 %3919
        %3921 = vrot.lane.b32.xlu0 %v943, 112
        %v3922 = vpop.permute.xlu0 %3921
        %v3923 = vsel %vm1058, %v3920, 0
        %v3925 = vsel %vm1058, %v3922, 0
        %3927 = vmatpush.xpose.msra.mxu0 0.0
        %3928 = vmatpush.xpose.msra.mxu0 0.0
        %3929 = vmatpush.xpose.msra.mxu0 0.0
        %3930 = vmatpush.xpose.msra.mxu0 0.0
        %3931 = vmatpush.xpose.msra.mxu0 0.0
        %3932 = vmatpush.xpose.msra.mxu0 0.0
        %3933 = vmatpush.xpose.msra.mxu0 0.0
        %3934 = vmatpush.xpose.msra.mxu0 0.0
        %3935 = vmatpush.xpose.msra.mxu0 0.0
        %3936 = vmatpush.xpose.msra.mxu0 0.0
        %3937 = vmatpush.xpose.msra.mxu0 0.0
        %3938 = vmatpush.xpose.msra.mxu0 0.0
        %3939 = vmatpush.xpose.msra.mxu0 0.0
        %3940 = vmatpush.xpose.msra.mxu0 0.0
        %3941 = vmatpush.xpose.msra.mxu0 0.0
        %3942 = vmatpush.xpose.msra.mxu0 %v3925
        %3943 = vmatmul.f32.gmra.mxu0 %v3923
        %v3944 = vpop.f32.mrf.mxu0
        %v3945 = vadd.f32 0.0, %v3944
        %3946 = vdwg.mxu0
        %3947 = vrot.lane.b32.xlu0 %v1044, 112
        %v3948 = vpop.permute.xlu0 %3947
        %3949 = vrot.lane.b32.xlu0 %v946, 112
        %v3950 = vpop.permute.xlu0 %3949
        %v3951 = vsel %vm1058, %v3948, 0
        %v3953 = vsel %vm1058, %v3950, 0
        %3955 = vmatpush.xpose.msra.mxu0 0.0
        %3956 = vmatpush.xpose.msra.mxu0 0.0
        %3957 = vmatpush.xpose.msra.mxu0 0.0
        %3958 = vmatpush.xpose.msra.mxu0 0.0
        %3959 = vmatpush.xpose.msra.mxu0 0.0
        %3960 = vmatpush.xpose.msra.mxu0 0.0
        %3961 = vmatpush.xpose.msra.mxu0 0.0
        %3962 = vmatpush.xpose.msra.mxu0 0.0
        %3963 = vmatpush.xpose.msra.mxu0 0.0
        %3964 = vmatpush.xpose.msra.mxu0 0.0
        %3965 = vmatpush.xpose.msra.mxu0 0.0
        %3966 = vmatpush.xpose.msra.mxu0 0.0
        %3967 = vmatpush.xpose.msra.mxu0 0.0
        %3968 = vmatpush.xpose.msra.mxu0 0.0
        %3969 = vmatpush.xpose.msra.mxu0 0.0
        %3970 = vmatpush.xpose.msra.mxu0 %v3953
        %3971 = vmatmul.f32.gmra.mxu0 %v3951
        %v3972 = vpop.f32.mrf.mxu0
        %v3973 = vadd.f32 0.0, %v3972
        %3974 = vdwg.mxu0
        %3975 = vrot.lane.b32.xlu0 %v1045, 112
        %v3976 = vpop.permute.xlu0 %3975
        %3977 = vrot.lane.b32.xlu0 %v949, 112
        %v3978 = vpop.permute.xlu0 %3977
        %v3979 = vsel %vm1058, %v3976, 0
        %v3981 = vsel %vm1058, %v3978, 0
        %3983 = vmatpush.xpose.msra.mxu0 0.0
        %3984 = vmatpush.xpose.msra.mxu0 0.0
        %3985 = vmatpush.xpose.msra.mxu0 0.0
        %3986 = vmatpush.xpose.msra.mxu0 0.0
        %3987 = vmatpush.xpose.msra.mxu0 0.0
        %3988 = vmatpush.xpose.msra.mxu0 0.0
        %3989 = vmatpush.xpose.msra.mxu0 0.0
        %3990 = vmatpush.xpose.msra.mxu0 0.0
        %3991 = vmatpush.xpose.msra.mxu0 0.0
        %3992 = vmatpush.xpose.msra.mxu0 0.0
        %3993 = vmatpush.xpose.msra.mxu0 0.0
        %3994 = vmatpush.xpose.msra.mxu0 0.0
        %3995 = vmatpush.xpose.msra.mxu0 0.0
        %3996 = vmatpush.xpose.msra.mxu0 0.0
        %3997 = vmatpush.xpose.msra.mxu0 0.0
        %3998 = vmatpush.xpose.msra.mxu0 %v3981
        %3999 = vmatmul.f32.gmra.mxu0 %v3979
        %v4000 = vpop.f32.mrf.mxu0
        %v4001 = vadd.f32 0.0, %v4000
        %4002 = vdwg.mxu0
        %4003 = vrot.lane.b32.xlu0 %v1046, 112
        %v4004 = vpop.permute.xlu0 %4003
        %4005 = vrot.lane.b32.xlu0 %v952, 112
        %v4006 = vpop.permute.xlu0 %4005
        %v4007 = vsel %vm1058, %v4004, 0
        %v4009 = vsel %vm1058, %v4006, 0
        %4011 = vmatpush.xpose.msra.mxu0 0.0
        %4012 = vmatpush.xpose.msra.mxu0 0.0
        %4013 = vmatpush.xpose.msra.mxu0 0.0
        %4014 = vmatpush.xpose.msra.mxu0 0.0
        %4015 = vmatpush.xpose.msra.mxu0 0.0
        %4016 = vmatpush.xpose.msra.mxu0 0.0
        %4017 = vmatpush.xpose.msra.mxu0 0.0
        %4018 = vmatpush.xpose.msra.mxu0 0.0
        %4019 = vmatpush.xpose.msra.mxu0 0.0
        %4020 = vmatpush.xpose.msra.mxu0 0.0
        %4021 = vmatpush.xpose.msra.mxu0 0.0
        %4022 = vmatpush.xpose.msra.mxu0 0.0
        %4023 = vmatpush.xpose.msra.mxu0 0.0
        %4024 = vmatpush.xpose.msra.mxu0 0.0
        %4025 = vmatpush.xpose.msra.mxu0 0.0
        %4026 = vmatpush.xpose.msra.mxu0 %v4009
        %4027 = vmatmul.f32.gmra.mxu0 %v4007
        %v4028 = vpop.f32.mrf.mxu0
        %v4029 = vadd.f32 0.0, %v4028
        %4030 = vdwg.mxu0
        %4031 = vrot.lane.b32.xlu0 %v1047, 112
        %v4032 = vpop.permute.xlu0 %4031
        %4033 = vrot.lane.b32.xlu0 %v955, 112
        %v4034 = vpop.permute.xlu0 %4033
        %v4035 = vsel %vm1058, %v4032, 0
        %v4037 = vsel %vm1058, %v4034, 0
        %4039 = vmatpush.xpose.msra.mxu0 0.0
        %4040 = vmatpush.xpose.msra.mxu0 0.0
        %4041 = vmatpush.xpose.msra.mxu0 0.0
        %4042 = vmatpush.xpose.msra.mxu0 0.0
        %4043 = vmatpush.xpose.msra.mxu0 0.0
        %4044 = vmatpush.xpose.msra.mxu0 0.0
        %4045 = vmatpush.xpose.msra.mxu0 0.0
        %4046 = vmatpush.xpose.msra.mxu0 0.0
        %4047 = vmatpush.xpose.msra.mxu0 0.0
        %4048 = vmatpush.xpose.msra.mxu0 0.0
        %4049 = vmatpush.xpose.msra.mxu0 0.0
        %4050 = vmatpush.xpose.msra.mxu0 0.0
        %4051 = vmatpush.xpose.msra.mxu0 0.0
        %4052 = vmatpush.xpose.msra.mxu0 0.0
        %4053 = vmatpush.xpose.msra.mxu0 0.0
        %4054 = vmatpush.xpose.msra.mxu0 %v4037
        %4055 = vmatmul.f32.gmra.mxu0 %v4035
        %v4056 = vpop.f32.mrf.mxu0
        %v4057 = vadd.f32 0.0, %v4056
        %4058 = vdwg.mxu0
        %4059 = vrot.lane.b32.xlu0 %v1048, 112
        %v4060 = vpop.permute.xlu0 %4059
        %4061 = vrot.lane.b32.xlu0 %v958, 112
        %v4062 = vpop.permute.xlu0 %4061
        %v4063 = vsel %vm1058, %v4060, 0
        %v4065 = vsel %vm1058, %v4062, 0
        %4067 = vmatpush.xpose.msra.mxu0 0.0
        %4068 = vmatpush.xpose.msra.mxu0 0.0
        %4069 = vmatpush.xpose.msra.mxu0 0.0
        %4070 = vmatpush.xpose.msra.mxu0 0.0
        %4071 = vmatpush.xpose.msra.mxu0 0.0
        %4072 = vmatpush.xpose.msra.mxu0 0.0
        %4073 = vmatpush.xpose.msra.mxu0 0.0
        %4074 = vmatpush.xpose.msra.mxu0 0.0
        %4075 = vmatpush.xpose.msra.mxu0 0.0
        %4076 = vmatpush.xpose.msra.mxu0 0.0
        %4077 = vmatpush.xpose.msra.mxu0 0.0
        %4078 = vmatpush.xpose.msra.mxu0 0.0
        %4079 = vmatpush.xpose.msra.mxu0 0.0
        %4080 = vmatpush.xpose.msra.mxu0 0.0
        %4081 = vmatpush.xpose.msra.mxu0 0.0
        %4082 = vmatpush.xpose.msra.mxu0 %v4065
        %4083 = vmatmul.f32.gmra.mxu0 %v4063
        %v4084 = vpop.f32.mrf.mxu0
        %v4085 = vadd.f32 0.0, %v4084
        %4086 = vdwg.mxu0
        %4087 = vrot.lane.b32.xlu0 %v1049, 112
        %v4088 = vpop.permute.xlu0 %4087
        %4089 = vrot.lane.b32.xlu0 %v961, 112
        %v4090 = vpop.permute.xlu0 %4089
        %v4091 = vsel %vm1058, %v4088, 0
        %v4093 = vsel %vm1058, %v4090, 0
        %4095 = vmatpush.xpose.msra.mxu0 0.0
        %4096 = vmatpush.xpose.msra.mxu0 0.0
        %4097 = vmatpush.xpose.msra.mxu0 0.0
        %4098 = vmatpush.xpose.msra.mxu0 0.0
        %4099 = vmatpush.xpose.msra.mxu0 0.0
        %4100 = vmatpush.xpose.msra.mxu0 0.0
        %4101 = vmatpush.xpose.msra.mxu0 0.0
        %4102 = vmatpush.xpose.msra.mxu0 0.0
        %4103 = vmatpush.xpose.msra.mxu0 0.0
        %4104 = vmatpush.xpose.msra.mxu0 0.0
        %4105 = vmatpush.xpose.msra.mxu0 0.0
        %4106 = vmatpush.xpose.msra.mxu0 0.0
        %4107 = vmatpush.xpose.msra.mxu0 0.0
        %4108 = vmatpush.xpose.msra.mxu0 0.0
        %4109 = vmatpush.xpose.msra.mxu0 0.0
        %4110 = vmatpush.xpose.msra.mxu0 %v4093
        %4111 = vmatmul.f32.gmra.mxu0 %v4091
        %v4112 = vpop.f32.mrf.mxu0
        %v4113 = vadd.f32 0.0, %v4112
        %4114 = vdwg.mxu0
        %4115 = vrot.lane.b32.xlu0 %v1050, 112
        %v4116 = vpop.permute.xlu0 %4115
        %4117 = vrot.lane.b32.xlu0 %v964, 112
        %v4118 = vpop.permute.xlu0 %4117
        %v4119 = vsel %vm1058, %v4116, 0
        %v4121 = vsel %vm1058, %v4118, 0
        %4123 = vmatpush.xpose.msra.mxu0 0.0
        %4124 = vmatpush.xpose.msra.mxu0 0.0
        %4125 = vmatpush.xpose.msra.mxu0 0.0
        %4126 = vmatpush.xpose.msra.mxu0 0.0
        %4127 = vmatpush.xpose.msra.mxu0 0.0
        %4128 = vmatpush.xpose.msra.mxu0 0.0
        %4129 = vmatpush.xpose.msra.mxu0 0.0
        %4130 = vmatpush.xpose.msra.mxu0 0.0
        %4131 = vmatpush.xpose.msra.mxu0 0.0
        %4132 = vmatpush.xpose.msra.mxu0 0.0
        %4133 = vmatpush.xpose.msra.mxu0 0.0
        %4134 = vmatpush.xpose.msra.mxu0 0.0
        %4135 = vmatpush.xpose.msra.mxu0 0.0
        %4136 = vmatpush.xpose.msra.mxu0 0.0
        %4137 = vmatpush.xpose.msra.mxu0 0.0
        %4138 = vmatpush.xpose.msra.mxu0 %v4121
        %4139 = vmatmul.f32.gmra.mxu0 %v4119
        %v4140 = vpop.f32.mrf.mxu0
        %v4141 = vadd.f32 0.0, %v4140
        %4142 = vdwg.mxu0
        %4143 = vrot.lane.b32.xlu0 %v1051, 112
        %v4144 = vpop.permute.xlu0 %4143
        %4145 = vrot.lane.b32.xlu0 %v967, 112
        %v4146 = vpop.permute.xlu0 %4145
        %v4147 = vsel %vm1058, %v4144, 0
        %v4149 = vsel %vm1058, %v4146, 0
        %4151 = vmatpush.xpose.msra.mxu0 0.0
        %4152 = vmatpush.xpose.msra.mxu0 0.0
        %4153 = vmatpush.xpose.msra.mxu0 0.0
        %4154 = vmatpush.xpose.msra.mxu0 0.0
        %4155 = vmatpush.xpose.msra.mxu0 0.0
        %4156 = vmatpush.xpose.msra.mxu0 0.0
        %4157 = vmatpush.xpose.msra.mxu0 0.0
        %4158 = vmatpush.xpose.msra.mxu0 0.0
        %4159 = vmatpush.xpose.msra.mxu0 0.0
        %4160 = vmatpush.xpose.msra.mxu0 0.0
        %4161 = vmatpush.xpose.msra.mxu0 0.0
        %4162 = vmatpush.xpose.msra.mxu0 0.0
        %4163 = vmatpush.xpose.msra.mxu0 0.0
        %4164 = vmatpush.xpose.msra.mxu0 0.0
        %4165 = vmatpush.xpose.msra.mxu0 0.0
        %4166 = vmatpush.xpose.msra.mxu0 %v4149
        %4167 = vmatmul.f32.gmra.mxu0 %v4147
        %v4168 = vpop.f32.mrf.mxu0
        %v4169 = vadd.f32 0.0, %v4168
        %4170 = vdwg.mxu0
        %4171 = vrot.lane.b32.xlu0 %v1052, 112
        %v4172 = vpop.permute.xlu0 %4171
        %4173 = vrot.lane.b32.xlu0 %v970, 112
        %v4174 = vpop.permute.xlu0 %4173
        %v4175 = vsel %vm1058, %v4172, 0
        %v4177 = vsel %vm1058, %v4174, 0
        %4179 = vmatpush.xpose.msra.mxu0 0.0
        %4180 = vmatpush.xpose.msra.mxu0 0.0
        %4181 = vmatpush.xpose.msra.mxu0 0.0
        %4182 = vmatpush.xpose.msra.mxu0 0.0
        %4183 = vmatpush.xpose.msra.mxu0 0.0
        %4184 = vmatpush.xpose.msra.mxu0 0.0
        %4185 = vmatpush.xpose.msra.mxu0 0.0
        %4186 = vmatpush.xpose.msra.mxu0 0.0
        %4187 = vmatpush.xpose.msra.mxu0 0.0
        %4188 = vmatpush.xpose.msra.mxu0 0.0
        %4189 = vmatpush.xpose.msra.mxu0 0.0
        %4190 = vmatpush.xpose.msra.mxu0 0.0
        %4191 = vmatpush.xpose.msra.mxu0 0.0
        %4192 = vmatpush.xpose.msra.mxu0 0.0
        %4193 = vmatpush.xpose.msra.mxu0 0.0
        %4194 = vmatpush.xpose.msra.mxu0 %v4177
        %4195 = vmatmul.f32.gmra.mxu0 %v4175
        %v4196 = vpop.f32.mrf.mxu0
        %v4197 = vadd.f32 0.0, %v4196
        %4198 = vdwg.mxu0
        %v4199 = vsel %vm1058, %v3777, -inf
        %4200 = vmax.xlane.f32.xlu0 %v4199
        %v4201 = vpop.xlane.xlu0 %4200
        %v4202 = vsel %vm1058, %v3805, -inf
        %4203 = vmax.xlane.f32.xlu0 %v4202
        %v4204 = vpop.xlane.xlu0 %4203
        %v4205 = vsel %vm1058, %v3833, -inf
        %4206 = vmax.xlane.f32.xlu0 %v4205
        %v4207 = vpop.xlane.xlu0 %4206
        %v4208 = vsel %vm1058, %v3861, -inf
        %4209 = vmax.xlane.f32.xlu0 %v4208
        %v4210 = vpop.xlane.xlu0 %4209
        %v4211 = vsel %vm1058, %v3889, -inf
        %4212 = vmax.xlane.f32.xlu0 %v4211
        %v4213 = vpop.xlane.xlu0 %4212
        %v4214 = vsel %vm1058, %v3917, -inf
        %4215 = vmax.xlane.f32.xlu0 %v4214
        %v4216 = vpop.xlane.xlu0 %4215
        %v4217 = vsel %vm1058, %v3945, -inf
        %4218 = vmax.xlane.f32.xlu0 %v4217
        %v4219 = vpop.xlane.xlu0 %4218
        %v4220 = vsel %vm1058, %v3973, -inf
        %4221 = vmax.xlane.f32.xlu0 %v4220
        %v4222 = vpop.xlane.xlu0 %4221
        %v4223 = vsel %vm1058, %v4001, -inf
        %4224 = vmax.xlane.f32.xlu0 %v4223
        %v4225 = vpop.xlane.xlu0 %4224
        %v4226 = vsel %vm1058, %v4029, -inf
        %4227 = vmax.xlane.f32.xlu0 %v4226
        %v4228 = vpop.xlane.xlu0 %4227
        %v4229 = vsel %vm1058, %v4057, -inf
        %4230 = vmax.xlane.f32.xlu0 %v4229
        %v4231 = vpop.xlane.xlu0 %4230
        %v4232 = vsel %vm1058, %v4085, -inf
        %4233 = vmax.xlane.f32.xlu0 %v4232
        %v4234 = vpop.xlane.xlu0 %4233
        %v4235 = vsel %vm1058, %v4113, -inf
        %4236 = vmax.xlane.f32.xlu0 %v4235
        %v4237 = vpop.xlane.xlu0 %4236
        %v4238 = vsel %vm1058, %v4141, -inf
        %4239 = vmax.xlane.f32.xlu0 %v4238
        %v4240 = vpop.xlane.xlu0 %4239
        %v4241 = vsel %vm1058, %v4169, -inf
        %4242 = vmax.xlane.f32.xlu0 %v4241
        %v4243 = vpop.xlane.xlu0 %4242
        %v4244 = vsel %vm1058, %v4197, -inf
        %4245 = vmax.xlane.f32.xlu0 %v4244
        %v4246 = vpop.xlane.xlu0 %4245
        %v4247 = vsub.f32 %v3777, %v4201
        %v4248 = vsub.f32 %v3805, %v4204
        %v4249 = vsub.f32 %v3833, %v4207
        %v4250 = vsub.f32 %v3861, %v4210
        %v4251 = vsub.f32 %v3889, %v4213
        %v4252 = vsub.f32 %v3917, %v4216
        %v4253 = vsub.f32 %v3945, %v4219
        %v4254 = vsub.f32 %v3973, %v4222
        %v4255 = vsub.f32 %v4001, %v4225
        %v4256 = vsub.f32 %v4029, %v4228
        %v4257 = vsub.f32 %v4057, %v4231
        %v4258 = vsub.f32 %v4085, %v4234
        %v4259 = vsub.f32 %v4113, %v4237
        %v4260 = vsub.f32 %v4141, %v4240
        %v4261 = vsub.f32 %v4169, %v4243
        %v4262 = vsub.f32 %v4197, %v4246
        %v4263 = vmul.f32 %v4247, 1.442695
        %v4264 = vpow.pop %v4263
        %v4265 = vmul.f32 %v4248, 1.442695
        %v4266 = vpow.pop %v4265
        %v4267 = vmul.f32 %v4249, 1.442695
        %v4268 = vpow.pop %v4267
        %v4269 = vmul.f32 %v4250, 1.442695
        %v4270 = vpow.pop %v4269
        %v4271 = vmul.f32 %v4251, 1.442695
        %v4272 = vpow.pop %v4271
        %v4273 = vmul.f32 %v4252, 1.442695
        %v4274 = vpow.pop %v4273
        %v4275 = vmul.f32 %v4253, 1.442695
        %v4276 = vpow.pop %v4275
        %v4277 = vmul.f32 %v4254, 1.442695
        %v4278 = vpow.pop %v4277
        %v4279 = vmul.f32 %v4255, 1.442695
        %v4280 = vpow.pop %v4279
        %v4281 = vmul.f32 %v4256, 1.442695
        %v4282 = vpow.pop %v4281
        %v4283 = vmul.f32 %v4257, 1.442695
        %v4284 = vpow.pop %v4283
        %v4285 = vmul.f32 %v4258, 1.442695
        %v4286 = vpow.pop %v4285
        %v4287 = vmul.f32 %v4259, 1.442695
        %v4288 = vpow.pop %v4287
        %v4289 = vmul.f32 %v4260, 1.442695
        %v4290 = vpow.pop %v4289
        %v4291 = vmul.f32 %v4261, 1.442695
        %v4292 = vpow.pop %v4291
        %v4293 = vmul.f32 %v4262, 1.442695
        %v4294 = vpow.pop %v4293
        %v4295 = vsel %vm1058, %v4264, 0.0
        %4296 = vadd.xlane.f32.xlu0 %v4295
        %v4297 = vpop.xlane.xlu0 %4296
        %v4298 = vsel %vm1058, %v4266, 0.0
        %4299 = vadd.xlane.f32.xlu0 %v4298
        %v4300 = vpop.xlane.xlu0 %4299
        %v4301 = vsel %vm1058, %v4268, 0.0
        %4302 = vadd.xlane.f32.xlu0 %v4301
        %v4303 = vpop.xlane.xlu0 %4302
        %v4304 = vsel %vm1058, %v4270, 0.0
        %4305 = vadd.xlane.f32.xlu0 %v4304
        %v4306 = vpop.xlane.xlu0 %4305
        %v4307 = vsel %vm1058, %v4272, 0.0
        %4308 = vadd.xlane.f32.xlu0 %v4307
        %v4309 = vpop.xlane.xlu0 %4308
        %v4310 = vsel %vm1058, %v4274, 0.0
        %4311 = vadd.xlane.f32.xlu0 %v4310
        %v4312 = vpop.xlane.xlu0 %4311
        %v4313 = vsel %vm1058, %v4276, 0.0
        %4314 = vadd.xlane.f32.xlu0 %v4313
        %v4315 = vpop.xlane.xlu0 %4314
        %v4316 = vsel %vm1058, %v4278, 0.0
        %4317 = vadd.xlane.f32.xlu0 %v4316
        %v4318 = vpop.xlane.xlu0 %4317
        %v4319 = vsel %vm1058, %v4280, 0.0
        %4320 = vadd.xlane.f32.xlu0 %v4319
        %v4321 = vpop.xlane.xlu0 %4320
        %v4322 = vsel %vm1058, %v4282, 0.0
        %4323 = vadd.xlane.f32.xlu0 %v4322
        %v4324 = vpop.xlane.xlu0 %4323
        %v4325 = vsel %vm1058, %v4284, 0.0
        %4326 = vadd.xlane.f32.xlu0 %v4325
        %v4327 = vpop.xlane.xlu0 %4326
        %v4328 = vsel %vm1058, %v4286, 0.0
        %4329 = vadd.xlane.f32.xlu0 %v4328
        %v4330 = vpop.xlane.xlu0 %4329
        %v4331 = vsel %vm1058, %v4288, 0.0
        %4332 = vadd.xlane.f32.xlu0 %v4331
        %v4333 = vpop.xlane.xlu0 %4332
        %v4334 = vsel %vm1058, %v4290, 0.0
        %4335 = vadd.xlane.f32.xlu0 %v4334
        %v4336 = vpop.xlane.xlu0 %4335
        %v4337 = vsel %vm1058, %v4292, 0.0
        %4338 = vadd.xlane.f32.xlu0 %v4337
        %v4339 = vpop.xlane.xlu0 %4338
        %v4340 = vsel %vm1058, %v4294, 0.0
        %4341 = vadd.xlane.f32.xlu0 %v4340
        %v4342 = vpop.xlane.xlu0 %4341
        %v4343 = vrcp.pop %v4297
        %v4344 = vmul.f32 %v4297, %v4343
        %v4345 = vsub.f32 1.0, %v4344
        %v4346 = vmul.f32 %v4343, %v4345
        %v4347 = vadd.f32 %v4343, %v4346
        %vm4348 = vweird.f32 %v4297
        %vm4349 = vweird.f32 %v4343
        %vm4350 = vmor %vm4348, %vm4349
        %v4351 = vsel %vm4350, %v4343, %v4347
        %v4352 = vand.u32 2147483647, %v4297
        %vm4353 = vcmp.eq.f32.partialorder %v4352, 8.507059e+37
        %v4354 = vand.u32 %v4297, 2147483648
        %v4355 = vor.u32 1.1754944e-38, %v4354
        %v4356 = vsel %vm4353, %v4355, %v4351
        %v4357 = vmul.f32 %v4264, %v4356
        %v4358 = vrcp.pop %v4300
        %v4359 = vmul.f32 %v4300, %v4358
        %v4360 = vsub.f32 1.0, %v4359
        %v4361 = vmul.f32 %v4358, %v4360
        %v4362 = vadd.f32 %v4358, %v4361
        %vm4363 = vweird.f32 %v4300
        %vm4364 = vweird.f32 %v4358
        %vm4365 = vmor %vm4363, %vm4364
        %v4366 = vsel %vm4365, %v4358, %v4362
        %v4367 = vand.u32 2147483647, %v4300
        %vm4368 = vcmp.eq.f32.partialorder %v4367, 8.507059e+37
        %v4369 = vand.u32 %v4300, 2147483648
        %v4370 = vor.u32 1.1754944e-38, %v4369
        %v4371 = vsel %vm4368, %v4370, %v4366
        %v4372 = vmul.f32 %v4266, %v4371
        %v4373 = vrcp.pop %v4303
        %v4374 = vmul.f32 %v4303, %v4373
        %v4375 = vsub.f32 1.0, %v4374
        %v4376 = vmul.f32 %v4373, %v4375
        %v4377 = vadd.f32 %v4373, %v4376
        %vm4378 = vweird.f32 %v4303
        %vm4379 = vweird.f32 %v4373
        %vm4380 = vmor %vm4378, %vm4379
        %v4381 = vsel %vm4380, %v4373, %v4377
        %v4382 = vand.u32 2147483647, %v4303
        %vm4383 = vcmp.eq.f32.partialorder %v4382, 8.507059e+37
        %v4384 = vand.u32 %v4303, 2147483648
        %v4385 = vor.u32 1.1754944e-38, %v4384
        %v4386 = vsel %vm4383, %v4385, %v4381
        %v4387 = vmul.f32 %v4268, %v4386
        %v4388 = vrcp.pop %v4306
        %v4389 = vmul.f32 %v4306, %v4388
        %v4390 = vsub.f32 1.0, %v4389
        %v4391 = vmul.f32 %v4388, %v4390
        %v4392 = vadd.f32 %v4388, %v4391
        %vm4393 = vweird.f32 %v4306
        %vm4394 = vweird.f32 %v4388
        %vm4395 = vmor %vm4393, %vm4394
        %v4396 = vsel %vm4395, %v4388, %v4392
        %v4397 = vand.u32 2147483647, %v4306
        %vm4398 = vcmp.eq.f32.partialorder %v4397, 8.507059e+37
        %v4399 = vand.u32 %v4306, 2147483648
        %v4400 = vor.u32 1.1754944e-38, %v4399
        %v4401 = vsel %vm4398, %v4400, %v4396
        %v4402 = vmul.f32 %v4270, %v4401
        %v4403 = vrcp.pop %v4309
        %v4404 = vmul.f32 %v4309, %v4403
        %v4405 = vsub.f32 1.0, %v4404
        %v4406 = vmul.f32 %v4403, %v4405
        %v4407 = vadd.f32 %v4403, %v4406
        %vm4408 = vweird.f32 %v4309
        %vm4409 = vweird.f32 %v4403
        %vm4410 = vmor %vm4408, %vm4409
        %v4411 = vsel %vm4410, %v4403, %v4407
        %v4412 = vand.u32 2147483647, %v4309
        %vm4413 = vcmp.eq.f32.partialorder %v4412, 8.507059e+37
        %v4414 = vand.u32 %v4309, 2147483648
        %v4415 = vor.u32 1.1754944e-38, %v4414
        %v4416 = vsel %vm4413, %v4415, %v4411
        %v4417 = vmul.f32 %v4272, %v4416
        %v4418 = vrcp.pop %v4312
        %v4419 = vmul.f32 %v4312, %v4418
        %v4420 = vsub.f32 1.0, %v4419
        %v4421 = vmul.f32 %v4418, %v4420
        %v4422 = vadd.f32 %v4418, %v4421
        %vm4423 = vweird.f32 %v4312
        %vm4424 = vweird.f32 %v4418
        %vm4425 = vmor %vm4423, %vm4424
        %v4426 = vsel %vm4425, %v4418, %v4422
        %v4427 = vand.u32 2147483647, %v4312
        %vm4428 = vcmp.eq.f32.partialorder %v4427, 8.507059e+37
        %v4429 = vand.u32 %v4312, 2147483648
        %v4430 = vor.u32 1.1754944e-38, %v4429
        %v4431 = vsel %vm4428, %v4430, %v4426
        %v4432 = vmul.f32 %v4274, %v4431
        %v4433 = vrcp.pop %v4315
        %v4434 = vmul.f32 %v4315, %v4433
        %v4435 = vsub.f32 1.0, %v4434
        %v4436 = vmul.f32 %v4433, %v4435
        %v4437 = vadd.f32 %v4433, %v4436
        %vm4438 = vweird.f32 %v4315
        %vm4439 = vweird.f32 %v4433
        %vm4440 = vmor %vm4438, %vm4439
        %v4441 = vsel %vm4440, %v4433, %v4437
        %v4442 = vand.u32 2147483647, %v4315
        %vm4443 = vcmp.eq.f32.partialorder %v4442, 8.507059e+37
        %v4444 = vand.u32 %v4315, 2147483648
        %v4445 = vor.u32 1.1754944e-38, %v4444
        %v4446 = vsel %vm4443, %v4445, %v4441
        %v4447 = vmul.f32 %v4276, %v4446
        %v4448 = vrcp.pop %v4318
        %v4449 = vmul.f32 %v4318, %v4448
        %v4450 = vsub.f32 1.0, %v4449
        %v4451 = vmul.f32 %v4448, %v4450
        %v4452 = vadd.f32 %v4448, %v4451
        %vm4453 = vweird.f32 %v4318
        %vm4454 = vweird.f32 %v4448
        %vm4455 = vmor %vm4453, %vm4454
        %v4456 = vsel %vm4455, %v4448, %v4452
        %v4457 = vand.u32 2147483647, %v4318
        %vm4458 = vcmp.eq.f32.partialorder %v4457, 8.507059e+37
        %v4459 = vand.u32 %v4318, 2147483648
        %v4460 = vor.u32 1.1754944e-38, %v4459
        %v4461 = vsel %vm4458, %v4460, %v4456
        %v4462 = vmul.f32 %v4278, %v4461
        %v4463 = vrcp.pop %v4321
        %v4464 = vmul.f32 %v4321, %v4463
        %v4465 = vsub.f32 1.0, %v4464
        %v4466 = vmul.f32 %v4463, %v4465
        %v4467 = vadd.f32 %v4463, %v4466
        %vm4468 = vweird.f32 %v4321
        %vm4469 = vweird.f32 %v4463
        %vm4470 = vmor %vm4468, %vm4469
        %v4471 = vsel %vm4470, %v4463, %v4467
        %v4472 = vand.u32 2147483647, %v4321
        %vm4473 = vcmp.eq.f32.partialorder %v4472, 8.507059e+37
        %v4474 = vand.u32 %v4321, 2147483648
        %v4475 = vor.u32 1.1754944e-38, %v4474
        %v4476 = vsel %vm4473, %v4475, %v4471
        %v4477 = vmul.f32 %v4280, %v4476
        %v4478 = vrcp.pop %v4324
        %v4479 = vmul.f32 %v4324, %v4478
        %v4480 = vsub.f32 1.0, %v4479
        %v4481 = vmul.f32 %v4478, %v4480
        %v4482 = vadd.f32 %v4478, %v4481
        %vm4483 = vweird.f32 %v4324
        %vm4484 = vweird.f32 %v4478
        %vm4485 = vmor %vm4483, %vm4484
        %v4486 = vsel %vm4485, %v4478, %v4482
        %v4487 = vand.u32 2147483647, %v4324
        %vm4488 = vcmp.eq.f32.partialorder %v4487, 8.507059e+37
        %v4489 = vand.u32 %v4324, 2147483648
        %v4490 = vor.u32 1.1754944e-38, %v4489
        %v4491 = vsel %vm4488, %v4490, %v4486
        %v4492 = vmul.f32 %v4282, %v4491
        %v4493 = vrcp.pop %v4327
        %v4494 = vmul.f32 %v4327, %v4493
        %v4495 = vsub.f32 1.0, %v4494
        %v4496 = vmul.f32 %v4493, %v4495
        %v4497 = vadd.f32 %v4493, %v4496
        %vm4498 = vweird.f32 %v4327
        %vm4499 = vweird.f32 %v4493
        %vm4500 = vmor %vm4498, %vm4499
        %v4501 = vsel %vm4500, %v4493, %v4497
        %v4502 = vand.u32 2147483647, %v4327
        %vm4503 = vcmp.eq.f32.partialorder %v4502, 8.507059e+37
        %v4504 = vand.u32 %v4327, 2147483648
        %v4505 = vor.u32 1.1754944e-38, %v4504
        %v4506 = vsel %vm4503, %v4505, %v4501
        %v4507 = vmul.f32 %v4284, %v4506
        %v4508 = vrcp.pop %v4330
        %v4509 = vmul.f32 %v4330, %v4508
        %v4510 = vsub.f32 1.0, %v4509
        %v4511 = vmul.f32 %v4508, %v4510
        %v4512 = vadd.f32 %v4508, %v4511
        %vm4513 = vweird.f32 %v4330
        %vm4514 = vweird.f32 %v4508
        %vm4515 = vmor %vm4513, %vm4514
        %v4516 = vsel %vm4515, %v4508, %v4512
        %v4517 = vand.u32 2147483647, %v4330
        %vm4518 = vcmp.eq.f32.partialorder %v4517, 8.507059e+37
        %v4519 = vand.u32 %v4330, 2147483648
        %v4520 = vor.u32 1.1754944e-38, %v4519
        %v4521 = vsel %vm4518, %v4520, %v4516
        %v4522 = vmul.f32 %v4286, %v4521
        %v4523 = vrcp.pop %v4333
        %v4524 = vmul.f32 %v4333, %v4523
        %v4525 = vsub.f32 1.0, %v4524
        %v4526 = vmul.f32 %v4523, %v4525
        %v4527 = vadd.f32 %v4523, %v4526
        %vm4528 = vweird.f32 %v4333
        %vm4529 = vweird.f32 %v4523
        %vm4530 = vmor %vm4528, %vm4529
        %v4531 = vsel %vm4530, %v4523, %v4527
        %v4532 = vand.u32 2147483647, %v4333
        %vm4533 = vcmp.eq.f32.partialorder %v4532, 8.507059e+37
        %v4534 = vand.u32 %v4333, 2147483648
        %v4535 = vor.u32 1.1754944e-38, %v4534
        %v4536 = vsel %vm4533, %v4535, %v4531
        %v4537 = vmul.f32 %v4288, %v4536
        %v4538 = vrcp.pop %v4336
        %v4539 = vmul.f32 %v4336, %v4538
        %v4540 = vsub.f32 1.0, %v4539
        %v4541 = vmul.f32 %v4538, %v4540
        %v4542 = vadd.f32 %v4538, %v4541
        %vm4543 = vweird.f32 %v4336
        %vm4544 = vweird.f32 %v4538
        %vm4545 = vmor %vm4543, %vm4544
        %v4546 = vsel %vm4545, %v4538, %v4542
        %v4547 = vand.u32 2147483647, %v4336
        %vm4548 = vcmp.eq.f32.partialorder %v4547, 8.507059e+37
        %v4549 = vand.u32 %v4336, 2147483648
        %v4550 = vor.u32 1.1754944e-38, %v4549
        %v4551 = vsel %vm4548, %v4550, %v4546
        %v4552 = vmul.f32 %v4290, %v4551
        %v4553 = vrcp.pop %v4339
        %v4554 = vmul.f32 %v4339, %v4553
        %v4555 = vsub.f32 1.0, %v4554
        %v4556 = vmul.f32 %v4553, %v4555
        %v4557 = vadd.f32 %v4553, %v4556
        %vm4558 = vweird.f32 %v4339
        %vm4559 = vweird.f32 %v4553
        %vm4560 = vmor %vm4558, %vm4559
        %v4561 = vsel %vm4560, %v4553, %v4557
        %v4562 = vand.u32 2147483647, %v4339
        %vm4563 = vcmp.eq.f32.partialorder %v4562, 8.507059e+37
        %v4564 = vand.u32 %v4339, 2147483648
        %v4565 = vor.u32 1.1754944e-38, %v4564
        %v4566 = vsel %vm4563, %v4565, %v4561
        %v4567 = vmul.f32 %v4292, %v4566
        %v4568 = vrcp.pop %v4342
        %v4569 = vmul.f32 %v4342, %v4568
        %v4570 = vsub.f32 1.0, %v4569
        %v4571 = vmul.f32 %v4568, %v4570
        %v4572 = vadd.f32 %v4568, %v4571
        %vm4573 = vweird.f32 %v4342
        %vm4574 = vweird.f32 %v4568
        %vm4575 = vmor %vm4573, %vm4574
        %v4576 = vsel %vm4575, %v4568, %v4572
        %v4577 = vand.u32 2147483647, %v4342
        %vm4578 = vcmp.eq.f32.partialorder %v4577, 8.507059e+37
        %v4579 = vand.u32 %v4342, 2147483648
        %v4580 = vor.u32 1.1754944e-38, %v4579
        %v4581 = vsel %vm4578, %v4580, %v4576
        %v4582 = vmul.f32 %v4294, %v4581
        %4583 = vrot.lane.b32.xlu0 %v990, 112
        %v4584 = vpop.permute.xlu0 %4583
        %v4587 = vsel %vm1058, %v4357, 0
        %4589 = vmatpush.msra.mxu0 0.0
        %4590 = vmatpush.msra.mxu0 0.0
        %4591 = vmatpush.msra.mxu0 0.0
        %4592 = vmatpush.msra.mxu0 0.0
        %4593 = vmatpush.msra.mxu0 0.0
        %4594 = vmatpush.msra.mxu0 0.0
        %4595 = vmatpush.msra.mxu0 0.0
        %4596 = vmatpush.msra.mxu0 0.0
        %4597 = vmatpush.msra.mxu0 0.0
        %4598 = vmatpush.msra.mxu0 0.0
        %4599 = vmatpush.msra.mxu0 0.0
        %4600 = vmatpush.msra.mxu0 0.0
        %4601 = vmatpush.msra.mxu0 0.0
        %4602 = vmatpush.msra.mxu0 0.0
        %4603 = vmatpush.msra.mxu0 0.0
        %4604 = vmatpush.msra.mxu0 %v4584
        %4605 = vmatmul.f32.gmra.mxu0 %v4587
        %v4606 = vpop.f32.mrf.mxu0
        %v4607 = vadd.f32 0.0, %v4606
        %4608 = vdwg.mxu0
        %4609 = vrot.lane.b32.xlu0 %v993, 112
        %v4610 = vpop.permute.xlu0 %4609
        %v4613 = vsel %vm1058, %v4372, 0
        %4615 = vmatpush.msra.mxu0 0.0
        %4616 = vmatpush.msra.mxu0 0.0
        %4617 = vmatpush.msra.mxu0 0.0
        %4618 = vmatpush.msra.mxu0 0.0
        %4619 = vmatpush.msra.mxu0 0.0
        %4620 = vmatpush.msra.mxu0 0.0
        %4621 = vmatpush.msra.mxu0 0.0
        %4622 = vmatpush.msra.mxu0 0.0
        %4623 = vmatpush.msra.mxu0 0.0
        %4624 = vmatpush.msra.mxu0 0.0
        %4625 = vmatpush.msra.mxu0 0.0
        %4626 = vmatpush.msra.mxu0 0.0
        %4627 = vmatpush.msra.mxu0 0.0
        %4628 = vmatpush.msra.mxu0 0.0
        %4629 = vmatpush.msra.mxu0 0.0
        %4630 = vmatpush.msra.mxu0 %v4610
        %4631 = vmatmul.f32.gmra.mxu0 %v4613
        %v4632 = vpop.f32.mrf.mxu0
        %v4633 = vadd.f32 0.0, %v4632
        %4634 = vdwg.mxu0
        %4635 = vrot.lane.b32.xlu0 %v996, 112
        %v4636 = vpop.permute.xlu0 %4635
        %v4639 = vsel %vm1058, %v4387, 0
        %4641 = vmatpush.msra.mxu0 0.0
        %4642 = vmatpush.msra.mxu0 0.0
        %4643 = vmatpush.msra.mxu0 0.0
        %4644 = vmatpush.msra.mxu0 0.0
        %4645 = vmatpush.msra.mxu0 0.0
        %4646 = vmatpush.msra.mxu0 0.0
        %4647 = vmatpush.msra.mxu0 0.0
        %4648 = vmatpush.msra.mxu0 0.0
        %4649 = vmatpush.msra.mxu0 0.0
        %4650 = vmatpush.msra.mxu0 0.0
        %4651 = vmatpush.msra.mxu0 0.0
        %4652 = vmatpush.msra.mxu0 0.0
        %4653 = vmatpush.msra.mxu0 0.0
        %4654 = vmatpush.msra.mxu0 0.0
        %4655 = vmatpush.msra.mxu0 0.0
        %4656 = vmatpush.msra.mxu0 %v4636
        %4657 = vmatmul.f32.gmra.mxu0 %v4639
        %v4658 = vpop.f32.mrf.mxu0
        %v4659 = vadd.f32 0.0, %v4658
        %4660 = vdwg.mxu0
        %4661 = vrot.lane.b32.xlu0 %v999, 112
        %v4662 = vpop.permute.xlu0 %4661
        %v4665 = vsel %vm1058, %v4402, 0
        %4667 = vmatpush.msra.mxu0 0.0
        %4668 = vmatpush.msra.mxu0 0.0
        %4669 = vmatpush.msra.mxu0 0.0
        %4670 = vmatpush.msra.mxu0 0.0
        %4671 = vmatpush.msra.mxu0 0.0
        %4672 = vmatpush.msra.mxu0 0.0
        %4673 = vmatpush.msra.mxu0 0.0
        %4674 = vmatpush.msra.mxu0 0.0
        %4675 = vmatpush.msra.mxu0 0.0
        %4676 = vmatpush.msra.mxu0 0.0
        %4677 = vmatpush.msra.mxu0 0.0
        %4678 = vmatpush.msra.mxu0 0.0
        %4679 = vmatpush.msra.mxu0 0.0
        %4680 = vmatpush.msra.mxu0 0.0
        %4681 = vmatpush.msra.mxu0 0.0
        %4682 = vmatpush.msra.mxu0 %v4662
        %4683 = vmatmul.f32.gmra.mxu0 %v4665
        %v4684 = vpop.f32.mrf.mxu0
        %v4685 = vadd.f32 0.0, %v4684
        %4686 = vdwg.mxu0
        %4687 = vrot.lane.b32.xlu0 %v1002, 112
        %v4688 = vpop.permute.xlu0 %4687
        %v4691 = vsel %vm1058, %v4417, 0
        %4693 = vmatpush.msra.mxu0 0.0
        %4694 = vmatpush.msra.mxu0 0.0
        %4695 = vmatpush.msra.mxu0 0.0
        %4696 = vmatpush.msra.mxu0 0.0
        %4697 = vmatpush.msra.mxu0 0.0
        %4698 = vmatpush.msra.mxu0 0.0
        %4699 = vmatpush.msra.mxu0 0.0
        %4700 = vmatpush.msra.mxu0 0.0
        %4701 = vmatpush.msra.mxu0 0.0
        %4702 = vmatpush.msra.mxu0 0.0
        %4703 = vmatpush.msra.mxu0 0.0
        %4704 = vmatpush.msra.mxu0 0.0
        %4705 = vmatpush.msra.mxu0 0.0
        %4706 = vmatpush.msra.mxu0 0.0
        %4707 = vmatpush.msra.mxu0 0.0
        %4708 = vmatpush.msra.mxu0 %v4688
        %4709 = vmatmul.f32.gmra.mxu0 %v4691
        %v4710 = vpop.f32.mrf.mxu0
        %v4711 = vadd.f32 0.0, %v4710
        %4712 = vdwg.mxu0
        %4713 = vrot.lane.b32.xlu0 %v1005, 112
        %v4714 = vpop.permute.xlu0 %4713
        %v4717 = vsel %vm1058, %v4432, 0
        %4719 = vmatpush.msra.mxu0 0.0
        %4720 = vmatpush.msra.mxu0 0.0
        %4721 = vmatpush.msra.mxu0 0.0
        %4722 = vmatpush.msra.mxu0 0.0
        %4723 = vmatpush.msra.mxu0 0.0
        %4724 = vmatpush.msra.mxu0 0.0
        %4725 = vmatpush.msra.mxu0 0.0
        %4726 = vmatpush.msra.mxu0 0.0
        %4727 = vmatpush.msra.mxu0 0.0
        %4728 = vmatpush.msra.mxu0 0.0
        %4729 = vmatpush.msra.mxu0 0.0
        %4730 = vmatpush.msra.mxu0 0.0
        %4731 = vmatpush.msra.mxu0 0.0
        %4732 = vmatpush.msra.mxu0 0.0
        %4733 = vmatpush.msra.mxu0 0.0
        %4734 = vmatpush.msra.mxu0 %v4714
        %4735 = vmatmul.f32.gmra.mxu0 %v4717
        %v4736 = vpop.f32.mrf.mxu0
        %v4737 = vadd.f32 0.0, %v4736
        %4738 = vdwg.mxu0
        %4739 = vrot.lane.b32.xlu0 %v1008, 112
        %v4740 = vpop.permute.xlu0 %4739
        %v4743 = vsel %vm1058, %v4447, 0
        %4745 = vmatpush.msra.mxu0 0.0
        %4746 = vmatpush.msra.mxu0 0.0
        %4747 = vmatpush.msra.mxu0 0.0
        %4748 = vmatpush.msra.mxu0 0.0
        %4749 = vmatpush.msra.mxu0 0.0
        %4750 = vmatpush.msra.mxu0 0.0
        %4751 = vmatpush.msra.mxu0 0.0
        %4752 = vmatpush.msra.mxu0 0.0
        %4753 = vmatpush.msra.mxu0 0.0
        %4754 = vmatpush.msra.mxu0 0.0
        %4755 = vmatpush.msra.mxu0 0.0
        %4756 = vmatpush.msra.mxu0 0.0
        %4757 = vmatpush.msra.mxu0 0.0
        %4758 = vmatpush.msra.mxu0 0.0
        %4759 = vmatpush.msra.mxu0 0.0
        %4760 = vmatpush.msra.mxu0 %v4740
        %4761 = vmatmul.f32.gmra.mxu0 %v4743
        %v4762 = vpop.f32.mrf.mxu0
        %v4763 = vadd.f32 0.0, %v4762
        %4764 = vdwg.mxu0
        %4765 = vrot.lane.b32.xlu0 %v1011, 112
        %v4766 = vpop.permute.xlu0 %4765
        %v4769 = vsel %vm1058, %v4462, 0
        %4771 = vmatpush.msra.mxu0 0.0
        %4772 = vmatpush.msra.mxu0 0.0
        %4773 = vmatpush.msra.mxu0 0.0
        %4774 = vmatpush.msra.mxu0 0.0
        %4775 = vmatpush.msra.mxu0 0.0
        %4776 = vmatpush.msra.mxu0 0.0
        %4777 = vmatpush.msra.mxu0 0.0
        %4778 = vmatpush.msra.mxu0 0.0
        %4779 = vmatpush.msra.mxu0 0.0
        %4780 = vmatpush.msra.mxu0 0.0
        %4781 = vmatpush.msra.mxu0 0.0
        %4782 = vmatpush.msra.mxu0 0.0
        %4783 = vmatpush.msra.mxu0 0.0
        %4784 = vmatpush.msra.mxu0 0.0
        %4785 = vmatpush.msra.mxu0 0.0
        %4786 = vmatpush.msra.mxu0 %v4766
        %4787 = vmatmul.f32.gmra.mxu0 %v4769
        %v4788 = vpop.f32.mrf.mxu0
        %v4789 = vadd.f32 0.0, %v4788
        %4790 = vdwg.mxu0
        %4791 = vrot.lane.b32.xlu0 %v1014, 112
        %v4792 = vpop.permute.xlu0 %4791
        %v4795 = vsel %vm1058, %v4477, 0
        %4797 = vmatpush.msra.mxu0 0.0
        %4798 = vmatpush.msra.mxu0 0.0
        %4799 = vmatpush.msra.mxu0 0.0
        %4800 = vmatpush.msra.mxu0 0.0
        %4801 = vmatpush.msra.mxu0 0.0
        %4802 = vmatpush.msra.mxu0 0.0
        %4803 = vmatpush.msra.mxu0 0.0
        %4804 = vmatpush.msra.mxu0 0.0
        %4805 = vmatpush.msra.mxu0 0.0
        %4806 = vmatpush.msra.mxu0 0.0
        %4807 = vmatpush.msra.mxu0 0.0
        %4808 = vmatpush.msra.mxu0 0.0
        %4809 = vmatpush.msra.mxu0 0.0
        %4810 = vmatpush.msra.mxu0 0.0
        %4811 = vmatpush.msra.mxu0 0.0
        %4812 = vmatpush.msra.mxu0 %v4792
        %4813 = vmatmul.f32.gmra.mxu0 %v4795
        %v4814 = vpop.f32.mrf.mxu0
        %v4815 = vadd.f32 0.0, %v4814
        %4816 = vdwg.mxu0
        %4817 = vrot.lane.b32.xlu0 %v1017, 112
        %v4818 = vpop.permute.xlu0 %4817
        %v4821 = vsel %vm1058, %v4492, 0
        %4823 = vmatpush.msra.mxu0 0.0
        %4824 = vmatpush.msra.mxu0 0.0
        %4825 = vmatpush.msra.mxu0 0.0
        %4826 = vmatpush.msra.mxu0 0.0
        %4827 = vmatpush.msra.mxu0 0.0
        %4828 = vmatpush.msra.mxu0 0.0
        %4829 = vmatpush.msra.mxu0 0.0
        %4830 = vmatpush.msra.mxu0 0.0
        %4831 = vmatpush.msra.mxu0 0.0
        %4832 = vmatpush.msra.mxu0 0.0
        %4833 = vmatpush.msra.mxu0 0.0
        %4834 = vmatpush.msra.mxu0 0.0
        %4835 = vmatpush.msra.mxu0 0.0
        %4836 = vmatpush.msra.mxu0 0.0
        %4837 = vmatpush.msra.mxu0 0.0
        %4838 = vmatpush.msra.mxu0 %v4818
        %4839 = vmatmul.f32.gmra.mxu0 %v4821
        %v4840 = vpop.f32.mrf.mxu0
        %v4841 = vadd.f32 0.0, %v4840
        %4842 = vdwg.mxu0
        %4843 = vrot.lane.b32.xlu0 %v1020, 112
        %v4844 = vpop.permute.xlu0 %4843
        %v4847 = vsel %vm1058, %v4507, 0
        %4849 = vmatpush.msra.mxu0 0.0
        %4850 = vmatpush.msra.mxu0 0.0
        %4851 = vmatpush.msra.mxu0 0.0
        %4852 = vmatpush.msra.mxu0 0.0
        %4853 = vmatpush.msra.mxu0 0.0
        %4854 = vmatpush.msra.mxu0 0.0
        %4855 = vmatpush.msra.mxu0 0.0
        %4856 = vmatpush.msra.mxu0 0.0
        %4857 = vmatpush.msra.mxu0 0.0
        %4858 = vmatpush.msra.mxu0 0.0
        %4859 = vmatpush.msra.mxu0 0.0
        %4860 = vmatpush.msra.mxu0 0.0
        %4861 = vmatpush.msra.mxu0 0.0
        %4862 = vmatpush.msra.mxu0 0.0
        %4863 = vmatpush.msra.mxu0 0.0
        %4864 = vmatpush.msra.mxu0 %v4844
        %4865 = vmatmul.f32.gmra.mxu0 %v4847
        %v4866 = vpop.f32.mrf.mxu0
        %v4867 = vadd.f32 0.0, %v4866
        %4868 = vdwg.mxu0
        %4869 = vrot.lane.b32.xlu0 %v1023, 112
        %v4870 = vpop.permute.xlu0 %4869
        %v4873 = vsel %vm1058, %v4522, 0
        %4875 = vmatpush.msra.mxu0 0.0
        %4876 = vmatpush.msra.mxu0 0.0
        %4877 = vmatpush.msra.mxu0 0.0
        %4878 = vmatpush.msra.mxu0 0.0
        %4879 = vmatpush.msra.mxu0 0.0
        %4880 = vmatpush.msra.mxu0 0.0
        %4881 = vmatpush.msra.mxu0 0.0
        %4882 = vmatpush.msra.mxu0 0.0
        %4883 = vmatpush.msra.mxu0 0.0
        %4884 = vmatpush.msra.mxu0 0.0
        %4885 = vmatpush.msra.mxu0 0.0
        %4886 = vmatpush.msra.mxu0 0.0
        %4887 = vmatpush.msra.mxu0 0.0
        %4888 = vmatpush.msra.mxu0 0.0
        %4889 = vmatpush.msra.mxu0 0.0
        %4890 = vmatpush.msra.mxu0 %v4870
        %4891 = vmatmul.f32.gmra.mxu0 %v4873
        %v4892 = vpop.f32.mrf.mxu0
        %v4893 = vadd.f32 0.0, %v4892
        %4894 = vdwg.mxu0
        %4895 = vrot.lane.b32.xlu0 %v1026, 112
        %v4896 = vpop.permute.xlu0 %4895
        %v4899 = vsel %vm1058, %v4537, 0
        %4901 = vmatpush.msra.mxu0 0.0
        %4902 = vmatpush.msra.mxu0 0.0
        %4903 = vmatpush.msra.mxu0 0.0
        %4904 = vmatpush.msra.mxu0 0.0
        %4905 = vmatpush.msra.mxu0 0.0
        %4906 = vmatpush.msra.mxu0 0.0
        %4907 = vmatpush.msra.mxu0 0.0
        %4908 = vmatpush.msra.mxu0 0.0
        %4909 = vmatpush.msra.mxu0 0.0
        %4910 = vmatpush.msra.mxu0 0.0
        %4911 = vmatpush.msra.mxu0 0.0
        %4912 = vmatpush.msra.mxu0 0.0
        %4913 = vmatpush.msra.mxu0 0.0
        %4914 = vmatpush.msra.mxu0 0.0
        %4915 = vmatpush.msra.mxu0 0.0
        %4916 = vmatpush.msra.mxu0 %v4896
        %4917 = vmatmul.f32.gmra.mxu0 %v4899
        %v4918 = vpop.f32.mrf.mxu0
        %v4919 = vadd.f32 0.0, %v4918
        %4920 = vdwg.mxu0
        %4921 = vrot.lane.b32.xlu0 %v1029, 112
        %v4922 = vpop.permute.xlu0 %4921
        %v4925 = vsel %vm1058, %v4552, 0
        %4927 = vmatpush.msra.mxu0 0.0
        %4928 = vmatpush.msra.mxu0 0.0
        %4929 = vmatpush.msra.mxu0 0.0
        %4930 = vmatpush.msra.mxu0 0.0
        %4931 = vmatpush.msra.mxu0 0.0
        %4932 = vmatpush.msra.mxu0 0.0
        %4933 = vmatpush.msra.mxu0 0.0
        %4934 = vmatpush.msra.mxu0 0.0
        %4935 = vmatpush.msra.mxu0 0.0
        %4936 = vmatpush.msra.mxu0 0.0
        %4937 = vmatpush.msra.mxu0 0.0
        %4938 = vmatpush.msra.mxu0 0.0
        %4939 = vmatpush.msra.mxu0 0.0
        %4940 = vmatpush.msra.mxu0 0.0
        %4941 = vmatpush.msra.mxu0 0.0
        %4942 = vmatpush.msra.mxu0 %v4922
        %4943 = vmatmul.f32.gmra.mxu0 %v4925
        %v4944 = vpop.f32.mrf.mxu0
        %v4945 = vadd.f32 0.0, %v4944
        %4946 = vdwg.mxu0
        %4947 = vrot.lane.b32.xlu0 %v1032, 112
        %v4948 = vpop.permute.xlu0 %4947
        %v4951 = vsel %vm1058, %v4567, 0
        %4953 = vmatpush.msra.mxu0 0.0
        %4954 = vmatpush.msra.mxu0 0.0
        %4955 = vmatpush.msra.mxu0 0.0
        %4956 = vmatpush.msra.mxu0 0.0
        %4957 = vmatpush.msra.mxu0 0.0
        %4958 = vmatpush.msra.mxu0 0.0
        %4959 = vmatpush.msra.mxu0 0.0
        %4960 = vmatpush.msra.mxu0 0.0
        %4961 = vmatpush.msra.mxu0 0.0
        %4962 = vmatpush.msra.mxu0 0.0
        %4963 = vmatpush.msra.mxu0 0.0
        %4964 = vmatpush.msra.mxu0 0.0
        %4965 = vmatpush.msra.mxu0 0.0
        %4966 = vmatpush.msra.mxu0 0.0
        %4967 = vmatpush.msra.mxu0 0.0
        %4968 = vmatpush.msra.mxu0 %v4948
        %4969 = vmatmul.f32.gmra.mxu0 %v4951
        %v4970 = vpop.f32.mrf.mxu0
        %v4971 = vadd.f32 0.0, %v4970
        %4972 = vdwg.mxu0
        %4973 = vrot.lane.b32.xlu0 %v1035, 112
        %v4974 = vpop.permute.xlu0 %4973
        %v4977 = vsel %vm1058, %v4582, 0
        %4979 = vmatpush.msra.mxu0 0.0
        %4980 = vmatpush.msra.mxu0 0.0
        %4981 = vmatpush.msra.mxu0 0.0
        %4982 = vmatpush.msra.mxu0 0.0
        %4983 = vmatpush.msra.mxu0 0.0
        %4984 = vmatpush.msra.mxu0 0.0
        %4985 = vmatpush.msra.mxu0 0.0
        %4986 = vmatpush.msra.mxu0 0.0
        %4987 = vmatpush.msra.mxu0 0.0
        %4988 = vmatpush.msra.mxu0 0.0
        %4989 = vmatpush.msra.mxu0 0.0
        %4990 = vmatpush.msra.mxu0 0.0
        %4991 = vmatpush.msra.mxu0 0.0
        %4992 = vmatpush.msra.mxu0 0.0
        %4993 = vmatpush.msra.mxu0 0.0
        %4994 = vmatpush.msra.mxu0 %v4974
        %4995 = vmatmul.f32.gmra.mxu0 %v4977
        %v4996 = vpop.f32.mrf.mxu0
        %v4997 = vadd.f32 0.0, %v4996
        %4998 = vdwg.mxu0
        %v4999 = vld [vmem:[#allocation10 + $0x10] sm:$0xff]
        %v5001 = vsel %vm1058, %v4607, 0
        %v5004 = vsel %vm1058, %v4633, 0
        %v5007 = vsel %vm1058, %v4659, 0
        %v5010 = vsel %vm1058, %v4685, 0
        %v5013 = vsel %vm1058, %v4711, 0
        %v5016 = vsel %vm1058, %v4737, 0
        %v5019 = vsel %vm1058, %v4763, 0
        %v5022 = vsel %vm1058, %v4789, 0
        %v5025 = vsel %vm1058, %v4815, 0
        %v5028 = vsel %vm1058, %v4841, 0
        %v5031 = vsel %vm1058, %v4867, 0
        %v5034 = vsel %vm1058, %v4893, 0
        %v5037 = vsel %vm1058, %v4919, 0
        %v5040 = vsel %vm1058, %v4945, 0
        %v5043 = vsel %vm1058, %v4971, 0
        %v5046 = vsel %vm1058, %v4997, 0
        %5048 = vmatpush.msra.mxu0 0.0
        %5049 = vmatpush.msra.mxu0 0.0
        %5050 = vmatpush.msra.mxu0 0.0
        %5051 = vmatpush.msra.mxu0 0.0
        %5052 = vmatpush.msra.mxu0 0.0
        %5053 = vmatpush.msra.mxu0 0.0
        %5054 = vmatpush.msra.mxu0 0.0
        %5055 = vmatpush.msra.mxu0 0.0
        %5056 = vmatpush.msra.mxu0 0.0
        %5057 = vmatpush.msra.mxu0 0.0
        %5058 = vmatpush.msra.mxu0 0.0
        %5059 = vmatpush.msra.mxu0 0.0
        %5060 = vmatpush.msra.mxu0 0.0
        %5061 = vmatpush.msra.mxu0 0.0
        %5062 = vmatpush.msra.mxu0 0.0
        %5063 = vmatpush.msra.mxu0 %v4999
        %5064 = vmatmul.f32.gmra.mxu0 %v5001
        %v5065 = vpop.f32.mrf.mxu0
        %v5066 = vadd.f32 0.0, %v5065
        %5067 = vmatmul.f32.gmra.mxu0 %v5004
        %v5068 = vpop.f32.mrf.mxu0
        %v5069 = vadd.f32 0.0, %v5068
        %5070 = vmatmul.f32.gmra.mxu0 %v5007
        %v5071 = vpop.f32.mrf.mxu0
        %v5072 = vadd.f32 0.0, %v5071
        %5073 = vmatmul.f32.gmra.mxu0 %v5010
        %v5074 = vpop.f32.mrf.mxu0
        %v5075 = vadd.f32 0.0, %v5074
        %5076 = vmatmul.f32.gmra.mxu0 %v5013
        %v5077 = vpop.f32.mrf.mxu0
        %v5078 = vadd.f32 0.0, %v5077
        %5079 = vmatmul.f32.gmra.mxu0 %v5016
        %v5080 = vpop.f32.mrf.mxu0
        %v5081 = vadd.f32 0.0, %v5080
        %5082 = vmatmul.f32.gmra.mxu0 %v5019
        %v5083 = vpop.f32.mrf.mxu0
        %v5084 = vadd.f32 0.0, %v5083
        %5085 = vmatmul.f32.gmra.mxu0 %v5022
        %v5086 = vpop.f32.mrf.mxu0
        %v5087 = vadd.f32 0.0, %v5086
        %5088 = vmatmul.f32.gmra.mxu0 %v5025
        %v5089 = vpop.f32.mrf.mxu0
        %v5090 = vadd.f32 0.0, %v5089
        %5091 = vmatmul.f32.gmra.mxu0 %v5028
        %v5092 = vpop.f32.mrf.mxu0
        %v5093 = vadd.f32 0.0, %v5092
        %5094 = vmatmul.f32.gmra.mxu0 %v5031
        %v5095 = vpop.f32.mrf.mxu0
        %v5096 = vadd.f32 0.0, %v5095
        %5097 = vmatmul.f32.gmra.mxu0 %v5034
        %v5098 = vpop.f32.mrf.mxu0
        %v5099 = vadd.f32 0.0, %v5098
        %5100 = vmatmul.f32.gmra.mxu0 %v5037
        %v5101 = vpop.f32.mrf.mxu0
        %v5102 = vadd.f32 0.0, %v5101
        %5103 = vmatmul.f32.gmra.mxu0 %v5040
        %v5104 = vpop.f32.mrf.mxu0
        %v5105 = vadd.f32 0.0, %v5104
        %5106 = vmatmul.f32.gmra.mxu0 %v5043
        %v5107 = vpop.f32.mrf.mxu0
        %v5108 = vadd.f32 0.0, %v5107
        %5109 = vmatmul.f32.gmra.mxu0 %v5046
        %v5110 = vpop.f32.mrf.mxu0
        %v5111 = vadd.f32 0.0, %v5110
        %5112 = vdwg.mxu0
        %v5113 = vadd.f32 %v3735, %v5066
        %v5114 = vadd.f32 %v3736, %v5069
        %v5115 = vadd.f32 %v3737, %v5072
        %v5116 = vadd.f32 %v3738, %v5075
        %v5117 = vadd.f32 %v3739, %v5078
        %v5118 = vadd.f32 %v3740, %v5081
        %v5119 = vadd.f32 %v3741, %v5084
        %v5120 = vadd.f32 %v3742, %v5087
        %v5121 = vadd.f32 %v3743, %v5090
        %v5122 = vadd.f32 %v3744, %v5093
        %v5123 = vadd.f32 %v3745, %v5096
        %v5124 = vadd.f32 %v3746, %v5099
        %v5125 = vadd.f32 %v3747, %v5102
        %v5126 = vadd.f32 %v3748, %v5105
        %v5127 = vadd.f32 %v3749, %v5108
        %v5128 = vadd.f32 %v3750, %v5111
        %5129 = vrot.lane.b32.xlu0 %v1037, 104
        %v5130 = vpop.permute.xlu0 %5129
        %5131 = vrot.lane.b32.xlu0 %v925, 104
        %v5132 = vpop.permute.xlu0 %5131
        %v5133 = vsel %vm1058, %v5130, 0
        %v5135 = vsel %vm1058, %v5132, 0
        %5137 = vmatpush.xpose.msra.mxu0 0.0
        %5138 = vmatpush.xpose.msra.mxu0 0.0
        %5139 = vmatpush.xpose.msra.mxu0 0.0
        %5140 = vmatpush.xpose.msra.mxu0 0.0
        %5141 = vmatpush.xpose.msra.mxu0 0.0
        %5142 = vmatpush.xpose.msra.mxu0 0.0
        %5143 = vmatpush.xpose.msra.mxu0 0.0
        %5144 = vmatpush.xpose.msra.mxu0 0.0
        %5145 = vmatpush.xpose.msra.mxu0 0.0
        %5146 = vmatpush.xpose.msra.mxu0 0.0
        %5147 = vmatpush.xpose.msra.mxu0 0.0
        %5148 = vmatpush.xpose.msra.mxu0 0.0
        %5149 = vmatpush.xpose.msra.mxu0 0.0
        %5150 = vmatpush.xpose.msra.mxu0 0.0
        %5151 = vmatpush.xpose.msra.mxu0 0.0
        %5152 = vmatpush.xpose.msra.mxu0 %v5135
        %5153 = vmatmul.f32.gmra.mxu0 %v5133
        %v5154 = vpop.f32.mrf.mxu0
        %v5155 = vadd.f32 0.0, %v5154
        %5156 = vdwg.mxu0
        %5157 = vrot.lane.b32.xlu0 %v1038, 104
        %v5158 = vpop.permute.xlu0 %5157
        %5159 = vrot.lane.b32.xlu0 %v928, 104
        %v5160 = vpop.permute.xlu0 %5159
        %v5161 = vsel %vm1058, %v5158, 0
        %v5163 = vsel %vm1058, %v5160, 0
        %5165 = vmatpush.xpose.msra.mxu0 0.0
        %5166 = vmatpush.xpose.msra.mxu0 0.0
        %5167 = vmatpush.xpose.msra.mxu0 0.0
        %5168 = vmatpush.xpose.msra.mxu0 0.0
        %5169 = vmatpush.xpose.msra.mxu0 0.0
        %5170 = vmatpush.xpose.msra.mxu0 0.0
        %5171 = vmatpush.xpose.msra.mxu0 0.0
        %5172 = vmatpush.xpose.msra.mxu0 0.0
        %5173 = vmatpush.xpose.msra.mxu0 0.0
        %5174 = vmatpush.xpose.msra.mxu0 0.0
        %5175 = vmatpush.xpose.msra.mxu0 0.0
        %5176 = vmatpush.xpose.msra.mxu0 0.0
        %5177 = vmatpush.xpose.msra.mxu0 0.0
        %5178 = vmatpush.xpose.msra.mxu0 0.0
        %5179 = vmatpush.xpose.msra.mxu0 0.0
        %5180 = vmatpush.xpose.msra.mxu0 %v5163
        %5181 = vmatmul.f32.gmra.mxu0 %v5161
        %v5182 = vpop.f32.mrf.mxu0
        %v5183 = vadd.f32 0.0, %v5182
        %5184 = vdwg.mxu0
        %5185 = vrot.lane.b32.xlu0 %v1039, 104
        %v5186 = vpop.permute.xlu0 %5185
        %5187 = vrot.lane.b32.xlu0 %v931, 104
        %v5188 = vpop.permute.xlu0 %5187
        %v5189 = vsel %vm1058, %v5186, 0
        %v5191 = vsel %vm1058, %v5188, 0
        %5193 = vmatpush.xpose.msra.mxu0 0.0
        %5194 = vmatpush.xpose.msra.mxu0 0.0
        %5195 = vmatpush.xpose.msra.mxu0 0.0
        %5196 = vmatpush.xpose.msra.mxu0 0.0
        %5197 = vmatpush.xpose.msra.mxu0 0.0
        %5198 = vmatpush.xpose.msra.mxu0 0.0
        %5199 = vmatpush.xpose.msra.mxu0 0.0
        %5200 = vmatpush.xpose.msra.mxu0 0.0
        %5201 = vmatpush.xpose.msra.mxu0 0.0
        %5202 = vmatpush.xpose.msra.mxu0 0.0
        %5203 = vmatpush.xpose.msra.mxu0 0.0
        %5204 = vmatpush.xpose.msra.mxu0 0.0
        %5205 = vmatpush.xpose.msra.mxu0 0.0
        %5206 = vmatpush.xpose.msra.mxu0 0.0
        %5207 = vmatpush.xpose.msra.mxu0 0.0
        %5208 = vmatpush.xpose.msra.mxu0 %v5191
        %5209 = vmatmul.f32.gmra.mxu0 %v5189
        %v5210 = vpop.f32.mrf.mxu0
        %v5211 = vadd.f32 0.0, %v5210
        %5212 = vdwg.mxu0
        %5213 = vrot.lane.b32.xlu0 %v1040, 104
        %v5214 = vpop.permute.xlu0 %5213
        %5215 = vrot.lane.b32.xlu0 %v934, 104
        %v5216 = vpop.permute.xlu0 %5215
        %v5217 = vsel %vm1058, %v5214, 0
        %v5219 = vsel %vm1058, %v5216, 0
        %5221 = vmatpush.xpose.msra.mxu0 0.0
        %5222 = vmatpush.xpose.msra.mxu0 0.0
        %5223 = vmatpush.xpose.msra.mxu0 0.0
        %5224 = vmatpush.xpose.msra.mxu0 0.0
        %5225 = vmatpush.xpose.msra.mxu0 0.0
        %5226 = vmatpush.xpose.msra.mxu0 0.0
        %5227 = vmatpush.xpose.msra.mxu0 0.0
        %5228 = vmatpush.xpose.msra.mxu0 0.0
        %5229 = vmatpush.xpose.msra.mxu0 0.0
        %5230 = vmatpush.xpose.msra.mxu0 0.0
        %5231 = vmatpush.xpose.msra.mxu0 0.0
        %5232 = vmatpush.xpose.msra.mxu0 0.0
        %5233 = vmatpush.xpose.msra.mxu0 0.0
        %5234 = vmatpush.xpose.msra.mxu0 0.0
        %5235 = vmatpush.xpose.msra.mxu0 0.0
        %5236 = vmatpush.xpose.msra.mxu0 %v5219
        %5237 = vmatmul.f32.gmra.mxu0 %v5217
        %v5238 = vpop.f32.mrf.mxu0
        %v5239 = vadd.f32 0.0, %v5238
        %5240 = vdwg.mxu0
        %5241 = vrot.lane.b32.xlu0 %v1041, 104
        %v5242 = vpop.permute.xlu0 %5241
        %5243 = vrot.lane.b32.xlu0 %v937, 104
        %v5244 = vpop.permute.xlu0 %5243
        %v5245 = vsel %vm1058, %v5242, 0
        %v5247 = vsel %vm1058, %v5244, 0
        %5249 = vmatpush.xpose.msra.mxu0 0.0
        %5250 = vmatpush.xpose.msra.mxu0 0.0
        %5251 = vmatpush.xpose.msra.mxu0 0.0
        %5252 = vmatpush.xpose.msra.mxu0 0.0
        %5253 = vmatpush.xpose.msra.mxu0 0.0
        %5254 = vmatpush.xpose.msra.mxu0 0.0
        %5255 = vmatpush.xpose.msra.mxu0 0.0
        %5256 = vmatpush.xpose.msra.mxu0 0.0
        %5257 = vmatpush.xpose.msra.mxu0 0.0
        %5258 = vmatpush.xpose.msra.mxu0 0.0
        %5259 = vmatpush.xpose.msra.mxu0 0.0
        %5260 = vmatpush.xpose.msra.mxu0 0.0
        %5261 = vmatpush.xpose.msra.mxu0 0.0
        %5262 = vmatpush.xpose.msra.mxu0 0.0
        %5263 = vmatpush.xpose.msra.mxu0 0.0
        %5264 = vmatpush.xpose.msra.mxu0 %v5247
        %5265 = vmatmul.f32.gmra.mxu0 %v5245
        %v5266 = vpop.f32.mrf.mxu0
        %v5267 = vadd.f32 0.0, %v5266
        %5268 = vdwg.mxu0
        %5269 = vrot.lane.b32.xlu0 %v1042, 104
        %v5270 = vpop.permute.xlu0 %5269
        %5271 = vrot.lane.b32.xlu0 %v940, 104
        %v5272 = vpop.permute.xlu0 %5271
        %v5273 = vsel %vm1058, %v5270, 0
        %v5275 = vsel %vm1058, %v5272, 0
        %5277 = vmatpush.xpose.msra.mxu0 0.0
        %5278 = vmatpush.xpose.msra.mxu0 0.0
        %5279 = vmatpush.xpose.msra.mxu0 0.0
        %5280 = vmatpush.xpose.msra.mxu0 0.0
        %5281 = vmatpush.xpose.msra.mxu0 0.0
        %5282 = vmatpush.xpose.msra.mxu0 0.0
        %5283 = vmatpush.xpose.msra.mxu0 0.0
        %5284 = vmatpush.xpose.msra.mxu0 0.0
        %5285 = vmatpush.xpose.msra.mxu0 0.0
        %5286 = vmatpush.xpose.msra.mxu0 0.0
        %5287 = vmatpush.xpose.msra.mxu0 0.0
        %5288 = vmatpush.xpose.msra.mxu0 0.0
        %5289 = vmatpush.xpose.msra.mxu0 0.0
        %5290 = vmatpush.xpose.msra.mxu0 0.0
        %5291 = vmatpush.xpose.msra.mxu0 0.0
        %5292 = vmatpush.xpose.msra.mxu0 %v5275
        %5293 = vmatmul.f32.gmra.mxu0 %v5273
        %v5294 = vpop.f32.mrf.mxu0
        %v5295 = vadd.f32 0.0, %v5294
        %5296 = vdwg.mxu0
        %5297 = vrot.lane.b32.xlu0 %v1043, 104
        %v5298 = vpop.permute.xlu0 %5297
        %5299 = vrot.lane.b32.xlu0 %v943, 104
        %v5300 = vpop.permute.xlu0 %5299
        %v5301 = vsel %vm1058, %v5298, 0
        %v5303 = vsel %vm1058, %v5300, 0
        %5305 = vmatpush.xpose.msra.mxu0 0.0
        %5306 = vmatpush.xpose.msra.mxu0 0.0
        %5307 = vmatpush.xpose.msra.mxu0 0.0
        %5308 = vmatpush.xpose.msra.mxu0 0.0
        %5309 = vmatpush.xpose.msra.mxu0 0.0
        %5310 = vmatpush.xpose.msra.mxu0 0.0
        %5311 = vmatpush.xpose.msra.mxu0 0.0
        %5312 = vmatpush.xpose.msra.mxu0 0.0
        %5313 = vmatpush.xpose.msra.mxu0 0.0
        %5314 = vmatpush.xpose.msra.mxu0 0.0
        %5315 = vmatpush.xpose.msra.mxu0 0.0
        %5316 = vmatpush.xpose.msra.mxu0 0.0
        %5317 = vmatpush.xpose.msra.mxu0 0.0
        %5318 = vmatpush.xpose.msra.mxu0 0.0
        %5319 = vmatpush.xpose.msra.mxu0 0.0
        %5320 = vmatpush.xpose.msra.mxu0 %v5303
        %5321 = vmatmul.f32.gmra.mxu0 %v5301
        %v5322 = vpop.f32.mrf.mxu0
        %v5323 = vadd.f32 0.0, %v5322
        %5324 = vdwg.mxu0
        %5325 = vrot.lane.b32.xlu0 %v1044, 104
        %v5326 = vpop.permute.xlu0 %5325
        %5327 = vrot.lane.b32.xlu0 %v946, 104
        %v5328 = vpop.permute.xlu0 %5327
        %v5329 = vsel %vm1058, %v5326, 0
        %v5331 = vsel %vm1058, %v5328, 0
        %5333 = vmatpush.xpose.msra.mxu0 0.0
        %5334 = vmatpush.xpose.msra.mxu0 0.0
        %5335 = vmatpush.xpose.msra.mxu0 0.0
        %5336 = vmatpush.xpose.msra.mxu0 0.0
        %5337 = vmatpush.xpose.msra.mxu0 0.0
        %5338 = vmatpush.xpose.msra.mxu0 0.0
        %5339 = vmatpush.xpose.msra.mxu0 0.0
        %5340 = vmatpush.xpose.msra.mxu0 0.0
        %5341 = vmatpush.xpose.msra.mxu0 0.0
        %5342 = vmatpush.xpose.msra.mxu0 0.0
        %5343 = vmatpush.xpose.msra.mxu0 0.0
        %5344 = vmatpush.xpose.msra.mxu0 0.0
        %5345 = vmatpush.xpose.msra.mxu0 0.0
        %5346 = vmatpush.xpose.msra.mxu0 0.0
        %5347 = vmatpush.xpose.msra.mxu0 0.0
        %5348 = vmatpush.xpose.msra.mxu0 %v5331
        %5349 = vmatmul.f32.gmra.mxu0 %v5329
        %v5350 = vpop.f32.mrf.mxu0
        %v5351 = vadd.f32 0.0, %v5350
        %5352 = vdwg.mxu0
        %5353 = vrot.lane.b32.xlu0 %v1045, 104
        %v5354 = vpop.permute.xlu0 %5353
        %5355 = vrot.lane.b32.xlu0 %v949, 104
        %v5356 = vpop.permute.xlu0 %5355
        %v5357 = vsel %vm1058, %v5354, 0
        %v5359 = vsel %vm1058, %v5356, 0
        %5361 = vmatpush.xpose.msra.mxu0 0.0
        %5362 = vmatpush.xpose.msra.mxu0 0.0
        %5363 = vmatpush.xpose.msra.mxu0 0.0
        %5364 = vmatpush.xpose.msra.mxu0 0.0
        %5365 = vmatpush.xpose.msra.mxu0 0.0
        %5366 = vmatpush.xpose.msra.mxu0 0.0
        %5367 = vmatpush.xpose.msra.mxu0 0.0
        %5368 = vmatpush.xpose.msra.mxu0 0.0
        %5369 = vmatpush.xpose.msra.mxu0 0.0
        %5370 = vmatpush.xpose.msra.mxu0 0.0
        %5371 = vmatpush.xpose.msra.mxu0 0.0
        %5372 = vmatpush.xpose.msra.mxu0 0.0
        %5373 = vmatpush.xpose.msra.mxu0 0.0
        %5374 = vmatpush.xpose.msra.mxu0 0.0
        %5375 = vmatpush.xpose.msra.mxu0 0.0
        %5376 = vmatpush.xpose.msra.mxu0 %v5359
        %5377 = vmatmul.f32.gmra.mxu0 %v5357
        %v5378 = vpop.f32.mrf.mxu0
        %v5379 = vadd.f32 0.0, %v5378
        %5380 = vdwg.mxu0
        %5381 = vrot.lane.b32.xlu0 %v1046, 104
        %v5382 = vpop.permute.xlu0 %5381
        %5383 = vrot.lane.b32.xlu0 %v952, 104
        %v5384 = vpop.permute.xlu0 %5383
        %v5385 = vsel %vm1058, %v5382, 0
        %v5387 = vsel %vm1058, %v5384, 0
        %5389 = vmatpush.xpose.msra.mxu0 0.0
        %5390 = vmatpush.xpose.msra.mxu0 0.0
        %5391 = vmatpush.xpose.msra.mxu0 0.0
        %5392 = vmatpush.xpose.msra.mxu0 0.0
        %5393 = vmatpush.xpose.msra.mxu0 0.0
        %5394 = vmatpush.xpose.msra.mxu0 0.0
        %5395 = vmatpush.xpose.msra.mxu0 0.0
        %5396 = vmatpush.xpose.msra.mxu0 0.0
        %5397 = vmatpush.xpose.msra.mxu0 0.0
        %5398 = vmatpush.xpose.msra.mxu0 0.0
        %5399 = vmatpush.xpose.msra.mxu0 0.0
        %5400 = vmatpush.xpose.msra.mxu0 0.0
        %5401 = vmatpush.xpose.msra.mxu0 0.0
        %5402 = vmatpush.xpose.msra.mxu0 0.0
        %5403 = vmatpush.xpose.msra.mxu0 0.0
        %5404 = vmatpush.xpose.msra.mxu0 %v5387
        %5405 = vmatmul.f32.gmra.mxu0 %v5385
        %v5406 = vpop.f32.mrf.mxu0
        %v5407 = vadd.f32 0.0, %v5406
        %5408 = vdwg.mxu0
        %5409 = vrot.lane.b32.xlu0 %v1047, 104
        %v5410 = vpop.permute.xlu0 %5409
        %5411 = vrot.lane.b32.xlu0 %v955, 104
        %v5412 = vpop.permute.xlu0 %5411
        %v5413 = vsel %vm1058, %v5410, 0
        %v5415 = vsel %vm1058, %v5412, 0
        %5417 = vmatpush.xpose.msra.mxu0 0.0
        %5418 = vmatpush.xpose.msra.mxu0 0.0
        %5419 = vmatpush.xpose.msra.mxu0 0.0
        %5420 = vmatpush.xpose.msra.mxu0 0.0
        %5421 = vmatpush.xpose.msra.mxu0 0.0
        %5422 = vmatpush.xpose.msra.mxu0 0.0
        %5423 = vmatpush.xpose.msra.mxu0 0.0
        %5424 = vmatpush.xpose.msra.mxu0 0.0
        %5425 = vmatpush.xpose.msra.mxu0 0.0
        %5426 = vmatpush.xpose.msra.mxu0 0.0
        %5427 = vmatpush.xpose.msra.mxu0 0.0
        %5428 = vmatpush.xpose.msra.mxu0 0.0
        %5429 = vmatpush.xpose.msra.mxu0 0.0
        %5430 = vmatpush.xpose.msra.mxu0 0.0
        %5431 = vmatpush.xpose.msra.mxu0 0.0
        %5432 = vmatpush.xpose.msra.mxu0 %v5415
        %5433 = vmatmul.f32.gmra.mxu0 %v5413
        %v5434 = vpop.f32.mrf.mxu0
        %v5435 = vadd.f32 0.0, %v5434
        %5436 = vdwg.mxu0
        %5437 = vrot.lane.b32.xlu0 %v1048, 104
        %v5438 = vpop.permute.xlu0 %5437
        %5439 = vrot.lane.b32.xlu0 %v958, 104
        %v5440 = vpop.permute.xlu0 %5439
        %v5441 = vsel %vm1058, %v5438, 0
        %v5443 = vsel %vm1058, %v5440, 0
        %5445 = vmatpush.xpose.msra.mxu0 0.0
        %5446 = vmatpush.xpose.msra.mxu0 0.0
        %5447 = vmatpush.xpose.msra.mxu0 0.0
        %5448 = vmatpush.xpose.msra.mxu0 0.0
        %5449 = vmatpush.xpose.msra.mxu0 0.0
        %5450 = vmatpush.xpose.msra.mxu0 0.0
        %5451 = vmatpush.xpose.msra.mxu0 0.0
        %5452 = vmatpush.xpose.msra.mxu0 0.0
        %5453 = vmatpush.xpose.msra.mxu0 0.0
        %5454 = vmatpush.xpose.msra.mxu0 0.0
        %5455 = vmatpush.xpose.msra.mxu0 0.0
        %5456 = vmatpush.xpose.msra.mxu0 0.0
        %5457 = vmatpush.xpose.msra.mxu0 0.0
        %5458 = vmatpush.xpose.msra.mxu0 0.0
        %5459 = vmatpush.xpose.msra.mxu0 0.0
        %5460 = vmatpush.xpose.msra.mxu0 %v5443
        %5461 = vmatmul.f32.gmra.mxu0 %v5441
        %v5462 = vpop.f32.mrf.mxu0
        %v5463 = vadd.f32 0.0, %v5462
        %5464 = vdwg.mxu0
        %5465 = vrot.lane.b32.xlu0 %v1049, 104
        %v5466 = vpop.permute.xlu0 %5465
        %5467 = vrot.lane.b32.xlu0 %v961, 104
        %v5468 = vpop.permute.xlu0 %5467
        %v5469 = vsel %vm1058, %v5466, 0
        %v5471 = vsel %vm1058, %v5468, 0
        %5473 = vmatpush.xpose.msra.mxu0 0.0
        %5474 = vmatpush.xpose.msra.mxu0 0.0
        %5475 = vmatpush.xpose.msra.mxu0 0.0
        %5476 = vmatpush.xpose.msra.mxu0 0.0
        %5477 = vmatpush.xpose.msra.mxu0 0.0
        %5478 = vmatpush.xpose.msra.mxu0 0.0
        %5479 = vmatpush.xpose.msra.mxu0 0.0
        %5480 = vmatpush.xpose.msra.mxu0 0.0
        %5481 = vmatpush.xpose.msra.mxu0 0.0
        %5482 = vmatpush.xpose.msra.mxu0 0.0
        %5483 = vmatpush.xpose.msra.mxu0 0.0
        %5484 = vmatpush.xpose.msra.mxu0 0.0
        %5485 = vmatpush.xpose.msra.mxu0 0.0
        %5486 = vmatpush.xpose.msra.mxu0 0.0
        %5487 = vmatpush.xpose.msra.mxu0 0.0
        %5488 = vmatpush.xpose.msra.mxu0 %v5471
        %5489 = vmatmul.f32.gmra.mxu0 %v5469
        %v5490 = vpop.f32.mrf.mxu0
        %v5491 = vadd.f32 0.0, %v5490
        %5492 = vdwg.mxu0
        %5493 = vrot.lane.b32.xlu0 %v1050, 104
        %v5494 = vpop.permute.xlu0 %5493
        %5495 = vrot.lane.b32.xlu0 %v964, 104
        %v5496 = vpop.permute.xlu0 %5495
        %v5497 = vsel %vm1058, %v5494, 0
        %v5499 = vsel %vm1058, %v5496, 0
        %5501 = vmatpush.xpose.msra.mxu0 0.0
        %5502 = vmatpush.xpose.msra.mxu0 0.0
        %5503 = vmatpush.xpose.msra.mxu0 0.0
        %5504 = vmatpush.xpose.msra.mxu0 0.0
        %5505 = vmatpush.xpose.msra.mxu0 0.0
        %5506 = vmatpush.xpose.msra.mxu0 0.0
        %5507 = vmatpush.xpose.msra.mxu0 0.0
        %5508 = vmatpush.xpose.msra.mxu0 0.0
        %5509 = vmatpush.xpose.msra.mxu0 0.0
        %5510 = vmatpush.xpose.msra.mxu0 0.0
        %5511 = vmatpush.xpose.msra.mxu0 0.0
        %5512 = vmatpush.xpose.msra.mxu0 0.0
        %5513 = vmatpush.xpose.msra.mxu0 0.0
        %5514 = vmatpush.xpose.msra.mxu0 0.0
        %5515 = vmatpush.xpose.msra.mxu0 0.0
        %5516 = vmatpush.xpose.msra.mxu0 %v5499
        %5517 = vmatmul.f32.gmra.mxu0 %v5497
        %v5518 = vpop.f32.mrf.mxu0
        %v5519 = vadd.f32 0.0, %v5518
        %5520 = vdwg.mxu0
        %5521 = vrot.lane.b32.xlu0 %v1051, 104
        %v5522 = vpop.permute.xlu0 %5521
        %5523 = vrot.lane.b32.xlu0 %v967, 104
        %v5524 = vpop.permute.xlu0 %5523
        %v5525 = vsel %vm1058, %v5522, 0
        %v5527 = vsel %vm1058, %v5524, 0
        %5529 = vmatpush.xpose.msra.mxu0 0.0
        %5530 = vmatpush.xpose.msra.mxu0 0.0
        %5531 = vmatpush.xpose.msra.mxu0 0.0
        %5532 = vmatpush.xpose.msra.mxu0 0.0
        %5533 = vmatpush.xpose.msra.mxu0 0.0
        %5534 = vmatpush.xpose.msra.mxu0 0.0
        %5535 = vmatpush.xpose.msra.mxu0 0.0
        %5536 = vmatpush.xpose.msra.mxu0 0.0
        %5537 = vmatpush.xpose.msra.mxu0 0.0
        %5538 = vmatpush.xpose.msra.mxu0 0.0
        %5539 = vmatpush.xpose.msra.mxu0 0.0
        %5540 = vmatpush.xpose.msra.mxu0 0.0
        %5541 = vmatpush.xpose.msra.mxu0 0.0
        %5542 = vmatpush.xpose.msra.mxu0 0.0
        %5543 = vmatpush.xpose.msra.mxu0 0.0
        %5544 = vmatpush.xpose.msra.mxu0 %v5527
        %5545 = vmatmul.f32.gmra.mxu0 %v5525
        %v5546 = vpop.f32.mrf.mxu0
        %v5547 = vadd.f32 0.0, %v5546
        %5548 = vdwg.mxu0
        %5549 = vrot.lane.b32.xlu0 %v1052, 104
        %v5550 = vpop.permute.xlu0 %5549
        %5551 = vrot.lane.b32.xlu0 %v970, 104
        %v5552 = vpop.permute.xlu0 %5551
        %v5553 = vsel %vm1058, %v5550, 0
        %v5555 = vsel %vm1058, %v5552, 0
        %5557 = vmatpush.xpose.msra.mxu0 0.0
        %5558 = vmatpush.xpose.msra.mxu0 0.0
        %5559 = vmatpush.xpose.msra.mxu0 0.0
        %5560 = vmatpush.xpose.msra.mxu0 0.0
        %5561 = vmatpush.xpose.msra.mxu0 0.0
        %5562 = vmatpush.xpose.msra.mxu0 0.0
        %5563 = vmatpush.xpose.msra.mxu0 0.0
        %5564 = vmatpush.xpose.msra.mxu0 0.0
        %5565 = vmatpush.xpose.msra.mxu0 0.0
        %5566 = vmatpush.xpose.msra.mxu0 0.0
        %5567 = vmatpush.xpose.msra.mxu0 0.0
        %5568 = vmatpush.xpose.msra.mxu0 0.0
        %5569 = vmatpush.xpose.msra.mxu0 0.0
        %5570 = vmatpush.xpose.msra.mxu0 0.0
        %5571 = vmatpush.xpose.msra.mxu0 0.0
        %5572 = vmatpush.xpose.msra.mxu0 %v5555
        %5573 = vmatmul.f32.gmra.mxu0 %v5553
        %v5574 = vpop.f32.mrf.mxu0
        %v5575 = vadd.f32 0.0, %v5574
        %5576 = vdwg.mxu0
        %v5577 = vsel %vm1058, %v5155, -inf
        %5578 = vmax.xlane.f32.xlu0 %v5577
        %v5579 = vpop.xlane.xlu0 %5578
        %v5580 = vsel %vm1058, %v5183, -inf
        %5581 = vmax.xlane.f32.xlu0 %v5580
        %v5582 = vpop.xlane.xlu0 %5581
        %v5583 = vsel %vm1058, %v5211, -inf
        %5584 = vmax.xlane.f32.xlu0 %v5583
        %v5585 = vpop.xlane.xlu0 %5584
        %v5586 = vsel %vm1058, %v5239, -inf
        %5587 = vmax.xlane.f32.xlu0 %v5586
        %v5588 = vpop.xlane.xlu0 %5587
        %v5589 = vsel %vm1058, %v5267, -inf
        %5590 = vmax.xlane.f32.xlu0 %v5589
        %v5591 = vpop.xlane.xlu0 %5590
        %v5592 = vsel %vm1058, %v5295, -inf
        %5593 = vmax.xlane.f32.xlu0 %v5592
        %v5594 = vpop.xlane.xlu0 %5593
        %v5595 = vsel %vm1058, %v5323, -inf
        %5596 = vmax.xlane.f32.xlu0 %v5595
        %v5597 = vpop.xlane.xlu0 %5596
        %v5598 = vsel %vm1058, %v5351, -inf
        %5599 = vmax.xlane.f32.xlu0 %v5598
        %v5600 = vpop.xlane.xlu0 %5599
        %v5601 = vsel %vm1058, %v5379, -inf
        %5602 = vmax.xlane.f32.xlu0 %v5601
        %v5603 = vpop.xlane.xlu0 %5602
        %v5604 = vsel %vm1058, %v5407, -inf
        %5605 = vmax.xlane.f32.xlu0 %v5604
        %v5606 = vpop.xlane.xlu0 %5605
        %v5607 = vsel %vm1058, %v5435, -inf
        %5608 = vmax.xlane.f32.xlu0 %v5607
        %v5609 = vpop.xlane.xlu0 %5608
        %v5610 = vsel %vm1058, %v5463, -inf
        %5611 = vmax.xlane.f32.xlu0 %v5610
        %v5612 = vpop.xlane.xlu0 %5611
        %v5613 = vsel %vm1058, %v5491, -inf
        %5614 = vmax.xlane.f32.xlu0 %v5613
        %v5615 = vpop.xlane.xlu0 %5614
        %v5616 = vsel %vm1058, %v5519, -inf
        %5617 = vmax.xlane.f32.xlu0 %v5616
        %v5618 = vpop.xlane.xlu0 %5617
        %v5619 = vsel %vm1058, %v5547, -inf
        %5620 = vmax.xlane.f32.xlu0 %v5619
        %v5621 = vpop.xlane.xlu0 %5620
        %v5622 = vsel %vm1058, %v5575, -inf
        %5623 = vmax.xlane.f32.xlu0 %v5622
        %v5624 = vpop.xlane.xlu0 %5623
        %v5625 = vsub.f32 %v5155, %v5579
        %v5626 = vsub.f32 %v5183, %v5582
        %v5627 = vsub.f32 %v5211, %v5585
        %v5628 = vsub.f32 %v5239, %v5588
        %v5629 = vsub.f32 %v5267, %v5591
        %v5630 = vsub.f32 %v5295, %v5594
        %v5631 = vsub.f32 %v5323, %v5597
        %v5632 = vsub.f32 %v5351, %v5600
        %v5633 = vsub.f32 %v5379, %v5603
        %v5634 = vsub.f32 %v5407, %v5606
        %v5635 = vsub.f32 %v5435, %v5609
        %v5636 = vsub.f32 %v5463, %v5612
        %v5637 = vsub.f32 %v5491, %v5615
        %v5638 = vsub.f32 %v5519, %v5618
        %v5639 = vsub.f32 %v5547, %v5621
        %v5640 = vsub.f32 %v5575, %v5624
        %v5641 = vmul.f32 %v5625, 1.442695
        %v5642 = vpow.pop %v5641
        %v5643 = vmul.f32 %v5626, 1.442695
        %v5644 = vpow.pop %v5643
        %v5645 = vmul.f32 %v5627, 1.442695
        %v5646 = vpow.pop %v5645
        %v5647 = vmul.f32 %v5628, 1.442695
        %v5648 = vpow.pop %v5647
        %v5649 = vmul.f32 %v5629, 1.442695
        %v5650 = vpow.pop %v5649
        %v5651 = vmul.f32 %v5630, 1.442695
        %v5652 = vpow.pop %v5651
        %v5653 = vmul.f32 %v5631, 1.442695
        %v5654 = vpow.pop %v5653
        %v5655 = vmul.f32 %v5632, 1.442695
        %v5656 = vpow.pop %v5655
        %v5657 = vmul.f32 %v5633, 1.442695
        %v5658 = vpow.pop %v5657
        %v5659 = vmul.f32 %v5634, 1.442695
        %v5660 = vpow.pop %v5659
        %v5661 = vmul.f32 %v5635, 1.442695
        %v5662 = vpow.pop %v5661
        %v5663 = vmul.f32 %v5636, 1.442695
        %v5664 = vpow.pop %v5663
        %v5665 = vmul.f32 %v5637, 1.442695
        %v5666 = vpow.pop %v5665
        %v5667 = vmul.f32 %v5638, 1.442695
        %v5668 = vpow.pop %v5667
        %v5669 = vmul.f32 %v5639, 1.442695
        %v5670 = vpow.pop %v5669
        %v5671 = vmul.f32 %v5640, 1.442695
        %v5672 = vpow.pop %v5671
        %v5673 = vsel %vm1058, %v5642, 0.0
        %5674 = vadd.xlane.f32.xlu0 %v5673
        %v5675 = vpop.xlane.xlu0 %5674
        %v5676 = vsel %vm1058, %v5644, 0.0
        %5677 = vadd.xlane.f32.xlu0 %v5676
        %v5678 = vpop.xlane.xlu0 %5677
        %v5679 = vsel %vm1058, %v5646, 0.0
        %5680 = vadd.xlane.f32.xlu0 %v5679
        %v5681 = vpop.xlane.xlu0 %5680
        %v5682 = vsel %vm1058, %v5648, 0.0
        %5683 = vadd.xlane.f32.xlu0 %v5682
        %v5684 = vpop.xlane.xlu0 %5683
        %v5685 = vsel %vm1058, %v5650, 0.0
        %5686 = vadd.xlane.f32.xlu0 %v5685
        %v5687 = vpop.xlane.xlu0 %5686
        %v5688 = vsel %vm1058, %v5652, 0.0
        %5689 = vadd.xlane.f32.xlu0 %v5688
        %v5690 = vpop.xlane.xlu0 %5689
        %v5691 = vsel %vm1058, %v5654, 0.0
        %5692 = vadd.xlane.f32.xlu0 %v5691
        %v5693 = vpop.xlane.xlu0 %5692
        %v5694 = vsel %vm1058, %v5656, 0.0
        %5695 = vadd.xlane.f32.xlu0 %v5694
        %v5696 = vpop.xlane.xlu0 %5695
        %v5697 = vsel %vm1058, %v5658, 0.0
        %5698 = vadd.xlane.f32.xlu0 %v5697
        %v5699 = vpop.xlane.xlu0 %5698
        %v5700 = vsel %vm1058, %v5660, 0.0
        %5701 = vadd.xlane.f32.xlu0 %v5700
        %v5702 = vpop.xlane.xlu0 %5701
        %v5703 = vsel %vm1058, %v5662, 0.0
        %5704 = vadd.xlane.f32.xlu0 %v5703
        %v5705 = vpop.xlane.xlu0 %5704
        %v5706 = vsel %vm1058, %v5664, 0.0
        %5707 = vadd.xlane.f32.xlu0 %v5706
        %v5708 = vpop.xlane.xlu0 %5707
        %v5709 = vsel %vm1058, %v5666, 0.0
        %5710 = vadd.xlane.f32.xlu0 %v5709
        %v5711 = vpop.xlane.xlu0 %5710
        %v5712 = vsel %vm1058, %v5668, 0.0
        %5713 = vadd.xlane.f32.xlu0 %v5712
        %v5714 = vpop.xlane.xlu0 %5713
        %v5715 = vsel %vm1058, %v5670, 0.0
        %5716 = vadd.xlane.f32.xlu0 %v5715
        %v5717 = vpop.xlane.xlu0 %5716
        %v5718 = vsel %vm1058, %v5672, 0.0
        %5719 = vadd.xlane.f32.xlu0 %v5718
        %v5720 = vpop.xlane.xlu0 %5719
        %v5721 = vrcp.pop %v5675
        %v5722 = vmul.f32 %v5675, %v5721
        %v5723 = vsub.f32 1.0, %v5722
        %v5724 = vmul.f32 %v5721, %v5723
        %v5725 = vadd.f32 %v5721, %v5724
        %vm5726 = vweird.f32 %v5675
        %vm5727 = vweird.f32 %v5721
        %vm5728 = vmor %vm5726, %vm5727
        %v5729 = vsel %vm5728, %v5721, %v5725
        %v5730 = vand.u32 2147483647, %v5675
        %vm5731 = vcmp.eq.f32.partialorder %v5730, 8.507059e+37
        %v5732 = vand.u32 %v5675, 2147483648
        %v5733 = vor.u32 1.1754944e-38, %v5732
        %v5734 = vsel %vm5731, %v5733, %v5729
        %v5735 = vmul.f32 %v5642, %v5734
        %v5736 = vrcp.pop %v5678
        %v5737 = vmul.f32 %v5678, %v5736
        %v5738 = vsub.f32 1.0, %v5737
        %v5739 = vmul.f32 %v5736, %v5738
        %v5740 = vadd.f32 %v5736, %v5739
        %vm5741 = vweird.f32 %v5678
        %vm5742 = vweird.f32 %v5736
        %vm5743 = vmor %vm5741, %vm5742
        %v5744 = vsel %vm5743, %v5736, %v5740
        %v5745 = vand.u32 2147483647, %v5678
        %vm5746 = vcmp.eq.f32.partialorder %v5745, 8.507059e+37
        %v5747 = vand.u32 %v5678, 2147483648
        %v5748 = vor.u32 1.1754944e-38, %v5747
        %v5749 = vsel %vm5746, %v5748, %v5744
        %v5750 = vmul.f32 %v5644, %v5749
        %v5751 = vrcp.pop %v5681
        %v5752 = vmul.f32 %v5681, %v5751
        %v5753 = vsub.f32 1.0, %v5752
        %v5754 = vmul.f32 %v5751, %v5753
        %v5755 = vadd.f32 %v5751, %v5754
        %vm5756 = vweird.f32 %v5681
        %vm5757 = vweird.f32 %v5751
        %vm5758 = vmor %vm5756, %vm5757
        %v5759 = vsel %vm5758, %v5751, %v5755
        %v5760 = vand.u32 2147483647, %v5681
        %vm5761 = vcmp.eq.f32.partialorder %v5760, 8.507059e+37
        %v5762 = vand.u32 %v5681, 2147483648
        %v5763 = vor.u32 1.1754944e-38, %v5762
        %v5764 = vsel %vm5761, %v5763, %v5759
        %v5765 = vmul.f32 %v5646, %v5764
        %v5766 = vrcp.pop %v5684
        %v5767 = vmul.f32 %v5684, %v5766
        %v5768 = vsub.f32 1.0, %v5767
        %v5769 = vmul.f32 %v5766, %v5768
        %v5770 = vadd.f32 %v5766, %v5769
        %vm5771 = vweird.f32 %v5684
        %vm5772 = vweird.f32 %v5766
        %vm5773 = vmor %vm5771, %vm5772
        %v5774 = vsel %vm5773, %v5766, %v5770
        %v5775 = vand.u32 2147483647, %v5684
        %vm5776 = vcmp.eq.f32.partialorder %v5775, 8.507059e+37
        %v5777 = vand.u32 %v5684, 2147483648
        %v5778 = vor.u32 1.1754944e-38, %v5777
        %v5779 = vsel %vm5776, %v5778, %v5774
        %v5780 = vmul.f32 %v5648, %v5779
        %v5781 = vrcp.pop %v5687
        %v5782 = vmul.f32 %v5687, %v5781
        %v5783 = vsub.f32 1.0, %v5782
        %v5784 = vmul.f32 %v5781, %v5783
        %v5785 = vadd.f32 %v5781, %v5784
        %vm5786 = vweird.f32 %v5687
        %vm5787 = vweird.f32 %v5781
        %vm5788 = vmor %vm5786, %vm5787
        %v5789 = vsel %vm5788, %v5781, %v5785
        %v5790 = vand.u32 2147483647, %v5687
        %vm5791 = vcmp.eq.f32.partialorder %v5790, 8.507059e+37
        %v5792 = vand.u32 %v5687, 2147483648
        %v5793 = vor.u32 1.1754944e-38, %v5792
        %v5794 = vsel %vm5791, %v5793, %v5789
        %v5795 = vmul.f32 %v5650, %v5794
        %v5796 = vrcp.pop %v5690
        %v5797 = vmul.f32 %v5690, %v5796
        %v5798 = vsub.f32 1.0, %v5797
        %v5799 = vmul.f32 %v5796, %v5798
        %v5800 = vadd.f32 %v5796, %v5799
        %vm5801 = vweird.f32 %v5690
        %vm5802 = vweird.f32 %v5796
        %vm5803 = vmor %vm5801, %vm5802
        %v5804 = vsel %vm5803, %v5796, %v5800
        %v5805 = vand.u32 2147483647, %v5690
        %vm5806 = vcmp.eq.f32.partialorder %v5805, 8.507059e+37
        %v5807 = vand.u32 %v5690, 2147483648
        %v5808 = vor.u32 1.1754944e-38, %v5807
        %v5809 = vsel %vm5806, %v5808, %v5804
        %v5810 = vmul.f32 %v5652, %v5809
        %v5811 = vrcp.pop %v5693
        %v5812 = vmul.f32 %v5693, %v5811
        %v5813 = vsub.f32 1.0, %v5812
        %v5814 = vmul.f32 %v5811, %v5813
        %v5815 = vadd.f32 %v5811, %v5814
        %vm5816 = vweird.f32 %v5693
        %vm5817 = vweird.f32 %v5811
        %vm5818 = vmor %vm5816, %vm5817
        %v5819 = vsel %vm5818, %v5811, %v5815
        %v5820 = vand.u32 2147483647, %v5693
        %vm5821 = vcmp.eq.f32.partialorder %v5820, 8.507059e+37
        %v5822 = vand.u32 %v5693, 2147483648
        %v5823 = vor.u32 1.1754944e-38, %v5822
        %v5824 = vsel %vm5821, %v5823, %v5819
        %v5825 = vmul.f32 %v5654, %v5824
        %v5826 = vrcp.pop %v5696
        %v5827 = vmul.f32 %v5696, %v5826
        %v5828 = vsub.f32 1.0, %v5827
        %v5829 = vmul.f32 %v5826, %v5828
        %v5830 = vadd.f32 %v5826, %v5829
        %vm5831 = vweird.f32 %v5696
        %vm5832 = vweird.f32 %v5826
        %vm5833 = vmor %vm5831, %vm5832
        %v5834 = vsel %vm5833, %v5826, %v5830
        %v5835 = vand.u32 2147483647, %v5696
        %vm5836 = vcmp.eq.f32.partialorder %v5835, 8.507059e+37
        %v5837 = vand.u32 %v5696, 2147483648
        %v5838 = vor.u32 1.1754944e-38, %v5837
        %v5839 = vsel %vm5836, %v5838, %v5834
        %v5840 = vmul.f32 %v5656, %v5839
        %v5841 = vrcp.pop %v5699
        %v5842 = vmul.f32 %v5699, %v5841
        %v5843 = vsub.f32 1.0, %v5842
        %v5844 = vmul.f32 %v5841, %v5843
        %v5845 = vadd.f32 %v5841, %v5844
        %vm5846 = vweird.f32 %v5699
        %vm5847 = vweird.f32 %v5841
        %vm5848 = vmor %vm5846, %vm5847
        %v5849 = vsel %vm5848, %v5841, %v5845
        %v5850 = vand.u32 2147483647, %v5699
        %vm5851 = vcmp.eq.f32.partialorder %v5850, 8.507059e+37
        %v5852 = vand.u32 %v5699, 2147483648
        %v5853 = vor.u32 1.1754944e-38, %v5852
        %v5854 = vsel %vm5851, %v5853, %v5849
        %v5855 = vmul.f32 %v5658, %v5854
        %v5856 = vrcp.pop %v5702
        %v5857 = vmul.f32 %v5702, %v5856
        %v5858 = vsub.f32 1.0, %v5857
        %v5859 = vmul.f32 %v5856, %v5858
        %v5860 = vadd.f32 %v5856, %v5859
        %vm5861 = vweird.f32 %v5702
        %vm5862 = vweird.f32 %v5856
        %vm5863 = vmor %vm5861, %vm5862
        %v5864 = vsel %vm5863, %v5856, %v5860
        %v5865 = vand.u32 2147483647, %v5702
        %vm5866 = vcmp.eq.f32.partialorder %v5865, 8.507059e+37
        %v5867 = vand.u32 %v5702, 2147483648
        %v5868 = vor.u32 1.1754944e-38, %v5867
        %v5869 = vsel %vm5866, %v5868, %v5864
        %v5870 = vmul.f32 %v5660, %v5869
        %v5871 = vrcp.pop %v5705
        %v5872 = vmul.f32 %v5705, %v5871
        %v5873 = vsub.f32 1.0, %v5872
        %v5874 = vmul.f32 %v5871, %v5873
        %v5875 = vadd.f32 %v5871, %v5874
        %vm5876 = vweird.f32 %v5705
        %vm5877 = vweird.f32 %v5871
        %vm5878 = vmor %vm5876, %vm5877
        %v5879 = vsel %vm5878, %v5871, %v5875
        %v5880 = vand.u32 2147483647, %v5705
        %vm5881 = vcmp.eq.f32.partialorder %v5880, 8.507059e+37
        %v5882 = vand.u32 %v5705, 2147483648
        %v5883 = vor.u32 1.1754944e-38, %v5882
        %v5884 = vsel %vm5881, %v5883, %v5879
        %v5885 = vmul.f32 %v5662, %v5884
        %v5886 = vrcp.pop %v5708
        %v5887 = vmul.f32 %v5708, %v5886
        %v5888 = vsub.f32 1.0, %v5887
        %v5889 = vmul.f32 %v5886, %v5888
        %v5890 = vadd.f32 %v5886, %v5889
        %vm5891 = vweird.f32 %v5708
        %vm5892 = vweird.f32 %v5886
        %vm5893 = vmor %vm5891, %vm5892
        %v5894 = vsel %vm5893, %v5886, %v5890
        %v5895 = vand.u32 2147483647, %v5708
        %vm5896 = vcmp.eq.f32.partialorder %v5895, 8.507059e+37
        %v5897 = vand.u32 %v5708, 2147483648
        %v5898 = vor.u32 1.1754944e-38, %v5897
        %v5899 = vsel %vm5896, %v5898, %v5894
        %v5900 = vmul.f32 %v5664, %v5899
        %v5901 = vrcp.pop %v5711
        %v5902 = vmul.f32 %v5711, %v5901
        %v5903 = vsub.f32 1.0, %v5902
        %v5904 = vmul.f32 %v5901, %v5903
        %v5905 = vadd.f32 %v5901, %v5904
        %vm5906 = vweird.f32 %v5711
        %vm5907 = vweird.f32 %v5901
        %vm5908 = vmor %vm5906, %vm5907
        %v5909 = vsel %vm5908, %v5901, %v5905
        %v5910 = vand.u32 2147483647, %v5711
        %vm5911 = vcmp.eq.f32.partialorder %v5910, 8.507059e+37
        %v5912 = vand.u32 %v5711, 2147483648
        %v5913 = vor.u32 1.1754944e-38, %v5912
        %v5914 = vsel %vm5911, %v5913, %v5909
        %v5915 = vmul.f32 %v5666, %v5914
        %v5916 = vrcp.pop %v5714
        %v5917 = vmul.f32 %v5714, %v5916
        %v5918 = vsub.f32 1.0, %v5917
        %v5919 = vmul.f32 %v5916, %v5918
        %v5920 = vadd.f32 %v5916, %v5919
        %vm5921 = vweird.f32 %v5714
        %vm5922 = vweird.f32 %v5916
        %vm5923 = vmor %vm5921, %vm5922
        %v5924 = vsel %vm5923, %v5916, %v5920
        %v5925 = vand.u32 2147483647, %v5714
        %vm5926 = vcmp.eq.f32.partialorder %v5925, 8.507059e+37
        %v5927 = vand.u32 %v5714, 2147483648
        %v5928 = vor.u32 1.1754944e-38, %v5927
        %v5929 = vsel %vm5926, %v5928, %v5924
        %v5930 = vmul.f32 %v5668, %v5929
        %v5931 = vrcp.pop %v5717
        %v5932 = vmul.f32 %v5717, %v5931
        %v5933 = vsub.f32 1.0, %v5932
        %v5934 = vmul.f32 %v5931, %v5933
        %v5935 = vadd.f32 %v5931, %v5934
        %vm5936 = vweird.f32 %v5717
        %vm5937 = vweird.f32 %v5931
        %vm5938 = vmor %vm5936, %vm5937
        %v5939 = vsel %vm5938, %v5931, %v5935
        %v5940 = vand.u32 2147483647, %v5717
        %vm5941 = vcmp.eq.f32.partialorder %v5940, 8.507059e+37
        %v5942 = vand.u32 %v5717, 2147483648
        %v5943 = vor.u32 1.1754944e-38, %v5942
        %v5944 = vsel %vm5941, %v5943, %v5939
        %v5945 = vmul.f32 %v5670, %v5944
        %v5946 = vrcp.pop %v5720
        %v5947 = vmul.f32 %v5720, %v5946
        %v5948 = vsub.f32 1.0, %v5947
        %v5949 = vmul.f32 %v5946, %v5948
        %v5950 = vadd.f32 %v5946, %v5949
        %vm5951 = vweird.f32 %v5720
        %vm5952 = vweird.f32 %v5946
        %vm5953 = vmor %vm5951, %vm5952
        %v5954 = vsel %vm5953, %v5946, %v5950
        %v5955 = vand.u32 2147483647, %v5720
        %vm5956 = vcmp.eq.f32.partialorder %v5955, 8.507059e+37
        %v5957 = vand.u32 %v5720, 2147483648
        %v5958 = vor.u32 1.1754944e-38, %v5957
        %v5959 = vsel %vm5956, %v5958, %v5954
        %v5960 = vmul.f32 %v5672, %v5959
        %5961 = vrot.lane.b32.xlu0 %v990, 104
        %v5962 = vpop.permute.xlu0 %5961
        %v5965 = vsel %vm1058, %v5735, 0
        %5967 = vmatpush.msra.mxu0 0.0
        %5968 = vmatpush.msra.mxu0 0.0
        %5969 = vmatpush.msra.mxu0 0.0
        %5970 = vmatpush.msra.mxu0 0.0
        %5971 = vmatpush.msra.mxu0 0.0
        %5972 = vmatpush.msra.mxu0 0.0
        %5973 = vmatpush.msra.mxu0 0.0
        %5974 = vmatpush.msra.mxu0 0.0
        %5975 = vmatpush.msra.mxu0 0.0
        %5976 = vmatpush.msra.mxu0 0.0
        %5977 = vmatpush.msra.mxu0 0.0
        %5978 = vmatpush.msra.mxu0 0.0
        %5979 = vmatpush.msra.mxu0 0.0
        %5980 = vmatpush.msra.mxu0 0.0
        %5981 = vmatpush.msra.mxu0 0.0
        %5982 = vmatpush.msra.mxu0 %v5962
        %5983 = vmatmul.f32.gmra.mxu0 %v5965
        %v5984 = vpop.f32.mrf.mxu0
        %v5985 = vadd.f32 0.0, %v5984
        %5986 = vdwg.mxu0
        %5987 = vrot.lane.b32.xlu0 %v993, 104
        %v5988 = vpop.permute.xlu0 %5987
        %v5991 = vsel %vm1058, %v5750, 0
        %5993 = vmatpush.msra.mxu0 0.0
        %5994 = vmatpush.msra.mxu0 0.0
        %5995 = vmatpush.msra.mxu0 0.0
        %5996 = vmatpush.msra.mxu0 0.0
        %5997 = vmatpush.msra.mxu0 0.0
        %5998 = vmatpush.msra.mxu0 0.0
        %5999 = vmatpush.msra.mxu0 0.0
        %6000 = vmatpush.msra.mxu0 0.0
        %6001 = vmatpush.msra.mxu0 0.0
        %6002 = vmatpush.msra.mxu0 0.0
        %6003 = vmatpush.msra.mxu0 0.0
        %6004 = vmatpush.msra.mxu0 0.0
        %6005 = vmatpush.msra.mxu0 0.0
        %6006 = vmatpush.msra.mxu0 0.0
        %6007 = vmatpush.msra.mxu0 0.0
        %6008 = vmatpush.msra.mxu0 %v5988
        %6009 = vmatmul.f32.gmra.mxu0 %v5991
        %v6010 = vpop.f32.mrf.mxu0
        %v6011 = vadd.f32 0.0, %v6010
        %6012 = vdwg.mxu0
        %6013 = vrot.lane.b32.xlu0 %v996, 104
        %v6014 = vpop.permute.xlu0 %6013
        %v6017 = vsel %vm1058, %v5765, 0
        %6019 = vmatpush.msra.mxu0 0.0
        %6020 = vmatpush.msra.mxu0 0.0
        %6021 = vmatpush.msra.mxu0 0.0
        %6022 = vmatpush.msra.mxu0 0.0
        %6023 = vmatpush.msra.mxu0 0.0
        %6024 = vmatpush.msra.mxu0 0.0
        %6025 = vmatpush.msra.mxu0 0.0
        %6026 = vmatpush.msra.mxu0 0.0
        %6027 = vmatpush.msra.mxu0 0.0
        %6028 = vmatpush.msra.mxu0 0.0
        %6029 = vmatpush.msra.mxu0 0.0
        %6030 = vmatpush.msra.mxu0 0.0
        %6031 = vmatpush.msra.mxu0 0.0
        %6032 = vmatpush.msra.mxu0 0.0
        %6033 = vmatpush.msra.mxu0 0.0
        %6034 = vmatpush.msra.mxu0 %v6014
        %6035 = vmatmul.f32.gmra.mxu0 %v6017
        %v6036 = vpop.f32.mrf.mxu0
        %v6037 = vadd.f32 0.0, %v6036
        %6038 = vdwg.mxu0
        %6039 = vrot.lane.b32.xlu0 %v999, 104
        %v6040 = vpop.permute.xlu0 %6039
        %v6043 = vsel %vm1058, %v5780, 0
        %6045 = vmatpush.msra.mxu0 0.0
        %6046 = vmatpush.msra.mxu0 0.0
        %6047 = vmatpush.msra.mxu0 0.0
        %6048 = vmatpush.msra.mxu0 0.0
        %6049 = vmatpush.msra.mxu0 0.0
        %6050 = vmatpush.msra.mxu0 0.0
        %6051 = vmatpush.msra.mxu0 0.0
        %6052 = vmatpush.msra.mxu0 0.0
        %6053 = vmatpush.msra.mxu0 0.0
        %6054 = vmatpush.msra.mxu0 0.0
        %6055 = vmatpush.msra.mxu0 0.0
        %6056 = vmatpush.msra.mxu0 0.0
        %6057 = vmatpush.msra.mxu0 0.0
        %6058 = vmatpush.msra.mxu0 0.0
        %6059 = vmatpush.msra.mxu0 0.0
        %6060 = vmatpush.msra.mxu0 %v6040
        %6061 = vmatmul.f32.gmra.mxu0 %v6043
        %v6062 = vpop.f32.mrf.mxu0
        %v6063 = vadd.f32 0.0, %v6062
        %6064 = vdwg.mxu0
        %6065 = vrot.lane.b32.xlu0 %v1002, 104
        %v6066 = vpop.permute.xlu0 %6065
        %v6069 = vsel %vm1058, %v5795, 0
        %6071 = vmatpush.msra.mxu0 0.0
        %6072 = vmatpush.msra.mxu0 0.0
        %6073 = vmatpush.msra.mxu0 0.0
        %6074 = vmatpush.msra.mxu0 0.0
        %6075 = vmatpush.msra.mxu0 0.0
        %6076 = vmatpush.msra.mxu0 0.0
        %6077 = vmatpush.msra.mxu0 0.0
        %6078 = vmatpush.msra.mxu0 0.0
        %6079 = vmatpush.msra.mxu0 0.0
        %6080 = vmatpush.msra.mxu0 0.0
        %6081 = vmatpush.msra.mxu0 0.0
        %6082 = vmatpush.msra.mxu0 0.0
        %6083 = vmatpush.msra.mxu0 0.0
        %6084 = vmatpush.msra.mxu0 0.0
        %6085 = vmatpush.msra.mxu0 0.0
        %6086 = vmatpush.msra.mxu0 %v6066
        %6087 = vmatmul.f32.gmra.mxu0 %v6069
        %v6088 = vpop.f32.mrf.mxu0
        %v6089 = vadd.f32 0.0, %v6088
        %6090 = vdwg.mxu0
        %6091 = vrot.lane.b32.xlu0 %v1005, 104
        %v6092 = vpop.permute.xlu0 %6091
        %v6095 = vsel %vm1058, %v5810, 0
        %6097 = vmatpush.msra.mxu0 0.0
        %6098 = vmatpush.msra.mxu0 0.0
        %6099 = vmatpush.msra.mxu0 0.0
        %6100 = vmatpush.msra.mxu0 0.0
        %6101 = vmatpush.msra.mxu0 0.0
        %6102 = vmatpush.msra.mxu0 0.0
        %6103 = vmatpush.msra.mxu0 0.0
        %6104 = vmatpush.msra.mxu0 0.0
        %6105 = vmatpush.msra.mxu0 0.0
        %6106 = vmatpush.msra.mxu0 0.0
        %6107 = vmatpush.msra.mxu0 0.0
        %6108 = vmatpush.msra.mxu0 0.0
        %6109 = vmatpush.msra.mxu0 0.0
        %6110 = vmatpush.msra.mxu0 0.0
        %6111 = vmatpush.msra.mxu0 0.0
        %6112 = vmatpush.msra.mxu0 %v6092
        %6113 = vmatmul.f32.gmra.mxu0 %v6095
        %v6114 = vpop.f32.mrf.mxu0
        %v6115 = vadd.f32 0.0, %v6114
        %6116 = vdwg.mxu0
        %6117 = vrot.lane.b32.xlu0 %v1008, 104
        %v6118 = vpop.permute.xlu0 %6117
        %v6121 = vsel %vm1058, %v5825, 0
        %6123 = vmatpush.msra.mxu0 0.0
        %6124 = vmatpush.msra.mxu0 0.0
        %6125 = vmatpush.msra.mxu0 0.0
        %6126 = vmatpush.msra.mxu0 0.0
        %6127 = vmatpush.msra.mxu0 0.0
        %6128 = vmatpush.msra.mxu0 0.0
        %6129 = vmatpush.msra.mxu0 0.0
        %6130 = vmatpush.msra.mxu0 0.0
        %6131 = vmatpush.msra.mxu0 0.0
        %6132 = vmatpush.msra.mxu0 0.0
        %6133 = vmatpush.msra.mxu0 0.0
        %6134 = vmatpush.msra.mxu0 0.0
        %6135 = vmatpush.msra.mxu0 0.0
        %6136 = vmatpush.msra.mxu0 0.0
        %6137 = vmatpush.msra.mxu0 0.0
        %6138 = vmatpush.msra.mxu0 %v6118
        %6139 = vmatmul.f32.gmra.mxu0 %v6121
        %v6140 = vpop.f32.mrf.mxu0
        %v6141 = vadd.f32 0.0, %v6140
        %6142 = vdwg.mxu0
        %6143 = vrot.lane.b32.xlu0 %v1011, 104
        %v6144 = vpop.permute.xlu0 %6143
        %v6147 = vsel %vm1058, %v5840, 0
        %6149 = vmatpush.msra.mxu0 0.0
        %6150 = vmatpush.msra.mxu0 0.0
        %6151 = vmatpush.msra.mxu0 0.0
        %6152 = vmatpush.msra.mxu0 0.0
        %6153 = vmatpush.msra.mxu0 0.0
        %6154 = vmatpush.msra.mxu0 0.0
        %6155 = vmatpush.msra.mxu0 0.0
        %6156 = vmatpush.msra.mxu0 0.0
        %6157 = vmatpush.msra.mxu0 0.0
        %6158 = vmatpush.msra.mxu0 0.0
        %6159 = vmatpush.msra.mxu0 0.0
        %6160 = vmatpush.msra.mxu0 0.0
        %6161 = vmatpush.msra.mxu0 0.0
        %6162 = vmatpush.msra.mxu0 0.0
        %6163 = vmatpush.msra.mxu0 0.0
        %6164 = vmatpush.msra.mxu0 %v6144
        %6165 = vmatmul.f32.gmra.mxu0 %v6147
        %v6166 = vpop.f32.mrf.mxu0
        %v6167 = vadd.f32 0.0, %v6166
        %6168 = vdwg.mxu0
        %6169 = vrot.lane.b32.xlu0 %v1014, 104
        %v6170 = vpop.permute.xlu0 %6169
        %v6173 = vsel %vm1058, %v5855, 0
        %6175 = vmatpush.msra.mxu0 0.0
        %6176 = vmatpush.msra.mxu0 0.0
        %6177 = vmatpush.msra.mxu0 0.0
        %6178 = vmatpush.msra.mxu0 0.0
        %6179 = vmatpush.msra.mxu0 0.0
        %6180 = vmatpush.msra.mxu0 0.0
        %6181 = vmatpush.msra.mxu0 0.0
        %6182 = vmatpush.msra.mxu0 0.0
        %6183 = vmatpush.msra.mxu0 0.0
        %6184 = vmatpush.msra.mxu0 0.0
        %6185 = vmatpush.msra.mxu0 0.0
        %6186 = vmatpush.msra.mxu0 0.0
        %6187 = vmatpush.msra.mxu0 0.0
        %6188 = vmatpush.msra.mxu0 0.0
        %6189 = vmatpush.msra.mxu0 0.0
        %6190 = vmatpush.msra.mxu0 %v6170
        %6191 = vmatmul.f32.gmra.mxu0 %v6173
        %v6192 = vpop.f32.mrf.mxu0
        %v6193 = vadd.f32 0.0, %v6192
        %6194 = vdwg.mxu0
        %6195 = vrot.lane.b32.xlu0 %v1017, 104
        %v6196 = vpop.permute.xlu0 %6195
        %v6199 = vsel %vm1058, %v5870, 0
        %6201 = vmatpush.msra.mxu0 0.0
        %6202 = vmatpush.msra.mxu0 0.0
        %6203 = vmatpush.msra.mxu0 0.0
        %6204 = vmatpush.msra.mxu0 0.0
        %6205 = vmatpush.msra.mxu0 0.0
        %6206 = vmatpush.msra.mxu0 0.0
        %6207 = vmatpush.msra.mxu0 0.0
        %6208 = vmatpush.msra.mxu0 0.0
        %6209 = vmatpush.msra.mxu0 0.0
        %6210 = vmatpush.msra.mxu0 0.0
        %6211 = vmatpush.msra.mxu0 0.0
        %6212 = vmatpush.msra.mxu0 0.0
        %6213 = vmatpush.msra.mxu0 0.0
        %6214 = vmatpush.msra.mxu0 0.0
        %6215 = vmatpush.msra.mxu0 0.0
        %6216 = vmatpush.msra.mxu0 %v6196
        %6217 = vmatmul.f32.gmra.mxu0 %v6199
        %v6218 = vpop.f32.mrf.mxu0
        %v6219 = vadd.f32 0.0, %v6218
        %6220 = vdwg.mxu0
        %6221 = vrot.lane.b32.xlu0 %v1020, 104
        %v6222 = vpop.permute.xlu0 %6221
        %v6225 = vsel %vm1058, %v5885, 0
        %6227 = vmatpush.msra.mxu0 0.0
        %6228 = vmatpush.msra.mxu0 0.0
        %6229 = vmatpush.msra.mxu0 0.0
        %6230 = vmatpush.msra.mxu0 0.0
        %6231 = vmatpush.msra.mxu0 0.0
        %6232 = vmatpush.msra.mxu0 0.0
        %6233 = vmatpush.msra.mxu0 0.0
        %6234 = vmatpush.msra.mxu0 0.0
        %6235 = vmatpush.msra.mxu0 0.0
        %6236 = vmatpush.msra.mxu0 0.0
        %6237 = vmatpush.msra.mxu0 0.0
        %6238 = vmatpush.msra.mxu0 0.0
        %6239 = vmatpush.msra.mxu0 0.0
        %6240 = vmatpush.msra.mxu0 0.0
        %6241 = vmatpush.msra.mxu0 0.0
        %6242 = vmatpush.msra.mxu0 %v6222
        %6243 = vmatmul.f32.gmra.mxu0 %v6225
        %v6244 = vpop.f32.mrf.mxu0
        %v6245 = vadd.f32 0.0, %v6244
        %6246 = vdwg.mxu0
        %6247 = vrot.lane.b32.xlu0 %v1023, 104
        %v6248 = vpop.permute.xlu0 %6247
        %v6251 = vsel %vm1058, %v5900, 0
        %6253 = vmatpush.msra.mxu0 0.0
        %6254 = vmatpush.msra.mxu0 0.0
        %6255 = vmatpush.msra.mxu0 0.0
        %6256 = vmatpush.msra.mxu0 0.0
        %6257 = vmatpush.msra.mxu0 0.0
        %6258 = vmatpush.msra.mxu0 0.0
        %6259 = vmatpush.msra.mxu0 0.0
        %6260 = vmatpush.msra.mxu0 0.0
        %6261 = vmatpush.msra.mxu0 0.0
        %6262 = vmatpush.msra.mxu0 0.0
        %6263 = vmatpush.msra.mxu0 0.0
        %6264 = vmatpush.msra.mxu0 0.0
        %6265 = vmatpush.msra.mxu0 0.0
        %6266 = vmatpush.msra.mxu0 0.0
        %6267 = vmatpush.msra.mxu0 0.0
        %6268 = vmatpush.msra.mxu0 %v6248
        %6269 = vmatmul.f32.gmra.mxu0 %v6251
        %v6270 = vpop.f32.mrf.mxu0
        %v6271 = vadd.f32 0.0, %v6270
        %6272 = vdwg.mxu0
        %6273 = vrot.lane.b32.xlu0 %v1026, 104
        %v6274 = vpop.permute.xlu0 %6273
        %v6277 = vsel %vm1058, %v5915, 0
        %6279 = vmatpush.msra.mxu0 0.0
        %6280 = vmatpush.msra.mxu0 0.0
        %6281 = vmatpush.msra.mxu0 0.0
        %6282 = vmatpush.msra.mxu0 0.0
        %6283 = vmatpush.msra.mxu0 0.0
        %6284 = vmatpush.msra.mxu0 0.0
        %6285 = vmatpush.msra.mxu0 0.0
        %6286 = vmatpush.msra.mxu0 0.0
        %6287 = vmatpush.msra.mxu0 0.0
        %6288 = vmatpush.msra.mxu0 0.0
        %6289 = vmatpush.msra.mxu0 0.0
        %6290 = vmatpush.msra.mxu0 0.0
        %6291 = vmatpush.msra.mxu0 0.0
        %6292 = vmatpush.msra.mxu0 0.0
        %6293 = vmatpush.msra.mxu0 0.0
        %6294 = vmatpush.msra.mxu0 %v6274
        %6295 = vmatmul.f32.gmra.mxu0 %v6277
        %v6296 = vpop.f32.mrf.mxu0
        %v6297 = vadd.f32 0.0, %v6296
        %6298 = vdwg.mxu0
        %6299 = vrot.lane.b32.xlu0 %v1029, 104
        %v6300 = vpop.permute.xlu0 %6299
        %v6303 = vsel %vm1058, %v5930, 0
        %6305 = vmatpush.msra.mxu0 0.0
        %6306 = vmatpush.msra.mxu0 0.0
        %6307 = vmatpush.msra.mxu0 0.0
        %6308 = vmatpush.msra.mxu0 0.0
        %6309 = vmatpush.msra.mxu0 0.0
        %6310 = vmatpush.msra.mxu0 0.0
        %6311 = vmatpush.msra.mxu0 0.0
        %6312 = vmatpush.msra.mxu0 0.0
        %6313 = vmatpush.msra.mxu0 0.0
        %6314 = vmatpush.msra.mxu0 0.0
        %6315 = vmatpush.msra.mxu0 0.0
        %6316 = vmatpush.msra.mxu0 0.0
        %6317 = vmatpush.msra.mxu0 0.0
        %6318 = vmatpush.msra.mxu0 0.0
        %6319 = vmatpush.msra.mxu0 0.0
        %6320 = vmatpush.msra.mxu0 %v6300
        %6321 = vmatmul.f32.gmra.mxu0 %v6303
        %v6322 = vpop.f32.mrf.mxu0
        %v6323 = vadd.f32 0.0, %v6322
        %6324 = vdwg.mxu0
        %6325 = vrot.lane.b32.xlu0 %v1032, 104
        %v6326 = vpop.permute.xlu0 %6325
        %v6329 = vsel %vm1058, %v5945, 0
        %6331 = vmatpush.msra.mxu0 0.0
        %6332 = vmatpush.msra.mxu0 0.0
        %6333 = vmatpush.msra.mxu0 0.0
        %6334 = vmatpush.msra.mxu0 0.0
        %6335 = vmatpush.msra.mxu0 0.0
        %6336 = vmatpush.msra.mxu0 0.0
        %6337 = vmatpush.msra.mxu0 0.0
        %6338 = vmatpush.msra.mxu0 0.0
        %6339 = vmatpush.msra.mxu0 0.0
        %6340 = vmatpush.msra.mxu0 0.0
        %6341 = vmatpush.msra.mxu0 0.0
        %6342 = vmatpush.msra.mxu0 0.0
        %6343 = vmatpush.msra.mxu0 0.0
        %6344 = vmatpush.msra.mxu0 0.0
        %6345 = vmatpush.msra.mxu0 0.0
        %6346 = vmatpush.msra.mxu0 %v6326
        %6347 = vmatmul.f32.gmra.mxu0 %v6329
        %v6348 = vpop.f32.mrf.mxu0
        %v6349 = vadd.f32 0.0, %v6348
        %6350 = vdwg.mxu0
        %6351 = vrot.lane.b32.xlu0 %v1035, 104
        %v6352 = vpop.permute.xlu0 %6351
        %v6355 = vsel %vm1058, %v5960, 0
        %6357 = vmatpush.msra.mxu0 0.0
        %6358 = vmatpush.msra.mxu0 0.0
        %6359 = vmatpush.msra.mxu0 0.0
        %6360 = vmatpush.msra.mxu0 0.0
        %6361 = vmatpush.msra.mxu0 0.0
        %6362 = vmatpush.msra.mxu0 0.0
        %6363 = vmatpush.msra.mxu0 0.0
        %6364 = vmatpush.msra.mxu0 0.0
        %6365 = vmatpush.msra.mxu0 0.0
        %6366 = vmatpush.msra.mxu0 0.0
        %6367 = vmatpush.msra.mxu0 0.0
        %6368 = vmatpush.msra.mxu0 0.0
        %6369 = vmatpush.msra.mxu0 0.0
        %6370 = vmatpush.msra.mxu0 0.0
        %6371 = vmatpush.msra.mxu0 0.0
        %6372 = vmatpush.msra.mxu0 %v6352
        %6373 = vmatmul.f32.gmra.mxu0 %v6355
        %v6374 = vpop.f32.mrf.mxu0
        %v6375 = vadd.f32 0.0, %v6374
        %6376 = vdwg.mxu0
        %v6377 = vld [vmem:[#allocation10 + $0x18] sm:$0xff]
        %v6379 = vsel %vm1058, %v5985, 0
        %v6382 = vsel %vm1058, %v6011, 0
        %v6385 = vsel %vm1058, %v6037, 0
        %v6388 = vsel %vm1058, %v6063, 0
        %v6391 = vsel %vm1058, %v6089, 0
        %v6394 = vsel %vm1058, %v6115, 0
        %v6397 = vsel %vm1058, %v6141, 0
        %v6400 = vsel %vm1058, %v6167, 0
        %v6403 = vsel %vm1058, %v6193, 0
        %v6406 = vsel %vm1058, %v6219, 0
        %v6409 = vsel %vm1058, %v6245, 0
        %v6412 = vsel %vm1058, %v6271, 0
        %v6415 = vsel %vm1058, %v6297, 0
        %v6418 = vsel %vm1058, %v6323, 0
        %v6421 = vsel %vm1058, %v6349, 0
        %v6424 = vsel %vm1058, %v6375, 0
        %6426 = vmatpush.msra.mxu0 0.0
        %6427 = vmatpush.msra.mxu0 0.0
        %6428 = vmatpush.msra.mxu0 0.0
        %6429 = vmatpush.msra.mxu0 0.0
        %6430 = vmatpush.msra.mxu0 0.0
        %6431 = vmatpush.msra.mxu0 0.0
        %6432 = vmatpush.msra.mxu0 0.0
        %6433 = vmatpush.msra.mxu0 0.0
        %6434 = vmatpush.msra.mxu0 0.0
        %6435 = vmatpush.msra.mxu0 0.0
        %6436 = vmatpush.msra.mxu0 0.0
        %6437 = vmatpush.msra.mxu0 0.0
        %6438 = vmatpush.msra.mxu0 0.0
        %6439 = vmatpush.msra.mxu0 0.0
        %6440 = vmatpush.msra.mxu0 0.0
        %6441 = vmatpush.msra.mxu0 %v6377
        %6442 = vmatmul.f32.gmra.mxu0 %v6379
        %v6443 = vpop.f32.mrf.mxu0
        %v6444 = vadd.f32 0.0, %v6443
        %6445 = vmatmul.f32.gmra.mxu0 %v6382
        %v6446 = vpop.f32.mrf.mxu0
        %v6447 = vadd.f32 0.0, %v6446
        %6448 = vmatmul.f32.gmra.mxu0 %v6385
        %v6449 = vpop.f32.mrf.mxu0
        %v6450 = vadd.f32 0.0, %v6449
        %6451 = vmatmul.f32.gmra.mxu0 %v6388
        %v6452 = vpop.f32.mrf.mxu0
        %v6453 = vadd.f32 0.0, %v6452
        %6454 = vmatmul.f32.gmra.mxu0 %v6391
        %v6455 = vpop.f32.mrf.mxu0
        %v6456 = vadd.f32 0.0, %v6455
        %6457 = vmatmul.f32.gmra.mxu0 %v6394
        %v6458 = vpop.f32.mrf.mxu0
        %v6459 = vadd.f32 0.0, %v6458
        %6460 = vmatmul.f32.gmra.mxu0 %v6397
        %v6461 = vpop.f32.mrf.mxu0
        %v6462 = vadd.f32 0.0, %v6461
        %6463 = vmatmul.f32.gmra.mxu0 %v6400
        %v6464 = vpop.f32.mrf.mxu0
        %v6465 = vadd.f32 0.0, %v6464
        %6466 = vmatmul.f32.gmra.mxu0 %v6403
        %v6467 = vpop.f32.mrf.mxu0
        %v6468 = vadd.f32 0.0, %v6467
        %6469 = vmatmul.f32.gmra.mxu0 %v6406
        %v6470 = vpop.f32.mrf.mxu0
        %v6471 = vadd.f32 0.0, %v6470
        %6472 = vmatmul.f32.gmra.mxu0 %v6409
        %v6473 = vpop.f32.mrf.mxu0
        %v6474 = vadd.f32 0.0, %v6473
        %6475 = vmatmul.f32.gmra.mxu0 %v6412
        %v6476 = vpop.f32.mrf.mxu0
        %v6477 = vadd.f32 0.0, %v6476
        %6478 = vmatmul.f32.gmra.mxu0 %v6415
        %v6479 = vpop.f32.mrf.mxu0
        %v6480 = vadd.f32 0.0, %v6479
        %6481 = vmatmul.f32.gmra.mxu0 %v6418
        %v6482 = vpop.f32.mrf.mxu0
        %v6483 = vadd.f32 0.0, %v6482
        %6484 = vmatmul.f32.gmra.mxu0 %v6421
        %v6485 = vpop.f32.mrf.mxu0
        %v6486 = vadd.f32 0.0, %v6485
        %6487 = vmatmul.f32.gmra.mxu0 %v6424
        %v6488 = vpop.f32.mrf.mxu0
        %v6489 = vadd.f32 0.0, %v6488
        %6490 = vdwg.mxu0
        %v6491 = vadd.f32 %v5113, %v6444
        %v6492 = vadd.f32 %v5114, %v6447
        %v6493 = vadd.f32 %v5115, %v6450
        %v6494 = vadd.f32 %v5116, %v6453
        %v6495 = vadd.f32 %v5117, %v6456
        %v6496 = vadd.f32 %v5118, %v6459
        %v6497 = vadd.f32 %v5119, %v6462
        %v6498 = vadd.f32 %v5120, %v6465
        %v6499 = vadd.f32 %v5121, %v6468
        %v6500 = vadd.f32 %v5122, %v6471
        %v6501 = vadd.f32 %v5123, %v6474
        %v6502 = vadd.f32 %v5124, %v6477
        %v6503 = vadd.f32 %v5125, %v6480
        %v6504 = vadd.f32 %v5126, %v6483
        %v6505 = vadd.f32 %v5127, %v6486
        %v6506 = vadd.f32 %v5128, %v6489
        %v6507 = vadd.f32 %v739, %v6491
        %v6508 = vadd.f32 %v742, %v6492
        %v6509 = vadd.f32 %v745, %v6493
        %v6510 = vadd.f32 %v748, %v6494
        %v6511 = vadd.f32 %v751, %v6495
        %v6512 = vadd.f32 %v754, %v6496
        %v6513 = vadd.f32 %v757, %v6497
        %v6514 = vadd.f32 %v760, %v6498
        %v6515 = vadd.f32 %v763, %v6499
        %v6516 = vadd.f32 %v766, %v6500
        %v6517 = vadd.f32 %v769, %v6501
        %v6518 = vadd.f32 %v772, %v6502
        %v6519 = vadd.f32 %v775, %v6503
        %v6520 = vadd.f32 %v778, %v6504
        %v6521 = vadd.f32 %v781, %v6505
        %v6522 = vadd.f32 %v784, %v6506
        %v6523 = vld [vmem:[%s7] sm:$0x1]
        %v6524 = vld [vmem:[%s8] sm:$0x1]
        %6525 = vadd.xlane.f32.xlu0 %v6507
        %v6526 = vpop.xlane.xlu0 %6525
        %6527 = vadd.xlane.f32.xlu0 %v6508
        %v6528 = vpop.xlane.xlu0 %6527
        %6529 = vadd.xlane.f32.xlu0 %v6509
        %v6530 = vpop.xlane.xlu0 %6529
        %6531 = vadd.xlane.f32.xlu0 %v6510
        %v6532 = vpop.xlane.xlu0 %6531
        %6533 = vadd.xlane.f32.xlu0 %v6511
        %v6534 = vpop.xlane.xlu0 %6533
        %6535 = vadd.xlane.f32.xlu0 %v6512
        %v6536 = vpop.xlane.xlu0 %6535
        %6537 = vadd.xlane.f32.xlu0 %v6513
        %v6538 = vpop.xlane.xlu0 %6537
        %6539 = vadd.xlane.f32.xlu0 %v6514
        %v6540 = vpop.xlane.xlu0 %6539
        %6541 = vadd.xlane.f32.xlu0 %v6515
        %v6542 = vpop.xlane.xlu0 %6541
        %6543 = vadd.xlane.f32.xlu0 %v6516
        %v6544 = vpop.xlane.xlu0 %6543
        %6545 = vadd.xlane.f32.xlu0 %v6517
        %v6546 = vpop.xlane.xlu0 %6545
        %6547 = vadd.xlane.f32.xlu0 %v6518
        %v6548 = vpop.xlane.xlu0 %6547
        %6549 = vadd.xlane.f32.xlu0 %v6519
        %v6550 = vpop.xlane.xlu0 %6549
        %6551 = vadd.xlane.f32.xlu0 %v6520
        %v6552 = vpop.xlane.xlu0 %6551
        %6553 = vadd.xlane.f32.xlu0 %v6521
        %v6554 = vpop.xlane.xlu0 %6553
        %6555 = vadd.xlane.f32.xlu0 %v6522
        %v6556 = vpop.xlane.xlu0 %6555
        %v6557 = vmul.f32 %v6526, 0.03125
        %v6558 = vmul.f32 %v6528, 0.03125
        %v6559 = vmul.f32 %v6530, 0.03125
        %v6560 = vmul.f32 %v6532, 0.03125
        %v6561 = vmul.f32 %v6534, 0.03125
        %v6562 = vmul.f32 %v6536, 0.03125
        %v6563 = vmul.f32 %v6538, 0.03125
        %v6564 = vmul.f32 %v6540, 0.03125
        %v6565 = vmul.f32 %v6542, 0.03125
        %v6566 = vmul.f32 %v6544, 0.03125
        %v6567 = vmul.f32 %v6546, 0.03125
        %v6568 = vmul.f32 %v6548, 0.03125
        %v6569 = vmul.f32 %v6550, 0.03125
        %v6570 = vmul.f32 %v6552, 0.03125
        %v6571 = vmul.f32 %v6554, 0.03125
        %v6572 = vmul.f32 %v6556, 0.03125
        %v6573 = vmul.f32 %v6507, %v6507
        %v6574 = vmul.f32 %v6508, %v6508
        %v6575 = vmul.f32 %v6509, %v6509
        %v6576 = vmul.f32 %v6510, %v6510
        %v6577 = vmul.f32 %v6511, %v6511
        %v6578 = vmul.f32 %v6512, %v6512
        %v6579 = vmul.f32 %v6513, %v6513
        %v6580 = vmul.f32 %v6514, %v6514
        %v6581 = vmul.f32 %v6515, %v6515
        %v6582 = vmul.f32 %v6516, %v6516
        %v6583 = vmul.f32 %v6517, %v6517
        %v6584 = vmul.f32 %v6518, %v6518
        %v6585 = vmul.f32 %v6519, %v6519
        %v6586 = vmul.f32 %v6520, %v6520
        %v6587 = vmul.f32 %v6521, %v6521
        %v6588 = vmul.f32 %v6522, %v6522
        %6589 = vadd.xlane.f32.xlu0 %v6573
        %v6590 = vpop.xlane.xlu0 %6589
        %6591 = vadd.xlane.f32.xlu0 %v6574
        %v6592 = vpop.xlane.xlu0 %6591
        %6593 = vadd.xlane.f32.xlu0 %v6575
        %v6594 = vpop.xlane.xlu0 %6593
        %6595 = vadd.xlane.f32.xlu0 %v6576
        %v6596 = vpop.xlane.xlu0 %6595
        %6597 = vadd.xlane.f32.xlu0 %v6577
        %v6598 = vpop.xlane.xlu0 %6597
        %6599 = vadd.xlane.f32.xlu0 %v6578
        %v6600 = vpop.xlane.xlu0 %6599
        %6601 = vadd.xlane.f32.xlu0 %v6579
        %v6602 = vpop.xlane.xlu0 %6601
        %6603 = vadd.xlane.f32.xlu0 %v6580
        %v6604 = vpop.xlane.xlu0 %6603
        %6605 = vadd.xlane.f32.xlu0 %v6581
        %v6606 = vpop.xlane.xlu0 %6605
        %6607 = vadd.xlane.f32.xlu0 %v6582
        %v6608 = vpop.xlane.xlu0 %6607
        %6609 = vadd.xlane.f32.xlu0 %v6583
        %v6610 = vpop.xlane.xlu0 %6609
        %6611 = vadd.xlane.f32.xlu0 %v6584
        %v6612 = vpop.xlane.xlu0 %6611
        %6613 = vadd.xlane.f32.xlu0 %v6585
        %v6614 = vpop.xlane.xlu0 %6613
        %6615 = vadd.xlane.f32.xlu0 %v6586
        %v6616 = vpop.xlane.xlu0 %6615
        %6617 = vadd.xlane.f32.xlu0 %v6587
        %v6618 = vpop.xlane.xlu0 %6617
        %6619 = vadd.xlane.f32.xlu0 %v6588
        %v6620 = vpop.xlane.xlu0 %6619
        %v6621 = vmul.f32 %v6590, 0.03125
        %v6622 = vmul.f32 %v6592, 0.03125
        %v6623 = vmul.f32 %v6594, 0.03125
        %v6624 = vmul.f32 %v6596, 0.03125
        %v6625 = vmul.f32 %v6598, 0.03125
        %v6626 = vmul.f32 %v6600, 0.03125
        %v6627 = vmul.f32 %v6602, 0.03125
        %v6628 = vmul.f32 %v6604, 0.03125
        %v6629 = vmul.f32 %v6606, 0.03125
        %v6630 = vmul.f32 %v6608, 0.03125
        %v6631 = vmul.f32 %v6610, 0.03125
        %v6632 = vmul.f32 %v6612, 0.03125
        %v6633 = vmul.f32 %v6614, 0.03125
        %v6634 = vmul.f32 %v6616, 0.03125
        %v6635 = vmul.f32 %v6618, 0.03125
        %v6636 = vmul.f32 %v6620, 0.03125
        %v6637 = vmul.f32 %v6557, %v6557
        %v6638 = vmul.f32 %v6558, %v6558
        %v6639 = vmul.f32 %v6559, %v6559
        %v6640 = vmul.f32 %v6560, %v6560
        %v6641 = vmul.f32 %v6561, %v6561
        %v6642 = vmul.f32 %v6562, %v6562
        %v6643 = vmul.f32 %v6563, %v6563
        %v6644 = vmul.f32 %v6564, %v6564
        %v6645 = vmul.f32 %v6565, %v6565
        %v6646 = vmul.f32 %v6566, %v6566
        %v6647 = vmul.f32 %v6567, %v6567
        %v6648 = vmul.f32 %v6568, %v6568
        %v6649 = vmul.f32 %v6569, %v6569
        %v6650 = vmul.f32 %v6570, %v6570
        %v6651 = vmul.f32 %v6571, %v6571
        %v6652 = vmul.f32 %v6572, %v6572
        %v6653 = vsub.f32 %v6621, %v6637
        %v6654 = vsub.f32 %v6622, %v6638
        %v6655 = vsub.f32 %v6623, %v6639
        %v6656 = vsub.f32 %v6624, %v6640
        %v6657 = vsub.f32 %v6625, %v6641
        %v6658 = vsub.f32 %v6626, %v6642
        %v6659 = vsub.f32 %v6627, %v6643
        %v6660 = vsub.f32 %v6628, %v6644
        %v6661 = vsub.f32 %v6629, %v6645
        %v6662 = vsub.f32 %v6630, %v6646
        %v6663 = vsub.f32 %v6631, %v6647
        %v6664 = vsub.f32 %v6632, %v6648
        %v6665 = vsub.f32 %v6633, %v6649
        %v6666 = vsub.f32 %v6634, %v6650
        %v6667 = vsub.f32 %v6635, %v6651
        %v6668 = vsub.f32 %v6636, %v6652
        %v6669 = vsub.f32 %v6507, %v6557
        %v6670 = vsub.f32 %v6508, %v6558
        %v6671 = vsub.f32 %v6509, %v6559
        %v6672 = vsub.f32 %v6510, %v6560
        %v6673 = vsub.f32 %v6511, %v6561
        %v6674 = vsub.f32 %v6512, %v6562
        %v6675 = vsub.f32 %v6513, %v6563
        %v6676 = vsub.f32 %v6514, %v6564
        %v6677 = vsub.f32 %v6515, %v6565
        %v6678 = vsub.f32 %v6516, %v6566
        %v6679 = vsub.f32 %v6517, %v6567
        %v6680 = vsub.f32 %v6518, %v6568
        %v6681 = vsub.f32 %v6519, %v6569
        %v6682 = vsub.f32 %v6520, %v6570
        %v6683 = vsub.f32 %v6521, %v6571
        %v6684 = vsub.f32 %v6522, %v6572
        %v6685 = vadd.f32 %v6653, 1e-05
        %v6686 = vadd.f32 %v6654, 1e-05
        %v6687 = vadd.f32 %v6655, 1e-05
        %v6688 = vadd.f32 %v6656, 1e-05
        %v6689 = vadd.f32 %v6657, 1e-05
        %v6690 = vadd.f32 %v6658, 1e-05
        %v6691 = vadd.f32 %v6659, 1e-05
        %v6692 = vadd.f32 %v6660, 1e-05
        %v6693 = vadd.f32 %v6661, 1e-05
        %v6694 = vadd.f32 %v6662, 1e-05
        %v6695 = vadd.f32 %v6663, 1e-05
        %v6696 = vadd.f32 %v6664, 1e-05
        %v6697 = vadd.f32 %v6665, 1e-05
        %v6698 = vadd.f32 %v6666, 1e-05
        %v6699 = vadd.f32 %v6667, 1e-05
        %v6700 = vadd.f32 %v6668, 1e-05
        %v6701 = vrsqrt.pop %v6685
        %v6702 = vmul.f32 %v6701, %v6685
        %v6703 = vmul.f32 %v6702, %v6701
        %v6704 = vmul.f32 0.5, %v6703
        %v6705 = vsub.f32 1.5, %v6704
        %v6706 = vmul.f32 %v6701, %v6705
        %vm6707 = vweird.f32 %v6685
        %vm6708 = vweird.f32 %v6701
        %vm6709 = vmor %vm6707, %vm6708
        %v6710 = vsel %vm6709, %v6701, %v6706
        %v6711 = vrsqrt.pop %v6686
        %v6712 = vmul.f32 %v6711, %v6686
        %v6713 = vmul.f32 %v6712, %v6711
        %v6714 = vmul.f32 0.5, %v6713
        %v6715 = vsub.f32 1.5, %v6714
        %v6716 = vmul.f32 %v6711, %v6715
        %vm6717 = vweird.f32 %v6686
        %vm6718 = vweird.f32 %v6711
        %vm6719 = vmor %vm6717, %vm6718
        %v6720 = vsel %vm6719, %v6711, %v6716
        %v6721 = vrsqrt.pop %v6687
        %v6722 = vmul.f32 %v6721, %v6687
        %v6723 = vmul.f32 %v6722, %v6721
        %v6724 = vmul.f32 0.5, %v6723
        %v6725 = vsub.f32 1.5, %v6724
        %v6726 = vmul.f32 %v6721, %v6725
        %vm6727 = vweird.f32 %v6687
        %vm6728 = vweird.f32 %v6721
        %vm6729 = vmor %vm6727, %vm6728
        %v6730 = vsel %vm6729, %v6721, %v6726
        %v6731 = vrsqrt.pop %v6688
        %v6732 = vmul.f32 %v6731, %v6688
        %v6733 = vmul.f32 %v6732, %v6731
        %v6734 = vmul.f32 0.5, %v6733
        %v6735 = vsub.f32 1.5, %v6734
        %v6736 = vmul.f32 %v6731, %v6735
        %vm6737 = vweird.f32 %v6688
        %vm6738 = vweird.f32 %v6731
        %vm6739 = vmor %vm6737, %vm6738
        %v6740 = vsel %vm6739, %v6731, %v6736
        %v6741 = vrsqrt.pop %v6689
        %v6742 = vmul.f32 %v6741, %v6689
        %v6743 = vmul.f32 %v6742, %v6741
        %v6744 = vmul.f32 0.5, %v6743
        %v6745 = vsub.f32 1.5, %v6744
        %v6746 = vmul.f32 %v6741, %v6745
        %vm6747 = vweird.f32 %v6689
        %vm6748 = vweird.f32 %v6741
        %vm6749 = vmor %vm6747, %vm6748
        %v6750 = vsel %vm6749, %v6741, %v6746
        %v6751 = vrsqrt.pop %v6690
        %v6752 = vmul.f32 %v6751, %v6690
        %v6753 = vmul.f32 %v6752, %v6751
        %v6754 = vmul.f32 0.5, %v6753
        %v6755 = vsub.f32 1.5, %v6754
        %v6756 = vmul.f32 %v6751, %v6755
        %vm6757 = vweird.f32 %v6690
        %vm6758 = vweird.f32 %v6751
        %vm6759 = vmor %vm6757, %vm6758
        %v6760 = vsel %vm6759, %v6751, %v6756
        %v6761 = vrsqrt.pop %v6691
        %v6762 = vmul.f32 %v6761, %v6691
        %v6763 = vmul.f32 %v6762, %v6761
        %v6764 = vmul.f32 0.5, %v6763
        %v6765 = vsub.f32 1.5, %v6764
        %v6766 = vmul.f32 %v6761, %v6765
        %vm6767 = vweird.f32 %v6691
        %vm6768 = vweird.f32 %v6761
        %vm6769 = vmor %vm6767, %vm6768
        %v6770 = vsel %vm6769, %v6761, %v6766
        %v6771 = vrsqrt.pop %v6692
        %v6772 = vmul.f32 %v6771, %v6692
        %v6773 = vmul.f32 %v6772, %v6771
        %v6774 = vmul.f32 0.5, %v6773
        %v6775 = vsub.f32 1.5, %v6774
        %v6776 = vmul.f32 %v6771, %v6775
        %vm6777 = vweird.f32 %v6692
        %vm6778 = vweird.f32 %v6771
        %vm6779 = vmor %vm6777, %vm6778
        %v6780 = vsel %vm6779, %v6771, %v6776
        %v6781 = vrsqrt.pop %v6693
        %v6782 = vmul.f32 %v6781, %v6693
        %v6783 = vmul.f32 %v6782, %v6781
        %v6784 = vmul.f32 0.5, %v6783
        %v6785 = vsub.f32 1.5, %v6784
        %v6786 = vmul.f32 %v6781, %v6785
        %vm6787 = vweird.f32 %v6693
        %vm6788 = vweird.f32 %v6781
        %vm6789 = vmor %vm6787, %vm6788
        %v6790 = vsel %vm6789, %v6781, %v6786
        %v6791 = vrsqrt.pop %v6694
        %v6792 = vmul.f32 %v6791, %v6694
        %v6793 = vmul.f32 %v6792, %v6791
        %v6794 = vmul.f32 0.5, %v6793
        %v6795 = vsub.f32 1.5, %v6794
        %v6796 = vmul.f32 %v6791, %v6795
        %vm6797 = vweird.f32 %v6694
        %vm6798 = vweird.f32 %v6791
        %vm6799 = vmor %vm6797, %vm6798
        %v6800 = vsel %vm6799, %v6791, %v6796
        %v6801 = vrsqrt.pop %v6695
        %v6802 = vmul.f32 %v6801, %v6695
        %v6803 = vmul.f32 %v6802, %v6801
        %v6804 = vmul.f32 0.5, %v6803
        %v6805 = vsub.f32 1.5, %v6804
        %v6806 = vmul.f32 %v6801, %v6805
        %vm6807 = vweird.f32 %v6695
        %vm6808 = vweird.f32 %v6801
        %vm6809 = vmor %vm6807, %vm6808
        %v6810 = vsel %vm6809, %v6801, %v6806
        %v6811 = vrsqrt.pop %v6696
        %v6812 = vmul.f32 %v6811, %v6696
        %v6813 = vmul.f32 %v6812, %v6811
        %v6814 = vmul.f32 0.5, %v6813
        %v6815 = vsub.f32 1.5, %v6814
        %v6816 = vmul.f32 %v6811, %v6815
        %vm6817 = vweird.f32 %v6696
        %vm6818 = vweird.f32 %v6811
        %vm6819 = vmor %vm6817, %vm6818
        %v6820 = vsel %vm6819, %v6811, %v6816
        %v6821 = vrsqrt.pop %v6697
        %v6822 = vmul.f32 %v6821, %v6697
        %v6823 = vmul.f32 %v6822, %v6821
        %v6824 = vmul.f32 0.5, %v6823
        %v6825 = vsub.f32 1.5, %v6824
        %v6826 = vmul.f32 %v6821, %v6825
        %vm6827 = vweird.f32 %v6697
        %vm6828 = vweird.f32 %v6821
        %vm6829 = vmor %vm6827, %vm6828
        %v6830 = vsel %vm6829, %v6821, %v6826
        %v6831 = vrsqrt.pop %v6698
        %v6832 = vmul.f32 %v6831, %v6698
        %v6833 = vmul.f32 %v6832, %v6831
        %v6834 = vmul.f32 0.5, %v6833
        %v6835 = vsub.f32 1.5, %v6834
        %v6836 = vmul.f32 %v6831, %v6835
        %vm6837 = vweird.f32 %v6698
        %vm6838 = vweird.f32 %v6831
        %vm6839 = vmor %vm6837, %vm6838
        %v6840 = vsel %vm6839, %v6831, %v6836
        %v6841 = vrsqrt.pop %v6699
        %v6842 = vmul.f32 %v6841, %v6699
        %v6843 = vmul.f32 %v6842, %v6841
        %v6844 = vmul.f32 0.5, %v6843
        %v6845 = vsub.f32 1.5, %v6844
        %v6846 = vmul.f32 %v6841, %v6845
        %vm6847 = vweird.f32 %v6699
        %vm6848 = vweird.f32 %v6841
        %vm6849 = vmor %vm6847, %vm6848
        %v6850 = vsel %vm6849, %v6841, %v6846
        %v6851 = vrsqrt.pop %v6700
        %v6852 = vmul.f32 %v6851, %v6700
        %v6853 = vmul.f32 %v6852, %v6851
        %v6854 = vmul.f32 0.5, %v6853
        %v6855 = vsub.f32 1.5, %v6854
        %v6856 = vmul.f32 %v6851, %v6855
        %vm6857 = vweird.f32 %v6700
        %vm6858 = vweird.f32 %v6851
        %vm6859 = vmor %vm6857, %vm6858
        %v6860 = vsel %vm6859, %v6851, %v6856
        %v6861 = vmul.f32 %v6669, %v6710
        %v6862 = vmul.f32 %v6670, %v6720
        %v6863 = vmul.f32 %v6671, %v6730
        %v6864 = vmul.f32 %v6672, %v6740
        %v6865 = vmul.f32 %v6673, %v6750
        %v6866 = vmul.f32 %v6674, %v6760
        %v6867 = vmul.f32 %v6675, %v6770
        %v6868 = vmul.f32 %v6676, %v6780
        %v6869 = vmul.f32 %v6677, %v6790
        %v6870 = vmul.f32 %v6678, %v6800
        %v6871 = vmul.f32 %v6679, %v6810
        %v6872 = vmul.f32 %v6680, %v6820
        %v6873 = vmul.f32 %v6681, %v6830
        %v6874 = vmul.f32 %v6682, %v6840
        %v6875 = vmul.f32 %v6683, %v6850
        %v6876 = vmul.f32 %v6684, %v6860
        %v6878 = vperm.slane %v6523, 0
        %v6880 = vmul.f32 %v6861, %v6878
        %v6881 = vmul.f32 %v6862, %v6878
        %v6882 = vmul.f32 %v6863, %v6878
        %v6883 = vmul.f32 %v6864, %v6878
        %v6884 = vmul.f32 %v6865, %v6878
        %v6885 = vmul.f32 %v6866, %v6878
        %v6886 = vmul.f32 %v6867, %v6878
        %v6887 = vmul.f32 %v6868, %v6878
        %v6888 = vmul.f32 %v6869, %v6878
        %v6889 = vmul.f32 %v6870, %v6878
        %v6890 = vmul.f32 %v6871, %v6878
        %v6891 = vmul.f32 %v6872, %v6878
        %v6892 = vmul.f32 %v6873, %v6878
        %v6893 = vmul.f32 %v6874, %v6878
        %v6894 = vmul.f32 %v6875, %v6878
        %v6895 = vmul.f32 %v6876, %v6878
        %v6897 = vperm.slane %v6524, 0
        %v6899 = vadd.f32 %v6880, %v6897
        %v6900 = vadd.f32 %v6881, %v6897
        %v6901 = vadd.f32 %v6882, %v6897
        %v6902 = vadd.f32 %v6883, %v6897
        %v6903 = vadd.f32 %v6884, %v6897
        %v6904 = vadd.f32 %v6885, %v6897
        %v6905 = vadd.f32 %v6886, %v6897
        %v6906 = vadd.f32 %v6887, %v6897
        %v6907 = vadd.f32 %v6888, %v6897
        %v6908 = vadd.f32 %v6889, %v6897
        %v6909 = vadd.f32 %v6890, %v6897
        %v6910 = vadd.f32 %v6891, %v6897
        %v6911 = vadd.f32 %v6892, %v6897
        %v6912 = vadd.f32 %v6893, %v6897
        %v6913 = vadd.f32 %v6894, %v6897
        %v6914 = vadd.f32 %v6895, %v6897
        %v6915 = vld [vmem:[#allocation11] sm:$0xff]
        %v6916 = vld [vmem:[#allocation11 + $0x8] sm:$0xff]
        %v6917 = vld [vmem:[#allocation11 + $0x10] sm:$0xff]
        %v6918 = vld [vmem:[#allocation11 + $0x18] sm:$0xff]
        %v6919 = vld [vmem:[#allocation11 + $0x20] sm:$0xff]
        %v6920 = vld [vmem:[#allocation11 + $0x28] sm:$0xff]
        %v6921 = vld [vmem:[#allocation11 + $0x30] sm:$0xff]
        %v6922 = vld [vmem:[#allocation11 + $0x38] sm:$0xff]
        %v6923 = vld [vmem:[#allocation11 + $0x40] sm:$0xff]
        %v6924 = vld [vmem:[#allocation11 + $0x48] sm:$0xff]
        %v6925 = vld [vmem:[#allocation11 + $0x50] sm:$0xff]
        %v6926 = vld [vmem:[#allocation11 + $0x58] sm:$0xff]
        %v6927 = vld [vmem:[#allocation11 + $0x60] sm:$0xff]
        %v6928 = vld [vmem:[#allocation11 + $0x68] sm:$0xff]
        %v6929 = vld [vmem:[#allocation11 + $0x70] sm:$0xff]
        %v6930 = vld [vmem:[#allocation11 + $0x78] sm:$0xff]
        %v6931 = vld [vmem:[%s10] sm:$0x1]
        %v6933 = vperm.slane %v6931, 0
        %6935 = vmatpush.msra.mxu0 %v6930
        %6936 = vmatpush.msra.mxu0 %v6929
        %6937 = vmatpush.msra.mxu0 %v6928
        %6938 = vmatpush.msra.mxu0 %v6927
        %6939 = vmatpush.msra.mxu0 %v6926
        %6940 = vmatpush.msra.mxu0 %v6925
        %6941 = vmatpush.msra.mxu0 %v6924
        %6942 = vmatpush.msra.mxu0 %v6923
        %6943 = vmatpush.msra.mxu0 %v6922
        %6944 = vmatpush.msra.mxu0 %v6921
        %6945 = vmatpush.msra.mxu0 %v6920
        %6946 = vmatpush.msra.mxu0 %v6919
        %6947 = vmatpush.msra.mxu0 %v6918
        %6948 = vmatpush.msra.mxu0 %v6917
        %6949 = vmatpush.msra.mxu0 %v6916
        %6950 = vmatpush.msra.mxu0 %v6915
        %6951 = vmatmul.f32.gmra.mxu0 %v6899
        %v6952 = vpop.f32.mrf.mxu0
        %v6953 = vadd.f32 %v6933, %v6952
        %6954 = vmatmul.f32.gmra.mxu0 %v6900
        %v6955 = vpop.f32.mrf.mxu0
        %v6956 = vadd.f32 %v6933, %v6955
        %6957 = vmatmul.f32.gmra.mxu0 %v6901
        %v6958 = vpop.f32.mrf.mxu0
        %v6959 = vadd.f32 %v6933, %v6958
        %6960 = vmatmul.f32.gmra.mxu0 %v6902
        %v6961 = vpop.f32.mrf.mxu0
        %v6962 = vadd.f32 %v6933, %v6961
        %6963 = vmatmul.f32.gmra.mxu0 %v6903
        %v6964 = vpop.f32.mrf.mxu0
        %v6965 = vadd.f32 %v6933, %v6964
        %6966 = vmatmul.f32.gmra.mxu0 %v6904
        %v6967 = vpop.f32.mrf.mxu0
        %v6968 = vadd.f32 %v6933, %v6967
        %6969 = vmatmul.f32.gmra.mxu0 %v6905
        %v6970 = vpop.f32.mrf.mxu0
        %v6971 = vadd.f32 %v6933, %v6970
        %6972 = vmatmul.f32.gmra.mxu0 %v6906
        %v6973 = vpop.f32.mrf.mxu0
        %v6974 = vadd.f32 %v6933, %v6973
        %6975 = vmatmul.f32.gmra.mxu0 %v6907
        %v6976 = vpop.f32.mrf.mxu0
        %v6977 = vadd.f32 %v6933, %v6976
        %6978 = vmatmul.f32.gmra.mxu0 %v6908
        %v6979 = vpop.f32.mrf.mxu0
        %v6980 = vadd.f32 %v6933, %v6979
        %6981 = vmatmul.f32.gmra.mxu0 %v6909
        %v6982 = vpop.f32.mrf.mxu0
        %v6983 = vadd.f32 %v6933, %v6982
        %6984 = vmatmul.f32.gmra.mxu0 %v6910
        %v6985 = vpop.f32.mrf.mxu0
        %v6986 = vadd.f32 %v6933, %v6985
        %6987 = vmatmul.f32.gmra.mxu0 %v6911
        %v6988 = vpop.f32.mrf.mxu0
        %v6989 = vadd.f32 %v6933, %v6988
        %6990 = vmatmul.f32.gmra.mxu0 %v6912
        %v6991 = vpop.f32.mrf.mxu0
        %v6992 = vadd.f32 %v6933, %v6991
        %6993 = vmatmul.f32.gmra.mxu0 %v6913
        %v6994 = vpop.f32.mrf.mxu0
        %v6995 = vadd.f32 %v6933, %v6994
        %6996 = vmatmul.f32.gmra.mxu0 %v6914
        %v6997 = vpop.f32.mrf.mxu0
        %v6998 = vadd.f32 %v6933, %v6997
        %6999 = vdwg.mxu0
        %v7000 = vmax.f32 %v6953, 0.0
        %v7001 = vmax.f32 %v6956, 0.0
        %v7002 = vmax.f32 %v6959, 0.0
        %v7003 = vmax.f32 %v6962, 0.0
        %v7004 = vmax.f32 %v6965, 0.0
        %v7005 = vmax.f32 %v6968, 0.0
        %v7006 = vmax.f32 %v6971, 0.0
        %v7007 = vmax.f32 %v6974, 0.0
        %v7008 = vmax.f32 %v6977, 0.0
        %v7009 = vmax.f32 %v6980, 0.0
        %v7010 = vmax.f32 %v6983, 0.0
        %v7011 = vmax.f32 %v6986, 0.0
        %v7012 = vmax.f32 %v6989, 0.0
        %v7013 = vmax.f32 %v6992, 0.0
        %v7014 = vmax.f32 %v6995, 0.0
        %v7015 = vmax.f32 %v6998, 0.0
        %v7016 = vld [vmem:[#allocation13] sm:$0xff]
        %v7017 = vld [vmem:[#allocation13 + $0x8] sm:$0xff]
        %v7018 = vld [vmem:[#allocation13 + $0x10] sm:$0xff]
        %v7019 = vld [vmem:[#allocation13 + $0x18] sm:$0xff]
        %v7020 = vld [vmem:[#allocation13 + $0x20] sm:$0xff]
        %v7021 = vld [vmem:[#allocation13 + $0x28] sm:$0xff]
        %v7022 = vld [vmem:[#allocation13 + $0x30] sm:$0xff]
        %v7023 = vld [vmem:[#allocation13 + $0x38] sm:$0xff]
        %v7024 = vld [vmem:[#allocation13 + $0x40] sm:$0xff]
        %v7025 = vld [vmem:[#allocation13 + $0x48] sm:$0xff]
        %v7026 = vld [vmem:[#allocation13 + $0x50] sm:$0xff]
        %v7027 = vld [vmem:[#allocation13 + $0x58] sm:$0xff]
        %v7028 = vld [vmem:[#allocation13 + $0x60] sm:$0xff]
        %v7029 = vld [vmem:[#allocation13 + $0x68] sm:$0xff]
        %v7030 = vld [vmem:[#allocation13 + $0x70] sm:$0xff]
        %v7031 = vld [vmem:[#allocation13 + $0x78] sm:$0xff]
        %v7032 = vld [vmem:[%s12] sm:$0x1]
        %v7034 = vperm.slane %v7032, 0
        %7036 = vmatpush.msra.mxu0 %v7031
        %7037 = vmatpush.msra.mxu0 %v7030
        %7038 = vmatpush.msra.mxu0 %v7029
        %7039 = vmatpush.msra.mxu0 %v7028
        %7040 = vmatpush.msra.mxu0 %v7027
        %7041 = vmatpush.msra.mxu0 %v7026
        %7042 = vmatpush.msra.mxu0 %v7025
        %7043 = vmatpush.msra.mxu0 %v7024
        %7044 = vmatpush.msra.mxu0 %v7023
        %7045 = vmatpush.msra.mxu0 %v7022
        %7046 = vmatpush.msra.mxu0 %v7021
        %7047 = vmatpush.msra.mxu0 %v7020
        %7048 = vmatpush.msra.mxu0 %v7019
        %7049 = vmatpush.msra.mxu0 %v7018
        %7050 = vmatpush.msra.mxu0 %v7017
        %7051 = vmatpush.msra.mxu0 %v7016
        %7052 = vmatmul.f32.gmra.mxu0 %v7000
        %v7053 = vpop.f32.mrf.mxu0
        %v7054 = vadd.f32 %v7034, %v7053
        %7055 = vmatmul.f32.gmra.mxu0 %v7001
        %v7056 = vpop.f32.mrf.mxu0
        %v7057 = vadd.f32 %v7034, %v7056
        %7058 = vmatmul.f32.gmra.mxu0 %v7002
        %v7059 = vpop.f32.mrf.mxu0
        %v7060 = vadd.f32 %v7034, %v7059
        %7061 = vmatmul.f32.gmra.mxu0 %v7003
        %v7062 = vpop.f32.mrf.mxu0
        %v7063 = vadd.f32 %v7034, %v7062
        %7064 = vmatmul.f32.gmra.mxu0 %v7004
        %v7065 = vpop.f32.mrf.mxu0
        %v7066 = vadd.f32 %v7034, %v7065
        %7067 = vmatmul.f32.gmra.mxu0 %v7005
        %v7068 = vpop.f32.mrf.mxu0
        %v7069 = vadd.f32 %v7034, %v7068
        %7070 = vmatmul.f32.gmra.mxu0 %v7006
        %v7071 = vpop.f32.mrf.mxu0
        %v7072 = vadd.f32 %v7034, %v7071
        %7073 = vmatmul.f32.gmra.mxu0 %v7007
        %v7074 = vpop.f32.mrf.mxu0
        %v7075 = vadd.f32 %v7034, %v7074
        %7076 = vmatmul.f32.gmra.mxu0 %v7008
        %v7077 = vpop.f32.mrf.mxu0
        %v7078 = vadd.f32 %v7034, %v7077
        %7079 = vmatmul.f32.gmra.mxu0 %v7009
        %v7080 = vpop.f32.mrf.mxu0
        %v7081 = vadd.f32 %v7034, %v7080
        %7082 = vmatmul.f32.gmra.mxu0 %v7010
        %v7083 = vpop.f32.mrf.mxu0
        %v7084 = vadd.f32 %v7034, %v7083
        %7085 = vmatmul.f32.gmra.mxu0 %v7011
        %v7086 = vpop.f32.mrf.mxu0
        %v7087 = vadd.f32 %v7034, %v7086
        %7088 = vmatmul.f32.gmra.mxu0 %v7012
        %v7089 = vpop.f32.mrf.mxu0
        %v7090 = vadd.f32 %v7034, %v7089
        %7091 = vmatmul.f32.gmra.mxu0 %v7013
        %v7092 = vpop.f32.mrf.mxu0
        %v7093 = vadd.f32 %v7034, %v7092
        %7094 = vmatmul.f32.gmra.mxu0 %v7014
        %v7095 = vpop.f32.mrf.mxu0
        %v7096 = vadd.f32 %v7034, %v7095
        %7097 = vmatmul.f32.gmra.mxu0 %v7015
        %v7098 = vpop.f32.mrf.mxu0
        %v7099 = vadd.f32 %v7034, %v7098
        %7100 = vdwg.mxu0
        %v7101 = vadd.f32 %v6899, %v7054
        %v7102 = vadd.f32 %v6900, %v7057
        %v7103 = vadd.f32 %v6901, %v7060
        %v7104 = vadd.f32 %v6902, %v7063
        %v7105 = vadd.f32 %v6903, %v7066
        %v7106 = vadd.f32 %v6904, %v7069
        %v7107 = vadd.f32 %v6905, %v7072
        %v7108 = vadd.f32 %v6906, %v7075
        %v7109 = vadd.f32 %v6907, %v7078
        %v7110 = vadd.f32 %v6908, %v7081
        %v7111 = vadd.f32 %v6909, %v7084
        %v7112 = vadd.f32 %v6910, %v7087
        %v7113 = vadd.f32 %v6911, %v7090
        %v7114 = vadd.f32 %v6912, %v7093
        %v7115 = vadd.f32 %v6913, %v7096
        %v7116 = vadd.f32 %v6914, %v7099
        %v7117 = vld [vmem:[%s13] sm:$0x1]
        %v7118 = vld [vmem:[%s14] sm:$0x1]
        %7119 = vadd.xlane.f32.xlu0 %v7101
        %v7120 = vpop.xlane.xlu0 %7119
        %7121 = vadd.xlane.f32.xlu0 %v7102
        %v7122 = vpop.xlane.xlu0 %7121
        %7123 = vadd.xlane.f32.xlu0 %v7103
        %v7124 = vpop.xlane.xlu0 %7123
        %7125 = vadd.xlane.f32.xlu0 %v7104
        %v7126 = vpop.xlane.xlu0 %7125
        %7127 = vadd.xlane.f32.xlu0 %v7105
        %v7128 = vpop.xlane.xlu0 %7127
        %7129 = vadd.xlane.f32.xlu0 %v7106
        %v7130 = vpop.xlane.xlu0 %7129
        %7131 = vadd.xlane.f32.xlu0 %v7107
        %v7132 = vpop.xlane.xlu0 %7131
        %7133 = vadd.xlane.f32.xlu0 %v7108
        %v7134 = vpop.xlane.xlu0 %7133
        %7135 = vadd.xlane.f32.xlu0 %v7109
        %v7136 = vpop.xlane.xlu0 %7135
        %7137 = vadd.xlane.f32.xlu0 %v7110
        %v7138 = vpop.xlane.xlu0 %7137
        %7139 = vadd.xlane.f32.xlu0 %v7111
        %v7140 = vpop.xlane.xlu0 %7139
        %7141 = vadd.xlane.f32.xlu0 %v7112
        %v7142 = vpop.xlane.xlu0 %7141
        %7143 = vadd.xlane.f32.xlu0 %v7113
        %v7144 = vpop.xlane.xlu0 %7143
        %7145 = vadd.xlane.f32.xlu0 %v7114
        %v7146 = vpop.xlane.xlu0 %7145
        %7147 = vadd.xlane.f32.xlu0 %v7115
        %v7148 = vpop.xlane.xlu0 %7147
        %7149 = vadd.xlane.f32.xlu0 %v7116
        %v7150 = vpop.xlane.xlu0 %7149
        %v7151 = vmul.f32 %v7120, 0.03125
        %v7152 = vmul.f32 %v7122, 0.03125
        %v7153 = vmul.f32 %v7124, 0.03125
        %v7154 = vmul.f32 %v7126, 0.03125
        %v7155 = vmul.f32 %v7128, 0.03125
        %v7156 = vmul.f32 %v7130, 0.03125
        %v7157 = vmul.f32 %v7132, 0.03125
        %v7158 = vmul.f32 %v7134, 0.03125
        %v7159 = vmul.f32 %v7136, 0.03125
        %v7160 = vmul.f32 %v7138, 0.03125
        %v7161 = vmul.f32 %v7140, 0.03125
        %v7162 = vmul.f32 %v7142, 0.03125
        %v7163 = vmul.f32 %v7144, 0.03125
        %v7164 = vmul.f32 %v7146, 0.03125
        %v7165 = vmul.f32 %v7148, 0.03125
        %v7166 = vmul.f32 %v7150, 0.03125
        %v7167 = vmul.f32 %v7101, %v7101
        %v7168 = vmul.f32 %v7102, %v7102
        %v7169 = vmul.f32 %v7103, %v7103
        %v7170 = vmul.f32 %v7104, %v7104
        %v7171 = vmul.f32 %v7105, %v7105
        %v7172 = vmul.f32 %v7106, %v7106
        %v7173 = vmul.f32 %v7107, %v7107
        %v7174 = vmul.f32 %v7108, %v7108
        %v7175 = vmul.f32 %v7109, %v7109
        %v7176 = vmul.f32 %v7110, %v7110
        %v7177 = vmul.f32 %v7111, %v7111
        %v7178 = vmul.f32 %v7112, %v7112
        %v7179 = vmul.f32 %v7113, %v7113
        %v7180 = vmul.f32 %v7114, %v7114
        %v7181 = vmul.f32 %v7115, %v7115
        %v7182 = vmul.f32 %v7116, %v7116
        %7183 = vadd.xlane.f32.xlu0 %v7167
        %v7184 = vpop.xlane.xlu0 %7183
        %7185 = vadd.xlane.f32.xlu0 %v7168
        %v7186 = vpop.xlane.xlu0 %7185
        %7187 = vadd.xlane.f32.xlu0 %v7169
        %v7188 = vpop.xlane.xlu0 %7187
        %7189 = vadd.xlane.f32.xlu0 %v7170
        %v7190 = vpop.xlane.xlu0 %7189
        %7191 = vadd.xlane.f32.xlu0 %v7171
        %v7192 = vpop.xlane.xlu0 %7191
        %7193 = vadd.xlane.f32.xlu0 %v7172
        %v7194 = vpop.xlane.xlu0 %7193
        %7195 = vadd.xlane.f32.xlu0 %v7173
        %v7196 = vpop.xlane.xlu0 %7195
        %7197 = vadd.xlane.f32.xlu0 %v7174
        %v7198 = vpop.xlane.xlu0 %7197
        %7199 = vadd.xlane.f32.xlu0 %v7175
        %v7200 = vpop.xlane.xlu0 %7199
        %7201 = vadd.xlane.f32.xlu0 %v7176
        %v7202 = vpop.xlane.xlu0 %7201
        %7203 = vadd.xlane.f32.xlu0 %v7177
        %v7204 = vpop.xlane.xlu0 %7203
        %7205 = vadd.xlane.f32.xlu0 %v7178
        %v7206 = vpop.xlane.xlu0 %7205
        %7207 = vadd.xlane.f32.xlu0 %v7179
        %v7208 = vpop.xlane.xlu0 %7207
        %7209 = vadd.xlane.f32.xlu0 %v7180
        %v7210 = vpop.xlane.xlu0 %7209
        %7211 = vadd.xlane.f32.xlu0 %v7181
        %v7212 = vpop.xlane.xlu0 %7211
        %7213 = vadd.xlane.f32.xlu0 %v7182
        %v7214 = vpop.xlane.xlu0 %7213
        %v7215 = vmul.f32 %v7184, 0.03125
        %v7216 = vmul.f32 %v7186, 0.03125
        %v7217 = vmul.f32 %v7188, 0.03125
        %v7218 = vmul.f32 %v7190, 0.03125
        %v7219 = vmul.f32 %v7192, 0.03125
        %v7220 = vmul.f32 %v7194, 0.03125
        %v7221 = vmul.f32 %v7196, 0.03125
        %v7222 = vmul.f32 %v7198, 0.03125
        %v7223 = vmul.f32 %v7200, 0.03125
        %v7224 = vmul.f32 %v7202, 0.03125
        %v7225 = vmul.f32 %v7204, 0.03125
        %v7226 = vmul.f32 %v7206, 0.03125
        %v7227 = vmul.f32 %v7208, 0.03125
        %v7228 = vmul.f32 %v7210, 0.03125
        %v7229 = vmul.f32 %v7212, 0.03125
        %v7230 = vmul.f32 %v7214, 0.03125
        %v7231 = vmul.f32 %v7151, %v7151
        %v7232 = vmul.f32 %v7152, %v7152
        %v7233 = vmul.f32 %v7153, %v7153
        %v7234 = vmul.f32 %v7154, %v7154
        %v7235 = vmul.f32 %v7155, %v7155
        %v7236 = vmul.f32 %v7156, %v7156
        %v7237 = vmul.f32 %v7157, %v7157
        %v7238 = vmul.f32 %v7158, %v7158
        %v7239 = vmul.f32 %v7159, %v7159
        %v7240 = vmul.f32 %v7160, %v7160
        %v7241 = vmul.f32 %v7161, %v7161
        %v7242 = vmul.f32 %v7162, %v7162
        %v7243 = vmul.f32 %v7163, %v7163
        %v7244 = vmul.f32 %v7164, %v7164
        %v7245 = vmul.f32 %v7165, %v7165
        %v7246 = vmul.f32 %v7166, %v7166
        %v7247 = vsub.f32 %v7215, %v7231
        %v7248 = vsub.f32 %v7216, %v7232
        %v7249 = vsub.f32 %v7217, %v7233
        %v7250 = vsub.f32 %v7218, %v7234
        %v7251 = vsub.f32 %v7219, %v7235
        %v7252 = vsub.f32 %v7220, %v7236
        %v7253 = vsub.f32 %v7221, %v7237
        %v7254 = vsub.f32 %v7222, %v7238
        %v7255 = vsub.f32 %v7223, %v7239
        %v7256 = vsub.f32 %v7224, %v7240
        %v7257 = vsub.f32 %v7225, %v7241
        %v7258 = vsub.f32 %v7226, %v7242
        %v7259 = vsub.f32 %v7227, %v7243
        %v7260 = vsub.f32 %v7228, %v7244
        %v7261 = vsub.f32 %v7229, %v7245
        %v7262 = vsub.f32 %v7230, %v7246
        %v7263 = vsub.f32 %v7101, %v7151
        %v7264 = vsub.f32 %v7102, %v7152
        %v7265 = vsub.f32 %v7103, %v7153
        %v7266 = vsub.f32 %v7104, %v7154
        %v7267 = vsub.f32 %v7105, %v7155
        %v7268 = vsub.f32 %v7106, %v7156
        %v7269 = vsub.f32 %v7107, %v7157
        %v7270 = vsub.f32 %v7108, %v7158
        %v7271 = vsub.f32 %v7109, %v7159
        %v7272 = vsub.f32 %v7110, %v7160
        %v7273 = vsub.f32 %v7111, %v7161
        %v7274 = vsub.f32 %v7112, %v7162
        %v7275 = vsub.f32 %v7113, %v7163
        %v7276 = vsub.f32 %v7114, %v7164
        %v7277 = vsub.f32 %v7115, %v7165
        %v7278 = vsub.f32 %v7116, %v7166
        %v7279 = vadd.f32 %v7247, 1e-05
        %v7280 = vadd.f32 %v7248, 1e-05
        %v7281 = vadd.f32 %v7249, 1e-05
        %v7282 = vadd.f32 %v7250, 1e-05
        %v7283 = vadd.f32 %v7251, 1e-05
        %v7284 = vadd.f32 %v7252, 1e-05
        %v7285 = vadd.f32 %v7253, 1e-05
        %v7286 = vadd.f32 %v7254, 1e-05
        %v7287 = vadd.f32 %v7255, 1e-05
        %v7288 = vadd.f32 %v7256, 1e-05
        %v7289 = vadd.f32 %v7257, 1e-05
        %v7290 = vadd.f32 %v7258, 1e-05
        %v7291 = vadd.f32 %v7259, 1e-05
        %v7292 = vadd.f32 %v7260, 1e-05
        %v7293 = vadd.f32 %v7261, 1e-05
        %v7294 = vadd.f32 %v7262, 1e-05
        %v7295 = vrsqrt.pop %v7279
        %v7296 = vmul.f32 %v7295, %v7279
        %v7297 = vmul.f32 %v7296, %v7295
        %v7298 = vmul.f32 0.5, %v7297
        %v7299 = vsub.f32 1.5, %v7298
        %v7300 = vmul.f32 %v7295, %v7299
        %vm7301 = vweird.f32 %v7279
        %vm7302 = vweird.f32 %v7295
        %vm7303 = vmor %vm7301, %vm7302
        %v7304 = vsel %vm7303, %v7295, %v7300
        %v7305 = vrsqrt.pop %v7280
        %v7306 = vmul.f32 %v7305, %v7280
        %v7307 = vmul.f32 %v7306, %v7305
        %v7308 = vmul.f32 0.5, %v7307
        %v7309 = vsub.f32 1.5, %v7308
        %v7310 = vmul.f32 %v7305, %v7309
        %vm7311 = vweird.f32 %v7280
        %vm7312 = vweird.f32 %v7305
        %vm7313 = vmor %vm7311, %vm7312
        %v7314 = vsel %vm7313, %v7305, %v7310
        %v7315 = vrsqrt.pop %v7281
        %v7316 = vmul.f32 %v7315, %v7281
        %v7317 = vmul.f32 %v7316, %v7315
        %v7318 = vmul.f32 0.5, %v7317
        %v7319 = vsub.f32 1.5, %v7318
        %v7320 = vmul.f32 %v7315, %v7319
        %vm7321 = vweird.f32 %v7281
        %vm7322 = vweird.f32 %v7315
        %vm7323 = vmor %vm7321, %vm7322
        %v7324 = vsel %vm7323, %v7315, %v7320
        %v7325 = vrsqrt.pop %v7282
        %v7326 = vmul.f32 %v7325, %v7282
        %v7327 = vmul.f32 %v7326, %v7325
        %v7328 = vmul.f32 0.5, %v7327
        %v7329 = vsub.f32 1.5, %v7328
        %v7330 = vmul.f32 %v7325, %v7329
        %vm7331 = vweird.f32 %v7282
        %vm7332 = vweird.f32 %v7325
        %vm7333 = vmor %vm7331, %vm7332
        %v7334 = vsel %vm7333, %v7325, %v7330
        %v7335 = vrsqrt.pop %v7283
        %v7336 = vmul.f32 %v7335, %v7283
        %v7337 = vmul.f32 %v7336, %v7335
        %v7338 = vmul.f32 0.5, %v7337
        %v7339 = vsub.f32 1.5, %v7338
        %v7340 = vmul.f32 %v7335, %v7339
        %vm7341 = vweird.f32 %v7283
        %vm7342 = vweird.f32 %v7335
        %vm7343 = vmor %vm7341, %vm7342
        %v7344 = vsel %vm7343, %v7335, %v7340
        %v7345 = vrsqrt.pop %v7284
        %v7346 = vmul.f32 %v7345, %v7284
        %v7347 = vmul.f32 %v7346, %v7345
        %v7348 = vmul.f32 0.5, %v7347
        %v7349 = vsub.f32 1.5, %v7348
        %v7350 = vmul.f32 %v7345, %v7349
        %vm7351 = vweird.f32 %v7284
        %vm7352 = vweird.f32 %v7345
        %vm7353 = vmor %vm7351, %vm7352
        %v7354 = vsel %vm7353, %v7345, %v7350
        %v7355 = vrsqrt.pop %v7285
        %v7356 = vmul.f32 %v7355, %v7285
        %v7357 = vmul.f32 %v7356, %v7355
        %v7358 = vmul.f32 0.5, %v7357
        %v7359 = vsub.f32 1.5, %v7358
        %v7360 = vmul.f32 %v7355, %v7359
        %vm7361 = vweird.f32 %v7285
        %vm7362 = vweird.f32 %v7355
        %vm7363 = vmor %vm7361, %vm7362
        %v7364 = vsel %vm7363, %v7355, %v7360
        %v7365 = vrsqrt.pop %v7286
        %v7366 = vmul.f32 %v7365, %v7286
        %v7367 = vmul.f32 %v7366, %v7365
        %v7368 = vmul.f32 0.5, %v7367
        %v7369 = vsub.f32 1.5, %v7368
        %v7370 = vmul.f32 %v7365, %v7369
        %vm7371 = vweird.f32 %v7286
        %vm7372 = vweird.f32 %v7365
        %vm7373 = vmor %vm7371, %vm7372
        %v7374 = vsel %vm7373, %v7365, %v7370
        %v7375 = vrsqrt.pop %v7287
        %v7376 = vmul.f32 %v7375, %v7287
        %v7377 = vmul.f32 %v7376, %v7375
        %v7378 = vmul.f32 0.5, %v7377
        %v7379 = vsub.f32 1.5, %v7378
        %v7380 = vmul.f32 %v7375, %v7379
        %vm7381 = vweird.f32 %v7287
        %vm7382 = vweird.f32 %v7375
        %vm7383 = vmor %vm7381, %vm7382
        %v7384 = vsel %vm7383, %v7375, %v7380
        %v7385 = vrsqrt.pop %v7288
        %v7386 = vmul.f32 %v7385, %v7288
        %v7387 = vmul.f32 %v7386, %v7385
        %v7388 = vmul.f32 0.5, %v7387
        %v7389 = vsub.f32 1.5, %v7388
        %v7390 = vmul.f32 %v7385, %v7389
        %vm7391 = vweird.f32 %v7288
        %vm7392 = vweird.f32 %v7385
        %vm7393 = vmor %vm7391, %vm7392
        %v7394 = vsel %vm7393, %v7385, %v7390
        %v7395 = vrsqrt.pop %v7289
        %v7396 = vmul.f32 %v7395, %v7289
        %v7397 = vmul.f32 %v7396, %v7395
        %v7398 = vmul.f32 0.5, %v7397
        %v7399 = vsub.f32 1.5, %v7398
        %v7400 = vmul.f32 %v7395, %v7399
        %vm7401 = vweird.f32 %v7289
        %vm7402 = vweird.f32 %v7395
        %vm7403 = vmor %vm7401, %vm7402
        %v7404 = vsel %vm7403, %v7395, %v7400
        %v7405 = vrsqrt.pop %v7290
        %v7406 = vmul.f32 %v7405, %v7290
        %v7407 = vmul.f32 %v7406, %v7405
        %v7408 = vmul.f32 0.5, %v7407
        %v7409 = vsub.f32 1.5, %v7408
        %v7410 = vmul.f32 %v7405, %v7409
        %vm7411 = vweird.f32 %v7290
        %vm7412 = vweird.f32 %v7405
        %vm7413 = vmor %vm7411, %vm7412
        %v7414 = vsel %vm7413, %v7405, %v7410
        %v7415 = vrsqrt.pop %v7291
        %v7416 = vmul.f32 %v7415, %v7291
        %v7417 = vmul.f32 %v7416, %v7415
        %v7418 = vmul.f32 0.5, %v7417
        %v7419 = vsub.f32 1.5, %v7418
        %v7420 = vmul.f32 %v7415, %v7419
        %vm7421 = vweird.f32 %v7291
        %vm7422 = vweird.f32 %v7415
        %vm7423 = vmor %vm7421, %vm7422
        %v7424 = vsel %vm7423, %v7415, %v7420
        %v7425 = vrsqrt.pop %v7292
        %v7426 = vmul.f32 %v7425, %v7292
        %v7427 = vmul.f32 %v7426, %v7425
        %v7428 = vmul.f32 0.5, %v7427
        %v7429 = vsub.f32 1.5, %v7428
        %v7430 = vmul.f32 %v7425, %v7429
        %vm7431 = vweird.f32 %v7292
        %vm7432 = vweird.f32 %v7425
        %vm7433 = vmor %vm7431, %vm7432
        %v7434 = vsel %vm7433, %v7425, %v7430
        %v7435 = vrsqrt.pop %v7293
        %v7436 = vmul.f32 %v7435, %v7293
        %v7437 = vmul.f32 %v7436, %v7435
        %v7438 = vmul.f32 0.5, %v7437
        %v7439 = vsub.f32 1.5, %v7438
        %v7440 = vmul.f32 %v7435, %v7439
        %vm7441 = vweird.f32 %v7293
        %vm7442 = vweird.f32 %v7435
        %vm7443 = vmor %vm7441, %vm7442
        %v7444 = vsel %vm7443, %v7435, %v7440
        %v7445 = vrsqrt.pop %v7294
        %v7446 = vmul.f32 %v7445, %v7294
        %v7447 = vmul.f32 %v7446, %v7445
        %v7448 = vmul.f32 0.5, %v7447
        %v7449 = vsub.f32 1.5, %v7448
        %v7450 = vmul.f32 %v7445, %v7449
        %vm7451 = vweird.f32 %v7294
        %vm7452 = vweird.f32 %v7445
        %vm7453 = vmor %vm7451, %vm7452
        %v7454 = vsel %vm7453, %v7445, %v7450
        %v7455 = vmul.f32 %v7263, %v7304
        %v7456 = vmul.f32 %v7264, %v7314
        %v7457 = vmul.f32 %v7265, %v7324
        %v7458 = vmul.f32 %v7266, %v7334
        %v7459 = vmul.f32 %v7267, %v7344
        %v7460 = vmul.f32 %v7268, %v7354
        %v7461 = vmul.f32 %v7269, %v7364
        %v7462 = vmul.f32 %v7270, %v7374
        %v7463 = vmul.f32 %v7271, %v7384
        %v7464 = vmul.f32 %v7272, %v7394
        %v7465 = vmul.f32 %v7273, %v7404
        %v7466 = vmul.f32 %v7274, %v7414
        %v7467 = vmul.f32 %v7275, %v7424
        %v7468 = vmul.f32 %v7276, %v7434
        %v7469 = vmul.f32 %v7277, %v7444
        %v7470 = vmul.f32 %v7278, %v7454
        %v7472 = vperm.slane %v7117, 0
        %v7474 = vmul.f32 %v7455, %v7472
        %v7475 = vmul.f32 %v7456, %v7472
        %v7476 = vmul.f32 %v7457, %v7472
        %v7477 = vmul.f32 %v7458, %v7472
        %v7478 = vmul.f32 %v7459, %v7472
        %v7479 = vmul.f32 %v7460, %v7472
        %v7480 = vmul.f32 %v7461, %v7472
        %v7481 = vmul.f32 %v7462, %v7472
        %v7482 = vmul.f32 %v7463, %v7472
        %v7483 = vmul.f32 %v7464, %v7472
        %v7484 = vmul.f32 %v7465, %v7472
        %v7485 = vmul.f32 %v7466, %v7472
        %v7486 = vmul.f32 %v7467, %v7472
        %v7487 = vmul.f32 %v7468, %v7472
        %v7488 = vmul.f32 %v7469, %v7472
        %v7489 = vmul.f32 %v7470, %v7472
        %v7491 = vperm.slane %v7118, 0
        %v7493 = vadd.f32 %v7474, %v7491
        %v7494 = vadd.f32 %v7475, %v7491
        %v7495 = vadd.f32 %v7476, %v7491
        %v7496 = vadd.f32 %v7477, %v7491
        %v7497 = vadd.f32 %v7478, %v7491
        %v7498 = vadd.f32 %v7479, %v7491
        %v7499 = vadd.f32 %v7480, %v7491
        %v7500 = vadd.f32 %v7481, %v7491
        %v7501 = vadd.f32 %v7482, %v7491
        %v7502 = vadd.f32 %v7483, %v7491
        %v7503 = vadd.f32 %v7484, %v7491
        %v7504 = vadd.f32 %v7485, %v7491
        %v7505 = vadd.f32 %v7486, %v7491
        %v7506 = vadd.f32 %v7487, %v7491
        %v7507 = vadd.f32 %v7488, %v7491
        %v7508 = vadd.f32 %v7489, %v7491
        %v7509 = vld [vmem:[#allocation14] sm:$0xff]
        %v7510 = vld [vmem:[#allocation14 + $0x8] sm:$0xff]
        %v7511 = vld [vmem:[#allocation14 + $0x10] sm:$0xff]
        %v7512 = vld [vmem:[#allocation14 + $0x18] sm:$0xff]
        %v7513 = vld [vmem:[#allocation14 + $0x20] sm:$0xff]
        %v7514 = vld [vmem:[#allocation14 + $0x28] sm:$0xff]
        %v7515 = vld [vmem:[#allocation14 + $0x30] sm:$0xff]
        %v7516 = vld [vmem:[#allocation14 + $0x38] sm:$0xff]
        %v7517 = vld [vmem:[#allocation14 + $0x40] sm:$0xff]
        %v7518 = vld [vmem:[#allocation14 + $0x48] sm:$0xff]
        %v7519 = vld [vmem:[#allocation14 + $0x50] sm:$0xff]
        %v7520 = vld [vmem:[#allocation14 + $0x58] sm:$0xff]
        %v7521 = vld [vmem:[#allocation14 + $0x60] sm:$0xff]
        %v7522 = vld [vmem:[#allocation14 + $0x68] sm:$0xff]
        %v7523 = vld [vmem:[#allocation14 + $0x70] sm:$0xff]
        %v7524 = vld [vmem:[#allocation14 + $0x78] sm:$0xff]
        %v7525 = vld [vmem:[%s16] sm:$0x1]
        %v7527 = vperm.slane %v7525, 0
        %7529 = vmatpush.msra.mxu0 %v7524
        %7530 = vmatpush.msra.mxu0 %v7523
        %7531 = vmatpush.msra.mxu0 %v7522
        %7532 = vmatpush.msra.mxu0 %v7521
        %7533 = vmatpush.msra.mxu0 %v7520
        %7534 = vmatpush.msra.mxu0 %v7519
        %7535 = vmatpush.msra.mxu0 %v7518
        %7536 = vmatpush.msra.mxu0 %v7517
        %7537 = vmatpush.msra.mxu0 %v7516
        %7538 = vmatpush.msra.mxu0 %v7515
        %7539 = vmatpush.msra.mxu0 %v7514
        %7540 = vmatpush.msra.mxu0 %v7513
        %7541 = vmatpush.msra.mxu0 %v7512
        %7542 = vmatpush.msra.mxu0 %v7511
        %7543 = vmatpush.msra.mxu0 %v7510
        %7544 = vmatpush.msra.mxu0 %v7509
        %7545 = vmatmul.f32.gmra.mxu0 %v7493
        %v7546 = vpop.f32.mrf.mxu0
        %v7547 = vadd.f32 %v7527, %v7546
        %7548 = vmatmul.f32.gmra.mxu0 %v7494
        %v7549 = vpop.f32.mrf.mxu0
        %v7550 = vadd.f32 %v7527, %v7549
        %7551 = vmatmul.f32.gmra.mxu0 %v7495
        %v7552 = vpop.f32.mrf.mxu0
        %v7553 = vadd.f32 %v7527, %v7552
        %7554 = vmatmul.f32.gmra.mxu0 %v7496
        %v7555 = vpop.f32.mrf.mxu0
        %v7556 = vadd.f32 %v7527, %v7555
        %7557 = vmatmul.f32.gmra.mxu0 %v7497
        %v7558 = vpop.f32.mrf.mxu0
        %v7559 = vadd.f32 %v7527, %v7558
        %7560 = vmatmul.f32.gmra.mxu0 %v7498
        %v7561 = vpop.f32.mrf.mxu0
        %v7562 = vadd.f32 %v7527, %v7561
        %7563 = vmatmul.f32.gmra.mxu0 %v7499
        %v7564 = vpop.f32.mrf.mxu0
        %v7565 = vadd.f32 %v7527, %v7564
        %7566 = vmatmul.f32.gmra.mxu0 %v7500
        %v7567 = vpop.f32.mrf.mxu0
        %v7568 = vadd.f32 %v7527, %v7567
        %7569 = vmatmul.f32.gmra.mxu0 %v7501
        %v7570 = vpop.f32.mrf.mxu0
        %v7571 = vadd.f32 %v7527, %v7570
        %7572 = vmatmul.f32.gmra.mxu0 %v7502
        %v7573 = vpop.f32.mrf.mxu0
        %v7574 = vadd.f32 %v7527, %v7573
        %7575 = vmatmul.f32.gmra.mxu0 %v7503
        %v7576 = vpop.f32.mrf.mxu0
        %v7577 = vadd.f32 %v7527, %v7576
        %7578 = vmatmul.f32.gmra.mxu0 %v7504
        %v7579 = vpop.f32.mrf.mxu0
        %v7580 = vadd.f32 %v7527, %v7579
        %7581 = vmatmul.f32.gmra.mxu0 %v7505
        %v7582 = vpop.f32.mrf.mxu0
        %v7583 = vadd.f32 %v7527, %v7582
        %7584 = vmatmul.f32.gmra.mxu0 %v7506
        %v7585 = vpop.f32.mrf.mxu0
        %v7586 = vadd.f32 %v7527, %v7585
        %7587 = vmatmul.f32.gmra.mxu0 %v7507
        %v7588 = vpop.f32.mrf.mxu0
        %v7589 = vadd.f32 %v7527, %v7588
        %7590 = vmatmul.f32.gmra.mxu0 %v7508
        %v7591 = vpop.f32.mrf.mxu0
        %v7592 = vadd.f32 %v7527, %v7591
        %7593 = vdwg.mxu0
        %7594 = vst [vmem:[%s682] sm:$0xff] %v7547
        %7595 = vst [vmem:[%s682 + $0x8] sm:$0xff] %v7550
        %7596 = vst [vmem:[%s682 + $0x10] sm:$0xff] %v7553
        %7597 = vst [vmem:[%s682 + $0x18] sm:$0xff] %v7556
        %7598 = vst [vmem:[%s682 + $0x20] sm:$0xff] %v7559
        %7599 = vst [vmem:[%s682 + $0x28] sm:$0xff] %v7562
        %7600 = vst [vmem:[%s682 + $0x30] sm:$0xff] %v7565
        %7601 = vst [vmem:[%s682 + $0x38] sm:$0xff] %v7568
        %7602 = vst [vmem:[%s682 + $0x40] sm:$0xff] %v7571
        %7603 = vst [vmem:[%s682 + $0x48] sm:$0xff] %v7574
        %7604 = vst [vmem:[%s682 + $0x50] sm:$0xff] %v7577
        %7605 = vst [vmem:[%s682 + $0x58] sm:$0xff] %v7580
        %7606 = vst [vmem:[%s682 + $0x60] sm:$0xff] %v7583
        %7607 = vst [vmem:[%s682 + $0x68] sm:$0xff] %v7586
        %7608 = vst [vmem:[%s682 + $0x70] sm:$0xff] %v7589
        %7609 = vst [vmem:[%s682 + $0x78] sm:$0xff] %v7592
        %s7610 = sand.u32 %s408, 1
        %s7611 = scalar_lea.sflag [#allocation4], %s7610
        %s7612 = sand.u32 %s408, 1
        %s7613 = smul.addr %s7612, 128
        %s7614 = scalar_lea.vmem [#allocation16], %s7613
        // Predicated region
        $region121: #{tpu_custom_call.1} parent=87 // pred_check
          %p7615 = pneg %p418
        $region122: #{tpu_custom_call.1} parent=87 // pred_check_branch
          %7617 = sbr.rel (%p7615) target = $region124
        $region123: #{tpu_custom_call.1} parent=87 // pred_region
          %s7618 = smul.u32 16, %s38
          %7620 = vsyncadd %s7611, 0
          %s7621 = smul.addr %s7618, 8
          %s7622 = scalar_lea.hbm %s17, %s7621
          %s7623 = sshll.u32 %s7614, 4
          %s7624 = int_to_ptr.vmem [resolvable:$true] %s7623
          %s7625 = sshll.u32 %s7622, 4
          %s7626 = int_to_ptr.hbm [resolvable:$true] %s7625
          %7631 = dma.vmem_to_hbm [thread:$0]  %s7624, 2048, %s7626, %s7611, 128, 128, 8
        $region124: #{tpu_custom_call.1} parent=87 // pred_fallthru
          _
      $region88: #{tpu_custom_call.1} parent=5 // pred_fallthru
        _
      %p7632 = scmp.le.s32.totalorder 2, %s33
      // Predicated region
      $region125: #{tpu_custom_call.1} parent=5 // pred_check
        %p7633 = pneg %p7632
      $region126: #{tpu_custom_call.1} parent=5 // pred_check_branch
        %7635 = sbr.rel (%p7633) target = $region128
      $region127: #{tpu_custom_call.1} parent=5 // pred_region
        %s7636 = ssub.s32 %s33, 2
        // Predicated region
        $region129: #{tpu_custom_call.1} parent=127 // pred_check
          %p7637 = pneg %p424
        $region130: #{tpu_custom_call.1} parent=127 // pred_check_branch
          %7639 = sbr.rel (%p7637) target = $region132
        $region131: #{tpu_custom_call.1} parent=127 // pred_region
          %s7640 = sand.u32 %s409, 1
          %s7641 = scalar_lea.sflag [#allocation4], %s7640
          %s7642 = sand.u32 %s409, 1
          %s7643 = smul.addr %s7642, 128
          %s7644 = scalar_lea.vmem [#allocation16], %s7643
          %7646 = dma.done %s7641, 2048
        $region132: #{tpu_custom_call.1} parent=127 // pred_fallthru
          _
      $region128: #{tpu_custom_call.1} parent=5 // pred_fallthru
        _
    $region6: #{tpu_custom_call.1} parent=1 // loop_footer
      %s37 = sadd.s32 1, %s33
    $region7: #{tpu_custom_call.1} parent=1 // loop_footer_branch
      %32 = sbr.rel target = $region3
    $region8: #{tpu_custom_call.1} parent=1 // loop_exit
      _
    %7647 = vsyncpa [#allocation3], 1
    %s7648 = scalar_lea.sflag [#allocation3], 1
    %7649 = vsyncpa %s7648, 1
    %7650 = vsyncpa [#allocation6], 1
    %7651 = vsyncpa [#allocation9], 1
    %7652 = vsyncpa [#allocation12], 1
    %7653 = vsyncpa [#allocation15], 1
    %7654 = vsyncpa [#allocation4], 1
    %s7655 = scalar_lea.sflag [#allocation4], 1
    %7656 = vsyncpa %s7655, 1

</llo_original>
